<compile_context>
chip_gen: v7x
topology: tpu7x:2x2x1
jax: 0.10.0
libtpu: 0.0.40
codegen_flags: <defaults>
</compile_context>

<pallas_src>
import functools

import jax
import jax.numpy as jnp
from jax.experimental import pallas as pl
from jax.experimental.pallas import tpu as pltpu

OUTPUT_SIZE = 23418
HIDDEN_DIM = 128
N_LAYERS = 2
TN = 12288  # 23418 -> padded 24576 -> 2 tiles (even => clean v7x 2-TC split)


def _fused_mlp_kernel(x_ref, *refs, n_hidden):
    """Fused MLP: (Linear + ReLU) * n_hidden -> Linear, one (M, tn) output tile.

    refs layout: (w1, b1, ..., w_h, b_h, w_out, b_out, o_ref).
    Hidden layers are tiny f32 and recomputed per N tile; the final layer is
    bf16 x bf16 on the MXU with an f32 accumulator.
    """
    o_ref = refs[-1]
    h = x_ref[...]
    for i in range(n_hidden):
        w_ref = refs[2 * i]
        b_ref = refs[2 * i + 1]
        h = jnp.dot(h, w_ref[...], preferred_element_type=jnp.float32) + b_ref[...]
        h = jnp.maximum(h, 0.0)
        # Dropout(p=0.12) is identity in eval mode.
    w_ref = refs[2 * n_hidden]
    b_ref = refs[2 * n_hidden + 1]
    out = jnp.dot(h.astype(jnp.bfloat16), w_ref[...],
                  preferred_element_type=jnp.float32)
    out = out + b_ref[...].astype(jnp.float32)
    o_ref[...] = out.astype(o_ref.dtype)


def init_mlp_params(key, layer_sizes):
    """Deterministic init matching nn.Linear's U(-1/sqrt(fan_in), 1/sqrt(fan_in)).

    Weights are stored transposed as (in_features, out_features) so the kernel
    computes y = x @ W + b directly.
    """
    params = []
    for i in range(len(layer_sizes) - 1):
        fan_in, fan_out = layer_sizes[i], layer_sizes[i + 1]
        key, kw, kb = jax.random.split(key, 3)
        bound = 1.0 / (fan_in ** 0.5)
        w = jax.random.uniform(kw, (fan_in, fan_out), jnp.float32, -bound, bound)
        b = jax.random.uniform(kb, (fan_out,), jnp.float32, -bound, bound)
        params.append((w, b))
    return params


def prepare_params(params, *, tn=TN):
    """One-time prep (NOT in the per-forward path):

    - reshape biases to (1, n) rows,
    - zero-pad the final layer's weight/bias out to a multiple of tn,
    - cast the final layer's weight/bias to bf16 (HBM-traffic halving).
    Returns (hidden_layers_f32, (w_out_bf16, b_out_bf16), true_output_size).
    """
    hidden = [(w, b.reshape(1, -1)) for (w, b) in params[:-1]]
    w_out, b_out = params[-1]
    n_out = w_out.shape[1]
    pad = (-n_out) % tn
    if pad:
        w_out = jnp.pad(w_out, ((0, 0), (0, pad)))
        b_out = jnp.pad(b_out, ((0, pad),))
    w_out = w_out.astype(jnp.bfloat16)
    b_out = b_out.reshape(1, -1).astype(jnp.bfloat16)
    return hidden, (w_out, b_out), n_out


def mlp_forward(x, prepared, *, tn=TN):
    """Fused forward pass. x: (M, in_dim) f32 -> (M, OUTPUT_SIZE) f32."""
    hidden, (w_out, b_out), n_out = prepared
    M = x.shape[0]
    Kp, Np = w_out.shape
    n_hidden = len(hidden)
    grid_n = pl.cdiv(n_out, tn)
    assert Np == grid_n * tn  # padded weight covers every (possibly ragged) tile

    # Small / resident operands: full-array blocks, constant index_map.
    in_specs = [pl.BlockSpec(x.shape, lambda j: (0, 0))]
    args = [x]
    for (w, b) in hidden:
        in_specs.append(pl.BlockSpec(w.shape, lambda j: (0, 0)))
        in_specs.append(pl.BlockSpec(b.shape, lambda j: (0, 0)))
        args.extend([w, b])
    # Big final-layer weight / bias: tiled along N only (bf16).
    in_specs.append(pl.BlockSpec((Kp, tn), lambda j: (0, j)))
    in_specs.append(pl.BlockSpec((1, tn), lambda j: (0, j)))
    args.extend([w_out, b_out])

    hidden_flops = sum(2 * M * w.shape[0] * w.shape[1] for (w, _) in hidden)
    bytes_accessed = (
        x.size * x.dtype.itemsize
        + sum(w.size * 4 + b.size * 4 for (w, b) in hidden)
        + w_out.size * w_out.dtype.itemsize
        + b_out.size * b_out.dtype.itemsize
        + M * n_out * 4
    )
    cost = pl.CostEstimate(
        flops=2 * M * Kp * Np + hidden_flops,
        transcendentals=0,
        bytes_accessed=bytes_accessed,
    )

    out = pl.pallas_call(
        functools.partial(_fused_mlp_kernel, n_hidden=n_hidden),
        out_shape=jax.ShapeDtypeStruct((M, n_out), x.dtype),
        grid_spec=pltpu.PrefetchScalarGridSpec(
            num_scalar_prefetch=0,
            grid=(grid_n,),
            in_specs=in_specs,
            out_specs=pl.BlockSpec((M, tn), lambda j: (0, j)),
        ),
        compiler_params=pltpu.CompilerParams(
            dimension_semantics=("parallel",),
        ),
        cost_estimate=cost,
    )(*args)

    return out


def mlp_forward_ref(x, params, *, final_bf16=False):
    """Pure-JAX reference. final_bf16=True mirrors the kernel's bf16 last layer."""
    n = len(params)
    for i, (w, b) in enumerate(params):
        if i == n - 1 and final_bf16:
            x = jnp.dot(x.astype(jnp.bfloat16), w.astype(jnp.bfloat16),
                        preferred_element_type=jnp.float32)
            x = x + b.astype(jnp.bfloat16).astype(jnp.float32)
        else:
            x = x @ w + b
        if i < n - 1:
            x = jnp.maximum(x, 0.0)
    return x


if __name__ == "__main__":
    key = jax.random.PRNGKey(0)
    key, kx = jax.random.split(key)

    batch, in_dim = 8, 64
    layer_sizes = [in_dim] + [HIDDEN_DIM] * N_LAYERS + [OUTPUT_SIZE]

    x = jax.random.normal(kx, (batch, in_dim), jnp.float32)
    params = init_mlp_params(key, layer_sizes)
    prepared = prepare_params(params)  # one-time pad + bf16 cast, outside fwd path

    y = mlp_forward(x, prepared)
    y = jax.block_until_ready(y)

    assert y.shape == (batch, OUTPUT_SIZE), y.shape

    # Tight check vs a reference that uses the same bf16 final matmul.
    y_ref_bf16 = mlp_forward_ref(x, params, final_bf16=True)
    assert jnp.allclose(y, y_ref_bf16, atol=1e-3, rtol=1e-3), \
        "mismatch vs bf16-matched reference"

    # Looser check vs the pure-f32 PyTorch-equivalent reference
    # (bf16 weight compression trades a small amount of accuracy for ~2x HBM).
    y_ref = mlp_forward_ref(x, params, final_bf16=False)
    assert jnp.allclose(y, y_ref, atol=2e-2, rtol=2e-2), "mismatch vs f32 reference"

    print("KERNEL_OK")
</pallas_src>

<mosaic_0001>
module attributes {stable_mosaic.version = 11 : i64} {
  func.func @_fused_mlp_kernel(%arg0: i32, %arg1: memref<8x64xf32, #tpu.memory_space<vmem>>, %arg2: memref<64x128xf32, #tpu.memory_space<vmem>>, %arg3: memref<1x128xf32, #tpu.memory_space<vmem>>, %arg4: memref<128x128xf32, #tpu.memory_space<vmem>>, %arg5: memref<1x128xf32, #tpu.memory_space<vmem>>, %arg6: memref<128x12288xbf16, #tpu.memory_space<vmem>>, %arg7: memref<1x12288xbf16, #tpu.memory_space<vmem>>, %arg8: memref<8x12288xf32, #tpu.memory_space<vmem>>) attributes {dimension_semantics = [#tpu.dimension_semantics<parallel>], iteration_bounds = array<i64: 2>, scalar_prefetch = 0 : i64, scratch_operands = 0 : i64, tpu.core_type = #tpu.core_type<tc>, window_params = [{pipeline_mode = #tpu.pipeline_mode<synchronous>, transform_indices = @transform_0, window_bounds = array<i64: 8, 64>}, {pipeline_mode = #tpu.pipeline_mode<synchronous>, transform_indices = @transform_1, window_bounds = array<i64: 64, 128>}, {pipeline_mode = #tpu.pipeline_mode<synchronous>, transform_indices = @transform_2, window_bounds = array<i64: 1, 128>}, {pipeline_mode = #tpu.pipeline_mode<synchronous>, transform_indices = @transform_3, window_bounds = array<i64: 128, 128>}, {pipeline_mode = #tpu.pipeline_mode<synchronous>, transform_indices = @transform_4, window_bounds = array<i64: 1, 128>}, {transform_indices = @transform_5, window_bounds = array<i64: 128, 12288>}, {transform_indices = @transform_6, window_bounds = array<i64: 1, 12288>}, {transform_indices = @transform_7, window_bounds = array<i64: 8, 12288>}]} {
    %c0 = arith.constant 0 : index
    %c0_0 = arith.constant 0 : index
    %0 = vector.load %arg1[%c0, %c0_0] : memref<8x64xf32, #tpu.memory_space<vmem>>, vector<8x64xf32>
    %c0_1 = arith.constant 0 : index
    %c0_2 = arith.constant 0 : index
    %1 = vector.load %arg2[%c0_1, %c0_2] : memref<64x128xf32, #tpu.memory_space<vmem>>, vector<64x128xf32>
    %cst = arith.constant dense<0.000000e+00> : vector<8x128xf32>
    %2 = tpu.matmul %0, %1, %cst {dimension_numbers = #tpu.dot_dimension_numbers<[1], [0], [0], [1], [0, 0, 1, 1], [], []>} : vector<8x64xf32>, vector<64x128xf32>, vector<8x128xf32> -> vector<8x128xf32>
    %c0_3 = arith.constant 0 : index
    %c0_4 = arith.constant 0 : index
    %3 = vector.load %arg3[%c0_3, %c0_4] : memref<1x128xf32, #tpu.memory_space<vmem>>, vector<1x128xf32>
    %4 = vector.broadcast %3 : vector<1x128xf32> to vector<8x128xf32>
    %5 = arith.addf %2, %4 : vector<8x128xf32>
    %cst_5 = arith.constant 0.000000e+00 : f32
    %6 = vector.broadcast %cst_5 : f32 to vector<8x128xf32>
    %7 = arith.maximumf %5, %6 : vector<8x128xf32>
    %c0_6 = arith.constant 0 : index
    %c0_7 = arith.constant 0 : index
    %8 = vector.load %arg4[%c0_6, %c0_7] : memref<128x128xf32, #tpu.memory_space<vmem>>, vector<128x128xf32>
    %cst_8 = arith.constant dense<0.000000e+00> : vector<8x128xf32>
    %9 = tpu.matmul %7, %8, %cst_8 {dimension_numbers = #tpu.dot_dimension_numbers<[1], [0], [0], [1], [0, 0, 1, 1], [], []>} : vector<8x128xf32>, vector<128x128xf32>, vector<8x128xf32> -> vector<8x128xf32>
    %c0_9 = arith.constant 0 : index
    %c0_10 = arith.constant 0 : index
    %10 = vector.load %arg5[%c0_9, %c0_10] : memref<1x128xf32, #tpu.memory_space<vmem>>, vector<1x128xf32>
    %11 = vector.broadcast %10 : vector<1x128xf32> to vector<8x128xf32>
    %12 = arith.addf %9, %11 : vector<8x128xf32>
    %cst_11 = arith.constant 0.000000e+00 : f32
    %13 = vector.broadcast %cst_11 : f32 to vector<8x128xf32>
    %14 = arith.maximumf %12, %13 : vector<8x128xf32>
    %15 = arith.truncf %14 : vector<8x128xf32> to vector<8x128xbf16>
    %c0_12 = arith.constant 0 : index
    %c0_13 = arith.constant 0 : index
    %16 = vector.load %arg6[%c0_12, %c0_13] : memref<128x12288xbf16, #tpu.memory_space<vmem>>, vector<128x12288xbf16>
    %cst_14 = arith.constant dense<0.000000e+00> : vector<8x12288xf32>
    %17 = tpu.matmul %15, %16, %cst_14 {dimension_numbers = #tpu.dot_dimension_numbers<[1], [0], [0], [1], [0, 0, 1, 1], [], []>} : vector<8x128xbf16>, vector<128x12288xbf16>, vector<8x12288xf32> -> vector<8x12288xf32>
    %c0_15 = arith.constant 0 : index
    %c0_16 = arith.constant 0 : index
    %18 = vector.load %arg7[%c0_15, %c0_16] : memref<1x12288xbf16, #tpu.memory_space<vmem>>, vector<1x12288xbf16>
    %19 = arith.extf %18 : vector<1x12288xbf16> to vector<1x12288xf32>
    %20 = vector.broadcast %19 : vector<1x12288xf32> to vector<8x12288xf32>
    %21 = arith.addf %17, %20 : vector<8x12288xf32>
    %c0_17 = arith.constant 0 : index
    %c0_18 = arith.constant 0 : index
    %22 = vector.load %arg8[%c0_17, %c0_18] : memref<8x12288xf32, #tpu.memory_space<vmem>>, vector<8x12288xf32>
    tpu.vector_store %arg8[%c0_17, %c0_18], %21 {strides = array<i32>} : memref<8x12288xf32, #tpu.memory_space<vmem>>, vector<8x12288xf32>,
    return
  }
  func.func @transform_0(%arg0: i32) -> (i32, i32) {
    %c0_i32 = arith.constant 0 : i32
    %c0_i32_0 = arith.constant 0 : i32
    %c0_i32_1 = arith.constant 0 : i32
    return %c0_i32, %c0_i32_0 : i32, i32
  }
  func.func @transform_1(%arg0: i32) -> (i32, i32) {
    %c0_i32 = arith.constant 0 : i32
    %c0_i32_0 = arith.constant 0 : i32
    %c0_i32_1 = arith.constant 0 : i32
    return %c0_i32, %c0_i32_0 : i32, i32
  }
  func.func @transform_2(%arg0: i32) -> (i32, i32) {
    %c0_i32 = arith.constant 0 : i32
    %c0_i32_0 = arith.constant 0 : i32
    %c0_i32_1 = arith.constant 0 : i32
    return %c0_i32, %c0_i32_0 : i32, i32
  }
  func.func @transform_3(%arg0: i32) -> (i32, i32) {
    %c0_i32 = arith.constant 0 : i32
    %c0_i32_0 = arith.constant 0 : i32
    %c0_i32_1 = arith.constant 0 : i32
    return %c0_i32, %c0_i32_0 : i32, i32
  }
  func.func @transform_4(%arg0: i32) -> (i32, i32) {
    %c0_i32 = arith.constant 0 : i32
    %c0_i32_0 = arith.constant 0 : i32
    %c0_i32_1 = arith.constant 0 : i32
    return %c0_i32, %c0_i32_0 : i32, i32
  }
  func.func @transform_5(%arg0: i32) -> (i32, i32) {
    %c0_i32 = arith.constant 0 : i32
    %c0_i32_0 = arith.constant 0 : i32
    return %c0_i32, %arg0 : i32, i32
  }
  func.func @transform_6(%arg0: i32) -> (i32, i32) {
    %c0_i32 = arith.constant 0 : i32
    %c0_i32_0 = arith.constant 0 : i32
    return %c0_i32, %arg0 : i32, i32
  }
  func.func @transform_7(%arg0: i32) -> (i32, i32) {
    %c0_i32 = arith.constant 0 : i32
    %c0_i32_0 = arith.constant 0 : i32
    return %c0_i32, %arg0 : i32, i32
  }
}

</mosaic_0001>

<llo_original>
// kernel: tpu_custom_call.1
$region0: #{tpu_custom_call.1}
  #allocation0 [shape = 'u32[]', space=smem, size = 0x4, offset = 0x4, fixed_abs, tag = 'smem constant byte address 0x4 - core index']
  #allocation1 [shape = 'u32[144,128]{1,0:T(1,128)}', space=vmem, size = 0x12000, scoped, tag = 'internal scratch']
  %s0 = inlined_call_operand.hbm [shape: f32[8,64], index: 0, kind: input, shape index: {}]
  %s1 = inlined_call_operand.hbm [shape: f32[64,128], index: 1, kind: input, shape index: {}]
  %s2 = inlined_call_operand.hbm [shape: f32[1,128], index: 2, kind: input, shape index: {}]
  %s3 = inlined_call_operand.hbm [shape: f32[128,128], index: 3, kind: input, shape index: {}]
  %s4 = inlined_call_operand.hbm [shape: f32[1,128], index: 4, kind: input, shape index: {}]
  %s5 = inlined_call_operand.hbm [shape: bf16[128,24576], index: 5, kind: input, shape index: {}]
  %s6 = inlined_call_operand.hbm [shape: bf16[1,24576], index: 6, kind: input, shape index: {}]
  %s7 = inlined_call_operand.hbm [shape: f32[8,23418], index: 7, kind: output, shape index: {}]
  %s8 = sld [smem:[#allocation0]]
  $region89: #{tpu_custom_call.1} parent=0
    _
  %s10 = ssub.s32 1, %s8
  %s11 = scalar_select 0, %s10, %s8
  $region1: #{tpu_custom_call.1} parent=0
    #allocation2 [shape = 'u8[4096]{0}', space=vmem, size = 0x1000, scoped, tag = 'input window, operand 0, single buffered']
    #allocation3 [shape = 's32[2]{0}', space=sflag, size = 0x8, scoped, tag = 'scoped memory for tpu_custom_call.1']
    #allocation4 [shape = 's32[2]{0}', space=sflag, size = 0x8, scoped, tag = 'scoped memory for tpu_custom_call.1']
    #allocation5 [shape = 'u8[32768]{0}', space=vmem, size = 0x8000, scoped, tag = 'input window, operand 1, single buffered']
    #allocation6 [shape = 's32[1]{0}', space=sflag, size = 0x4, scoped, tag = 'scoped memory for tpu_custom_call.1']
    #allocation7 [shape = 'u8[512]{0}', space=vmem, size = 0x400, scoped, tag = 'input window, operand 2, single buffered']
    #allocation8 [shape = 'u8[65536]{0}', space=vmem, size = 0x10000, scoped, tag = 'input window, operand 3, single buffered']
    #allocation9 [shape = 's32[1]{0}', space=sflag, size = 0x4, scoped, tag = 'scoped memory for tpu_custom_call.1']
    #allocation10 [shape = 'u8[512]{0}', space=vmem, size = 0x400, scoped, tag = 'input window, operand 4, single buffered']
    #allocation11 [shape = 'u8[6291456]{0}', space=vmem, size = 0x600000, scoped, tag = 'input window, operand 5']
    #allocation12 [shape = 's32[2]{0}', space=sflag, size = 0x8, scoped, tag = 'scoped memory for tpu_custom_call.1']
    #allocation13 [shape = 'u8[98304]{0}', space=vmem, size = 0x18000, scoped, tag = 'input window, operand 6']
    #allocation14 [shape = 'u8[786432]{0}', space=vmem, size = 0xc0000, scoped, tag = 'output window, operand 0']
    %12 = vsyncpa [#allocation3], 0
    %13 = vsyncpa [#allocation6], 0
    %14 = vsyncpa [#allocation9], 0
    %15 = vsyncpa [#allocation12], 0
    %s16 = scalar_lea.sflag [#allocation12], 1
    %17 = vsyncpa %s16, 0
    %18 = vsyncpa [#allocation4], 0
    %s19 = scalar_lea.sflag [#allocation4], 1
    %20 = vsyncpa %s19, 0
    loop: start=0, step=1, limit=4
    $region2: #{tpu_custom_call.1} parent=1 // loop_pre_header
      _
    $region3: #{tpu_custom_call.1} parent=1 // loop_header
      %s22 = sphi 0, %s26
      %p23 = scmp.ge.s32.totalorder %s22, 4
      %s30 = sphi 0, %s30
      %s32 = sphi 0, %s30
      %s33 = sphi 0, %s32
      %s47 = sphi 0, %s33
      %s51 = sphi 0, %s51
      %s53 = sphi 0, %s51
      %s54 = sphi 0, %s53
      %s68 = sphi 0, %s54
      %s72 = sphi 0, %s72
      %s74 = sphi 0, %s72
      %s75 = sphi 0, %s74
      %s89 = sphi 0, %s75
      %s93 = sphi 0, %s93
      %s95 = sphi 0, %s93
      %s96 = sphi 0, %s95
      %s110 = sphi 0, %s96
      %s114 = sphi 0, %s114
      %s116 = sphi 0, %s114
      %s117 = sphi 0, %s116
      %s131 = sphi 0, %s117
      %s137 = sphi 0, %s139
      %s140 = sphi 0, %s137
      %s141 = sphi 0, %s140
      %s157 = sphi 0, %s141
      %s163 = sphi 0, %s165
      %s166 = sphi 0, %s163
      %s167 = sphi 0, %s166
      %s183 = sphi 0, %s167
      %s189 = sphi 0, %s191
      %s192 = sphi 0, %s189
      %s193 = sphi 0, %s192
      %s209 = sphi 0, %s193
    $region4: #{tpu_custom_call.1} parent=1 // loop_header_branch
      %25 = sbr.rel (%p23) target = $region8
    $region5: #{tpu_custom_call.1} parent=1 // loop_body
      %s27 = ssub.s32 %s22, 1
      %s28 = ssub.s32 %s22, 2
      %s29 = sadd.s32 %s22, 1
      %s31 = sadd.s32 %s30, 1
      %p34 = scmp.eq.s32.totalorder %s22, 1
      %p35 = scmp.ne.s32.totalorder %s30, %s32
      %p36 = scmp.eq.s32.totalorder %s22, 0
      %p37 = por %p35, %p36
      %p38 = scmp.ne.s32.totalorder %s30, %s32
      %p39 = scmp.eq.s32.totalorder %s27, 1
      %p40 = por %p38, %p39
      %p41 = scmp.ne.s32.totalorder %s32, %s33
      %p42 = scmp.eq.s32.totalorder %s27, 0
      %p43 = por %p41, %p42
      %p44 = scmp.ne.s32.totalorder %s32, %s33
      %p45 = scmp.eq.s32.totalorder %s28, 1
      %p46 = por %p44, %p45
      %p48 = scmp.ne.s32.totalorder %s33, %s47
      %p49 = scmp.eq.s32.totalorder %s28, 0
      %p50 = por %p48, %p49
      %s52 = sadd.s32 %s51, 1
      %p55 = scmp.eq.s32.totalorder %s22, 1
      %p56 = scmp.ne.s32.totalorder %s51, %s53
      %p57 = scmp.eq.s32.totalorder %s22, 0
      %p58 = por %p56, %p57
      %p59 = scmp.ne.s32.totalorder %s51, %s53
      %p60 = scmp.eq.s32.totalorder %s27, 1
      %p61 = por %p59, %p60
      %p62 = scmp.ne.s32.totalorder %s53, %s54
      %p63 = scmp.eq.s32.totalorder %s27, 0
      %p64 = por %p62, %p63
      %p65 = scmp.ne.s32.totalorder %s53, %s54
      %p66 = scmp.eq.s32.totalorder %s28, 1
      %p67 = por %p65, %p66
      %p69 = scmp.ne.s32.totalorder %s54, %s68
      %p70 = scmp.eq.s32.totalorder %s28, 0
      %p71 = por %p69, %p70
      %s73 = sadd.s32 %s72, 1
      %p76 = scmp.eq.s32.totalorder %s22, 1
      %p77 = scmp.ne.s32.totalorder %s72, %s74
      %p78 = scmp.eq.s32.totalorder %s22, 0
      %p79 = por %p77, %p78
      %p80 = scmp.ne.s32.totalorder %s72, %s74
      %p81 = scmp.eq.s32.totalorder %s27, 1
      %p82 = por %p80, %p81
      %p83 = scmp.ne.s32.totalorder %s74, %s75
      %p84 = scmp.eq.s32.totalorder %s27, 0
      %p85 = por %p83, %p84
      %p86 = scmp.ne.s32.totalorder %s74, %s75
      %p87 = scmp.eq.s32.totalorder %s28, 1
      %p88 = por %p86, %p87
      %p90 = scmp.ne.s32.totalorder %s75, %s89
      %p91 = scmp.eq.s32.totalorder %s28, 0
      %p92 = por %p90, %p91
      %s94 = sadd.s32 %s93, 1
      %p97 = scmp.eq.s32.totalorder %s22, 1
      %p98 = scmp.ne.s32.totalorder %s93, %s95
      %p99 = scmp.eq.s32.totalorder %s22, 0
      %p100 = por %p98, %p99
      %p101 = scmp.ne.s32.totalorder %s93, %s95
      %p102 = scmp.eq.s32.totalorder %s27, 1
      %p103 = por %p101, %p102
      %p104 = scmp.ne.s32.totalorder %s95, %s96
      %p105 = scmp.eq.s32.totalorder %s27, 0
      %p106 = por %p104, %p105
      %p107 = scmp.ne.s32.totalorder %s95, %s96
      %p108 = scmp.eq.s32.totalorder %s28, 1
      %p109 = por %p107, %p108
      %p111 = scmp.ne.s32.totalorder %s96, %s110
      %p112 = scmp.eq.s32.totalorder %s28, 0
      %p113 = por %p111, %p112
      %s115 = sadd.s32 %s114, 1
      %p118 = scmp.eq.s32.totalorder %s22, 1
      %p119 = scmp.ne.s32.totalorder %s114, %s116
      %p120 = scmp.eq.s32.totalorder %s22, 0
      %p121 = por %p119, %p120
      %p122 = scmp.ne.s32.totalorder %s114, %s116
      %p123 = scmp.eq.s32.totalorder %s27, 1
      %p124 = por %p122, %p123
      %p125 = scmp.ne.s32.totalorder %s116, %s117
      %p126 = scmp.eq.s32.totalorder %s27, 0
      %p127 = por %p125, %p126
      %p128 = scmp.ne.s32.totalorder %s116, %s117
      %p129 = scmp.eq.s32.totalorder %s28, 1
      %p130 = por %p128, %p129
      %p132 = scmp.ne.s32.totalorder %s117, %s131
      %p133 = scmp.eq.s32.totalorder %s28, 0
      %p134 = por %p132, %p133
      %s135 = ssub.s32 %s22, %s29
      %p136 = scmp.eq.s32.totalorder %s135, 0
      %s138 = sadd.s32 %s137, 1
      %s139 = scalar_select %p136, %s137, %s138
      %p142 = pneg %p136
      %p143 = scmp.eq.s32.totalorder %s22, 1
      %p144 = por %p142, %p143
      %p145 = scmp.ne.s32.totalorder %s137, %s140
      %p146 = scmp.eq.s32.totalorder %s22, 0
      %p147 = por %p145, %p146
      %p148 = scmp.ne.s32.totalorder %s137, %s140
      %p149 = scmp.eq.s32.totalorder %s27, 1
      %p150 = por %p148, %p149
      %p151 = scmp.ne.s32.totalorder %s140, %s141
      %p152 = scmp.eq.s32.totalorder %s27, 0
      %p153 = por %p151, %p152
      %p154 = scmp.ne.s32.totalorder %s140, %s141
      %p155 = scmp.eq.s32.totalorder %s28, 1
      %p156 = por %p154, %p155
      %p158 = scmp.ne.s32.totalorder %s141, %s157
      %p159 = scmp.eq.s32.totalorder %s28, 0
      %p160 = por %p158, %p159
      %s161 = ssub.s32 %s22, %s29
      %p162 = scmp.eq.s32.totalorder %s161, 0
      %s164 = sadd.s32 %s163, 1
      %s165 = scalar_select %p162, %s163, %s164
      %p168 = pneg %p162
      %p169 = scmp.eq.s32.totalorder %s22, 1
      %p170 = por %p168, %p169
      %p171 = scmp.ne.s32.totalorder %s163, %s166
      %p172 = scmp.eq.s32.totalorder %s22, 0
      %p173 = por %p171, %p172
      %p174 = scmp.ne.s32.totalorder %s163, %s166
      %p175 = scmp.eq.s32.totalorder %s27, 1
      %p176 = por %p174, %p175
      %p177 = scmp.ne.s32.totalorder %s166, %s167
      %p178 = scmp.eq.s32.totalorder %s27, 0
      %p179 = por %p177, %p178
      %p180 = scmp.ne.s32.totalorder %s166, %s167
      %p181 = scmp.eq.s32.totalorder %s28, 1
      %p182 = por %p180, %p181
      %p184 = scmp.ne.s32.totalorder %s167, %s183
      %p185 = scmp.eq.s32.totalorder %s28, 0
      %p186 = por %p184, %p185
      %s187 = ssub.s32 %s22, %s29
      %p188 = scmp.eq.s32.totalorder %s187, 0
      %s190 = sadd.s32 %s189, 1
      %s191 = scalar_select %p188, %s189, %s190
      %p194 = pneg %p188
      %p195 = scmp.eq.s32.totalorder %s22, 1
      %p196 = por %p194, %p195
      %p197 = scmp.ne.s32.totalorder %s189, %s192
      %p198 = scmp.eq.s32.totalorder %s22, 0
      %p199 = por %p197, %p198
      %p200 = scmp.ne.s32.totalorder %s189, %s192
      %p201 = scmp.eq.s32.totalorder %s27, 1
      %p202 = por %p200, %p201
      %p203 = scmp.ne.s32.totalorder %s192, %s193
      %p204 = scmp.eq.s32.totalorder %s27, 0
      %p205 = por %p203, %p204
      %p206 = scmp.ne.s32.totalorder %s192, %s193
      %p207 = scmp.eq.s32.totalorder %s28, 1
      %p208 = por %p206, %p207
      %p210 = scmp.ne.s32.totalorder %s193, %s209
      %p211 = scmp.eq.s32.totalorder %s28, 0
      %p212 = por %p210, %p211
      %p213 = scmp.le.s32.totalorder 1, %s22
      %p214 = scmp.lt.s32.totalorder %s22, 3
      %p215 = pnand %p213, %p214
      %p216 = pneg %p215
      // Predicated region
      $region9: #{tpu_custom_call.1} parent=5 // pred_check
        _
      $region10: #{tpu_custom_call.1} parent=5 // pred_check_branch
        %218 = sbr.rel (%p215) target = $region12
      $region11: #{tpu_custom_call.1} parent=5 // pred_region
        %s219 = ssub.s32 %s22, 1
        // Predicated region
        $region13: #{tpu_custom_call.1} parent=11 // pred_check
          %p220 = pneg %p43
        $region14: #{tpu_custom_call.1} parent=11 // pred_check_branch
          %222 = sbr.rel (%p220) target = $region16
        $region15: #{tpu_custom_call.1} parent=11 // pred_region
          %s224 = ssub.s32 128, 128
          %225 = vsyncadd [#allocation3], %s224
          %s227 = sshll.u32 [#allocation2], 4
          %s228 = int_to_ptr.vmem [resolvable:$true] %s227
          %230 = dma.hbm_to_vmem [thread:$0]  %s0, 128, %s228, [#allocation3]
        $region16: #{tpu_custom_call.1} parent=11 // pred_fallthru
          _
        // Predicated region
        $region17: #{tpu_custom_call.1} parent=11 // pred_check
          %p231 = pneg %p64
        $region18: #{tpu_custom_call.1} parent=11 // pred_check_branch
          %233 = sbr.rel (%p231) target = $region20
        $region19: #{tpu_custom_call.1} parent=11 // pred_region
          %s235 = ssub.s32 1024, 1024
          %236 = vsyncadd [#allocation6], %s235
          %s237 = sshll.u32 [#allocation5], 4
          %s238 = int_to_ptr.vmem [resolvable:$true] %s237
          %243 = dma.hbm_to_vmem [thread:$0]  %s1, 1024, %s238, [#allocation6], 128, 128, 8
        $region20: #{tpu_custom_call.1} parent=11 // pred_fallthru
          _
        // Predicated region
        $region21: #{tpu_custom_call.1} parent=11 // pred_check
          %p244 = pneg %p85
        $region22: #{tpu_custom_call.1} parent=11 // pred_check_branch
          %246 = sbr.rel (%p244) target = $region24
        $region23: #{tpu_custom_call.1} parent=11 // pred_region
          %s248 = ssub.s32 16, 16
          %249 = vsyncadd [#allocation6], %s248
          %s251 = sshll.u32 [#allocation7], 4
          %s252 = int_to_ptr.vmem [resolvable:$true] %s251
          %254 = dma.hbm_to_vmem [thread:$0]  %s2, 16, %s252, [#allocation6]
        $region24: #{tpu_custom_call.1} parent=11 // pred_fallthru
          _
        // Predicated region
        $region25: #{tpu_custom_call.1} parent=11 // pred_check
          %p255 = pneg %p106
        $region26: #{tpu_custom_call.1} parent=11 // pred_check_branch
          %257 = sbr.rel (%p255) target = $region28
        $region27: #{tpu_custom_call.1} parent=11 // pred_region
          %s259 = ssub.s32 2048, 2048
          %260 = vsyncadd [#allocation9], %s259
          %s261 = sshll.u32 [#allocation8], 4
          %s262 = int_to_ptr.vmem [resolvable:$true] %s261
          %267 = dma.hbm_to_vmem [thread:$0]  %s3, 2048, %s262, [#allocation9], 128, 128, 8
        $region28: #{tpu_custom_call.1} parent=11 // pred_fallthru
          _
        // Predicated region
        $region29: #{tpu_custom_call.1} parent=11 // pred_check
          %p268 = pneg %p127
        $region30: #{tpu_custom_call.1} parent=11 // pred_check_branch
          %270 = sbr.rel (%p268) target = $region32
        $region31: #{tpu_custom_call.1} parent=11 // pred_region
          %s272 = ssub.s32 16, 16
          %273 = vsyncadd [#allocation9], %s272
          %s275 = sshll.u32 [#allocation10], 4
          %s276 = int_to_ptr.vmem [resolvable:$true] %s275
          %278 = dma.hbm_to_vmem [thread:$0]  %s4, 16, %s276, [#allocation9]
        $region32: #{tpu_custom_call.1} parent=11 // pred_fallthru
          _
      $region12: #{tpu_custom_call.1} parent=5 // pred_fallthru
        _
      %p279 = scmp.lt.s32.totalorder %s22, 2
      // Predicated region
      $region33: #{tpu_custom_call.1} parent=5 // pred_check
        %p280 = pneg %p279
      $region34: #{tpu_custom_call.1} parent=5 // pred_check_branch
        %282 = sbr.rel (%p280) target = $region36
      $region35: #{tpu_custom_call.1} parent=5 // pred_region
        // Predicated region
        $region37: #{tpu_custom_call.1} parent=35 // pred_check
          %p283 = pneg %p147
        $region38: #{tpu_custom_call.1} parent=35 // pred_check_branch
          %285 = sbr.rel (%p283) target = $region40
        $region39: #{tpu_custom_call.1} parent=35 // pred_region
          %s286 = sand.u32 %s22, 1
          %s287 = scalar_lea.sflag [#allocation12], %s286
          %s288 = sand.u32 %s137, 1
          %s289 = smul.addr %s288, 6144
          %s290 = scalar_lea.vmem [#allocation11], %s289
          %s291 = smul.u32 96, %s22
          %s293 = ssub.s32 98304, 98304
          %294 = vsyncadd %s287, %s293
          %s295 = smul.addr %s291, 64
          %s296 = scalar_lea.hbm %s5, %s295
          %s297 = sshll.u32 %s290, 4
          %s298 = int_to_ptr.vmem [resolvable:$true] %s297
          %303 = dma.hbm_to_vmem [thread:$0]  %s296, 98304, %s298, %s287, 12288, 6144, 384
        $region40: #{tpu_custom_call.1} parent=35 // pred_fallthru
          _
        // Predicated region
        $region41: #{tpu_custom_call.1} parent=35 // pred_check
          %p304 = pneg %p173
        $region42: #{tpu_custom_call.1} parent=35 // pred_check_branch
          %306 = sbr.rel (%p304) target = $region44
        $region43: #{tpu_custom_call.1} parent=35 // pred_region
          %s307 = sand.u32 %s22, 1
          %s308 = scalar_lea.sflag [#allocation12], %s307
          %s309 = sand.u32 %s163, 1
          %s310 = smul.addr %s309, 96
          %s311 = scalar_lea.vmem [#allocation13], %s310
          %s312 = smul.u32 96, %s22
          %s314 = ssub.s32 1536, 1536
          %315 = vsyncadd %s308, %s314
          %s316 = smul.addr %s312, 16
          %s317 = scalar_lea.hbm %s6, %s316
          %s319 = sshll.u32 %s311, 4
          %s320 = int_to_ptr.vmem [resolvable:$true] %s319
          %322 = dma.hbm_to_vmem [thread:$0]  %s317, 1536, %s320, %s308
        $region44: #{tpu_custom_call.1} parent=35 // pred_fallthru
          _
      $region36: #{tpu_custom_call.1} parent=5 // pred_fallthru
        _
      %p323 = scmp.le.s32.totalorder 1, %s22
      %p324 = scmp.lt.s32.totalorder %s22, 3
      %p325 = pnand %p323, %p324
      %p326 = pneg %p325
      // Predicated region
      $region45: #{tpu_custom_call.1} parent=5 // pred_check
        _
      $region46: #{tpu_custom_call.1} parent=5 // pred_check_branch
        %328 = sbr.rel (%p325) target = $region48
      $region47: #{tpu_custom_call.1} parent=5 // pred_region
        %s329 = ssub.s32 %s22, 1
        // Predicated region
        $region49: #{tpu_custom_call.1} parent=47 // pred_check
          %p330 = pneg %p43
        $region50: #{tpu_custom_call.1} parent=47 // pred_check_branch
          %332 = sbr.rel (%p330) target = $region52
        $region51: #{tpu_custom_call.1} parent=47 // pred_region
          %333 = dma.done [#allocation3], 128
        $region52: #{tpu_custom_call.1} parent=47 // pred_fallthru
          _
        // Predicated region
        $region53: #{tpu_custom_call.1} parent=47 // pred_check
          %p334 = pneg %p64
        $region54: #{tpu_custom_call.1} parent=47 // pred_check_branch
          %336 = sbr.rel (%p334) target = $region56
        $region55: #{tpu_custom_call.1} parent=47 // pred_region
          %337 = dma.done [#allocation6], 1024
        $region56: #{tpu_custom_call.1} parent=47 // pred_fallthru
          _
        // Predicated region
        $region57: #{tpu_custom_call.1} parent=47 // pred_check
          %p338 = pneg %p85
        $region58: #{tpu_custom_call.1} parent=47 // pred_check_branch
          %340 = sbr.rel (%p338) target = $region60
        $region59: #{tpu_custom_call.1} parent=47 // pred_region
          %341 = dma.done [#allocation6], 16
        $region60: #{tpu_custom_call.1} parent=47 // pred_fallthru
          _
        // Predicated region
        $region61: #{tpu_custom_call.1} parent=47 // pred_check
          %p342 = pneg %p106
        $region62: #{tpu_custom_call.1} parent=47 // pred_check_branch
          %344 = sbr.rel (%p342) target = $region64
        $region63: #{tpu_custom_call.1} parent=47 // pred_region
          %345 = dma.done [#allocation9], 2048
        $region64: #{tpu_custom_call.1} parent=47 // pred_fallthru
          _
        // Predicated region
        $region65: #{tpu_custom_call.1} parent=47 // pred_check
          %p346 = pneg %p127
        $region66: #{tpu_custom_call.1} parent=47 // pred_check_branch
          %348 = sbr.rel (%p346) target = $region68
        $region67: #{tpu_custom_call.1} parent=47 // pred_region
          %349 = dma.done [#allocation9], 16
        $region68: #{tpu_custom_call.1} parent=47 // pred_fallthru
          _
        %s350 = sand.u32 %s27, 1
        %s351 = scalar_lea.sflag [#allocation12], %s350
        %s352 = sand.u32 %s140, 1
        %s353 = smul.addr %s352, 6144
        %s354 = scalar_lea.vmem [#allocation11], %s353
        // Predicated region
        $region69: #{tpu_custom_call.1} parent=47 // pred_check
          %p355 = pneg %p153
        $region70: #{tpu_custom_call.1} parent=47 // pred_check_branch
          %357 = sbr.rel (%p355) target = $region72
        $region71: #{tpu_custom_call.1} parent=47 // pred_region
          %358 = dma.done %s351, 98304
        $region72: #{tpu_custom_call.1} parent=47 // pred_fallthru
          _
        %s359 = sand.u32 %s27, 1
        %s360 = scalar_lea.sflag [#allocation12], %s359
        %s361 = sand.u32 %s166, 1
        %s362 = smul.addr %s361, 96
        %s363 = scalar_lea.vmem [#allocation13], %s362
        // Predicated region
        $region73: #{tpu_custom_call.1} parent=47 // pred_check
          %p364 = pneg %p179
        $region74: #{tpu_custom_call.1} parent=47 // pred_check_branch
          %366 = sbr.rel (%p364) target = $region76
        $region75: #{tpu_custom_call.1} parent=47 // pred_region
          %367 = dma.done %s360, 1536
        $region76: #{tpu_custom_call.1} parent=47 // pred_fallthru
          _
        %p368 = pneg %p43
        %p369 = pneg %p40
        %p370 = pneg %p64
        %p371 = pneg %p61
        %p372 = pneg %p85
        %p373 = pneg %p82
        %p374 = pneg %p106
        %p375 = pneg %p103
        %p376 = pneg %p127
        %p377 = pneg %p124
        %s378 = sand.u32 %s27, 1
        %s379 = scalar_lea.sflag [#allocation12], %s378
        %s380 = sand.u32 %s140, 1
        %s381 = smul.addr %s380, 6144
        %s382 = scalar_lea.vmem [#allocation11], %s381
        %p383 = pneg %p153
        %p384 = pneg %p150
        %s385 = sand.u32 %s27, 1
        %s386 = scalar_lea.sflag [#allocation12], %s385
        %s387 = sand.u32 %s166, 1
        %s388 = smul.addr %s387, 96
        %s389 = scalar_lea.vmem [#allocation13], %s388
        %p390 = pneg %p179
        %p391 = pneg %p176
        %p392 = pneg %p205
        %p393 = pneg %p202
        %s394 = sand.u32 %s192, 1
        %s395 = scalar_lea.sflag [#allocation4], %s394
        %s396 = sand.u32 %s192, 1
        %s397 = smul.addr %s396, 768
        %s398 = scalar_lea.vmem [#allocation14], %s397
        %s399 = smul.u32 96, %s27
        %s400 = smul.u32 96, %s27
        %s401 = smul.u32 96, %s27
        %s402 = ssub.s32 183, %s401
        %p403 = scmp.lt.s32.totalorder %s402, 96
        %s404 = scalar_select %p403, %s402, 96
        %s405 = smul.u32 128, %s404
        %v407 = vld [vmem:[#allocation2] sm:$0xff]
        %v408 = vld [vmem:[#allocation5] sm:$0xff]
        %v409 = vld [vmem:[#allocation5 + $0x8] sm:$0xff]
        %v410 = vld [vmem:[#allocation5 + $0x10] sm:$0xff]
        %v411 = vld [vmem:[#allocation5 + $0x18] sm:$0xff]
        %v412 = vld [vmem:[#allocation5 + $0x20] sm:$0xff]
        %v413 = vld [vmem:[#allocation5 + $0x28] sm:$0xff]
        %v414 = vld [vmem:[#allocation5 + $0x30] sm:$0xff]
        %v415 = vld [vmem:[#allocation5 + $0x38] sm:$0xff]
        %v416 = vld [vmem:[#allocation7] sm:$0x1]
        %v418 = vlaneseq
        %v419 = vshrl.u32 %v418, 7
        %v420 = vsub.s32 0, %v419
        %v421 = vrot.slane %v416, %v420
        %vm423 = vcmask 523264
        %v425 = vsel %vm423, %v407, 0
        %427 = vmatprep.subr.mxu0 0.0
        %428 = vmatpush1.msra.mxu0 %v408
        %429 = vmatprep.subr.mxu0 0.0
        %430 = vmatpush1.msra.mxu0 %v409
        %431 = vmatprep.subr.mxu0 0.0
        %432 = vmatpush1.msra.mxu0 %v410
        %433 = vmatprep.subr.mxu0 0.0
        %434 = vmatpush1.msra.mxu0 %v411
        %435 = vmatprep.subr.mxu0 0.0
        %436 = vmatpush1.msra.mxu0 %v412
        %437 = vmatprep.subr.mxu0 0.0
        %438 = vmatpush1.msra.mxu0 %v413
        %439 = vmatprep.subr.mxu0 0.0
        %440 = vmatpush1.msra.mxu0 %v414
        %441 = vmatprep.subr.mxu0 0.0
        %442 = vmatpush1.msra.mxu0 %v415
        %443 = vmatprep.subr.mxu0 0.0
        %444 = vmatpush1.msra.mxu0 0.0
        %445 = vmatprep.subr.mxu0 0.0
        %446 = vmatpush1.msra.mxu0 0.0
        %447 = vmatprep.subr.mxu0 0.0
        %448 = vmatpush1.msra.mxu0 0.0
        %449 = vmatprep.subr.mxu0 0.0
        %450 = vmatpush1.msra.mxu0 0.0
        %451 = vmatprep.subr.mxu0 0.0
        %452 = vmatpush1.msra.mxu0 0.0
        %453 = vmatprep.subr.mxu0 0.0
        %454 = vmatpush1.msra.mxu0 0.0
        %455 = vmatprep.subr.mxu0 0.0
        %456 = vmatpush1.msra.mxu0 0.0
        %457 = vmatprep.subr.mxu0 0.0
        %458 = vmatpush1.msra.mxu0 0.0
        %459 = vmatprep.subr.mxu0 0.0
        %460 = vmatpush1.msra.mxu0 0.0
        %461 = vmatprep.subr.mxu0 0.0
        %462 = vmatpush1.msra.mxu0 0.0
        %463 = vmatprep.subr.mxu0 0.0
        %464 = vmatpush1.msra.mxu0 0.0
        %465 = vmatprep.subr.mxu0 0.0
        %466 = vmatpush1.msra.mxu0 0.0
        %467 = vmatprep.subr.mxu0 0.0
        %468 = vmatpush1.msra.mxu0 0.0
        %469 = vmatprep.subr.mxu0 0.0
        %470 = vmatpush1.msra.mxu0 0.0
        %471 = vmatprep.subr.mxu0 0.0
        %472 = vmatpush1.msra.mxu0 0.0
        %473 = vmatprep.subr.mxu0 0.0
        %474 = vmatpush1.msra.mxu0 0.0
        %475 = vmatprep.subr.mxu0 0.0
        %476 = vmatpush1.msra.mxu0 0.0
        %477 = vmatprep.subr.mxu0 0.0
        %478 = vmatpush1.msra.mxu0 0.0
        %479 = vmatprep.subr.mxu0 0.0
        %480 = vmatpush1.msra.mxu0 0.0
        %481 = vmatprep.subr.mxu0 0.0
        %482 = vmatpush1.msra.mxu0 0.0
        %483 = vmatprep.subr.mxu0 0.0
        %484 = vmatpush1.msra.mxu0 0.0
        %485 = vmatprep.subr.mxu0 0.0
        %486 = vmatpush1.msra.mxu0 0.0
        %487 = vmatprep.subr.mxu0 0.0
        %488 = vmatpush1.msra.mxu0 0.0
        %489 = vmatprep.subr.mxu0 0.0
        %490 = vmatpush1.msra.mxu0 0.0
        %491 = vmatprep.mubr.f32.mxu0 0.0
        %492 = vmatmul.mubr.f32.gmra.mrb[0].mxu0 %v425
        %v493 = vpop.f32.mrb[0].mxu0
        %v494 = vadd.f32 %v421, %v493
        %v495 = vpop.f32.mrb[0].mxu0
        %496 = vdwg.mxu0
        %v497 = vmax.f32 %v494, 0.0
        %v498 = vld [vmem:[#allocation8] sm:$0xff]
        %v499 = vld [vmem:[#allocation8 + $0x8] sm:$0xff]
        %v500 = vld [vmem:[#allocation8 + $0x10] sm:$0xff]
        %v501 = vld [vmem:[#allocation8 + $0x18] sm:$0xff]
        %v502 = vld [vmem:[#allocation8 + $0x20] sm:$0xff]
        %v503 = vld [vmem:[#allocation8 + $0x28] sm:$0xff]
        %v504 = vld [vmem:[#allocation8 + $0x30] sm:$0xff]
        %v505 = vld [vmem:[#allocation8 + $0x38] sm:$0xff]
        %v506 = vld [vmem:[#allocation8 + $0x40] sm:$0xff]
        %v507 = vld [vmem:[#allocation8 + $0x48] sm:$0xff]
        %v508 = vld [vmem:[#allocation8 + $0x50] sm:$0xff]
        %v509 = vld [vmem:[#allocation8 + $0x58] sm:$0xff]
        %v510 = vld [vmem:[#allocation8 + $0x60] sm:$0xff]
        %v511 = vld [vmem:[#allocation8 + $0x68] sm:$0xff]
        %v512 = vld [vmem:[#allocation8 + $0x70] sm:$0xff]
        %v513 = vld [vmem:[#allocation8 + $0x78] sm:$0xff]
        %v514 = vld [vmem:[#allocation10] sm:$0x1]
        %v516 = vlaneseq
        %v517 = vshrl.u32 %v516, 7
        %v518 = vsub.s32 0, %v517
        %v519 = vrot.slane %v514, %v518
        %521 = vmatprep.subr.mxu0 0.0
        %522 = vmatpush1.msra.mxu0 %v498
        %523 = vmatprep.subr.mxu0 0.0
        %524 = vmatpush1.msra.mxu0 %v499
        %525 = vmatprep.subr.mxu0 0.0
        %526 = vmatpush1.msra.mxu0 %v500
        %527 = vmatprep.subr.mxu0 0.0
        %528 = vmatpush1.msra.mxu0 %v501
        %529 = vmatprep.subr.mxu0 0.0
        %530 = vmatpush1.msra.mxu0 %v502
        %531 = vmatprep.subr.mxu0 0.0
        %532 = vmatpush1.msra.mxu0 %v503
        %533 = vmatprep.subr.mxu0 0.0
        %534 = vmatpush1.msra.mxu0 %v504
        %535 = vmatprep.subr.mxu0 0.0
        %536 = vmatpush1.msra.mxu0 %v505
        %537 = vmatprep.subr.mxu0 0.0
        %538 = vmatpush1.msra.mxu0 %v506
        %539 = vmatprep.subr.mxu0 0.0
        %540 = vmatpush1.msra.mxu0 %v507
        %541 = vmatprep.subr.mxu0 0.0
        %542 = vmatpush1.msra.mxu0 %v508
        %543 = vmatprep.subr.mxu0 0.0
        %544 = vmatpush1.msra.mxu0 %v509
        %545 = vmatprep.subr.mxu0 0.0
        %546 = vmatpush1.msra.mxu0 %v510
        %547 = vmatprep.subr.mxu0 0.0
        %548 = vmatpush1.msra.mxu0 %v511
        %549 = vmatprep.subr.mxu0 0.0
        %550 = vmatpush1.msra.mxu0 %v512
        %551 = vmatprep.subr.mxu0 0.0
        %552 = vmatpush1.msra.mxu0 %v513
        %553 = vmatprep.subr.mxu0 0.0
        %554 = vmatpush1.msra.mxu0 0.0
        %555 = vmatprep.subr.mxu0 0.0
        %556 = vmatpush1.msra.mxu0 0.0
        %557 = vmatprep.subr.mxu0 0.0
        %558 = vmatpush1.msra.mxu0 0.0
        %559 = vmatprep.subr.mxu0 0.0
        %560 = vmatpush1.msra.mxu0 0.0
        %561 = vmatprep.subr.mxu0 0.0
        %562 = vmatpush1.msra.mxu0 0.0
        %563 = vmatprep.subr.mxu0 0.0
        %564 = vmatpush1.msra.mxu0 0.0
        %565 = vmatprep.subr.mxu0 0.0
        %566 = vmatpush1.msra.mxu0 0.0
        %567 = vmatprep.subr.mxu0 0.0
        %568 = vmatpush1.msra.mxu0 0.0
        %569 = vmatprep.subr.mxu0 0.0
        %570 = vmatpush1.msra.mxu0 0.0
        %571 = vmatprep.subr.mxu0 0.0
        %572 = vmatpush1.msra.mxu0 0.0
        %573 = vmatprep.subr.mxu0 0.0
        %574 = vmatpush1.msra.mxu0 0.0
        %575 = vmatprep.subr.mxu0 0.0
        %576 = vmatpush1.msra.mxu0 0.0
        %577 = vmatprep.subr.mxu0 0.0
        %578 = vmatpush1.msra.mxu0 0.0
        %579 = vmatprep.subr.mxu0 0.0
        %580 = vmatpush1.msra.mxu0 0.0
        %581 = vmatprep.subr.mxu0 0.0
        %582 = vmatpush1.msra.mxu0 0.0
        %583 = vmatprep.subr.mxu0 0.0
        %584 = vmatpush1.msra.mxu0 0.0
        %585 = vmatprep.mubr.f32.mxu0 0.0
        %586 = vmatmul.mubr.f32.gmra.mrb[0].mxu0 %v497
        %v587 = vpop.f32.mrb[0].mxu0
        %v588 = vadd.f32 %v519, %v587
        %v589 = vpop.f32.mrb[0].mxu0
        %590 = vdwg.mxu0
        %v591 = vmax.f32 %v588, 0.0
        %v592 = vpack.c.bf16 %v591, %v591
        %v593 = vld [vmem:[%s354] sm:$0xff]
        %v594 = vld [vmem:[%s354 + $0x8] sm:$0xff]
        %v595 = vld [vmem:[%s354 + $0x10] sm:$0xff]
        %v596 = vld [vmem:[%s354 + $0x18] sm:$0xff]
        %v597 = vld [vmem:[%s354 + $0x20] sm:$0xff]
        %v598 = vld [vmem:[%s354 + $0x28] sm:$0xff]
        %v599 = vld [vmem:[%s354 + $0x30] sm:$0xff]
        %v600 = vld [vmem:[%s354 + $0x38] sm:$0xff]
        %v601 = vld [vmem:[%s354 + $0x40] sm:$0xff]
        %v602 = vld [vmem:[%s354 + $0x48] sm:$0xff]
        %v603 = vld [vmem:[%s354 + $0x50] sm:$0xff]
        %v604 = vld [vmem:[%s354 + $0x58] sm:$0xff]
        %v605 = vld [vmem:[%s354 + $0x60] sm:$0xff]
        %v606 = vld [vmem:[%s354 + $0x68] sm:$0xff]
        %v607 = vld [vmem:[%s354 + $0x70] sm:$0xff]
        %v608 = vld [vmem:[%s354 + $0x78] sm:$0xff]
        %v609 = vld [vmem:[%s354 + $0x80] sm:$0xff]
        %v610 = vld [vmem:[%s354 + $0x88] sm:$0xff]
        %v611 = vld [vmem:[%s354 + $0x90] sm:$0xff]
        %v612 = vld [vmem:[%s354 + $0x98] sm:$0xff]
        %v613 = vld [vmem:[%s354 + $0xa0] sm:$0xff]
        %v614 = vld [vmem:[%s354 + $0xa8] sm:$0xff]
        %v615 = vld [vmem:[%s354 + $0xb0] sm:$0xff]
        %v616 = vld [vmem:[%s354 + $0xb8] sm:$0xff]
        %v617 = vld [vmem:[%s354 + $0xc0] sm:$0xff]
        %v618 = vld [vmem:[%s354 + $0xc8] sm:$0xff]
        %v619 = vld [vmem:[%s354 + $0xd0] sm:$0xff]
        %v620 = vld [vmem:[%s354 + $0xd8] sm:$0xff]
        %v621 = vld [vmem:[%s354 + $0xe0] sm:$0xff]
        %v622 = vld [vmem:[%s354 + $0xe8] sm:$0xff]
        %v623 = vld [vmem:[%s354 + $0xf0] sm:$0xff]
        %v624 = vld [vmem:[%s354 + $0xf8] sm:$0xff]
        %v625 = vld [vmem:[%s354 + $0x100] sm:$0xff]
        %v626 = vld [vmem:[%s354 + $0x108] sm:$0xff]
        %v627 = vld [vmem:[%s354 + $0x110] sm:$0xff]
        %v628 = vld [vmem:[%s354 + $0x118] sm:$0xff]
        %v629 = vld [vmem:[%s354 + $0x120] sm:$0xff]
        %v630 = vld [vmem:[%s354 + $0x128] sm:$0xff]
        %v631 = vld [vmem:[%s354 + $0x130] sm:$0xff]
        %v632 = vld [vmem:[%s354 + $0x138] sm:$0xff]
        %v633 = vld [vmem:[%s354 + $0x140] sm:$0xff]
        %v634 = vld [vmem:[%s354 + $0x148] sm:$0xff]
        %v635 = vld [vmem:[%s354 + $0x150] sm:$0xff]
        %v636 = vld [vmem:[%s354 + $0x158] sm:$0xff]
        %v637 = vld [vmem:[%s354 + $0x160] sm:$0xff]
        %v638 = vld [vmem:[%s354 + $0x168] sm:$0xff]
        %v639 = vld [vmem:[%s354 + $0x170] sm:$0xff]
        %v640 = vld [vmem:[%s354 + $0x178] sm:$0xff]
        %v641 = vld [vmem:[%s354 + $0x180] sm:$0xff]
        %v642 = vld [vmem:[%s354 + $0x188] sm:$0xff]
        %v643 = vld [vmem:[%s354 + $0x190] sm:$0xff]
        %v644 = vld [vmem:[%s354 + $0x198] sm:$0xff]
        %v645 = vld [vmem:[%s354 + $0x1a0] sm:$0xff]
        %v646 = vld [vmem:[%s354 + $0x1a8] sm:$0xff]
        %v647 = vld [vmem:[%s354 + $0x1b0] sm:$0xff]
        %v648 = vld [vmem:[%s354 + $0x1b8] sm:$0xff]
        %v649 = vld [vmem:[%s354 + $0x1c0] sm:$0xff]
        %v650 = vld [vmem:[%s354 + $0x1c8] sm:$0xff]
        %v651 = vld [vmem:[%s354 + $0x1d0] sm:$0xff]
        %v652 = vld [vmem:[%s354 + $0x1d8] sm:$0xff]
        %v653 = vld [vmem:[%s354 + $0x1e0] sm:$0xff]
        %v654 = vld [vmem:[%s354 + $0x1e8] sm:$0xff]
        %v655 = vld [vmem:[%s354 + $0x1f0] sm:$0xff]
        %v656 = vld [vmem:[%s354 + $0x1f8] sm:$0xff]
        %v657 = vld [vmem:[%s354 + $0x200] sm:$0xff]
        %v658 = vld [vmem:[%s354 + $0x208] sm:$0xff]
        %v659 = vld [vmem:[%s354 + $0x210] sm:$0xff]
        %v660 = vld [vmem:[%s354 + $0x218] sm:$0xff]
        %v661 = vld [vmem:[%s354 + $0x220] sm:$0xff]
        %v662 = vld [vmem:[%s354 + $0x228] sm:$0xff]
        %v663 = vld [vmem:[%s354 + $0x230] sm:$0xff]
        %v664 = vld [vmem:[%s354 + $0x238] sm:$0xff]
        %v665 = vld [vmem:[%s354 + $0x240] sm:$0xff]
        %v666 = vld [vmem:[%s354 + $0x248] sm:$0xff]
        %v667 = vld [vmem:[%s354 + $0x250] sm:$0xff]
        %v668 = vld [vmem:[%s354 + $0x258] sm:$0xff]
        %v669 = vld [vmem:[%s354 + $0x260] sm:$0xff]
        %v670 = vld [vmem:[%s354 + $0x268] sm:$0xff]
        %v671 = vld [vmem:[%s354 + $0x270] sm:$0xff]
        %v672 = vld [vmem:[%s354 + $0x278] sm:$0xff]
        %v673 = vld [vmem:[%s354 + $0x280] sm:$0xff]
        %v674 = vld [vmem:[%s354 + $0x288] sm:$0xff]
        %v675 = vld [vmem:[%s354 + $0x290] sm:$0xff]
        %v676 = vld [vmem:[%s354 + $0x298] sm:$0xff]
        %v677 = vld [vmem:[%s354 + $0x2a0] sm:$0xff]
        %v678 = vld [vmem:[%s354 + $0x2a8] sm:$0xff]
        %v679 = vld [vmem:[%s354 + $0x2b0] sm:$0xff]
        %v680 = vld [vmem:[%s354 + $0x2b8] sm:$0xff]
        %v681 = vld [vmem:[%s354 + $0x2c0] sm:$0xff]
        %v682 = vld [vmem:[%s354 + $0x2c8] sm:$0xff]
        %v683 = vld [vmem:[%s354 + $0x2d0] sm:$0xff]
        %v684 = vld [vmem:[%s354 + $0x2d8] sm:$0xff]
        %v685 = vld [vmem:[%s354 + $0x2e0] sm:$0xff]
        %v686 = vld [vmem:[%s354 + $0x2e8] sm:$0xff]
        %v687 = vld [vmem:[%s354 + $0x2f0] sm:$0xff]
        %v688 = vld [vmem:[%s354 + $0x2f8] sm:$0xff]
        %v689 = vld [vmem:[%s354 + $0x300] sm:$0xff]
        %v690 = vld [vmem:[%s354 + $0x308] sm:$0xff]
        %v691 = vld [vmem:[%s354 + $0x310] sm:$0xff]
        %v692 = vld [vmem:[%s354 + $0x318] sm:$0xff]
        %v693 = vld [vmem:[%s354 + $0x320] sm:$0xff]
        %v694 = vld [vmem:[%s354 + $0x328] sm:$0xff]
        %v695 = vld [vmem:[%s354 + $0x330] sm:$0xff]
        %v696 = vld [vmem:[%s354 + $0x338] sm:$0xff]
        %v697 = vld [vmem:[%s354 + $0x340] sm:$0xff]
        %v698 = vld [vmem:[%s354 + $0x348] sm:$0xff]
        %v699 = vld [vmem:[%s354 + $0x350] sm:$0xff]
        %v700 = vld [vmem:[%s354 + $0x358] sm:$0xff]
        %v701 = vld [vmem:[%s354 + $0x360] sm:$0xff]
        %v702 = vld [vmem:[%s354 + $0x368] sm:$0xff]
        %v703 = vld [vmem:[%s354 + $0x370] sm:$0xff]
        %v704 = vld [vmem:[%s354 + $0x378] sm:$0xff]
        %v705 = vld [vmem:[%s354 + $0x380] sm:$0xff]
        %v706 = vld [vmem:[%s354 + $0x388] sm:$0xff]
        %v707 = vld [vmem:[%s354 + $0x390] sm:$0xff]
        %v708 = vld [vmem:[%s354 + $0x398] sm:$0xff]
        %v709 = vld [vmem:[%s354 + $0x3a0] sm:$0xff]
        %v710 = vld [vmem:[%s354 + $0x3a8] sm:$0xff]
        %v711 = vld [vmem:[%s354 + $0x3b0] sm:$0xff]
        %v712 = vld [vmem:[%s354 + $0x3b8] sm:$0xff]
        %v713 = vld [vmem:[%s354 + $0x3c0] sm:$0xff]
        %v714 = vld [vmem:[%s354 + $0x3c8] sm:$0xff]
        %v715 = vld [vmem:[%s354 + $0x3d0] sm:$0xff]
        %v716 = vld [vmem:[%s354 + $0x3d8] sm:$0xff]
        %v717 = vld [vmem:[%s354 + $0x3e0] sm:$0xff]
        %v718 = vld [vmem:[%s354 + $0x3e8] sm:$0xff]
        %v719 = vld [vmem:[%s354 + $0x3f0] sm:$0xff]
        %v720 = vld [vmem:[%s354 + $0x3f8] sm:$0xff]
        %v721 = vld [vmem:[%s354 + $0x400] sm:$0xff]
        %v722 = vld [vmem:[%s354 + $0x408] sm:$0xff]
        %v723 = vld [vmem:[%s354 + $0x410] sm:$0xff]
        %v724 = vld [vmem:[%s354 + $0x418] sm:$0xff]
        %v725 = vld [vmem:[%s354 + $0x420] sm:$0xff]
        %v726 = vld [vmem:[%s354 + $0x428] sm:$0xff]
        %v727 = vld [vmem:[%s354 + $0x430] sm:$0xff]
        %v728 = vld [vmem:[%s354 + $0x438] sm:$0xff]
        %v729 = vld [vmem:[%s354 + $0x440] sm:$0xff]
        %v730 = vld [vmem:[%s354 + $0x448] sm:$0xff]
        %v731 = vld [vmem:[%s354 + $0x450] sm:$0xff]
        %v732 = vld [vmem:[%s354 + $0x458] sm:$0xff]
        %v733 = vld [vmem:[%s354 + $0x460] sm:$0xff]
        %v734 = vld [vmem:[%s354 + $0x468] sm:$0xff]
        %v735 = vld [vmem:[%s354 + $0x470] sm:$0xff]
        %v736 = vld [vmem:[%s354 + $0x478] sm:$0xff]
        %v737 = vld [vmem:[%s354 + $0x480] sm:$0xff]
        %v738 = vld [vmem:[%s354 + $0x488] sm:$0xff]
        %v739 = vld [vmem:[%s354 + $0x490] sm:$0xff]
        %v740 = vld [vmem:[%s354 + $0x498] sm:$0xff]
        %v741 = vld [vmem:[%s354 + $0x4a0] sm:$0xff]
        %v742 = vld [vmem:[%s354 + $0x4a8] sm:$0xff]
        %v743 = vld [vmem:[%s354 + $0x4b0] sm:$0xff]
        %v744 = vld [vmem:[%s354 + $0x4b8] sm:$0xff]
        %v745 = vld [vmem:[%s354 + $0x4c0] sm:$0xff]
        %v746 = vld [vmem:[%s354 + $0x4c8] sm:$0xff]
        %v747 = vld [vmem:[%s354 + $0x4d0] sm:$0xff]
        %v748 = vld [vmem:[%s354 + $0x4d8] sm:$0xff]
        %v749 = vld [vmem:[%s354 + $0x4e0] sm:$0xff]
        %v750 = vld [vmem:[%s354 + $0x4e8] sm:$0xff]
        %v751 = vld [vmem:[%s354 + $0x4f0] sm:$0xff]
        %v752 = vld [vmem:[%s354 + $0x4f8] sm:$0xff]
        %v753 = vld [vmem:[%s354 + $0x500] sm:$0xff]
        %v754 = vld [vmem:[%s354 + $0x508] sm:$0xff]
        %v755 = vld [vmem:[%s354 + $0x510] sm:$0xff]
        %v756 = vld [vmem:[%s354 + $0x518] sm:$0xff]
        %v757 = vld [vmem:[%s354 + $0x520] sm:$0xff]
        %v758 = vld [vmem:[%s354 + $0x528] sm:$0xff]
        %v759 = vld [vmem:[%s354 + $0x530] sm:$0xff]
        %v760 = vld [vmem:[%s354 + $0x538] sm:$0xff]
        %v761 = vld [vmem:[%s354 + $0x540] sm:$0xff]
        %v762 = vld [vmem:[%s354 + $0x548] sm:$0xff]
        %v763 = vld [vmem:[%s354 + $0x550] sm:$0xff]
        %v764 = vld [vmem:[%s354 + $0x558] sm:$0xff]
        %v765 = vld [vmem:[%s354 + $0x560] sm:$0xff]
        %v766 = vld [vmem:[%s354 + $0x568] sm:$0xff]
        %v767 = vld [vmem:[%s354 + $0x570] sm:$0xff]
        %v768 = vld [vmem:[%s354 + $0x578] sm:$0xff]
        %v769 = vld [vmem:[%s354 + $0x580] sm:$0xff]
        %v770 = vld [vmem:[%s354 + $0x588] sm:$0xff]
        %v771 = vld [vmem:[%s354 + $0x590] sm:$0xff]
        %v772 = vld [vmem:[%s354 + $0x598] sm:$0xff]
        %v773 = vld [vmem:[%s354 + $0x5a0] sm:$0xff]
        %v774 = vld [vmem:[%s354 + $0x5a8] sm:$0xff]
        %v775 = vld [vmem:[%s354 + $0x5b0] sm:$0xff]
        %v776 = vld [vmem:[%s354 + $0x5b8] sm:$0xff]
        %v777 = vld [vmem:[%s354 + $0x5c0] sm:$0xff]
        %v778 = vld [vmem:[%s354 + $0x5c8] sm:$0xff]
        %v779 = vld [vmem:[%s354 + $0x5d0] sm:$0xff]
        %v780 = vld [vmem:[%s354 + $0x5d8] sm:$0xff]
        %v781 = vld [vmem:[%s354 + $0x5e0] sm:$0xff]
        %v782 = vld [vmem:[%s354 + $0x5e8] sm:$0xff]
        %v783 = vld [vmem:[%s354 + $0x5f0] sm:$0xff]
        %v784 = vld [vmem:[%s354 + $0x5f8] sm:$0xff]
        %v785 = vld [vmem:[%s354 + $0x600] sm:$0xff]
        %v786 = vld [vmem:[%s354 + $0x608] sm:$0xff]
        %v787 = vld [vmem:[%s354 + $0x610] sm:$0xff]
        %v788 = vld [vmem:[%s354 + $0x618] sm:$0xff]
        %v789 = vld [vmem:[%s354 + $0x620] sm:$0xff]
        %v790 = vld [vmem:[%s354 + $0x628] sm:$0xff]
        %v791 = vld [vmem:[%s354 + $0x630] sm:$0xff]
        %v792 = vld [vmem:[%s354 + $0x638] sm:$0xff]
        %v793 = vld [vmem:[%s354 + $0x640] sm:$0xff]
        %v794 = vld [vmem:[%s354 + $0x648] sm:$0xff]
        %v795 = vld [vmem:[%s354 + $0x650] sm:$0xff]
        %v796 = vld [vmem:[%s354 + $0x658] sm:$0xff]
        %v797 = vld [vmem:[%s354 + $0x660] sm:$0xff]
        %v798 = vld [vmem:[%s354 + $0x668] sm:$0xff]
        %v799 = vld [vmem:[%s354 + $0x670] sm:$0xff]
        %v800 = vld [vmem:[%s354 + $0x678] sm:$0xff]
        %v801 = vld [vmem:[%s354 + $0x680] sm:$0xff]
        %v802 = vld [vmem:[%s354 + $0x688] sm:$0xff]
        %v803 = vld [vmem:[%s354 + $0x690] sm:$0xff]
        %v804 = vld [vmem:[%s354 + $0x698] sm:$0xff]
        %v805 = vld [vmem:[%s354 + $0x6a0] sm:$0xff]
        %v806 = vld [vmem:[%s354 + $0x6a8] sm:$0xff]
        %v807 = vld [vmem:[%s354 + $0x6b0] sm:$0xff]
        %v808 = vld [vmem:[%s354 + $0x6b8] sm:$0xff]
        %v809 = vld [vmem:[%s354 + $0x6c0] sm:$0xff]
        %v810 = vld [vmem:[%s354 + $0x6c8] sm:$0xff]
        %v811 = vld [vmem:[%s354 + $0x6d0] sm:$0xff]
        %v812 = vld [vmem:[%s354 + $0x6d8] sm:$0xff]
        %v813 = vld [vmem:[%s354 + $0x6e0] sm:$0xff]
        %v814 = vld [vmem:[%s354 + $0x6e8] sm:$0xff]
        %v815 = vld [vmem:[%s354 + $0x6f0] sm:$0xff]
        %v816 = vld [vmem:[%s354 + $0x6f8] sm:$0xff]
        %v817 = vld [vmem:[%s354 + $0x700] sm:$0xff]
        %v818 = vld [vmem:[%s354 + $0x708] sm:$0xff]
        %v819 = vld [vmem:[%s354 + $0x710] sm:$0xff]
        %v820 = vld [vmem:[%s354 + $0x718] sm:$0xff]
        %v821 = vld [vmem:[%s354 + $0x720] sm:$0xff]
        %v822 = vld [vmem:[%s354 + $0x728] sm:$0xff]
        %v823 = vld [vmem:[%s354 + $0x730] sm:$0xff]
        %v824 = vld [vmem:[%s354 + $0x738] sm:$0xff]
        %v825 = vld [vmem:[%s354 + $0x740] sm:$0xff]
        %v826 = vld [vmem:[%s354 + $0x748] sm:$0xff]
        %v827 = vld [vmem:[%s354 + $0x750] sm:$0xff]
        %v828 = vld [vmem:[%s354 + $0x758] sm:$0xff]
        %v829 = vld [vmem:[%s354 + $0x760] sm:$0xff]
        %v830 = vld [vmem:[%s354 + $0x768] sm:$0xff]
        %v831 = vld [vmem:[%s354 + $0x770] sm:$0xff]
        %v832 = vld [vmem:[%s354 + $0x778] sm:$0xff]
        %v833 = vld [vmem:[%s354 + $0x780] sm:$0xff]
        %v834 = vld [vmem:[%s354 + $0x788] sm:$0xff]
        %v835 = vld [vmem:[%s354 + $0x790] sm:$0xff]
        %v836 = vld [vmem:[%s354 + $0x798] sm:$0xff]
        %v837 = vld [vmem:[%s354 + $0x7a0] sm:$0xff]
        %v838 = vld [vmem:[%s354 + $0x7a8] sm:$0xff]
        %v839 = vld [vmem:[%s354 + $0x7b0] sm:$0xff]
        %v840 = vld [vmem:[%s354 + $0x7b8] sm:$0xff]
        %v841 = vld [vmem:[%s354 + $0x7c0] sm:$0xff]
        %v842 = vld [vmem:[%s354 + $0x7c8] sm:$0xff]
        %v843 = vld [vmem:[%s354 + $0x7d0] sm:$0xff]
        %v844 = vld [vmem:[%s354 + $0x7d8] sm:$0xff]
        %v845 = vld [vmem:[%s354 + $0x7e0] sm:$0xff]
        %v846 = vld [vmem:[%s354 + $0x7e8] sm:$0xff]
        %v847 = vld [vmem:[%s354 + $0x7f0] sm:$0xff]
        %v848 = vld [vmem:[%s354 + $0x7f8] sm:$0xff]
        %v849 = vld [vmem:[%s354 + $0x800] sm:$0xff]
        %v850 = vld [vmem:[%s354 + $0x808] sm:$0xff]
        %v851 = vld [vmem:[%s354 + $0x810] sm:$0xff]
        %v852 = vld [vmem:[%s354 + $0x818] sm:$0xff]
        %v853 = vld [vmem:[%s354 + $0x820] sm:$0xff]
        %v854 = vld [vmem:[%s354 + $0x828] sm:$0xff]
        %v855 = vld [vmem:[%s354 + $0x830] sm:$0xff]
        %v856 = vld [vmem:[%s354 + $0x838] sm:$0xff]
        %v857 = vld [vmem:[%s354 + $0x840] sm:$0xff]
        %v858 = vld [vmem:[%s354 + $0x848] sm:$0xff]
        %v859 = vld [vmem:[%s354 + $0x850] sm:$0xff]
        %v860 = vld [vmem:[%s354 + $0x858] sm:$0xff]
        %v861 = vld [vmem:[%s354 + $0x860] sm:$0xff]
        %v862 = vld [vmem:[%s354 + $0x868] sm:$0xff]
        %v863 = vld [vmem:[%s354 + $0x870] sm:$0xff]
        %v864 = vld [vmem:[%s354 + $0x878] sm:$0xff]
        %v865 = vld [vmem:[%s354 + $0x880] sm:$0xff]
        %v866 = vld [vmem:[%s354 + $0x888] sm:$0xff]
        %v867 = vld [vmem:[%s354 + $0x890] sm:$0xff]
        %v868 = vld [vmem:[%s354 + $0x898] sm:$0xff]
        %v869 = vld [vmem:[%s354 + $0x8a0] sm:$0xff]
        %v870 = vld [vmem:[%s354 + $0x8a8] sm:$0xff]
        %v871 = vld [vmem:[%s354 + $0x8b0] sm:$0xff]
        %v872 = vld [vmem:[%s354 + $0x8b8] sm:$0xff]
        %v873 = vld [vmem:[%s354 + $0x8c0] sm:$0xff]
        %v874 = vld [vmem:[%s354 + $0x8c8] sm:$0xff]
        %v875 = vld [vmem:[%s354 + $0x8d0] sm:$0xff]
        %v876 = vld [vmem:[%s354 + $0x8d8] sm:$0xff]
        %v877 = vld [vmem:[%s354 + $0x8e0] sm:$0xff]
        %v878 = vld [vmem:[%s354 + $0x8e8] sm:$0xff]
        %v879 = vld [vmem:[%s354 + $0x8f0] sm:$0xff]
        %v880 = vld [vmem:[%s354 + $0x8f8] sm:$0xff]
        %v881 = vld [vmem:[%s354 + $0x900] sm:$0xff]
        %v882 = vld [vmem:[%s354 + $0x908] sm:$0xff]
        %v883 = vld [vmem:[%s354 + $0x910] sm:$0xff]
        %v884 = vld [vmem:[%s354 + $0x918] sm:$0xff]
        %v885 = vld [vmem:[%s354 + $0x920] sm:$0xff]
        %v886 = vld [vmem:[%s354 + $0x928] sm:$0xff]
        %v887 = vld [vmem:[%s354 + $0x930] sm:$0xff]
        %v888 = vld [vmem:[%s354 + $0x938] sm:$0xff]
        %v889 = vld [vmem:[%s354 + $0x940] sm:$0xff]
        %v890 = vld [vmem:[%s354 + $0x948] sm:$0xff]
        %v891 = vld [vmem:[%s354 + $0x950] sm:$0xff]
        %v892 = vld [vmem:[%s354 + $0x958] sm:$0xff]
        %v893 = vld [vmem:[%s354 + $0x960] sm:$0xff]
        %v894 = vld [vmem:[%s354 + $0x968] sm:$0xff]
        %v895 = vld [vmem:[%s354 + $0x970] sm:$0xff]
        %v896 = vld [vmem:[%s354 + $0x978] sm:$0xff]
        %v897 = vld [vmem:[%s354 + $0x980] sm:$0xff]
        %v898 = vld [vmem:[%s354 + $0x988] sm:$0xff]
        %v899 = vld [vmem:[%s354 + $0x990] sm:$0xff]
        %v900 = vld [vmem:[%s354 + $0x998] sm:$0xff]
        %v901 = vld [vmem:[%s354 + $0x9a0] sm:$0xff]
        %v902 = vld [vmem:[%s354 + $0x9a8] sm:$0xff]
        %v903 = vld [vmem:[%s354 + $0x9b0] sm:$0xff]
        %v904 = vld [vmem:[%s354 + $0x9b8] sm:$0xff]
        %v905 = vld [vmem:[%s354 + $0x9c0] sm:$0xff]
        %v906 = vld [vmem:[%s354 + $0x9c8] sm:$0xff]
        %v907 = vld [vmem:[%s354 + $0x9d0] sm:$0xff]
        %v908 = vld [vmem:[%s354 + $0x9d8] sm:$0xff]
        %v909 = vld [vmem:[%s354 + $0x9e0] sm:$0xff]
        %v910 = vld [vmem:[%s354 + $0x9e8] sm:$0xff]
        %v911 = vld [vmem:[%s354 + $0x9f0] sm:$0xff]
        %v912 = vld [vmem:[%s354 + $0x9f8] sm:$0xff]
        %v913 = vld [vmem:[%s354 + $0xa00] sm:$0xff]
        %v914 = vld [vmem:[%s354 + $0xa08] sm:$0xff]
        %v915 = vld [vmem:[%s354 + $0xa10] sm:$0xff]
        %v916 = vld [vmem:[%s354 + $0xa18] sm:$0xff]
        %v917 = vld [vmem:[%s354 + $0xa20] sm:$0xff]
        %v918 = vld [vmem:[%s354 + $0xa28] sm:$0xff]
        %v919 = vld [vmem:[%s354 + $0xa30] sm:$0xff]
        %v920 = vld [vmem:[%s354 + $0xa38] sm:$0xff]
        %v921 = vld [vmem:[%s354 + $0xa40] sm:$0xff]
        %v922 = vld [vmem:[%s354 + $0xa48] sm:$0xff]
        %v923 = vld [vmem:[%s354 + $0xa50] sm:$0xff]
        %v924 = vld [vmem:[%s354 + $0xa58] sm:$0xff]
        %v925 = vld [vmem:[%s354 + $0xa60] sm:$0xff]
        %v926 = vld [vmem:[%s354 + $0xa68] sm:$0xff]
        %v927 = vld [vmem:[%s354 + $0xa70] sm:$0xff]
        %v928 = vld [vmem:[%s354 + $0xa78] sm:$0xff]
        %v929 = vld [vmem:[%s354 + $0xa80] sm:$0xff]
        %v930 = vld [vmem:[%s354 + $0xa88] sm:$0xff]
        %v931 = vld [vmem:[%s354 + $0xa90] sm:$0xff]
        %v932 = vld [vmem:[%s354 + $0xa98] sm:$0xff]
        %v933 = vld [vmem:[%s354 + $0xaa0] sm:$0xff]
        %v934 = vld [vmem:[%s354 + $0xaa8] sm:$0xff]
        %v935 = vld [vmem:[%s354 + $0xab0] sm:$0xff]
        %v936 = vld [vmem:[%s354 + $0xab8] sm:$0xff]
        %v937 = vld [vmem:[%s354 + $0xac0] sm:$0xff]
        %v938 = vld [vmem:[%s354 + $0xac8] sm:$0xff]
        %v939 = vld [vmem:[%s354 + $0xad0] sm:$0xff]
        %v940 = vld [vmem:[%s354 + $0xad8] sm:$0xff]
        %v941 = vld [vmem:[%s354 + $0xae0] sm:$0xff]
        %v942 = vld [vmem:[%s354 + $0xae8] sm:$0xff]
        %v943 = vld [vmem:[%s354 + $0xaf0] sm:$0xff]
        %v944 = vld [vmem:[%s354 + $0xaf8] sm:$0xff]
        %v945 = vld [vmem:[%s354 + $0xb00] sm:$0xff]
        %v946 = vld [vmem:[%s354 + $0xb08] sm:$0xff]
        %v947 = vld [vmem:[%s354 + $0xb10] sm:$0xff]
        %v948 = vld [vmem:[%s354 + $0xb18] sm:$0xff]
        %v949 = vld [vmem:[%s354 + $0xb20] sm:$0xff]
        %v950 = vld [vmem:[%s354 + $0xb28] sm:$0xff]
        %v951 = vld [vmem:[%s354 + $0xb30] sm:$0xff]
        %v952 = vld [vmem:[%s354 + $0xb38] sm:$0xff]
        %v953 = vld [vmem:[%s354 + $0xb40] sm:$0xff]
        %v954 = vld [vmem:[%s354 + $0xb48] sm:$0xff]
        %v955 = vld [vmem:[%s354 + $0xb50] sm:$0xff]
        %v956 = vld [vmem:[%s354 + $0xb58] sm:$0xff]
        %v957 = vld [vmem:[%s354 + $0xb60] sm:$0xff]
        %v958 = vld [vmem:[%s354 + $0xb68] sm:$0xff]
        %v959 = vld [vmem:[%s354 + $0xb70] sm:$0xff]
        %v960 = vld [vmem:[%s354 + $0xb78] sm:$0xff]
        %v961 = vld [vmem:[%s354 + $0xb80] sm:$0xff]
        %v962 = vld [vmem:[%s354 + $0xb88] sm:$0xff]
        %v963 = vld [vmem:[%s354 + $0xb90] sm:$0xff]
        %v964 = vld [vmem:[%s354 + $0xb98] sm:$0xff]
        %v965 = vld [vmem:[%s354 + $0xba0] sm:$0xff]
        %v966 = vld [vmem:[%s354 + $0xba8] sm:$0xff]
        %v967 = vld [vmem:[%s354 + $0xbb0] sm:$0xff]
        %v968 = vld [vmem:[%s354 + $0xbb8] sm:$0xff]
        %v969 = vld [vmem:[%s354 + $0xbc0] sm:$0xff]
        %v970 = vld [vmem:[%s354 + $0xbc8] sm:$0xff]
        %v971 = vld [vmem:[%s354 + $0xbd0] sm:$0xff]
        %v972 = vld [vmem:[%s354 + $0xbd8] sm:$0xff]
        %v973 = vld [vmem:[%s354 + $0xbe0] sm:$0xff]
        %v974 = vld [vmem:[%s354 + $0xbe8] sm:$0xff]
        %v975 = vld [vmem:[%s354 + $0xbf0] sm:$0xff]
        %v976 = vld [vmem:[%s354 + $0xbf8] sm:$0xff]
        %v977 = vld [vmem:[%s354 + $0xc00] sm:$0xff]
        %v978 = vld [vmem:[%s354 + $0xc08] sm:$0xff]
        %v979 = vld [vmem:[%s354 + $0xc10] sm:$0xff]
        %v980 = vld [vmem:[%s354 + $0xc18] sm:$0xff]
        %v981 = vld [vmem:[%s354 + $0xc20] sm:$0xff]
        %v982 = vld [vmem:[%s354 + $0xc28] sm:$0xff]
        %v983 = vld [vmem:[%s354 + $0xc30] sm:$0xff]
        %v984 = vld [vmem:[%s354 + $0xc38] sm:$0xff]
        %v985 = vld [vmem:[%s354 + $0xc40] sm:$0xff]
        %v986 = vld [vmem:[%s354 + $0xc48] sm:$0xff]
        %v987 = vld [vmem:[%s354 + $0xc50] sm:$0xff]
        %v988 = vld [vmem:[%s354 + $0xc58] sm:$0xff]
        %v989 = vld [vmem:[%s354 + $0xc60] sm:$0xff]
        %v990 = vld [vmem:[%s354 + $0xc68] sm:$0xff]
        %v991 = vld [vmem:[%s354 + $0xc70] sm:$0xff]
        %v992 = vld [vmem:[%s354 + $0xc78] sm:$0xff]
        %v993 = vld [vmem:[%s354 + $0xc80] sm:$0xff]
        %v994 = vld [vmem:[%s354 + $0xc88] sm:$0xff]
        %v995 = vld [vmem:[%s354 + $0xc90] sm:$0xff]
        %v996 = vld [vmem:[%s354 + $0xc98] sm:$0xff]
        %v997 = vld [vmem:[%s354 + $0xca0] sm:$0xff]
        %v998 = vld [vmem:[%s354 + $0xca8] sm:$0xff]
        %v999 = vld [vmem:[%s354 + $0xcb0] sm:$0xff]
        %v1000 = vld [vmem:[%s354 + $0xcb8] sm:$0xff]
        %v1001 = vld [vmem:[%s354 + $0xcc0] sm:$0xff]
        %v1002 = vld [vmem:[%s354 + $0xcc8] sm:$0xff]
        %v1003 = vld [vmem:[%s354 + $0xcd0] sm:$0xff]
        %v1004 = vld [vmem:[%s354 + $0xcd8] sm:$0xff]
        %v1005 = vld [vmem:[%s354 + $0xce0] sm:$0xff]
        %v1006 = vld [vmem:[%s354 + $0xce8] sm:$0xff]
        %v1007 = vld [vmem:[%s354 + $0xcf0] sm:$0xff]
        %v1008 = vld [vmem:[%s354 + $0xcf8] sm:$0xff]
        %v1009 = vld [vmem:[%s354 + $0xd00] sm:$0xff]
        %v1010 = vld [vmem:[%s354 + $0xd08] sm:$0xff]
        %v1011 = vld [vmem:[%s354 + $0xd10] sm:$0xff]
        %v1012 = vld [vmem:[%s354 + $0xd18] sm:$0xff]
        %v1013 = vld [vmem:[%s354 + $0xd20] sm:$0xff]
        %v1014 = vld [vmem:[%s354 + $0xd28] sm:$0xff]
        %v1015 = vld [vmem:[%s354 + $0xd30] sm:$0xff]
        %v1016 = vld [vmem:[%s354 + $0xd38] sm:$0xff]
        %v1017 = vld [vmem:[%s354 + $0xd40] sm:$0xff]
        %v1018 = vld [vmem:[%s354 + $0xd48] sm:$0xff]
        %v1019 = vld [vmem:[%s354 + $0xd50] sm:$0xff]
        %v1020 = vld [vmem:[%s354 + $0xd58] sm:$0xff]
        %v1021 = vld [vmem:[%s354 + $0xd60] sm:$0xff]
        %v1022 = vld [vmem:[%s354 + $0xd68] sm:$0xff]
        %v1023 = vld [vmem:[%s354 + $0xd70] sm:$0xff]
        %v1024 = vld [vmem:[%s354 + $0xd78] sm:$0xff]
        %v1025 = vld [vmem:[%s354 + $0xd80] sm:$0xff]
        %v1026 = vld [vmem:[%s354 + $0xd88] sm:$0xff]
        %v1027 = vld [vmem:[%s354 + $0xd90] sm:$0xff]
        %v1028 = vld [vmem:[%s354 + $0xd98] sm:$0xff]
        %v1029 = vld [vmem:[%s354 + $0xda0] sm:$0xff]
        %v1030 = vld [vmem:[%s354 + $0xda8] sm:$0xff]
        %v1031 = vld [vmem:[%s354 + $0xdb0] sm:$0xff]
        %v1032 = vld [vmem:[%s354 + $0xdb8] sm:$0xff]
        %v1033 = vld [vmem:[%s354 + $0xdc0] sm:$0xff]
        %v1034 = vld [vmem:[%s354 + $0xdc8] sm:$0xff]
        %v1035 = vld [vmem:[%s354 + $0xdd0] sm:$0xff]
        %v1036 = vld [vmem:[%s354 + $0xdd8] sm:$0xff]
        %v1037 = vld [vmem:[%s354 + $0xde0] sm:$0xff]
        %v1038 = vld [vmem:[%s354 + $0xde8] sm:$0xff]
        %v1039 = vld [vmem:[%s354 + $0xdf0] sm:$0xff]
        %v1040 = vld [vmem:[%s354 + $0xdf8] sm:$0xff]
        %v1041 = vld [vmem:[%s354 + $0xe00] sm:$0xff]
        %v1042 = vld [vmem:[%s354 + $0xe08] sm:$0xff]
        %v1043 = vld [vmem:[%s354 + $0xe10] sm:$0xff]
        %v1044 = vld [vmem:[%s354 + $0xe18] sm:$0xff]
        %v1045 = vld [vmem:[%s354 + $0xe20] sm:$0xff]
        %v1046 = vld [vmem:[%s354 + $0xe28] sm:$0xff]
        %v1047 = vld [vmem:[%s354 + $0xe30] sm:$0xff]
        %v1048 = vld [vmem:[%s354 + $0xe38] sm:$0xff]
        %v1049 = vld [vmem:[%s354 + $0xe40] sm:$0xff]
        %v1050 = vld [vmem:[%s354 + $0xe48] sm:$0xff]
        %v1051 = vld [vmem:[%s354 + $0xe50] sm:$0xff]
        %v1052 = vld [vmem:[%s354 + $0xe58] sm:$0xff]
        %v1053 = vld [vmem:[%s354 + $0xe60] sm:$0xff]
        %v1054 = vld [vmem:[%s354 + $0xe68] sm:$0xff]
        %v1055 = vld [vmem:[%s354 + $0xe70] sm:$0xff]
        %v1056 = vld [vmem:[%s354 + $0xe78] sm:$0xff]
        %v1057 = vld [vmem:[%s354 + $0xe80] sm:$0xff]
        %v1058 = vld [vmem:[%s354 + $0xe88] sm:$0xff]
        %v1059 = vld [vmem:[%s354 + $0xe90] sm:$0xff]
        %v1060 = vld [vmem:[%s354 + $0xe98] sm:$0xff]
        %v1061 = vld [vmem:[%s354 + $0xea0] sm:$0xff]
        %v1062 = vld [vmem:[%s354 + $0xea8] sm:$0xff]
        %v1063 = vld [vmem:[%s354 + $0xeb0] sm:$0xff]
        %v1064 = vld [vmem:[%s354 + $0xeb8] sm:$0xff]
        %v1065 = vld [vmem:[%s354 + $0xec0] sm:$0xff]
        %v1066 = vld [vmem:[%s354 + $0xec8] sm:$0xff]
        %v1067 = vld [vmem:[%s354 + $0xed0] sm:$0xff]
        %v1068 = vld [vmem:[%s354 + $0xed8] sm:$0xff]
        %v1069 = vld [vmem:[%s354 + $0xee0] sm:$0xff]
        %v1070 = vld [vmem:[%s354 + $0xee8] sm:$0xff]
        %v1071 = vld [vmem:[%s354 + $0xef0] sm:$0xff]
        %v1072 = vld [vmem:[%s354 + $0xef8] sm:$0xff]
        %v1073 = vld [vmem:[%s354 + $0xf00] sm:$0xff]
        %v1074 = vld [vmem:[%s354 + $0xf08] sm:$0xff]
        %v1075 = vld [vmem:[%s354 + $0xf10] sm:$0xff]
        %v1076 = vld [vmem:[%s354 + $0xf18] sm:$0xff]
        %v1077 = vld [vmem:[%s354 + $0xf20] sm:$0xff]
        %v1078 = vld [vmem:[%s354 + $0xf28] sm:$0xff]
        %v1079 = vld [vmem:[%s354 + $0xf30] sm:$0xff]
        %v1080 = vld [vmem:[%s354 + $0xf38] sm:$0xff]
        %v1081 = vld [vmem:[%s354 + $0xf40] sm:$0xff]
        %v1082 = vld [vmem:[%s354 + $0xf48] sm:$0xff]
        %v1083 = vld [vmem:[%s354 + $0xf50] sm:$0xff]
        %v1084 = vld [vmem:[%s354 + $0xf58] sm:$0xff]
        %v1085 = vld [vmem:[%s354 + $0xf60] sm:$0xff]
        %v1086 = vld [vmem:[%s354 + $0xf68] sm:$0xff]
        %v1087 = vld [vmem:[%s354 + $0xf70] sm:$0xff]
        %v1088 = vld [vmem:[%s354 + $0xf78] sm:$0xff]
        %v1089 = vld [vmem:[%s354 + $0xf80] sm:$0xff]
        %v1090 = vld [vmem:[%s354 + $0xf88] sm:$0xff]
        %v1091 = vld [vmem:[%s354 + $0xf90] sm:$0xff]
        %v1092 = vld [vmem:[%s354 + $0xf98] sm:$0xff]
        %v1093 = vld [vmem:[%s354 + $0xfa0] sm:$0xff]
        %v1094 = vld [vmem:[%s354 + $0xfa8] sm:$0xff]
        %v1095 = vld [vmem:[%s354 + $0xfb0] sm:$0xff]
        %v1096 = vld [vmem:[%s354 + $0xfb8] sm:$0xff]
        %v1097 = vld [vmem:[%s354 + $0xfc0] sm:$0xff]
        %v1098 = vld [vmem:[%s354 + $0xfc8] sm:$0xff]
        %v1099 = vld [vmem:[%s354 + $0xfd0] sm:$0xff]
        %v1100 = vld [vmem:[%s354 + $0xfd8] sm:$0xff]
        %v1101 = vld [vmem:[%s354 + $0xfe0] sm:$0xff]
        %v1102 = vld [vmem:[%s354 + $0xfe8] sm:$0xff]
        %v1103 = vld [vmem:[%s354 + $0xff0] sm:$0xff]
        %v1104 = vld [vmem:[%s354 + $0xff8] sm:$0xff]
        %v1105 = vld [vmem:[%s354 + $0x1000] sm:$0xff]
        %v1106 = vld [vmem:[%s354 + $0x1008] sm:$0xff]
        %v1107 = vld [vmem:[%s354 + $0x1010] sm:$0xff]
        %v1108 = vld [vmem:[%s354 + $0x1018] sm:$0xff]
        %v1109 = vld [vmem:[%s354 + $0x1020] sm:$0xff]
        %v1110 = vld [vmem:[%s354 + $0x1028] sm:$0xff]
        %v1111 = vld [vmem:[%s354 + $0x1030] sm:$0xff]
        %v1112 = vld [vmem:[%s354 + $0x1038] sm:$0xff]
        %v1113 = vld [vmem:[%s354 + $0x1040] sm:$0xff]
        %v1114 = vld [vmem:[%s354 + $0x1048] sm:$0xff]
        %v1115 = vld [vmem:[%s354 + $0x1050] sm:$0xff]
        %v1116 = vld [vmem:[%s354 + $0x1058] sm:$0xff]
        %v1117 = vld [vmem:[%s354 + $0x1060] sm:$0xff]
        %v1118 = vld [vmem:[%s354 + $0x1068] sm:$0xff]
        %v1119 = vld [vmem:[%s354 + $0x1070] sm:$0xff]
        %v1120 = vld [vmem:[%s354 + $0x1078] sm:$0xff]
        %v1121 = vld [vmem:[%s354 + $0x1080] sm:$0xff]
        %v1122 = vld [vmem:[%s354 + $0x1088] sm:$0xff]
        %v1123 = vld [vmem:[%s354 + $0x1090] sm:$0xff]
        %v1124 = vld [vmem:[%s354 + $0x1098] sm:$0xff]
        %v1125 = vld [vmem:[%s354 + $0x10a0] sm:$0xff]
        %v1126 = vld [vmem:[%s354 + $0x10a8] sm:$0xff]
        %v1127 = vld [vmem:[%s354 + $0x10b0] sm:$0xff]
        %v1128 = vld [vmem:[%s354 + $0x10b8] sm:$0xff]
        %v1129 = vld [vmem:[%s354 + $0x10c0] sm:$0xff]
        %v1130 = vld [vmem:[%s354 + $0x10c8] sm:$0xff]
        %v1131 = vld [vmem:[%s354 + $0x10d0] sm:$0xff]
        %v1132 = vld [vmem:[%s354 + $0x10d8] sm:$0xff]
        %v1133 = vld [vmem:[%s354 + $0x10e0] sm:$0xff]
        %v1134 = vld [vmem:[%s354 + $0x10e8] sm:$0xff]
        %v1135 = vld [vmem:[%s354 + $0x10f0] sm:$0xff]
        %v1136 = vld [vmem:[%s354 + $0x10f8] sm:$0xff]
        %v1137 = vld [vmem:[%s354 + $0x1100] sm:$0xff]
        %v1138 = vld [vmem:[%s354 + $0x1108] sm:$0xff]
        %v1139 = vld [vmem:[%s354 + $0x1110] sm:$0xff]
        %v1140 = vld [vmem:[%s354 + $0x1118] sm:$0xff]
        %v1141 = vld [vmem:[%s354 + $0x1120] sm:$0xff]
        %v1142 = vld [vmem:[%s354 + $0x1128] sm:$0xff]
        %v1143 = vld [vmem:[%s354 + $0x1130] sm:$0xff]
        %v1144 = vld [vmem:[%s354 + $0x1138] sm:$0xff]
        %v1145 = vld [vmem:[%s354 + $0x1140] sm:$0xff]
        %v1146 = vld [vmem:[%s354 + $0x1148] sm:$0xff]
        %v1147 = vld [vmem:[%s354 + $0x1150] sm:$0xff]
        %v1148 = vld [vmem:[%s354 + $0x1158] sm:$0xff]
        %v1149 = vld [vmem:[%s354 + $0x1160] sm:$0xff]
        %v1150 = vld [vmem:[%s354 + $0x1168] sm:$0xff]
        %v1151 = vld [vmem:[%s354 + $0x1170] sm:$0xff]
        %v1152 = vld [vmem:[%s354 + $0x1178] sm:$0xff]
        %v1153 = vld [vmem:[%s354 + $0x1180] sm:$0xff]
        %v1154 = vld [vmem:[%s354 + $0x1188] sm:$0xff]
        %v1155 = vld [vmem:[%s354 + $0x1190] sm:$0xff]
        %v1156 = vld [vmem:[%s354 + $0x1198] sm:$0xff]
        %v1157 = vld [vmem:[%s354 + $0x11a0] sm:$0xff]
        %v1158 = vld [vmem:[%s354 + $0x11a8] sm:$0xff]
        %v1159 = vld [vmem:[%s354 + $0x11b0] sm:$0xff]
        %v1160 = vld [vmem:[%s354 + $0x11b8] sm:$0xff]
        %v1161 = vld [vmem:[%s354 + $0x11c0] sm:$0xff]
        %v1162 = vld [vmem:[%s354 + $0x11c8] sm:$0xff]
        %v1163 = vld [vmem:[%s354 + $0x11d0] sm:$0xff]
        %v1164 = vld [vmem:[%s354 + $0x11d8] sm:$0xff]
        %v1165 = vld [vmem:[%s354 + $0x11e0] sm:$0xff]
        %v1166 = vld [vmem:[%s354 + $0x11e8] sm:$0xff]
        %v1167 = vld [vmem:[%s354 + $0x11f0] sm:$0xff]
        %v1168 = vld [vmem:[%s354 + $0x11f8] sm:$0xff]
        %v1169 = vld [vmem:[%s354 + $0x1200] sm:$0xff]
        %v1170 = vld [vmem:[%s354 + $0x1208] sm:$0xff]
        %v1171 = vld [vmem:[%s354 + $0x1210] sm:$0xff]
        %v1172 = vld [vmem:[%s354 + $0x1218] sm:$0xff]
        %v1173 = vld [vmem:[%s354 + $0x1220] sm:$0xff]
        %v1174 = vld [vmem:[%s354 + $0x1228] sm:$0xff]
        %v1175 = vld [vmem:[%s354 + $0x1230] sm:$0xff]
        %v1176 = vld [vmem:[%s354 + $0x1238] sm:$0xff]
        %v1177 = vld [vmem:[%s354 + $0x1240] sm:$0xff]
        %v1178 = vld [vmem:[%s354 + $0x1248] sm:$0xff]
        %v1179 = vld [vmem:[%s354 + $0x1250] sm:$0xff]
        %v1180 = vld [vmem:[%s354 + $0x1258] sm:$0xff]
        %v1181 = vld [vmem:[%s354 + $0x1260] sm:$0xff]
        %v1182 = vld [vmem:[%s354 + $0x1268] sm:$0xff]
        %v1183 = vld [vmem:[%s354 + $0x1270] sm:$0xff]
        %v1184 = vld [vmem:[%s354 + $0x1278] sm:$0xff]
        %v1185 = vld [vmem:[%s354 + $0x1280] sm:$0xff]
        %v1186 = vld [vmem:[%s354 + $0x1288] sm:$0xff]
        %v1187 = vld [vmem:[%s354 + $0x1290] sm:$0xff]
        %v1188 = vld [vmem:[%s354 + $0x1298] sm:$0xff]
        %v1189 = vld [vmem:[%s354 + $0x12a0] sm:$0xff]
        %v1190 = vld [vmem:[%s354 + $0x12a8] sm:$0xff]
        %v1191 = vld [vmem:[%s354 + $0x12b0] sm:$0xff]
        %v1192 = vld [vmem:[%s354 + $0x12b8] sm:$0xff]
        %v1193 = vld [vmem:[%s354 + $0x12c0] sm:$0xff]
        %v1194 = vld [vmem:[%s354 + $0x12c8] sm:$0xff]
        %v1195 = vld [vmem:[%s354 + $0x12d0] sm:$0xff]
        %v1196 = vld [vmem:[%s354 + $0x12d8] sm:$0xff]
        %v1197 = vld [vmem:[%s354 + $0x12e0] sm:$0xff]
        %v1198 = vld [vmem:[%s354 + $0x12e8] sm:$0xff]
        %v1199 = vld [vmem:[%s354 + $0x12f0] sm:$0xff]
        %v1200 = vld [vmem:[%s354 + $0x12f8] sm:$0xff]
        %v1201 = vld [vmem:[%s354 + $0x1300] sm:$0xff]
        %v1202 = vld [vmem:[%s354 + $0x1308] sm:$0xff]
        %v1203 = vld [vmem:[%s354 + $0x1310] sm:$0xff]
        %v1204 = vld [vmem:[%s354 + $0x1318] sm:$0xff]
        %v1205 = vld [vmem:[%s354 + $0x1320] sm:$0xff]
        %v1206 = vld [vmem:[%s354 + $0x1328] sm:$0xff]
        %v1207 = vld [vmem:[%s354 + $0x1330] sm:$0xff]
        %v1208 = vld [vmem:[%s354 + $0x1338] sm:$0xff]
        %v1209 = vld [vmem:[%s354 + $0x1340] sm:$0xff]
        %v1210 = vld [vmem:[%s354 + $0x1348] sm:$0xff]
        %v1211 = vld [vmem:[%s354 + $0x1350] sm:$0xff]
        %v1212 = vld [vmem:[%s354 + $0x1358] sm:$0xff]
        %v1213 = vld [vmem:[%s354 + $0x1360] sm:$0xff]
        %v1214 = vld [vmem:[%s354 + $0x1368] sm:$0xff]
        %v1215 = vld [vmem:[%s354 + $0x1370] sm:$0xff]
        %v1216 = vld [vmem:[%s354 + $0x1378] sm:$0xff]
        %v1217 = vld [vmem:[%s354 + $0x1380] sm:$0xff]
        %v1218 = vld [vmem:[%s354 + $0x1388] sm:$0xff]
        %v1219 = vld [vmem:[%s354 + $0x1390] sm:$0xff]
        %v1220 = vld [vmem:[%s354 + $0x1398] sm:$0xff]
        %v1221 = vld [vmem:[%s354 + $0x13a0] sm:$0xff]
        %v1222 = vld [vmem:[%s354 + $0x13a8] sm:$0xff]
        %v1223 = vld [vmem:[%s354 + $0x13b0] sm:$0xff]
        %v1224 = vld [vmem:[%s354 + $0x13b8] sm:$0xff]
        %v1225 = vld [vmem:[%s354 + $0x13c0] sm:$0xff]
        %v1226 = vld [vmem:[%s354 + $0x13c8] sm:$0xff]
        %v1227 = vld [vmem:[%s354 + $0x13d0] sm:$0xff]
        %v1228 = vld [vmem:[%s354 + $0x13d8] sm:$0xff]
        %v1229 = vld [vmem:[%s354 + $0x13e0] sm:$0xff]
        %v1230 = vld [vmem:[%s354 + $0x13e8] sm:$0xff]
        %v1231 = vld [vmem:[%s354 + $0x13f0] sm:$0xff]
        %v1232 = vld [vmem:[%s354 + $0x13f8] sm:$0xff]
        %v1233 = vld [vmem:[%s354 + $0x1400] sm:$0xff]
        %v1234 = vld [vmem:[%s354 + $0x1408] sm:$0xff]
        %v1235 = vld [vmem:[%s354 + $0x1410] sm:$0xff]
        %v1236 = vld [vmem:[%s354 + $0x1418] sm:$0xff]
        %v1237 = vld [vmem:[%s354 + $0x1420] sm:$0xff]
        %v1238 = vld [vmem:[%s354 + $0x1428] sm:$0xff]
        %v1239 = vld [vmem:[%s354 + $0x1430] sm:$0xff]
        %v1240 = vld [vmem:[%s354 + $0x1438] sm:$0xff]
        %v1241 = vld [vmem:[%s354 + $0x1440] sm:$0xff]
        %v1242 = vld [vmem:[%s354 + $0x1448] sm:$0xff]
        %v1243 = vld [vmem:[%s354 + $0x1450] sm:$0xff]
        %v1244 = vld [vmem:[%s354 + $0x1458] sm:$0xff]
        %v1245 = vld [vmem:[%s354 + $0x1460] sm:$0xff]
        %v1246 = vld [vmem:[%s354 + $0x1468] sm:$0xff]
        %v1247 = vld [vmem:[%s354 + $0x1470] sm:$0xff]
        %v1248 = vld [vmem:[%s354 + $0x1478] sm:$0xff]
        %v1249 = vld [vmem:[%s354 + $0x1480] sm:$0xff]
        %v1250 = vld [vmem:[%s354 + $0x1488] sm:$0xff]
        %v1251 = vld [vmem:[%s354 + $0x1490] sm:$0xff]
        %v1252 = vld [vmem:[%s354 + $0x1498] sm:$0xff]
        %v1253 = vld [vmem:[%s354 + $0x14a0] sm:$0xff]
        %v1254 = vld [vmem:[%s354 + $0x14a8] sm:$0xff]
        %v1255 = vld [vmem:[%s354 + $0x14b0] sm:$0xff]
        %v1256 = vld [vmem:[%s354 + $0x14b8] sm:$0xff]
        %v1257 = vld [vmem:[%s354 + $0x14c0] sm:$0xff]
        %v1258 = vld [vmem:[%s354 + $0x14c8] sm:$0xff]
        %v1259 = vld [vmem:[%s354 + $0x14d0] sm:$0xff]
        %v1260 = vld [vmem:[%s354 + $0x14d8] sm:$0xff]
        %v1261 = vld [vmem:[%s354 + $0x14e0] sm:$0xff]
        %v1262 = vld [vmem:[%s354 + $0x14e8] sm:$0xff]
        %v1263 = vld [vmem:[%s354 + $0x14f0] sm:$0xff]
        %v1264 = vld [vmem:[%s354 + $0x14f8] sm:$0xff]
        %v1265 = vld [vmem:[%s354 + $0x1500] sm:$0xff]
        %v1266 = vld [vmem:[%s354 + $0x1508] sm:$0xff]
        %v1267 = vld [vmem:[%s354 + $0x1510] sm:$0xff]
        %v1268 = vld [vmem:[%s354 + $0x1518] sm:$0xff]
        %v1269 = vld [vmem:[%s354 + $0x1520] sm:$0xff]
        %v1270 = vld [vmem:[%s354 + $0x1528] sm:$0xff]
        %v1271 = vld [vmem:[%s354 + $0x1530] sm:$0xff]
        %v1272 = vld [vmem:[%s354 + $0x1538] sm:$0xff]
        %v1273 = vld [vmem:[%s354 + $0x1540] sm:$0xff]
        %v1274 = vld [vmem:[%s354 + $0x1548] sm:$0xff]
        %v1275 = vld [vmem:[%s354 + $0x1550] sm:$0xff]
        %v1276 = vld [vmem:[%s354 + $0x1558] sm:$0xff]
        %v1277 = vld [vmem:[%s354 + $0x1560] sm:$0xff]
        %v1278 = vld [vmem:[%s354 + $0x1568] sm:$0xff]
        %v1279 = vld [vmem:[%s354 + $0x1570] sm:$0xff]
        %v1280 = vld [vmem:[%s354 + $0x1578] sm:$0xff]
        %v1281 = vld [vmem:[%s354 + $0x1580] sm:$0xff]
        %v1282 = vld [vmem:[%s354 + $0x1588] sm:$0xff]
        %v1283 = vld [vmem:[%s354 + $0x1590] sm:$0xff]
        %v1284 = vld [vmem:[%s354 + $0x1598] sm:$0xff]
        %v1285 = vld [vmem:[%s354 + $0x15a0] sm:$0xff]
        %v1286 = vld [vmem:[%s354 + $0x15a8] sm:$0xff]
        %v1287 = vld [vmem:[%s354 + $0x15b0] sm:$0xff]
        %v1288 = vld [vmem:[%s354 + $0x15b8] sm:$0xff]
        %v1289 = vld [vmem:[%s354 + $0x15c0] sm:$0xff]
        %v1290 = vld [vmem:[%s354 + $0x15c8] sm:$0xff]
        %v1291 = vld [vmem:[%s354 + $0x15d0] sm:$0xff]
        %v1292 = vld [vmem:[%s354 + $0x15d8] sm:$0xff]
        %v1293 = vld [vmem:[%s354 + $0x15e0] sm:$0xff]
        %v1294 = vld [vmem:[%s354 + $0x15e8] sm:$0xff]
        %v1295 = vld [vmem:[%s354 + $0x15f0] sm:$0xff]
        %v1296 = vld [vmem:[%s354 + $0x15f8] sm:$0xff]
        %v1297 = vld [vmem:[%s354 + $0x1600] sm:$0xff]
        %v1298 = vld [vmem:[%s354 + $0x1608] sm:$0xff]
        %v1299 = vld [vmem:[%s354 + $0x1610] sm:$0xff]
        %v1300 = vld [vmem:[%s354 + $0x1618] sm:$0xff]
        %v1301 = vld [vmem:[%s354 + $0x1620] sm:$0xff]
        %v1302 = vld [vmem:[%s354 + $0x1628] sm:$0xff]
        %v1303 = vld [vmem:[%s354 + $0x1630] sm:$0xff]
        %v1304 = vld [vmem:[%s354 + $0x1638] sm:$0xff]
        %v1305 = vld [vmem:[%s354 + $0x1640] sm:$0xff]
        %v1306 = vld [vmem:[%s354 + $0x1648] sm:$0xff]
        %v1307 = vld [vmem:[%s354 + $0x1650] sm:$0xff]
        %v1308 = vld [vmem:[%s354 + $0x1658] sm:$0xff]
        %v1309 = vld [vmem:[%s354 + $0x1660] sm:$0xff]
        %v1310 = vld [vmem:[%s354 + $0x1668] sm:$0xff]
        %v1311 = vld [vmem:[%s354 + $0x1670] sm:$0xff]
        %v1312 = vld [vmem:[%s354 + $0x1678] sm:$0xff]
        %v1313 = vld [vmem:[%s354 + $0x1680] sm:$0xff]
        %v1314 = vld [vmem:[%s354 + $0x1688] sm:$0xff]
        %v1315 = vld [vmem:[%s354 + $0x1690] sm:$0xff]
        %v1316 = vld [vmem:[%s354 + $0x1698] sm:$0xff]
        %v1317 = vld [vmem:[%s354 + $0x16a0] sm:$0xff]
        %v1318 = vld [vmem:[%s354 + $0x16a8] sm:$0xff]
        %v1319 = vld [vmem:[%s354 + $0x16b0] sm:$0xff]
        %v1320 = vld [vmem:[%s354 + $0x16b8] sm:$0xff]
        %v1321 = vld [vmem:[%s354 + $0x16c0] sm:$0xff]
        %v1322 = vld [vmem:[%s354 + $0x16c8] sm:$0xff]
        %v1323 = vld [vmem:[%s354 + $0x16d0] sm:$0xff]
        %v1324 = vld [vmem:[%s354 + $0x16d8] sm:$0xff]
        %v1325 = vld [vmem:[%s354 + $0x16e0] sm:$0xff]
        %v1326 = vld [vmem:[%s354 + $0x16e8] sm:$0xff]
        %v1327 = vld [vmem:[%s354 + $0x16f0] sm:$0xff]
        %v1328 = vld [vmem:[%s354 + $0x16f8] sm:$0xff]
        %v1329 = vld [vmem:[%s354 + $0x1700] sm:$0xff]
        %v1330 = vld [vmem:[%s354 + $0x1708] sm:$0xff]
        %v1331 = vld [vmem:[%s354 + $0x1710] sm:$0xff]
        %v1332 = vld [vmem:[%s354 + $0x1718] sm:$0xff]
        %v1333 = vld [vmem:[%s354 + $0x1720] sm:$0xff]
        %v1334 = vld [vmem:[%s354 + $0x1728] sm:$0xff]
        %v1335 = vld [vmem:[%s354 + $0x1730] sm:$0xff]
        %v1336 = vld [vmem:[%s354 + $0x1738] sm:$0xff]
        %v1337 = vld [vmem:[%s354 + $0x1740] sm:$0xff]
        %v1338 = vld [vmem:[%s354 + $0x1748] sm:$0xff]
        %v1339 = vld [vmem:[%s354 + $0x1750] sm:$0xff]
        %v1340 = vld [vmem:[%s354 + $0x1758] sm:$0xff]
        %v1341 = vld [vmem:[%s354 + $0x1760] sm:$0xff]
        %v1342 = vld [vmem:[%s354 + $0x1768] sm:$0xff]
        %v1343 = vld [vmem:[%s354 + $0x1770] sm:$0xff]
        %v1344 = vld [vmem:[%s354 + $0x1778] sm:$0xff]
        %v1345 = vld [vmem:[%s354 + $0x1780] sm:$0xff]
        %v1346 = vld [vmem:[%s354 + $0x1788] sm:$0xff]
        %v1347 = vld [vmem:[%s354 + $0x1790] sm:$0xff]
        %v1348 = vld [vmem:[%s354 + $0x1798] sm:$0xff]
        %v1349 = vld [vmem:[%s354 + $0x17a0] sm:$0xff]
        %v1350 = vld [vmem:[%s354 + $0x17a8] sm:$0xff]
        %v1351 = vld [vmem:[%s354 + $0x17b0] sm:$0xff]
        %v1352 = vld [vmem:[%s354 + $0x17b8] sm:$0xff]
        %v1353 = vld [vmem:[%s354 + $0x17c0] sm:$0xff]
        %v1354 = vld [vmem:[%s354 + $0x17c8] sm:$0xff]
        %v1355 = vld [vmem:[%s354 + $0x17d0] sm:$0xff]
        %v1356 = vld [vmem:[%s354 + $0x17d8] sm:$0xff]
        %v1357 = vld [vmem:[%s354 + $0x17e0] sm:$0xff]
        %v1358 = vld [vmem:[%s354 + $0x17e8] sm:$0xff]
        %v1359 = vld [vmem:[%s354 + $0x17f0] sm:$0xff]
        %v1360 = vld [vmem:[%s354 + $0x17f8] sm:$0xff]
        %v1361 = vld [vmem:[%s363] sm:$0xff]
        %v1362 = vld [vmem:[%s363 + $0x8] sm:$0xff]
        %v1363 = vld [vmem:[%s363 + $0x10] sm:$0xff]
        %v1364 = vld [vmem:[%s363 + $0x18] sm:$0xff]
        %v1365 = vld [vmem:[%s363 + $0x20] sm:$0xff]
        %v1366 = vld [vmem:[%s363 + $0x28] sm:$0xff]
        %v1367 = vld [vmem:[%s363 + $0x30] sm:$0xff]
        %v1368 = vld [vmem:[%s363 + $0x38] sm:$0xff]
        %v1369 = vld [vmem:[%s363 + $0x40] sm:$0xff]
        %v1370 = vld [vmem:[%s363 + $0x48] sm:$0xff]
        %v1371 = vld [vmem:[%s363 + $0x50] sm:$0xff]
        %v1372 = vld [vmem:[%s363 + $0x58] sm:$0xff]
        %v1373 = vunpack.c.l.bf16 %v1361
        %v1374 = vunpack.c.h.bf16 %v1361
        %v1375 = vunpack.c.l.bf16 %v1362
        %v1376 = vunpack.c.h.bf16 %v1362
        %v1377 = vunpack.c.l.bf16 %v1363
        %v1378 = vunpack.c.h.bf16 %v1363
        %v1379 = vunpack.c.l.bf16 %v1364
        %v1380 = vunpack.c.h.bf16 %v1364
        %v1381 = vunpack.c.l.bf16 %v1365
        %v1382 = vunpack.c.h.bf16 %v1365
        %v1383 = vunpack.c.l.bf16 %v1366
        %v1384 = vunpack.c.h.bf16 %v1366
        %v1385 = vunpack.c.l.bf16 %v1367
        %v1386 = vunpack.c.h.bf16 %v1367
        %v1387 = vunpack.c.l.bf16 %v1368
        %v1388 = vunpack.c.h.bf16 %v1368
        %v1389 = vunpack.c.l.bf16 %v1369
        %v1390 = vunpack.c.h.bf16 %v1369
        %v1391 = vunpack.c.l.bf16 %v1370
        %v1392 = vunpack.c.h.bf16 %v1370
        %v1393 = vunpack.c.l.bf16 %v1371
        %v1394 = vunpack.c.h.bf16 %v1371
        %v1395 = vunpack.c.l.bf16 %v1372
        %v1396 = vunpack.c.h.bf16 %v1372
        %v1421 = vlaneseq
        %v1422 = vshrl.u32 %v1421, 7
        %v1423 = vsub.s32 0, %v1422
        %v1424 = vrot.slane %v1373, %v1423
        %v1425 = vlaneseq
        %v1426 = vshrl.u32 %v1425, 7
        %v1427 = vsub.s32 2, %v1426
        %v1428 = vrot.slane %v1373, %v1427
        %v1429 = vlaneseq
        %v1430 = vshrl.u32 %v1429, 7
        %v1431 = vsub.s32 4, %v1430
        %v1432 = vrot.slane %v1373, %v1431
        %v1433 = vlaneseq
        %v1434 = vshrl.u32 %v1433, 7
        %v1435 = vsub.s32 6, %v1434
        %v1436 = vrot.slane %v1373, %v1435
        %v1437 = vlaneseq
        %v1438 = vshrl.u32 %v1437, 7
        %v1439 = vsub.s32 0, %v1438
        %v1440 = vrot.slane %v1374, %v1439
        %v1441 = vlaneseq
        %v1442 = vshrl.u32 %v1441, 7
        %v1443 = vsub.s32 2, %v1442
        %v1444 = vrot.slane %v1374, %v1443
        %v1445 = vlaneseq
        %v1446 = vshrl.u32 %v1445, 7
        %v1447 = vsub.s32 4, %v1446
        %v1448 = vrot.slane %v1374, %v1447
        %v1449 = vlaneseq
        %v1450 = vshrl.u32 %v1449, 7
        %v1451 = vsub.s32 6, %v1450
        %v1452 = vrot.slane %v1374, %v1451
        %v1453 = vlaneseq
        %v1454 = vshrl.u32 %v1453, 7
        %v1455 = vsub.s32 0, %v1454
        %v1456 = vrot.slane %v1375, %v1455
        %v1457 = vlaneseq
        %v1458 = vshrl.u32 %v1457, 7
        %v1459 = vsub.s32 2, %v1458
        %v1460 = vrot.slane %v1375, %v1459
        %v1461 = vlaneseq
        %v1462 = vshrl.u32 %v1461, 7
        %v1463 = vsub.s32 4, %v1462
        %v1464 = vrot.slane %v1375, %v1463
        %v1465 = vlaneseq
        %v1466 = vshrl.u32 %v1465, 7
        %v1467 = vsub.s32 6, %v1466
        %v1468 = vrot.slane %v1375, %v1467
        %v1469 = vlaneseq
        %v1470 = vshrl.u32 %v1469, 7
        %v1471 = vsub.s32 0, %v1470
        %v1472 = vrot.slane %v1376, %v1471
        %v1473 = vlaneseq
        %v1474 = vshrl.u32 %v1473, 7
        %v1475 = vsub.s32 2, %v1474
        %v1476 = vrot.slane %v1376, %v1475
        %v1477 = vlaneseq
        %v1478 = vshrl.u32 %v1477, 7
        %v1479 = vsub.s32 4, %v1478
        %v1480 = vrot.slane %v1376, %v1479
        %v1481 = vlaneseq
        %v1482 = vshrl.u32 %v1481, 7
        %v1483 = vsub.s32 6, %v1482
        %v1484 = vrot.slane %v1376, %v1483
        %v1485 = vlaneseq
        %v1486 = vshrl.u32 %v1485, 7
        %v1487 = vsub.s32 0, %v1486
        %v1488 = vrot.slane %v1377, %v1487
        %v1489 = vlaneseq
        %v1490 = vshrl.u32 %v1489, 7
        %v1491 = vsub.s32 2, %v1490
        %v1492 = vrot.slane %v1377, %v1491
        %v1493 = vlaneseq
        %v1494 = vshrl.u32 %v1493, 7
        %v1495 = vsub.s32 4, %v1494
        %v1496 = vrot.slane %v1377, %v1495
        %v1497 = vlaneseq
        %v1498 = vshrl.u32 %v1497, 7
        %v1499 = vsub.s32 6, %v1498
        %v1500 = vrot.slane %v1377, %v1499
        %v1501 = vlaneseq
        %v1502 = vshrl.u32 %v1501, 7
        %v1503 = vsub.s32 0, %v1502
        %v1504 = vrot.slane %v1378, %v1503
        %v1505 = vlaneseq
        %v1506 = vshrl.u32 %v1505, 7
        %v1507 = vsub.s32 2, %v1506
        %v1508 = vrot.slane %v1378, %v1507
        %v1509 = vlaneseq
        %v1510 = vshrl.u32 %v1509, 7
        %v1511 = vsub.s32 4, %v1510
        %v1512 = vrot.slane %v1378, %v1511
        %v1513 = vlaneseq
        %v1514 = vshrl.u32 %v1513, 7
        %v1515 = vsub.s32 6, %v1514
        %v1516 = vrot.slane %v1378, %v1515
        %v1517 = vlaneseq
        %v1518 = vshrl.u32 %v1517, 7
        %v1519 = vsub.s32 0, %v1518
        %v1520 = vrot.slane %v1379, %v1519
        %v1521 = vlaneseq
        %v1522 = vshrl.u32 %v1521, 7
        %v1523 = vsub.s32 2, %v1522
        %v1524 = vrot.slane %v1379, %v1523
        %v1525 = vlaneseq
        %v1526 = vshrl.u32 %v1525, 7
        %v1527 = vsub.s32 4, %v1526
        %v1528 = vrot.slane %v1379, %v1527
        %v1529 = vlaneseq
        %v1530 = vshrl.u32 %v1529, 7
        %v1531 = vsub.s32 6, %v1530
        %v1532 = vrot.slane %v1379, %v1531
        %v1533 = vlaneseq
        %v1534 = vshrl.u32 %v1533, 7
        %v1535 = vsub.s32 0, %v1534
        %v1536 = vrot.slane %v1380, %v1535
        %v1537 = vlaneseq
        %v1538 = vshrl.u32 %v1537, 7
        %v1539 = vsub.s32 2, %v1538
        %v1540 = vrot.slane %v1380, %v1539
        %v1541 = vlaneseq
        %v1542 = vshrl.u32 %v1541, 7
        %v1543 = vsub.s32 4, %v1542
        %v1544 = vrot.slane %v1380, %v1543
        %v1545 = vlaneseq
        %v1546 = vshrl.u32 %v1545, 7
        %v1547 = vsub.s32 6, %v1546
        %v1548 = vrot.slane %v1380, %v1547
        %v1549 = vlaneseq
        %v1550 = vshrl.u32 %v1549, 7
        %v1551 = vsub.s32 0, %v1550
        %v1552 = vrot.slane %v1381, %v1551
        %v1553 = vlaneseq
        %v1554 = vshrl.u32 %v1553, 7
        %v1555 = vsub.s32 2, %v1554
        %v1556 = vrot.slane %v1381, %v1555
        %v1557 = vlaneseq
        %v1558 = vshrl.u32 %v1557, 7
        %v1559 = vsub.s32 4, %v1558
        %v1560 = vrot.slane %v1381, %v1559
        %v1561 = vlaneseq
        %v1562 = vshrl.u32 %v1561, 7
        %v1563 = vsub.s32 6, %v1562
        %v1564 = vrot.slane %v1381, %v1563
        %v1565 = vlaneseq
        %v1566 = vshrl.u32 %v1565, 7
        %v1567 = vsub.s32 0, %v1566
        %v1568 = vrot.slane %v1382, %v1567
        %v1569 = vlaneseq
        %v1570 = vshrl.u32 %v1569, 7
        %v1571 = vsub.s32 2, %v1570
        %v1572 = vrot.slane %v1382, %v1571
        %v1573 = vlaneseq
        %v1574 = vshrl.u32 %v1573, 7
        %v1575 = vsub.s32 4, %v1574
        %v1576 = vrot.slane %v1382, %v1575
        %v1577 = vlaneseq
        %v1578 = vshrl.u32 %v1577, 7
        %v1579 = vsub.s32 6, %v1578
        %v1580 = vrot.slane %v1382, %v1579
        %v1581 = vlaneseq
        %v1582 = vshrl.u32 %v1581, 7
        %v1583 = vsub.s32 0, %v1582
        %v1584 = vrot.slane %v1383, %v1583
        %v1585 = vlaneseq
        %v1586 = vshrl.u32 %v1585, 7
        %v1587 = vsub.s32 2, %v1586
        %v1588 = vrot.slane %v1383, %v1587
        %v1589 = vlaneseq
        %v1590 = vshrl.u32 %v1589, 7
        %v1591 = vsub.s32 4, %v1590
        %v1592 = vrot.slane %v1383, %v1591
        %v1593 = vlaneseq
        %v1594 = vshrl.u32 %v1593, 7
        %v1595 = vsub.s32 6, %v1594
        %v1596 = vrot.slane %v1383, %v1595
        %v1597 = vlaneseq
        %v1598 = vshrl.u32 %v1597, 7
        %v1599 = vsub.s32 0, %v1598
        %v1600 = vrot.slane %v1384, %v1599
        %v1601 = vlaneseq
        %v1602 = vshrl.u32 %v1601, 7
        %v1603 = vsub.s32 2, %v1602
        %v1604 = vrot.slane %v1384, %v1603
        %v1605 = vlaneseq
        %v1606 = vshrl.u32 %v1605, 7
        %v1607 = vsub.s32 4, %v1606
        %v1608 = vrot.slane %v1384, %v1607
        %v1609 = vlaneseq
        %v1610 = vshrl.u32 %v1609, 7
        %v1611 = vsub.s32 6, %v1610
        %v1612 = vrot.slane %v1384, %v1611
        %v1613 = vlaneseq
        %v1614 = vshrl.u32 %v1613, 7
        %v1615 = vsub.s32 0, %v1614
        %v1616 = vrot.slane %v1385, %v1615
        %v1617 = vlaneseq
        %v1618 = vshrl.u32 %v1617, 7
        %v1619 = vsub.s32 2, %v1618
        %v1620 = vrot.slane %v1385, %v1619
        %v1621 = vlaneseq
        %v1622 = vshrl.u32 %v1621, 7
        %v1623 = vsub.s32 4, %v1622
        %v1624 = vrot.slane %v1385, %v1623
        %v1625 = vlaneseq
        %v1626 = vshrl.u32 %v1625, 7
        %v1627 = vsub.s32 6, %v1626
        %v1628 = vrot.slane %v1385, %v1627
        %v1629 = vlaneseq
        %v1630 = vshrl.u32 %v1629, 7
        %v1631 = vsub.s32 0, %v1630
        %v1632 = vrot.slane %v1386, %v1631
        %v1633 = vlaneseq
        %v1634 = vshrl.u32 %v1633, 7
        %v1635 = vsub.s32 2, %v1634
        %v1636 = vrot.slane %v1386, %v1635
        %v1637 = vlaneseq
        %v1638 = vshrl.u32 %v1637, 7
        %v1639 = vsub.s32 4, %v1638
        %v1640 = vrot.slane %v1386, %v1639
        %v1641 = vlaneseq
        %v1642 = vshrl.u32 %v1641, 7
        %v1643 = vsub.s32 6, %v1642
        %v1644 = vrot.slane %v1386, %v1643
        %v1645 = vlaneseq
        %v1646 = vshrl.u32 %v1645, 7
        %v1647 = vsub.s32 0, %v1646
        %v1648 = vrot.slane %v1387, %v1647
        %v1649 = vlaneseq
        %v1650 = vshrl.u32 %v1649, 7
        %v1651 = vsub.s32 2, %v1650
        %v1652 = vrot.slane %v1387, %v1651
        %v1653 = vlaneseq
        %v1654 = vshrl.u32 %v1653, 7
        %v1655 = vsub.s32 4, %v1654
        %v1656 = vrot.slane %v1387, %v1655
        %v1657 = vlaneseq
        %v1658 = vshrl.u32 %v1657, 7
        %v1659 = vsub.s32 6, %v1658
        %v1660 = vrot.slane %v1387, %v1659
        %v1661 = vlaneseq
        %v1662 = vshrl.u32 %v1661, 7
        %v1663 = vsub.s32 0, %v1662
        %v1664 = vrot.slane %v1388, %v1663
        %v1665 = vlaneseq
        %v1666 = vshrl.u32 %v1665, 7
        %v1667 = vsub.s32 2, %v1666
        %v1668 = vrot.slane %v1388, %v1667
        %v1669 = vlaneseq
        %v1670 = vshrl.u32 %v1669, 7
        %v1671 = vsub.s32 4, %v1670
        %v1672 = vrot.slane %v1388, %v1671
        %v1673 = vlaneseq
        %v1674 = vshrl.u32 %v1673, 7
        %v1675 = vsub.s32 6, %v1674
        %v1676 = vrot.slane %v1388, %v1675
        %v1677 = vlaneseq
        %v1678 = vshrl.u32 %v1677, 7
        %v1679 = vsub.s32 0, %v1678
        %v1680 = vrot.slane %v1389, %v1679
        %v1681 = vlaneseq
        %v1682 = vshrl.u32 %v1681, 7
        %v1683 = vsub.s32 2, %v1682
        %v1684 = vrot.slane %v1389, %v1683
        %v1685 = vlaneseq
        %v1686 = vshrl.u32 %v1685, 7
        %v1687 = vsub.s32 4, %v1686
        %v1688 = vrot.slane %v1389, %v1687
        %v1689 = vlaneseq
        %v1690 = vshrl.u32 %v1689, 7
        %v1691 = vsub.s32 6, %v1690
        %v1692 = vrot.slane %v1389, %v1691
        %v1693 = vlaneseq
        %v1694 = vshrl.u32 %v1693, 7
        %v1695 = vsub.s32 0, %v1694
        %v1696 = vrot.slane %v1390, %v1695
        %v1697 = vlaneseq
        %v1698 = vshrl.u32 %v1697, 7
        %v1699 = vsub.s32 2, %v1698
        %v1700 = vrot.slane %v1390, %v1699
        %v1701 = vlaneseq
        %v1702 = vshrl.u32 %v1701, 7
        %v1703 = vsub.s32 4, %v1702
        %v1704 = vrot.slane %v1390, %v1703
        %v1705 = vlaneseq
        %v1706 = vshrl.u32 %v1705, 7
        %v1707 = vsub.s32 6, %v1706
        %v1708 = vrot.slane %v1390, %v1707
        %v1709 = vlaneseq
        %v1710 = vshrl.u32 %v1709, 7
        %v1711 = vsub.s32 0, %v1710
        %v1712 = vrot.slane %v1391, %v1711
        %v1713 = vlaneseq
        %v1714 = vshrl.u32 %v1713, 7
        %v1715 = vsub.s32 2, %v1714
        %v1716 = vrot.slane %v1391, %v1715
        %v1717 = vlaneseq
        %v1718 = vshrl.u32 %v1717, 7
        %v1719 = vsub.s32 4, %v1718
        %v1720 = vrot.slane %v1391, %v1719
        %v1721 = vlaneseq
        %v1722 = vshrl.u32 %v1721, 7
        %v1723 = vsub.s32 6, %v1722
        %v1724 = vrot.slane %v1391, %v1723
        %v1725 = vlaneseq
        %v1726 = vshrl.u32 %v1725, 7
        %v1727 = vsub.s32 0, %v1726
        %v1728 = vrot.slane %v1392, %v1727
        %v1729 = vlaneseq
        %v1730 = vshrl.u32 %v1729, 7
        %v1731 = vsub.s32 2, %v1730
        %v1732 = vrot.slane %v1392, %v1731
        %v1733 = vlaneseq
        %v1734 = vshrl.u32 %v1733, 7
        %v1735 = vsub.s32 4, %v1734
        %v1736 = vrot.slane %v1392, %v1735
        %v1737 = vlaneseq
        %v1738 = vshrl.u32 %v1737, 7
        %v1739 = vsub.s32 6, %v1738
        %v1740 = vrot.slane %v1392, %v1739
        %v1741 = vlaneseq
        %v1742 = vshrl.u32 %v1741, 7
        %v1743 = vsub.s32 0, %v1742
        %v1744 = vrot.slane %v1393, %v1743
        %v1745 = vlaneseq
        %v1746 = vshrl.u32 %v1745, 7
        %v1747 = vsub.s32 2, %v1746
        %v1748 = vrot.slane %v1393, %v1747
        %v1749 = vlaneseq
        %v1750 = vshrl.u32 %v1749, 7
        %v1751 = vsub.s32 4, %v1750
        %v1752 = vrot.slane %v1393, %v1751
        %v1753 = vlaneseq
        %v1754 = vshrl.u32 %v1753, 7
        %v1755 = vsub.s32 6, %v1754
        %v1756 = vrot.slane %v1393, %v1755
        %v1757 = vlaneseq
        %v1758 = vshrl.u32 %v1757, 7
        %v1759 = vsub.s32 0, %v1758
        %v1760 = vrot.slane %v1394, %v1759
        %v1761 = vlaneseq
        %v1762 = vshrl.u32 %v1761, 7
        %v1763 = vsub.s32 2, %v1762
        %v1764 = vrot.slane %v1394, %v1763
        %v1765 = vlaneseq
        %v1766 = vshrl.u32 %v1765, 7
        %v1767 = vsub.s32 4, %v1766
        %v1768 = vrot.slane %v1394, %v1767
        %v1769 = vlaneseq
        %v1770 = vshrl.u32 %v1769, 7
        %v1771 = vsub.s32 6, %v1770
        %v1772 = vrot.slane %v1394, %v1771
        %v1773 = vlaneseq
        %v1774 = vshrl.u32 %v1773, 7
        %v1775 = vsub.s32 0, %v1774
        %v1776 = vrot.slane %v1395, %v1775
        %v1777 = vlaneseq
        %v1778 = vshrl.u32 %v1777, 7
        %v1779 = vsub.s32 2, %v1778
        %v1780 = vrot.slane %v1395, %v1779
        %v1781 = vlaneseq
        %v1782 = vshrl.u32 %v1781, 7
        %v1783 = vsub.s32 4, %v1782
        %v1784 = vrot.slane %v1395, %v1783
        %v1785 = vlaneseq
        %v1786 = vshrl.u32 %v1785, 7
        %v1787 = vsub.s32 6, %v1786
        %v1788 = vrot.slane %v1395, %v1787
        %v1789 = vlaneseq
        %v1790 = vshrl.u32 %v1789, 7
        %v1791 = vsub.s32 0, %v1790
        %v1792 = vrot.slane %v1396, %v1791
        %v1793 = vlaneseq
        %v1794 = vshrl.u32 %v1793, 7
        %v1795 = vsub.s32 2, %v1794
        %v1796 = vrot.slane %v1396, %v1795
        %v1797 = vlaneseq
        %v1798 = vshrl.u32 %v1797, 7
        %v1799 = vsub.s32 4, %v1798
        %v1800 = vrot.slane %v1396, %v1799
        %v1801 = vlaneseq
        %v1802 = vshrl.u32 %v1801, 7
        %v1803 = vsub.s32 6, %v1802
        %v1804 = vrot.slane %v1396, %v1803
        %v1901 = vlaneseq
        %v1902 = vshrl.u32 %v1901, 7
        %v1903 = vsub.s32 0, %v1902
        %v1904 = vrot.slane %v1424, %v1903
        %v1905 = vlaneseq
        %v1906 = vshrl.u32 %v1905, 7
        %v1907 = vsub.s32 0, %v1906
        %v1908 = vrot.slane %v1428, %v1907
        %v1909 = vlaneseq
        %v1910 = vshrl.u32 %v1909, 7
        %v1911 = vsub.s32 0, %v1910
        %v1912 = vrot.slane %v1432, %v1911
        %v1913 = vlaneseq
        %v1914 = vshrl.u32 %v1913, 7
        %v1915 = vsub.s32 0, %v1914
        %v1916 = vrot.slane %v1436, %v1915
        %v1917 = vlaneseq
        %v1918 = vshrl.u32 %v1917, 7
        %v1919 = vsub.s32 0, %v1918
        %v1920 = vrot.slane %v1440, %v1919
        %v1921 = vlaneseq
        %v1922 = vshrl.u32 %v1921, 7
        %v1923 = vsub.s32 0, %v1922
        %v1924 = vrot.slane %v1444, %v1923
        %v1925 = vlaneseq
        %v1926 = vshrl.u32 %v1925, 7
        %v1927 = vsub.s32 0, %v1926
        %v1928 = vrot.slane %v1448, %v1927
        %v1929 = vlaneseq
        %v1930 = vshrl.u32 %v1929, 7
        %v1931 = vsub.s32 0, %v1930
        %v1932 = vrot.slane %v1452, %v1931
        %v1933 = vlaneseq
        %v1934 = vshrl.u32 %v1933, 7
        %v1935 = vsub.s32 0, %v1934
        %v1936 = vrot.slane %v1456, %v1935
        %v1937 = vlaneseq
        %v1938 = vshrl.u32 %v1937, 7
        %v1939 = vsub.s32 0, %v1938
        %v1940 = vrot.slane %v1460, %v1939
        %v1941 = vlaneseq
        %v1942 = vshrl.u32 %v1941, 7
        %v1943 = vsub.s32 0, %v1942
        %v1944 = vrot.slane %v1464, %v1943
        %v1945 = vlaneseq
        %v1946 = vshrl.u32 %v1945, 7
        %v1947 = vsub.s32 0, %v1946
        %v1948 = vrot.slane %v1468, %v1947
        %v1949 = vlaneseq
        %v1950 = vshrl.u32 %v1949, 7
        %v1951 = vsub.s32 0, %v1950
        %v1952 = vrot.slane %v1472, %v1951
        %v1953 = vlaneseq
        %v1954 = vshrl.u32 %v1953, 7
        %v1955 = vsub.s32 0, %v1954
        %v1956 = vrot.slane %v1476, %v1955
        %v1957 = vlaneseq
        %v1958 = vshrl.u32 %v1957, 7
        %v1959 = vsub.s32 0, %v1958
        %v1960 = vrot.slane %v1480, %v1959
        %v1961 = vlaneseq
        %v1962 = vshrl.u32 %v1961, 7
        %v1963 = vsub.s32 0, %v1962
        %v1964 = vrot.slane %v1484, %v1963
        %v1965 = vlaneseq
        %v1966 = vshrl.u32 %v1965, 7
        %v1967 = vsub.s32 0, %v1966
        %v1968 = vrot.slane %v1488, %v1967
        %v1969 = vlaneseq
        %v1970 = vshrl.u32 %v1969, 7
        %v1971 = vsub.s32 0, %v1970
        %v1972 = vrot.slane %v1492, %v1971
        %v1973 = vlaneseq
        %v1974 = vshrl.u32 %v1973, 7
        %v1975 = vsub.s32 0, %v1974
        %v1976 = vrot.slane %v1496, %v1975
        %v1977 = vlaneseq
        %v1978 = vshrl.u32 %v1977, 7
        %v1979 = vsub.s32 0, %v1978
        %v1980 = vrot.slane %v1500, %v1979
        %v1981 = vlaneseq
        %v1982 = vshrl.u32 %v1981, 7
        %v1983 = vsub.s32 0, %v1982
        %v1984 = vrot.slane %v1504, %v1983
        %v1985 = vlaneseq
        %v1986 = vshrl.u32 %v1985, 7
        %v1987 = vsub.s32 0, %v1986
        %v1988 = vrot.slane %v1508, %v1987
        %v1989 = vlaneseq
        %v1990 = vshrl.u32 %v1989, 7
        %v1991 = vsub.s32 0, %v1990
        %v1992 = vrot.slane %v1512, %v1991
        %v1993 = vlaneseq
        %v1994 = vshrl.u32 %v1993, 7
        %v1995 = vsub.s32 0, %v1994
        %v1996 = vrot.slane %v1516, %v1995
        %v1997 = vlaneseq
        %v1998 = vshrl.u32 %v1997, 7
        %v1999 = vsub.s32 0, %v1998
        %v2000 = vrot.slane %v1520, %v1999
        %v2001 = vlaneseq
        %v2002 = vshrl.u32 %v2001, 7
        %v2003 = vsub.s32 0, %v2002
        %v2004 = vrot.slane %v1524, %v2003
        %v2005 = vlaneseq
        %v2006 = vshrl.u32 %v2005, 7
        %v2007 = vsub.s32 0, %v2006
        %v2008 = vrot.slane %v1528, %v2007
        %v2009 = vlaneseq
        %v2010 = vshrl.u32 %v2009, 7
        %v2011 = vsub.s32 0, %v2010
        %v2012 = vrot.slane %v1532, %v2011
        %v2013 = vlaneseq
        %v2014 = vshrl.u32 %v2013, 7
        %v2015 = vsub.s32 0, %v2014
        %v2016 = vrot.slane %v1536, %v2015
        %v2017 = vlaneseq
        %v2018 = vshrl.u32 %v2017, 7
        %v2019 = vsub.s32 0, %v2018
        %v2020 = vrot.slane %v1540, %v2019
        %v2021 = vlaneseq
        %v2022 = vshrl.u32 %v2021, 7
        %v2023 = vsub.s32 0, %v2022
        %v2024 = vrot.slane %v1544, %v2023
        %v2025 = vlaneseq
        %v2026 = vshrl.u32 %v2025, 7
        %v2027 = vsub.s32 0, %v2026
        %v2028 = vrot.slane %v1548, %v2027
        %v2029 = vlaneseq
        %v2030 = vshrl.u32 %v2029, 7
        %v2031 = vsub.s32 0, %v2030
        %v2032 = vrot.slane %v1552, %v2031
        %v2033 = vlaneseq
        %v2034 = vshrl.u32 %v2033, 7
        %v2035 = vsub.s32 0, %v2034
        %v2036 = vrot.slane %v1556, %v2035
        %v2037 = vlaneseq
        %v2038 = vshrl.u32 %v2037, 7
        %v2039 = vsub.s32 0, %v2038
        %v2040 = vrot.slane %v1560, %v2039
        %v2041 = vlaneseq
        %v2042 = vshrl.u32 %v2041, 7
        %v2043 = vsub.s32 0, %v2042
        %v2044 = vrot.slane %v1564, %v2043
        %v2045 = vlaneseq
        %v2046 = vshrl.u32 %v2045, 7
        %v2047 = vsub.s32 0, %v2046
        %v2048 = vrot.slane %v1568, %v2047
        %v2049 = vlaneseq
        %v2050 = vshrl.u32 %v2049, 7
        %v2051 = vsub.s32 0, %v2050
        %v2052 = vrot.slane %v1572, %v2051
        %v2053 = vlaneseq
        %v2054 = vshrl.u32 %v2053, 7
        %v2055 = vsub.s32 0, %v2054
        %v2056 = vrot.slane %v1576, %v2055
        %v2057 = vlaneseq
        %v2058 = vshrl.u32 %v2057, 7
        %v2059 = vsub.s32 0, %v2058
        %v2060 = vrot.slane %v1580, %v2059
        %v2061 = vlaneseq
        %v2062 = vshrl.u32 %v2061, 7
        %v2063 = vsub.s32 0, %v2062
        %v2064 = vrot.slane %v1584, %v2063
        %v2065 = vlaneseq
        %v2066 = vshrl.u32 %v2065, 7
        %v2067 = vsub.s32 0, %v2066
        %v2068 = vrot.slane %v1588, %v2067
        %v2069 = vlaneseq
        %v2070 = vshrl.u32 %v2069, 7
        %v2071 = vsub.s32 0, %v2070
        %v2072 = vrot.slane %v1592, %v2071
        %v2073 = vlaneseq
        %v2074 = vshrl.u32 %v2073, 7
        %v2075 = vsub.s32 0, %v2074
        %v2076 = vrot.slane %v1596, %v2075
        %v2077 = vlaneseq
        %v2078 = vshrl.u32 %v2077, 7
        %v2079 = vsub.s32 0, %v2078
        %v2080 = vrot.slane %v1600, %v2079
        %v2081 = vlaneseq
        %v2082 = vshrl.u32 %v2081, 7
        %v2083 = vsub.s32 0, %v2082
        %v2084 = vrot.slane %v1604, %v2083
        %v2085 = vlaneseq
        %v2086 = vshrl.u32 %v2085, 7
        %v2087 = vsub.s32 0, %v2086
        %v2088 = vrot.slane %v1608, %v2087
        %v2089 = vlaneseq
        %v2090 = vshrl.u32 %v2089, 7
        %v2091 = vsub.s32 0, %v2090
        %v2092 = vrot.slane %v1612, %v2091
        %v2093 = vlaneseq
        %v2094 = vshrl.u32 %v2093, 7
        %v2095 = vsub.s32 0, %v2094
        %v2096 = vrot.slane %v1616, %v2095
        %v2097 = vlaneseq
        %v2098 = vshrl.u32 %v2097, 7
        %v2099 = vsub.s32 0, %v2098
        %v2100 = vrot.slane %v1620, %v2099
        %v2101 = vlaneseq
        %v2102 = vshrl.u32 %v2101, 7
        %v2103 = vsub.s32 0, %v2102
        %v2104 = vrot.slane %v1624, %v2103
        %v2105 = vlaneseq
        %v2106 = vshrl.u32 %v2105, 7
        %v2107 = vsub.s32 0, %v2106
        %v2108 = vrot.slane %v1628, %v2107
        %v2109 = vlaneseq
        %v2110 = vshrl.u32 %v2109, 7
        %v2111 = vsub.s32 0, %v2110
        %v2112 = vrot.slane %v1632, %v2111
        %v2113 = vlaneseq
        %v2114 = vshrl.u32 %v2113, 7
        %v2115 = vsub.s32 0, %v2114
        %v2116 = vrot.slane %v1636, %v2115
        %v2117 = vlaneseq
        %v2118 = vshrl.u32 %v2117, 7
        %v2119 = vsub.s32 0, %v2118
        %v2120 = vrot.slane %v1640, %v2119
        %v2121 = vlaneseq
        %v2122 = vshrl.u32 %v2121, 7
        %v2123 = vsub.s32 0, %v2122
        %v2124 = vrot.slane %v1644, %v2123
        %v2125 = vlaneseq
        %v2126 = vshrl.u32 %v2125, 7
        %v2127 = vsub.s32 0, %v2126
        %v2128 = vrot.slane %v1648, %v2127
        %v2129 = vlaneseq
        %v2130 = vshrl.u32 %v2129, 7
        %v2131 = vsub.s32 0, %v2130
        %v2132 = vrot.slane %v1652, %v2131
        %v2133 = vlaneseq
        %v2134 = vshrl.u32 %v2133, 7
        %v2135 = vsub.s32 0, %v2134
        %v2136 = vrot.slane %v1656, %v2135
        %v2137 = vlaneseq
        %v2138 = vshrl.u32 %v2137, 7
        %v2139 = vsub.s32 0, %v2138
        %v2140 = vrot.slane %v1660, %v2139
        %v2141 = vlaneseq
        %v2142 = vshrl.u32 %v2141, 7
        %v2143 = vsub.s32 0, %v2142
        %v2144 = vrot.slane %v1664, %v2143
        %v2145 = vlaneseq
        %v2146 = vshrl.u32 %v2145, 7
        %v2147 = vsub.s32 0, %v2146
        %v2148 = vrot.slane %v1668, %v2147
        %v2149 = vlaneseq
        %v2150 = vshrl.u32 %v2149, 7
        %v2151 = vsub.s32 0, %v2150
        %v2152 = vrot.slane %v1672, %v2151
        %v2153 = vlaneseq
        %v2154 = vshrl.u32 %v2153, 7
        %v2155 = vsub.s32 0, %v2154
        %v2156 = vrot.slane %v1676, %v2155
        %v2157 = vlaneseq
        %v2158 = vshrl.u32 %v2157, 7
        %v2159 = vsub.s32 0, %v2158
        %v2160 = vrot.slane %v1680, %v2159
        %v2161 = vlaneseq
        %v2162 = vshrl.u32 %v2161, 7
        %v2163 = vsub.s32 0, %v2162
        %v2164 = vrot.slane %v1684, %v2163
        %v2165 = vlaneseq
        %v2166 = vshrl.u32 %v2165, 7
        %v2167 = vsub.s32 0, %v2166
        %v2168 = vrot.slane %v1688, %v2167
        %v2169 = vlaneseq
        %v2170 = vshrl.u32 %v2169, 7
        %v2171 = vsub.s32 0, %v2170
        %v2172 = vrot.slane %v1692, %v2171
        %v2173 = vlaneseq
        %v2174 = vshrl.u32 %v2173, 7
        %v2175 = vsub.s32 0, %v2174
        %v2176 = vrot.slane %v1696, %v2175
        %v2177 = vlaneseq
        %v2178 = vshrl.u32 %v2177, 7
        %v2179 = vsub.s32 0, %v2178
        %v2180 = vrot.slane %v1700, %v2179
        %v2181 = vlaneseq
        %v2182 = vshrl.u32 %v2181, 7
        %v2183 = vsub.s32 0, %v2182
        %v2184 = vrot.slane %v1704, %v2183
        %v2185 = vlaneseq
        %v2186 = vshrl.u32 %v2185, 7
        %v2187 = vsub.s32 0, %v2186
        %v2188 = vrot.slane %v1708, %v2187
        %v2189 = vlaneseq
        %v2190 = vshrl.u32 %v2189, 7
        %v2191 = vsub.s32 0, %v2190
        %v2192 = vrot.slane %v1712, %v2191
        %v2193 = vlaneseq
        %v2194 = vshrl.u32 %v2193, 7
        %v2195 = vsub.s32 0, %v2194
        %v2196 = vrot.slane %v1716, %v2195
        %v2197 = vlaneseq
        %v2198 = vshrl.u32 %v2197, 7
        %v2199 = vsub.s32 0, %v2198
        %v2200 = vrot.slane %v1720, %v2199
        %v2201 = vlaneseq
        %v2202 = vshrl.u32 %v2201, 7
        %v2203 = vsub.s32 0, %v2202
        %v2204 = vrot.slane %v1724, %v2203
        %v2205 = vlaneseq
        %v2206 = vshrl.u32 %v2205, 7
        %v2207 = vsub.s32 0, %v2206
        %v2208 = vrot.slane %v1728, %v2207
        %v2209 = vlaneseq
        %v2210 = vshrl.u32 %v2209, 7
        %v2211 = vsub.s32 0, %v2210
        %v2212 = vrot.slane %v1732, %v2211
        %v2213 = vlaneseq
        %v2214 = vshrl.u32 %v2213, 7
        %v2215 = vsub.s32 0, %v2214
        %v2216 = vrot.slane %v1736, %v2215
        %v2217 = vlaneseq
        %v2218 = vshrl.u32 %v2217, 7
        %v2219 = vsub.s32 0, %v2218
        %v2220 = vrot.slane %v1740, %v2219
        %v2221 = vlaneseq
        %v2222 = vshrl.u32 %v2221, 7
        %v2223 = vsub.s32 0, %v2222
        %v2224 = vrot.slane %v1744, %v2223
        %v2225 = vlaneseq
        %v2226 = vshrl.u32 %v2225, 7
        %v2227 = vsub.s32 0, %v2226
        %v2228 = vrot.slane %v1748, %v2227
        %v2229 = vlaneseq
        %v2230 = vshrl.u32 %v2229, 7
        %v2231 = vsub.s32 0, %v2230
        %v2232 = vrot.slane %v1752, %v2231
        %v2233 = vlaneseq
        %v2234 = vshrl.u32 %v2233, 7
        %v2235 = vsub.s32 0, %v2234
        %v2236 = vrot.slane %v1756, %v2235
        %v2237 = vlaneseq
        %v2238 = vshrl.u32 %v2237, 7
        %v2239 = vsub.s32 0, %v2238
        %v2240 = vrot.slane %v1760, %v2239
        %v2241 = vlaneseq
        %v2242 = vshrl.u32 %v2241, 7
        %v2243 = vsub.s32 0, %v2242
        %v2244 = vrot.slane %v1764, %v2243
        %v2245 = vlaneseq
        %v2246 = vshrl.u32 %v2245, 7
        %v2247 = vsub.s32 0, %v2246
        %v2248 = vrot.slane %v1768, %v2247
        %v2249 = vlaneseq
        %v2250 = vshrl.u32 %v2249, 7
        %v2251 = vsub.s32 0, %v2250
        %v2252 = vrot.slane %v1772, %v2251
        %v2253 = vlaneseq
        %v2254 = vshrl.u32 %v2253, 7
        %v2255 = vsub.s32 0, %v2254
        %v2256 = vrot.slane %v1776, %v2255
        %v2257 = vlaneseq
        %v2258 = vshrl.u32 %v2257, 7
        %v2259 = vsub.s32 0, %v2258
        %v2260 = vrot.slane %v1780, %v2259
        %v2261 = vlaneseq
        %v2262 = vshrl.u32 %v2261, 7
        %v2263 = vsub.s32 0, %v2262
        %v2264 = vrot.slane %v1784, %v2263
        %v2265 = vlaneseq
        %v2266 = vshrl.u32 %v2265, 7
        %v2267 = vsub.s32 0, %v2266
        %v2268 = vrot.slane %v1788, %v2267
        %v2269 = vlaneseq
        %v2270 = vshrl.u32 %v2269, 7
        %v2271 = vsub.s32 0, %v2270
        %v2272 = vrot.slane %v1792, %v2271
        %v2273 = vlaneseq
        %v2274 = vshrl.u32 %v2273, 7
        %v2275 = vsub.s32 0, %v2274
        %v2276 = vrot.slane %v1796, %v2275
        %v2277 = vlaneseq
        %v2278 = vshrl.u32 %v2277, 7
        %v2279 = vsub.s32 0, %v2278
        %v2280 = vrot.slane %v1800, %v2279
        %v2281 = vlaneseq
        %v2282 = vshrl.u32 %v2281, 7
        %v2283 = vsub.s32 0, %v2282
        %v2284 = vrot.slane %v1804, %v2283
        %v3053 = vunpack.c.l.b16 %v593
        %v3054 = vunpack.c.h.b16 %v593
        %v3055 = vunpack.c.l.b16 %v594
        %v3056 = vunpack.c.h.b16 %v594
        %v3057 = vunpack.c.l.b16 %v595
        %v3058 = vunpack.c.h.b16 %v595
        %v3059 = vunpack.c.l.b16 %v596
        %v3060 = vunpack.c.h.b16 %v596
        %v3061 = vunpack.c.l.b16 %v597
        %v3062 = vunpack.c.h.b16 %v597
        %v3063 = vunpack.c.l.b16 %v598
        %v3064 = vunpack.c.h.b16 %v598
        %v3065 = vunpack.c.l.b16 %v599
        %v3066 = vunpack.c.h.b16 %v599
        %v3067 = vunpack.c.l.b16 %v600
        %v3068 = vunpack.c.h.b16 %v600
        %v3069 = vunpack.c.l.b16 %v601
        %v3070 = vunpack.c.h.b16 %v601
        %v3071 = vunpack.c.l.b16 %v602
        %v3072 = vunpack.c.h.b16 %v602
        %v3073 = vunpack.c.l.b16 %v603
        %v3074 = vunpack.c.h.b16 %v603
        %v3075 = vunpack.c.l.b16 %v604
        %v3076 = vunpack.c.h.b16 %v604
        %v3077 = vunpack.c.l.b16 %v605
        %v3078 = vunpack.c.h.b16 %v605
        %v3079 = vunpack.c.l.b16 %v606
        %v3080 = vunpack.c.h.b16 %v606
        %v3081 = vunpack.c.l.b16 %v607
        %v3082 = vunpack.c.h.b16 %v607
        %v3083 = vunpack.c.l.b16 %v608
        %v3084 = vunpack.c.h.b16 %v608
        %v3085 = vunpack.c.l.b16 %v609
        %v3086 = vunpack.c.h.b16 %v609
        %v3087 = vunpack.c.l.b16 %v610
        %v3088 = vunpack.c.h.b16 %v610
        %v3089 = vunpack.c.l.b16 %v611
        %v3090 = vunpack.c.h.b16 %v611
        %v3091 = vunpack.c.l.b16 %v612
        %v3092 = vunpack.c.h.b16 %v612
        %v3093 = vunpack.c.l.b16 %v613
        %v3094 = vunpack.c.h.b16 %v613
        %v3095 = vunpack.c.l.b16 %v614
        %v3096 = vunpack.c.h.b16 %v614
        %v3097 = vunpack.c.l.b16 %v615
        %v3098 = vunpack.c.h.b16 %v615
        %v3099 = vunpack.c.l.b16 %v616
        %v3100 = vunpack.c.h.b16 %v616
        %v3101 = vunpack.c.l.b16 %v617
        %v3102 = vunpack.c.h.b16 %v617
        %v3103 = vunpack.c.l.b16 %v618
        %v3104 = vunpack.c.h.b16 %v618
        %v3105 = vunpack.c.l.b16 %v619
        %v3106 = vunpack.c.h.b16 %v619
        %v3107 = vunpack.c.l.b16 %v620
        %v3108 = vunpack.c.h.b16 %v620
        %v3109 = vunpack.c.l.b16 %v621
        %v3110 = vunpack.c.h.b16 %v621
        %v3111 = vunpack.c.l.b16 %v622
        %v3112 = vunpack.c.h.b16 %v622
        %v3113 = vunpack.c.l.b16 %v623
        %v3114 = vunpack.c.h.b16 %v623
        %v3115 = vunpack.c.l.b16 %v624
        %v3116 = vunpack.c.h.b16 %v624
        %v3117 = vunpack.c.l.b16 %v625
        %v3118 = vunpack.c.h.b16 %v625
        %v3119 = vunpack.c.l.b16 %v626
        %v3120 = vunpack.c.h.b16 %v626
        %v3121 = vunpack.c.l.b16 %v627
        %v3122 = vunpack.c.h.b16 %v627
        %v3123 = vunpack.c.l.b16 %v628
        %v3124 = vunpack.c.h.b16 %v628
        %v3125 = vunpack.c.l.b16 %v629
        %v3126 = vunpack.c.h.b16 %v629
        %v3127 = vunpack.c.l.b16 %v630
        %v3128 = vunpack.c.h.b16 %v630
        %v3129 = vunpack.c.l.b16 %v631
        %v3130 = vunpack.c.h.b16 %v631
        %v3131 = vunpack.c.l.b16 %v632
        %v3132 = vunpack.c.h.b16 %v632
        %v3133 = vunpack.c.l.b16 %v633
        %v3134 = vunpack.c.h.b16 %v633
        %v3135 = vunpack.c.l.b16 %v634
        %v3136 = vunpack.c.h.b16 %v634
        %v3137 = vunpack.c.l.b16 %v635
        %v3138 = vunpack.c.h.b16 %v635
        %v3139 = vunpack.c.l.b16 %v636
        %v3140 = vunpack.c.h.b16 %v636
        %v3141 = vunpack.c.l.b16 %v637
        %v3142 = vunpack.c.h.b16 %v637
        %v3143 = vunpack.c.l.b16 %v638
        %v3144 = vunpack.c.h.b16 %v638
        %v3145 = vunpack.c.l.b16 %v639
        %v3146 = vunpack.c.h.b16 %v639
        %v3147 = vunpack.c.l.b16 %v640
        %v3148 = vunpack.c.h.b16 %v640
        %v3149 = vunpack.c.l.b16 %v641
        %v3150 = vunpack.c.h.b16 %v641
        %v3151 = vunpack.c.l.b16 %v642
        %v3152 = vunpack.c.h.b16 %v642
        %v3153 = vunpack.c.l.b16 %v643
        %v3154 = vunpack.c.h.b16 %v643
        %v3155 = vunpack.c.l.b16 %v644
        %v3156 = vunpack.c.h.b16 %v644
        %v3157 = vunpack.c.l.b16 %v645
        %v3158 = vunpack.c.h.b16 %v645
        %v3159 = vunpack.c.l.b16 %v646
        %v3160 = vunpack.c.h.b16 %v646
        %v3161 = vunpack.c.l.b16 %v647
        %v3162 = vunpack.c.h.b16 %v647
        %v3163 = vunpack.c.l.b16 %v648
        %v3164 = vunpack.c.h.b16 %v648
        %v3165 = vunpack.c.l.b16 %v649
        %v3166 = vunpack.c.h.b16 %v649
        %v3167 = vunpack.c.l.b16 %v650
        %v3168 = vunpack.c.h.b16 %v650
        %v3169 = vunpack.c.l.b16 %v651
        %v3170 = vunpack.c.h.b16 %v651
        %v3171 = vunpack.c.l.b16 %v652
        %v3172 = vunpack.c.h.b16 %v652
        %v3173 = vunpack.c.l.b16 %v653
        %v3174 = vunpack.c.h.b16 %v653
        %v3175 = vunpack.c.l.b16 %v654
        %v3176 = vunpack.c.h.b16 %v654
        %v3177 = vunpack.c.l.b16 %v655
        %v3178 = vunpack.c.h.b16 %v655
        %v3179 = vunpack.c.l.b16 %v656
        %v3180 = vunpack.c.h.b16 %v656
        %v3181 = vunpack.c.l.b16 %v657
        %v3182 = vunpack.c.h.b16 %v657
        %v3183 = vunpack.c.l.b16 %v658
        %v3184 = vunpack.c.h.b16 %v658
        %v3185 = vunpack.c.l.b16 %v659
        %v3186 = vunpack.c.h.b16 %v659
        %v3187 = vunpack.c.l.b16 %v660
        %v3188 = vunpack.c.h.b16 %v660
        %v3189 = vunpack.c.l.b16 %v661
        %v3190 = vunpack.c.h.b16 %v661
        %v3191 = vunpack.c.l.b16 %v662
        %v3192 = vunpack.c.h.b16 %v662
        %v3193 = vunpack.c.l.b16 %v663
        %v3194 = vunpack.c.h.b16 %v663
        %v3195 = vunpack.c.l.b16 %v664
        %v3196 = vunpack.c.h.b16 %v664
        %v3197 = vunpack.c.l.b16 %v665
        %v3198 = vunpack.c.h.b16 %v665
        %v3199 = vunpack.c.l.b16 %v666
        %v3200 = vunpack.c.h.b16 %v666
        %v3201 = vunpack.c.l.b16 %v667
        %v3202 = vunpack.c.h.b16 %v667
        %v3203 = vunpack.c.l.b16 %v668
        %v3204 = vunpack.c.h.b16 %v668
        %v3205 = vunpack.c.l.b16 %v669
        %v3206 = vunpack.c.h.b16 %v669
        %v3207 = vunpack.c.l.b16 %v670
        %v3208 = vunpack.c.h.b16 %v670
        %v3209 = vunpack.c.l.b16 %v671
        %v3210 = vunpack.c.h.b16 %v671
        %v3211 = vunpack.c.l.b16 %v672
        %v3212 = vunpack.c.h.b16 %v672
        %v3213 = vunpack.c.l.b16 %v673
        %v3214 = vunpack.c.h.b16 %v673
        %v3215 = vunpack.c.l.b16 %v674
        %v3216 = vunpack.c.h.b16 %v674
        %v3217 = vunpack.c.l.b16 %v675
        %v3218 = vunpack.c.h.b16 %v675
        %v3219 = vunpack.c.l.b16 %v676
        %v3220 = vunpack.c.h.b16 %v676
        %v3221 = vunpack.c.l.b16 %v677
        %v3222 = vunpack.c.h.b16 %v677
        %v3223 = vunpack.c.l.b16 %v678
        %v3224 = vunpack.c.h.b16 %v678
        %v3225 = vunpack.c.l.b16 %v679
        %v3226 = vunpack.c.h.b16 %v679
        %v3227 = vunpack.c.l.b16 %v680
        %v3228 = vunpack.c.h.b16 %v680
        %v3229 = vunpack.c.l.b16 %v681
        %v3230 = vunpack.c.h.b16 %v681
        %v3231 = vunpack.c.l.b16 %v682
        %v3232 = vunpack.c.h.b16 %v682
        %v3233 = vunpack.c.l.b16 %v683
        %v3234 = vunpack.c.h.b16 %v683
        %v3235 = vunpack.c.l.b16 %v684
        %v3236 = vunpack.c.h.b16 %v684
        %v3237 = vunpack.c.l.b16 %v685
        %v3238 = vunpack.c.h.b16 %v685
        %v3239 = vunpack.c.l.b16 %v686
        %v3240 = vunpack.c.h.b16 %v686
        %v3241 = vunpack.c.l.b16 %v687
        %v3242 = vunpack.c.h.b16 %v687
        %v3243 = vunpack.c.l.b16 %v688
        %v3244 = vunpack.c.h.b16 %v688
        %v3245 = vunpack.c.l.b16 %v689
        %v3246 = vunpack.c.h.b16 %v689
        %v3247 = vunpack.c.l.b16 %v690
        %v3248 = vunpack.c.h.b16 %v690
        %v3249 = vunpack.c.l.b16 %v691
        %v3250 = vunpack.c.h.b16 %v691
        %v3251 = vunpack.c.l.b16 %v692
        %v3252 = vunpack.c.h.b16 %v692
        %v3253 = vunpack.c.l.b16 %v693
        %v3254 = vunpack.c.h.b16 %v693
        %v3255 = vunpack.c.l.b16 %v694
        %v3256 = vunpack.c.h.b16 %v694
        %v3257 = vunpack.c.l.b16 %v695
        %v3258 = vunpack.c.h.b16 %v695
        %v3259 = vunpack.c.l.b16 %v696
        %v3260 = vunpack.c.h.b16 %v696
        %v3261 = vunpack.c.l.b16 %v697
        %v3262 = vunpack.c.h.b16 %v697
        %v3263 = vunpack.c.l.b16 %v698
        %v3264 = vunpack.c.h.b16 %v698
        %v3265 = vunpack.c.l.b16 %v699
        %v3266 = vunpack.c.h.b16 %v699
        %v3267 = vunpack.c.l.b16 %v700
        %v3268 = vunpack.c.h.b16 %v700
        %v3269 = vunpack.c.l.b16 %v701
        %v3270 = vunpack.c.h.b16 %v701
        %v3271 = vunpack.c.l.b16 %v702
        %v3272 = vunpack.c.h.b16 %v702
        %v3273 = vunpack.c.l.b16 %v703
        %v3274 = vunpack.c.h.b16 %v703
        %v3275 = vunpack.c.l.b16 %v704
        %v3276 = vunpack.c.h.b16 %v704
        %v3277 = vunpack.c.l.b16 %v705
        %v3278 = vunpack.c.h.b16 %v705
        %v3279 = vunpack.c.l.b16 %v706
        %v3280 = vunpack.c.h.b16 %v706
        %v3281 = vunpack.c.l.b16 %v707
        %v3282 = vunpack.c.h.b16 %v707
        %v3283 = vunpack.c.l.b16 %v708
        %v3284 = vunpack.c.h.b16 %v708
        %v3285 = vunpack.c.l.b16 %v709
        %v3286 = vunpack.c.h.b16 %v709
        %v3287 = vunpack.c.l.b16 %v710
        %v3288 = vunpack.c.h.b16 %v710
        %v3289 = vunpack.c.l.b16 %v711
        %v3290 = vunpack.c.h.b16 %v711
        %v3291 = vunpack.c.l.b16 %v712
        %v3292 = vunpack.c.h.b16 %v712
        %v3293 = vunpack.c.l.b16 %v713
        %v3294 = vunpack.c.h.b16 %v713
        %v3295 = vunpack.c.l.b16 %v714
        %v3296 = vunpack.c.h.b16 %v714
        %v3297 = vunpack.c.l.b16 %v715
        %v3298 = vunpack.c.h.b16 %v715
        %v3299 = vunpack.c.l.b16 %v716
        %v3300 = vunpack.c.h.b16 %v716
        %v3301 = vunpack.c.l.b16 %v717
        %v3302 = vunpack.c.h.b16 %v717
        %v3303 = vunpack.c.l.b16 %v718
        %v3304 = vunpack.c.h.b16 %v718
        %v3305 = vunpack.c.l.b16 %v719
        %v3306 = vunpack.c.h.b16 %v719
        %v3307 = vunpack.c.l.b16 %v720
        %v3308 = vunpack.c.h.b16 %v720
        %v3309 = vunpack.c.l.b16 %v721
        %v3310 = vunpack.c.h.b16 %v721
        %v3311 = vunpack.c.l.b16 %v722
        %v3312 = vunpack.c.h.b16 %v722
        %v3313 = vunpack.c.l.b16 %v723
        %v3314 = vunpack.c.h.b16 %v723
        %v3315 = vunpack.c.l.b16 %v724
        %v3316 = vunpack.c.h.b16 %v724
        %v3317 = vunpack.c.l.b16 %v725
        %v3318 = vunpack.c.h.b16 %v725
        %v3319 = vunpack.c.l.b16 %v726
        %v3320 = vunpack.c.h.b16 %v726
        %v3321 = vunpack.c.l.b16 %v727
        %v3322 = vunpack.c.h.b16 %v727
        %v3323 = vunpack.c.l.b16 %v728
        %v3324 = vunpack.c.h.b16 %v728
        %v3325 = vunpack.c.l.b16 %v729
        %v3326 = vunpack.c.h.b16 %v729
        %v3327 = vunpack.c.l.b16 %v730
        %v3328 = vunpack.c.h.b16 %v730
        %v3329 = vunpack.c.l.b16 %v731
        %v3330 = vunpack.c.h.b16 %v731
        %v3331 = vunpack.c.l.b16 %v732
        %v3332 = vunpack.c.h.b16 %v732
        %v3333 = vunpack.c.l.b16 %v733
        %v3334 = vunpack.c.h.b16 %v733
        %v3335 = vunpack.c.l.b16 %v734
        %v3336 = vunpack.c.h.b16 %v734
        %v3337 = vunpack.c.l.b16 %v735
        %v3338 = vunpack.c.h.b16 %v735
        %v3339 = vunpack.c.l.b16 %v736
        %v3340 = vunpack.c.h.b16 %v736
        %v3341 = vunpack.c.l.b16 %v737
        %v3342 = vunpack.c.h.b16 %v737
        %v3343 = vunpack.c.l.b16 %v738
        %v3344 = vunpack.c.h.b16 %v738
        %v3345 = vunpack.c.l.b16 %v739
        %v3346 = vunpack.c.h.b16 %v739
        %v3347 = vunpack.c.l.b16 %v740
        %v3348 = vunpack.c.h.b16 %v740
        %v3349 = vunpack.c.l.b16 %v741
        %v3350 = vunpack.c.h.b16 %v741
        %v3351 = vunpack.c.l.b16 %v742
        %v3352 = vunpack.c.h.b16 %v742
        %v3353 = vunpack.c.l.b16 %v743
        %v3354 = vunpack.c.h.b16 %v743
        %v3355 = vunpack.c.l.b16 %v744
        %v3356 = vunpack.c.h.b16 %v744
        %v3357 = vunpack.c.l.b16 %v745
        %v3358 = vunpack.c.h.b16 %v745
        %v3359 = vunpack.c.l.b16 %v746
        %v3360 = vunpack.c.h.b16 %v746
        %v3361 = vunpack.c.l.b16 %v747
        %v3362 = vunpack.c.h.b16 %v747
        %v3363 = vunpack.c.l.b16 %v748
        %v3364 = vunpack.c.h.b16 %v748
        %v3365 = vunpack.c.l.b16 %v749
        %v3366 = vunpack.c.h.b16 %v749
        %v3367 = vunpack.c.l.b16 %v750
        %v3368 = vunpack.c.h.b16 %v750
        %v3369 = vunpack.c.l.b16 %v751
        %v3370 = vunpack.c.h.b16 %v751
        %v3371 = vunpack.c.l.b16 %v752
        %v3372 = vunpack.c.h.b16 %v752
        %v3373 = vunpack.c.l.b16 %v753
        %v3374 = vunpack.c.h.b16 %v753
        %v3375 = vunpack.c.l.b16 %v754
        %v3376 = vunpack.c.h.b16 %v754
        %v3377 = vunpack.c.l.b16 %v755
        %v3378 = vunpack.c.h.b16 %v755
        %v3379 = vunpack.c.l.b16 %v756
        %v3380 = vunpack.c.h.b16 %v756
        %v3381 = vunpack.c.l.b16 %v757
        %v3382 = vunpack.c.h.b16 %v757
        %v3383 = vunpack.c.l.b16 %v758
        %v3384 = vunpack.c.h.b16 %v758
        %v3385 = vunpack.c.l.b16 %v759
        %v3386 = vunpack.c.h.b16 %v759
        %v3387 = vunpack.c.l.b16 %v760
        %v3388 = vunpack.c.h.b16 %v760
        %v3389 = vunpack.c.l.b16 %v761
        %v3390 = vunpack.c.h.b16 %v761
        %v3391 = vunpack.c.l.b16 %v762
        %v3392 = vunpack.c.h.b16 %v762
        %v3393 = vunpack.c.l.b16 %v763
        %v3394 = vunpack.c.h.b16 %v763
        %v3395 = vunpack.c.l.b16 %v764
        %v3396 = vunpack.c.h.b16 %v764
        %v3397 = vunpack.c.l.b16 %v765
        %v3398 = vunpack.c.h.b16 %v765
        %v3399 = vunpack.c.l.b16 %v766
        %v3400 = vunpack.c.h.b16 %v766
        %v3401 = vunpack.c.l.b16 %v767
        %v3402 = vunpack.c.h.b16 %v767
        %v3403 = vunpack.c.l.b16 %v768
        %v3404 = vunpack.c.h.b16 %v768
        %v3405 = vunpack.c.l.b16 %v769
        %v3406 = vunpack.c.h.b16 %v769
        %v3407 = vunpack.c.l.b16 %v770
        %v3408 = vunpack.c.h.b16 %v770
        %v3409 = vunpack.c.l.b16 %v771
        %v3410 = vunpack.c.h.b16 %v771
        %v3411 = vunpack.c.l.b16 %v772
        %v3412 = vunpack.c.h.b16 %v772
        %v3413 = vunpack.c.l.b16 %v773
        %v3414 = vunpack.c.h.b16 %v773
        %v3415 = vunpack.c.l.b16 %v774
        %v3416 = vunpack.c.h.b16 %v774
        %v3417 = vunpack.c.l.b16 %v775
        %v3418 = vunpack.c.h.b16 %v775
        %v3419 = vunpack.c.l.b16 %v776
        %v3420 = vunpack.c.h.b16 %v776
        %v3421 = vunpack.c.l.b16 %v777
        %v3422 = vunpack.c.h.b16 %v777
        %v3423 = vunpack.c.l.b16 %v778
        %v3424 = vunpack.c.h.b16 %v778
        %v3425 = vunpack.c.l.b16 %v779
        %v3426 = vunpack.c.h.b16 %v779
        %v3427 = vunpack.c.l.b16 %v780
        %v3428 = vunpack.c.h.b16 %v780
        %v3429 = vunpack.c.l.b16 %v781
        %v3430 = vunpack.c.h.b16 %v781
        %v3431 = vunpack.c.l.b16 %v782
        %v3432 = vunpack.c.h.b16 %v782
        %v3433 = vunpack.c.l.b16 %v783
        %v3434 = vunpack.c.h.b16 %v783
        %v3435 = vunpack.c.l.b16 %v784
        %v3436 = vunpack.c.h.b16 %v784
        %v3437 = vunpack.c.l.b16 %v785
        %v3438 = vunpack.c.h.b16 %v785
        %v3439 = vunpack.c.l.b16 %v786
        %v3440 = vunpack.c.h.b16 %v786
        %v3441 = vunpack.c.l.b16 %v787
        %v3442 = vunpack.c.h.b16 %v787
        %v3443 = vunpack.c.l.b16 %v788
        %v3444 = vunpack.c.h.b16 %v788
        %v3445 = vunpack.c.l.b16 %v789
        %v3446 = vunpack.c.h.b16 %v789
        %v3447 = vunpack.c.l.b16 %v790
        %v3448 = vunpack.c.h.b16 %v790
        %v3449 = vunpack.c.l.b16 %v791
        %v3450 = vunpack.c.h.b16 %v791
        %v3451 = vunpack.c.l.b16 %v792
        %v3452 = vunpack.c.h.b16 %v792
        %v3453 = vunpack.c.l.b16 %v793
        %v3454 = vunpack.c.h.b16 %v793
        %v3455 = vunpack.c.l.b16 %v794
        %v3456 = vunpack.c.h.b16 %v794
        %v3457 = vunpack.c.l.b16 %v795
        %v3458 = vunpack.c.h.b16 %v795
        %v3459 = vunpack.c.l.b16 %v796
        %v3460 = vunpack.c.h.b16 %v796
        %v3461 = vunpack.c.l.b16 %v797
        %v3462 = vunpack.c.h.b16 %v797
        %v3463 = vunpack.c.l.b16 %v798
        %v3464 = vunpack.c.h.b16 %v798
        %v3465 = vunpack.c.l.b16 %v799
        %v3466 = vunpack.c.h.b16 %v799
        %v3467 = vunpack.c.l.b16 %v800
        %v3468 = vunpack.c.h.b16 %v800
        %v3469 = vunpack.c.l.b16 %v801
        %v3470 = vunpack.c.h.b16 %v801
        %v3471 = vunpack.c.l.b16 %v802
        %v3472 = vunpack.c.h.b16 %v802
        %v3473 = vunpack.c.l.b16 %v803
        %v3474 = vunpack.c.h.b16 %v803
        %v3475 = vunpack.c.l.b16 %v804
        %v3476 = vunpack.c.h.b16 %v804
        %v3477 = vunpack.c.l.b16 %v805
        %v3478 = vunpack.c.h.b16 %v805
        %v3479 = vunpack.c.l.b16 %v806
        %v3480 = vunpack.c.h.b16 %v806
        %v3481 = vunpack.c.l.b16 %v807
        %v3482 = vunpack.c.h.b16 %v807
        %v3483 = vunpack.c.l.b16 %v808
        %v3484 = vunpack.c.h.b16 %v808
        %v3485 = vunpack.c.l.b16 %v809
        %v3486 = vunpack.c.h.b16 %v809
        %v3487 = vunpack.c.l.b16 %v810
        %v3488 = vunpack.c.h.b16 %v810
        %v3489 = vunpack.c.l.b16 %v811
        %v3490 = vunpack.c.h.b16 %v811
        %v3491 = vunpack.c.l.b16 %v812
        %v3492 = vunpack.c.h.b16 %v812
        %v3493 = vunpack.c.l.b16 %v813
        %v3494 = vunpack.c.h.b16 %v813
        %v3495 = vunpack.c.l.b16 %v814
        %v3496 = vunpack.c.h.b16 %v814
        %v3497 = vunpack.c.l.b16 %v815
        %v3498 = vunpack.c.h.b16 %v815
        %v3499 = vunpack.c.l.b16 %v816
        %v3500 = vunpack.c.h.b16 %v816
        %v3501 = vunpack.c.l.b16 %v817
        %v3502 = vunpack.c.h.b16 %v817
        %v3503 = vunpack.c.l.b16 %v818
        %v3504 = vunpack.c.h.b16 %v818
        %v3505 = vunpack.c.l.b16 %v819
        %v3506 = vunpack.c.h.b16 %v819
        %v3507 = vunpack.c.l.b16 %v820
        %v3508 = vunpack.c.h.b16 %v820
        %v3509 = vunpack.c.l.b16 %v821
        %v3510 = vunpack.c.h.b16 %v821
        %v3511 = vunpack.c.l.b16 %v822
        %v3512 = vunpack.c.h.b16 %v822
        %v3513 = vunpack.c.l.b16 %v823
        %v3514 = vunpack.c.h.b16 %v823
        %v3515 = vunpack.c.l.b16 %v824
        %v3516 = vunpack.c.h.b16 %v824
        %v3517 = vunpack.c.l.b16 %v825
        %v3518 = vunpack.c.h.b16 %v825
        %v3519 = vunpack.c.l.b16 %v826
        %v3520 = vunpack.c.h.b16 %v826
        %v3521 = vunpack.c.l.b16 %v827
        %v3522 = vunpack.c.h.b16 %v827
        %v3523 = vunpack.c.l.b16 %v828
        %v3524 = vunpack.c.h.b16 %v828
        %v3525 = vunpack.c.l.b16 %v829
        %v3526 = vunpack.c.h.b16 %v829
        %v3527 = vunpack.c.l.b16 %v830
        %v3528 = vunpack.c.h.b16 %v830
        %v3529 = vunpack.c.l.b16 %v831
        %v3530 = vunpack.c.h.b16 %v831
        %v3531 = vunpack.c.l.b16 %v832
        %v3532 = vunpack.c.h.b16 %v832
        %v3533 = vunpack.c.l.b16 %v833
        %v3534 = vunpack.c.h.b16 %v833
        %v3535 = vunpack.c.l.b16 %v834
        %v3536 = vunpack.c.h.b16 %v834
        %v3537 = vunpack.c.l.b16 %v835
        %v3538 = vunpack.c.h.b16 %v835
        %v3539 = vunpack.c.l.b16 %v836
        %v3540 = vunpack.c.h.b16 %v836
        %v3541 = vunpack.c.l.b16 %v837
        %v3542 = vunpack.c.h.b16 %v837
        %v3543 = vunpack.c.l.b16 %v838
        %v3544 = vunpack.c.h.b16 %v838
        %v3545 = vunpack.c.l.b16 %v839
        %v3546 = vunpack.c.h.b16 %v839
        %v3547 = vunpack.c.l.b16 %v840
        %v3548 = vunpack.c.h.b16 %v840
        %v3549 = vunpack.c.l.b16 %v841
        %v3550 = vunpack.c.h.b16 %v841
        %v3551 = vunpack.c.l.b16 %v842
        %v3552 = vunpack.c.h.b16 %v842
        %v3553 = vunpack.c.l.b16 %v843
        %v3554 = vunpack.c.h.b16 %v843
        %v3555 = vunpack.c.l.b16 %v844
        %v3556 = vunpack.c.h.b16 %v844
        %v3557 = vunpack.c.l.b16 %v845
        %v3558 = vunpack.c.h.b16 %v845
        %v3559 = vunpack.c.l.b16 %v846
        %v3560 = vunpack.c.h.b16 %v846
        %v3561 = vunpack.c.l.b16 %v847
        %v3562 = vunpack.c.h.b16 %v847
        %v3563 = vunpack.c.l.b16 %v848
        %v3564 = vunpack.c.h.b16 %v848
        %v3565 = vunpack.c.l.b16 %v849
        %v3566 = vunpack.c.h.b16 %v849
        %v3567 = vunpack.c.l.b16 %v850
        %v3568 = vunpack.c.h.b16 %v850
        %v3569 = vunpack.c.l.b16 %v851
        %v3570 = vunpack.c.h.b16 %v851
        %v3571 = vunpack.c.l.b16 %v852
        %v3572 = vunpack.c.h.b16 %v852
        %v3573 = vunpack.c.l.b16 %v853
        %v3574 = vunpack.c.h.b16 %v853
        %v3575 = vunpack.c.l.b16 %v854
        %v3576 = vunpack.c.h.b16 %v854
        %v3577 = vunpack.c.l.b16 %v855
        %v3578 = vunpack.c.h.b16 %v855
        %v3579 = vunpack.c.l.b16 %v856
        %v3580 = vunpack.c.h.b16 %v856
        %v3581 = vunpack.c.l.b16 %v857
        %v3582 = vunpack.c.h.b16 %v857
        %v3583 = vunpack.c.l.b16 %v858
        %v3584 = vunpack.c.h.b16 %v858
        %v3585 = vunpack.c.l.b16 %v859
        %v3586 = vunpack.c.h.b16 %v859
        %v3587 = vunpack.c.l.b16 %v860
        %v3588 = vunpack.c.h.b16 %v860
        %v3589 = vunpack.c.l.b16 %v861
        %v3590 = vunpack.c.h.b16 %v861
        %v3591 = vunpack.c.l.b16 %v862
        %v3592 = vunpack.c.h.b16 %v862
        %v3593 = vunpack.c.l.b16 %v863
        %v3594 = vunpack.c.h.b16 %v863
        %v3595 = vunpack.c.l.b16 %v864
        %v3596 = vunpack.c.h.b16 %v864
        %v3597 = vunpack.c.l.b16 %v865
        %v3598 = vunpack.c.h.b16 %v865
        %v3599 = vunpack.c.l.b16 %v866
        %v3600 = vunpack.c.h.b16 %v866
        %v3601 = vunpack.c.l.b16 %v867
        %v3602 = vunpack.c.h.b16 %v867
        %v3603 = vunpack.c.l.b16 %v868
        %v3604 = vunpack.c.h.b16 %v868
        %v3605 = vunpack.c.l.b16 %v869
        %v3606 = vunpack.c.h.b16 %v869
        %v3607 = vunpack.c.l.b16 %v870
        %v3608 = vunpack.c.h.b16 %v870
        %v3609 = vunpack.c.l.b16 %v871
        %v3610 = vunpack.c.h.b16 %v871
        %v3611 = vunpack.c.l.b16 %v872
        %v3612 = vunpack.c.h.b16 %v872
        %v3613 = vunpack.c.l.b16 %v873
        %v3614 = vunpack.c.h.b16 %v873
        %v3615 = vunpack.c.l.b16 %v874
        %v3616 = vunpack.c.h.b16 %v874
        %v3617 = vunpack.c.l.b16 %v875
        %v3618 = vunpack.c.h.b16 %v875
        %v3619 = vunpack.c.l.b16 %v876
        %v3620 = vunpack.c.h.b16 %v876
        %v3621 = vunpack.c.l.b16 %v877
        %v3622 = vunpack.c.h.b16 %v877
        %v3623 = vunpack.c.l.b16 %v878
        %v3624 = vunpack.c.h.b16 %v878
        %v3625 = vunpack.c.l.b16 %v879
        %v3626 = vunpack.c.h.b16 %v879
        %v3627 = vunpack.c.l.b16 %v880
        %v3628 = vunpack.c.h.b16 %v880
        %v3629 = vunpack.c.l.b16 %v881
        %v3630 = vunpack.c.h.b16 %v881
        %v3631 = vunpack.c.l.b16 %v882
        %v3632 = vunpack.c.h.b16 %v882
        %v3633 = vunpack.c.l.b16 %v883
        %v3634 = vunpack.c.h.b16 %v883
        %v3635 = vunpack.c.l.b16 %v884
        %v3636 = vunpack.c.h.b16 %v884
        %v3637 = vunpack.c.l.b16 %v885
        %v3638 = vunpack.c.h.b16 %v885
        %v3639 = vunpack.c.l.b16 %v886
        %v3640 = vunpack.c.h.b16 %v886
        %v3641 = vunpack.c.l.b16 %v887
        %v3642 = vunpack.c.h.b16 %v887
        %v3643 = vunpack.c.l.b16 %v888
        %v3644 = vunpack.c.h.b16 %v888
        %v3645 = vunpack.c.l.b16 %v889
        %v3646 = vunpack.c.h.b16 %v889
        %v3647 = vunpack.c.l.b16 %v890
        %v3648 = vunpack.c.h.b16 %v890
        %v3649 = vunpack.c.l.b16 %v891
        %v3650 = vunpack.c.h.b16 %v891
        %v3651 = vunpack.c.l.b16 %v892
        %v3652 = vunpack.c.h.b16 %v892
        %v3653 = vunpack.c.l.b16 %v893
        %v3654 = vunpack.c.h.b16 %v893
        %v3655 = vunpack.c.l.b16 %v894
        %v3656 = vunpack.c.h.b16 %v894
        %v3657 = vunpack.c.l.b16 %v895
        %v3658 = vunpack.c.h.b16 %v895
        %v3659 = vunpack.c.l.b16 %v896
        %v3660 = vunpack.c.h.b16 %v896
        %v3661 = vunpack.c.l.b16 %v897
        %v3662 = vunpack.c.h.b16 %v897
        %v3663 = vunpack.c.l.b16 %v898
        %v3664 = vunpack.c.h.b16 %v898
        %v3665 = vunpack.c.l.b16 %v899
        %v3666 = vunpack.c.h.b16 %v899
        %v3667 = vunpack.c.l.b16 %v900
        %v3668 = vunpack.c.h.b16 %v900
        %v3669 = vunpack.c.l.b16 %v901
        %v3670 = vunpack.c.h.b16 %v901
        %v3671 = vunpack.c.l.b16 %v902
        %v3672 = vunpack.c.h.b16 %v902
        %v3673 = vunpack.c.l.b16 %v903
        %v3674 = vunpack.c.h.b16 %v903
        %v3675 = vunpack.c.l.b16 %v904
        %v3676 = vunpack.c.h.b16 %v904
        %v3677 = vunpack.c.l.b16 %v905
        %v3678 = vunpack.c.h.b16 %v905
        %v3679 = vunpack.c.l.b16 %v906
        %v3680 = vunpack.c.h.b16 %v906
        %v3681 = vunpack.c.l.b16 %v907
        %v3682 = vunpack.c.h.b16 %v907
        %v3683 = vunpack.c.l.b16 %v908
        %v3684 = vunpack.c.h.b16 %v908
        %v3685 = vunpack.c.l.b16 %v909
        %v3686 = vunpack.c.h.b16 %v909
        %v3687 = vunpack.c.l.b16 %v910
        %v3688 = vunpack.c.h.b16 %v910
        %v3689 = vunpack.c.l.b16 %v911
        %v3690 = vunpack.c.h.b16 %v911
        %v3691 = vunpack.c.l.b16 %v912
        %v3692 = vunpack.c.h.b16 %v912
        %v3693 = vunpack.c.l.b16 %v913
        %v3694 = vunpack.c.h.b16 %v913
        %v3695 = vunpack.c.l.b16 %v914
        %v3696 = vunpack.c.h.b16 %v914
        %v3697 = vunpack.c.l.b16 %v915
        %v3698 = vunpack.c.h.b16 %v915
        %v3699 = vunpack.c.l.b16 %v916
        %v3700 = vunpack.c.h.b16 %v916
        %v3701 = vunpack.c.l.b16 %v917
        %v3702 = vunpack.c.h.b16 %v917
        %v3703 = vunpack.c.l.b16 %v918
        %v3704 = vunpack.c.h.b16 %v918
        %v3705 = vunpack.c.l.b16 %v919
        %v3706 = vunpack.c.h.b16 %v919
        %v3707 = vunpack.c.l.b16 %v920
        %v3708 = vunpack.c.h.b16 %v920
        %v3709 = vunpack.c.l.b16 %v921
        %v3710 = vunpack.c.h.b16 %v921
        %v3711 = vunpack.c.l.b16 %v922
        %v3712 = vunpack.c.h.b16 %v922
        %v3713 = vunpack.c.l.b16 %v923
        %v3714 = vunpack.c.h.b16 %v923
        %v3715 = vunpack.c.l.b16 %v924
        %v3716 = vunpack.c.h.b16 %v924
        %v3717 = vunpack.c.l.b16 %v925
        %v3718 = vunpack.c.h.b16 %v925
        %v3719 = vunpack.c.l.b16 %v926
        %v3720 = vunpack.c.h.b16 %v926
        %v3721 = vunpack.c.l.b16 %v927
        %v3722 = vunpack.c.h.b16 %v927
        %v3723 = vunpack.c.l.b16 %v928
        %v3724 = vunpack.c.h.b16 %v928
        %v3725 = vunpack.c.l.b16 %v929
        %v3726 = vunpack.c.h.b16 %v929
        %v3727 = vunpack.c.l.b16 %v930
        %v3728 = vunpack.c.h.b16 %v930
        %v3729 = vunpack.c.l.b16 %v931
        %v3730 = vunpack.c.h.b16 %v931
        %v3731 = vunpack.c.l.b16 %v932
        %v3732 = vunpack.c.h.b16 %v932
        %v3733 = vunpack.c.l.b16 %v933
        %v3734 = vunpack.c.h.b16 %v933
        %v3735 = vunpack.c.l.b16 %v934
        %v3736 = vunpack.c.h.b16 %v934
        %v3737 = vunpack.c.l.b16 %v935
        %v3738 = vunpack.c.h.b16 %v935
        %v3739 = vunpack.c.l.b16 %v936
        %v3740 = vunpack.c.h.b16 %v936
        %v3741 = vunpack.c.l.b16 %v937
        %v3742 = vunpack.c.h.b16 %v937
        %v3743 = vunpack.c.l.b16 %v938
        %v3744 = vunpack.c.h.b16 %v938
        %v3745 = vunpack.c.l.b16 %v939
        %v3746 = vunpack.c.h.b16 %v939
        %v3747 = vunpack.c.l.b16 %v940
        %v3748 = vunpack.c.h.b16 %v940
        %v3749 = vunpack.c.l.b16 %v941
        %v3750 = vunpack.c.h.b16 %v941
        %v3751 = vunpack.c.l.b16 %v942
        %v3752 = vunpack.c.h.b16 %v942
        %v3753 = vunpack.c.l.b16 %v943
        %v3754 = vunpack.c.h.b16 %v943
        %v3755 = vunpack.c.l.b16 %v944
        %v3756 = vunpack.c.h.b16 %v944
        %v3757 = vunpack.c.l.b16 %v945
        %v3758 = vunpack.c.h.b16 %v945
        %v3759 = vunpack.c.l.b16 %v946
        %v3760 = vunpack.c.h.b16 %v946
        %v3761 = vunpack.c.l.b16 %v947
        %v3762 = vunpack.c.h.b16 %v947
        %v3763 = vunpack.c.l.b16 %v948
        %v3764 = vunpack.c.h.b16 %v948
        %v3765 = vunpack.c.l.b16 %v949
        %v3766 = vunpack.c.h.b16 %v949
        %v3767 = vunpack.c.l.b16 %v950
        %v3768 = vunpack.c.h.b16 %v950
        %v3769 = vunpack.c.l.b16 %v951
        %v3770 = vunpack.c.h.b16 %v951
        %v3771 = vunpack.c.l.b16 %v952
        %v3772 = vunpack.c.h.b16 %v952
        %v3773 = vunpack.c.l.b16 %v953
        %v3774 = vunpack.c.h.b16 %v953
        %v3775 = vunpack.c.l.b16 %v954
        %v3776 = vunpack.c.h.b16 %v954
        %v3777 = vunpack.c.l.b16 %v955
        %v3778 = vunpack.c.h.b16 %v955
        %v3779 = vunpack.c.l.b16 %v956
        %v3780 = vunpack.c.h.b16 %v956
        %v3781 = vunpack.c.l.b16 %v957
        %v3782 = vunpack.c.h.b16 %v957
        %v3783 = vunpack.c.l.b16 %v958
        %v3784 = vunpack.c.h.b16 %v958
        %v3785 = vunpack.c.l.b16 %v959
        %v3786 = vunpack.c.h.b16 %v959
        %v3787 = vunpack.c.l.b16 %v960
        %v3788 = vunpack.c.h.b16 %v960
        %v3789 = vunpack.c.l.b16 %v961
        %v3790 = vunpack.c.h.b16 %v961
        %v3791 = vunpack.c.l.b16 %v962
        %v3792 = vunpack.c.h.b16 %v962
        %v3793 = vunpack.c.l.b16 %v963
        %v3794 = vunpack.c.h.b16 %v963
        %v3795 = vunpack.c.l.b16 %v964
        %v3796 = vunpack.c.h.b16 %v964
        %v3797 = vunpack.c.l.b16 %v965
        %v3798 = vunpack.c.h.b16 %v965
        %v3799 = vunpack.c.l.b16 %v966
        %v3800 = vunpack.c.h.b16 %v966
        %v3801 = vunpack.c.l.b16 %v967
        %v3802 = vunpack.c.h.b16 %v967
        %v3803 = vunpack.c.l.b16 %v968
        %v3804 = vunpack.c.h.b16 %v968
        %v3805 = vunpack.c.l.b16 %v969
        %v3806 = vunpack.c.h.b16 %v969
        %v3807 = vunpack.c.l.b16 %v970
        %v3808 = vunpack.c.h.b16 %v970
        %v3809 = vunpack.c.l.b16 %v971
        %v3810 = vunpack.c.h.b16 %v971
        %v3811 = vunpack.c.l.b16 %v972
        %v3812 = vunpack.c.h.b16 %v972
        %v3813 = vunpack.c.l.b16 %v973
        %v3814 = vunpack.c.h.b16 %v973
        %v3815 = vunpack.c.l.b16 %v974
        %v3816 = vunpack.c.h.b16 %v974
        %v3817 = vunpack.c.l.b16 %v975
        %v3818 = vunpack.c.h.b16 %v975
        %v3819 = vunpack.c.l.b16 %v976
        %v3820 = vunpack.c.h.b16 %v976
        %v3821 = vunpack.c.l.b16 %v977
        %v3822 = vunpack.c.h.b16 %v977
        %v3823 = vunpack.c.l.b16 %v978
        %v3824 = vunpack.c.h.b16 %v978
        %v3825 = vunpack.c.l.b16 %v979
        %v3826 = vunpack.c.h.b16 %v979
        %v3827 = vunpack.c.l.b16 %v980
        %v3828 = vunpack.c.h.b16 %v980
        %v3829 = vunpack.c.l.b16 %v981
        %v3830 = vunpack.c.h.b16 %v981
        %v3831 = vunpack.c.l.b16 %v982
        %v3832 = vunpack.c.h.b16 %v982
        %v3833 = vunpack.c.l.b16 %v983
        %v3834 = vunpack.c.h.b16 %v983
        %v3835 = vunpack.c.l.b16 %v984
        %v3836 = vunpack.c.h.b16 %v984
        %v3837 = vunpack.c.l.b16 %v985
        %v3838 = vunpack.c.h.b16 %v985
        %v3839 = vunpack.c.l.b16 %v986
        %v3840 = vunpack.c.h.b16 %v986
        %v3841 = vunpack.c.l.b16 %v987
        %v3842 = vunpack.c.h.b16 %v987
        %v3843 = vunpack.c.l.b16 %v988
        %v3844 = vunpack.c.h.b16 %v988
        %v3845 = vunpack.c.l.b16 %v989
        %v3846 = vunpack.c.h.b16 %v989
        %v3847 = vunpack.c.l.b16 %v990
        %v3848 = vunpack.c.h.b16 %v990
        %v3849 = vunpack.c.l.b16 %v991
        %v3850 = vunpack.c.h.b16 %v991
        %v3851 = vunpack.c.l.b16 %v992
        %v3852 = vunpack.c.h.b16 %v992
        %v3853 = vunpack.c.l.b16 %v993
        %v3854 = vunpack.c.h.b16 %v993
        %v3855 = vunpack.c.l.b16 %v994
        %v3856 = vunpack.c.h.b16 %v994
        %v3857 = vunpack.c.l.b16 %v995
        %v3858 = vunpack.c.h.b16 %v995
        %v3859 = vunpack.c.l.b16 %v996
        %v3860 = vunpack.c.h.b16 %v996
        %v3861 = vunpack.c.l.b16 %v997
        %v3862 = vunpack.c.h.b16 %v997
        %v3863 = vunpack.c.l.b16 %v998
        %v3864 = vunpack.c.h.b16 %v998
        %v3865 = vunpack.c.l.b16 %v999
        %v3866 = vunpack.c.h.b16 %v999
        %v3867 = vunpack.c.l.b16 %v1000
        %v3868 = vunpack.c.h.b16 %v1000
        %v3869 = vunpack.c.l.b16 %v1001
        %v3870 = vunpack.c.h.b16 %v1001
        %v3871 = vunpack.c.l.b16 %v1002
        %v3872 = vunpack.c.h.b16 %v1002
        %v3873 = vunpack.c.l.b16 %v1003
        %v3874 = vunpack.c.h.b16 %v1003
        %v3875 = vunpack.c.l.b16 %v1004
        %v3876 = vunpack.c.h.b16 %v1004
        %v3877 = vunpack.c.l.b16 %v1005
        %v3878 = vunpack.c.h.b16 %v1005
        %v3879 = vunpack.c.l.b16 %v1006
        %v3880 = vunpack.c.h.b16 %v1006
        %v3881 = vunpack.c.l.b16 %v1007
        %v3882 = vunpack.c.h.b16 %v1007
        %v3883 = vunpack.c.l.b16 %v1008
        %v3884 = vunpack.c.h.b16 %v1008
        %v3885 = vunpack.c.l.b16 %v1009
        %v3886 = vunpack.c.h.b16 %v1009
        %v3887 = vunpack.c.l.b16 %v1010
        %v3888 = vunpack.c.h.b16 %v1010
        %v3889 = vunpack.c.l.b16 %v1011
        %v3890 = vunpack.c.h.b16 %v1011
        %v3891 = vunpack.c.l.b16 %v1012
        %v3892 = vunpack.c.h.b16 %v1012
        %v3893 = vunpack.c.l.b16 %v1013
        %v3894 = vunpack.c.h.b16 %v1013
        %v3895 = vunpack.c.l.b16 %v1014
        %v3896 = vunpack.c.h.b16 %v1014
        %v3897 = vunpack.c.l.b16 %v1015
        %v3898 = vunpack.c.h.b16 %v1015
        %v3899 = vunpack.c.l.b16 %v1016
        %v3900 = vunpack.c.h.b16 %v1016
        %v3901 = vunpack.c.l.b16 %v1017
        %v3902 = vunpack.c.h.b16 %v1017
        %v3903 = vunpack.c.l.b16 %v1018
        %v3904 = vunpack.c.h.b16 %v1018
        %v3905 = vunpack.c.l.b16 %v1019
        %v3906 = vunpack.c.h.b16 %v1019
        %v3907 = vunpack.c.l.b16 %v1020
        %v3908 = vunpack.c.h.b16 %v1020
        %v3909 = vunpack.c.l.b16 %v1021
        %v3910 = vunpack.c.h.b16 %v1021
        %v3911 = vunpack.c.l.b16 %v1022
        %v3912 = vunpack.c.h.b16 %v1022
        %v3913 = vunpack.c.l.b16 %v1023
        %v3914 = vunpack.c.h.b16 %v1023
        %v3915 = vunpack.c.l.b16 %v1024
        %v3916 = vunpack.c.h.b16 %v1024
        %v3917 = vunpack.c.l.b16 %v1025
        %v3918 = vunpack.c.h.b16 %v1025
        %v3919 = vunpack.c.l.b16 %v1026
        %v3920 = vunpack.c.h.b16 %v1026
        %v3921 = vunpack.c.l.b16 %v1027
        %v3922 = vunpack.c.h.b16 %v1027
        %v3923 = vunpack.c.l.b16 %v1028
        %v3924 = vunpack.c.h.b16 %v1028
        %v3925 = vunpack.c.l.b16 %v1029
        %v3926 = vunpack.c.h.b16 %v1029
        %v3927 = vunpack.c.l.b16 %v1030
        %v3928 = vunpack.c.h.b16 %v1030
        %v3929 = vunpack.c.l.b16 %v1031
        %v3930 = vunpack.c.h.b16 %v1031
        %v3931 = vunpack.c.l.b16 %v1032
        %v3932 = vunpack.c.h.b16 %v1032
        %v3933 = vunpack.c.l.b16 %v1033
        %v3934 = vunpack.c.h.b16 %v1033
        %v3935 = vunpack.c.l.b16 %v1034
        %v3936 = vunpack.c.h.b16 %v1034
        %v3937 = vunpack.c.l.b16 %v1035
        %v3938 = vunpack.c.h.b16 %v1035
        %v3939 = vunpack.c.l.b16 %v1036
        %v3940 = vunpack.c.h.b16 %v1036
        %v3941 = vunpack.c.l.b16 %v1037
        %v3942 = vunpack.c.h.b16 %v1037
        %v3943 = vunpack.c.l.b16 %v1038
        %v3944 = vunpack.c.h.b16 %v1038
        %v3945 = vunpack.c.l.b16 %v1039
        %v3946 = vunpack.c.h.b16 %v1039
        %v3947 = vunpack.c.l.b16 %v1040
        %v3948 = vunpack.c.h.b16 %v1040
        %v3949 = vunpack.c.l.b16 %v1041
        %v3950 = vunpack.c.h.b16 %v1041
        %v3951 = vunpack.c.l.b16 %v1042
        %v3952 = vunpack.c.h.b16 %v1042
        %v3953 = vunpack.c.l.b16 %v1043
        %v3954 = vunpack.c.h.b16 %v1043
        %v3955 = vunpack.c.l.b16 %v1044
        %v3956 = vunpack.c.h.b16 %v1044
        %v3957 = vunpack.c.l.b16 %v1045
        %v3958 = vunpack.c.h.b16 %v1045
        %v3959 = vunpack.c.l.b16 %v1046
        %v3960 = vunpack.c.h.b16 %v1046
        %v3961 = vunpack.c.l.b16 %v1047
        %v3962 = vunpack.c.h.b16 %v1047
        %v3963 = vunpack.c.l.b16 %v1048
        %v3964 = vunpack.c.h.b16 %v1048
        %v3965 = vunpack.c.l.b16 %v1049
        %v3966 = vunpack.c.h.b16 %v1049
        %v3967 = vunpack.c.l.b16 %v1050
        %v3968 = vunpack.c.h.b16 %v1050
        %v3969 = vunpack.c.l.b16 %v1051
        %v3970 = vunpack.c.h.b16 %v1051
        %v3971 = vunpack.c.l.b16 %v1052
        %v3972 = vunpack.c.h.b16 %v1052
        %v3973 = vunpack.c.l.b16 %v1053
        %v3974 = vunpack.c.h.b16 %v1053
        %v3975 = vunpack.c.l.b16 %v1054
        %v3976 = vunpack.c.h.b16 %v1054
        %v3977 = vunpack.c.l.b16 %v1055
        %v3978 = vunpack.c.h.b16 %v1055
        %v3979 = vunpack.c.l.b16 %v1056
        %v3980 = vunpack.c.h.b16 %v1056
        %v3981 = vunpack.c.l.b16 %v1057
        %v3982 = vunpack.c.h.b16 %v1057
        %v3983 = vunpack.c.l.b16 %v1058
        %v3984 = vunpack.c.h.b16 %v1058
        %v3985 = vunpack.c.l.b16 %v1059
        %v3986 = vunpack.c.h.b16 %v1059
        %v3987 = vunpack.c.l.b16 %v1060
        %v3988 = vunpack.c.h.b16 %v1060
        %v3989 = vunpack.c.l.b16 %v1061
        %v3990 = vunpack.c.h.b16 %v1061
        %v3991 = vunpack.c.l.b16 %v1062
        %v3992 = vunpack.c.h.b16 %v1062
        %v3993 = vunpack.c.l.b16 %v1063
        %v3994 = vunpack.c.h.b16 %v1063
        %v3995 = vunpack.c.l.b16 %v1064
        %v3996 = vunpack.c.h.b16 %v1064
        %v3997 = vunpack.c.l.b16 %v1065
        %v3998 = vunpack.c.h.b16 %v1065
        %v3999 = vunpack.c.l.b16 %v1066
        %v4000 = vunpack.c.h.b16 %v1066
        %v4001 = vunpack.c.l.b16 %v1067
        %v4002 = vunpack.c.h.b16 %v1067
        %v4003 = vunpack.c.l.b16 %v1068
        %v4004 = vunpack.c.h.b16 %v1068
        %v4005 = vunpack.c.l.b16 %v1069
        %v4006 = vunpack.c.h.b16 %v1069
        %v4007 = vunpack.c.l.b16 %v1070
        %v4008 = vunpack.c.h.b16 %v1070
        %v4009 = vunpack.c.l.b16 %v1071
        %v4010 = vunpack.c.h.b16 %v1071
        %v4011 = vunpack.c.l.b16 %v1072
        %v4012 = vunpack.c.h.b16 %v1072
        %v4013 = vunpack.c.l.b16 %v1073
        %v4014 = vunpack.c.h.b16 %v1073
        %v4015 = vunpack.c.l.b16 %v1074
        %v4016 = vunpack.c.h.b16 %v1074
        %v4017 = vunpack.c.l.b16 %v1075
        %v4018 = vunpack.c.h.b16 %v1075
        %v4019 = vunpack.c.l.b16 %v1076
        %v4020 = vunpack.c.h.b16 %v1076
        %v4021 = vunpack.c.l.b16 %v1077
        %v4022 = vunpack.c.h.b16 %v1077
        %v4023 = vunpack.c.l.b16 %v1078
        %v4024 = vunpack.c.h.b16 %v1078
        %v4025 = vunpack.c.l.b16 %v1079
        %v4026 = vunpack.c.h.b16 %v1079
        %v4027 = vunpack.c.l.b16 %v1080
        %v4028 = vunpack.c.h.b16 %v1080
        %v4029 = vunpack.c.l.b16 %v1081
        %v4030 = vunpack.c.h.b16 %v1081
        %v4031 = vunpack.c.l.b16 %v1082
        %v4032 = vunpack.c.h.b16 %v1082
        %v4033 = vunpack.c.l.b16 %v1083
        %v4034 = vunpack.c.h.b16 %v1083
        %v4035 = vunpack.c.l.b16 %v1084
        %v4036 = vunpack.c.h.b16 %v1084
        %v4037 = vunpack.c.l.b16 %v1085
        %v4038 = vunpack.c.h.b16 %v1085
        %v4039 = vunpack.c.l.b16 %v1086
        %v4040 = vunpack.c.h.b16 %v1086
        %v4041 = vunpack.c.l.b16 %v1087
        %v4042 = vunpack.c.h.b16 %v1087
        %v4043 = vunpack.c.l.b16 %v1088
        %v4044 = vunpack.c.h.b16 %v1088
        %v4045 = vunpack.c.l.b16 %v1089
        %v4046 = vunpack.c.h.b16 %v1089
        %v4047 = vunpack.c.l.b16 %v1090
        %v4048 = vunpack.c.h.b16 %v1090
        %v4049 = vunpack.c.l.b16 %v1091
        %v4050 = vunpack.c.h.b16 %v1091
        %v4051 = vunpack.c.l.b16 %v1092
        %v4052 = vunpack.c.h.b16 %v1092
        %v4053 = vunpack.c.l.b16 %v1093
        %v4054 = vunpack.c.h.b16 %v1093
        %v4055 = vunpack.c.l.b16 %v1094
        %v4056 = vunpack.c.h.b16 %v1094
        %v4057 = vunpack.c.l.b16 %v1095
        %v4058 = vunpack.c.h.b16 %v1095
        %v4059 = vunpack.c.l.b16 %v1096
        %v4060 = vunpack.c.h.b16 %v1096
        %v4061 = vunpack.c.l.b16 %v1097
        %v4062 = vunpack.c.h.b16 %v1097
        %v4063 = vunpack.c.l.b16 %v1098
        %v4064 = vunpack.c.h.b16 %v1098
        %v4065 = vunpack.c.l.b16 %v1099
        %v4066 = vunpack.c.h.b16 %v1099
        %v4067 = vunpack.c.l.b16 %v1100
        %v4068 = vunpack.c.h.b16 %v1100
        %v4069 = vunpack.c.l.b16 %v1101
        %v4070 = vunpack.c.h.b16 %v1101
        %v4071 = vunpack.c.l.b16 %v1102
        %v4072 = vunpack.c.h.b16 %v1102
        %v4073 = vunpack.c.l.b16 %v1103
        %v4074 = vunpack.c.h.b16 %v1103
        %v4075 = vunpack.c.l.b16 %v1104
        %v4076 = vunpack.c.h.b16 %v1104
        %v4077 = vunpack.c.l.b16 %v1105
        %v4078 = vunpack.c.h.b16 %v1105
        %v4079 = vunpack.c.l.b16 %v1106
        %v4080 = vunpack.c.h.b16 %v1106
        %v4081 = vunpack.c.l.b16 %v1107
        %v4082 = vunpack.c.h.b16 %v1107
        %v4083 = vunpack.c.l.b16 %v1108
        %v4084 = vunpack.c.h.b16 %v1108
        %v4085 = vunpack.c.l.b16 %v1109
        %v4086 = vunpack.c.h.b16 %v1109
        %v4087 = vunpack.c.l.b16 %v1110
        %v4088 = vunpack.c.h.b16 %v1110
        %v4089 = vunpack.c.l.b16 %v1111
        %v4090 = vunpack.c.h.b16 %v1111
        %v4091 = vunpack.c.l.b16 %v1112
        %v4092 = vunpack.c.h.b16 %v1112
        %v4093 = vunpack.c.l.b16 %v1113
        %v4094 = vunpack.c.h.b16 %v1113
        %v4095 = vunpack.c.l.b16 %v1114
        %v4096 = vunpack.c.h.b16 %v1114
        %v4097 = vunpack.c.l.b16 %v1115
        %v4098 = vunpack.c.h.b16 %v1115
        %v4099 = vunpack.c.l.b16 %v1116
        %v4100 = vunpack.c.h.b16 %v1116
        %v4101 = vunpack.c.l.b16 %v1117
        %v4102 = vunpack.c.h.b16 %v1117
        %v4103 = vunpack.c.l.b16 %v1118
        %v4104 = vunpack.c.h.b16 %v1118
        %v4105 = vunpack.c.l.b16 %v1119
        %v4106 = vunpack.c.h.b16 %v1119
        %v4107 = vunpack.c.l.b16 %v1120
        %v4108 = vunpack.c.h.b16 %v1120
        %v4109 = vunpack.c.l.b16 %v1121
        %v4110 = vunpack.c.h.b16 %v1121
        %v4111 = vunpack.c.l.b16 %v1122
        %v4112 = vunpack.c.h.b16 %v1122
        %v4113 = vunpack.c.l.b16 %v1123
        %v4114 = vunpack.c.h.b16 %v1123
        %v4115 = vunpack.c.l.b16 %v1124
        %v4116 = vunpack.c.h.b16 %v1124
        %v4117 = vunpack.c.l.b16 %v1125
        %v4118 = vunpack.c.h.b16 %v1125
        %v4119 = vunpack.c.l.b16 %v1126
        %v4120 = vunpack.c.h.b16 %v1126
        %v4121 = vunpack.c.l.b16 %v1127
        %v4122 = vunpack.c.h.b16 %v1127
        %v4123 = vunpack.c.l.b16 %v1128
        %v4124 = vunpack.c.h.b16 %v1128
        %v4125 = vunpack.c.l.b16 %v1129
        %v4126 = vunpack.c.h.b16 %v1129
        %v4127 = vunpack.c.l.b16 %v1130
        %v4128 = vunpack.c.h.b16 %v1130
        %v4129 = vunpack.c.l.b16 %v1131
        %v4130 = vunpack.c.h.b16 %v1131
        %v4131 = vunpack.c.l.b16 %v1132
        %v4132 = vunpack.c.h.b16 %v1132
        %v4133 = vunpack.c.l.b16 %v1133
        %v4134 = vunpack.c.h.b16 %v1133
        %v4135 = vunpack.c.l.b16 %v1134
        %v4136 = vunpack.c.h.b16 %v1134
        %v4137 = vunpack.c.l.b16 %v1135
        %v4138 = vunpack.c.h.b16 %v1135
        %v4139 = vunpack.c.l.b16 %v1136
        %v4140 = vunpack.c.h.b16 %v1136
        %v4141 = vunpack.c.l.b16 %v1137
        %v4142 = vunpack.c.h.b16 %v1137
        %v4143 = vunpack.c.l.b16 %v1138
        %v4144 = vunpack.c.h.b16 %v1138
        %v4145 = vunpack.c.l.b16 %v1139
        %v4146 = vunpack.c.h.b16 %v1139
        %v4147 = vunpack.c.l.b16 %v1140
        %v4148 = vunpack.c.h.b16 %v1140
        %v4149 = vunpack.c.l.b16 %v1141
        %v4150 = vunpack.c.h.b16 %v1141
        %v4151 = vunpack.c.l.b16 %v1142
        %v4152 = vunpack.c.h.b16 %v1142
        %v4153 = vunpack.c.l.b16 %v1143
        %v4154 = vunpack.c.h.b16 %v1143
        %v4155 = vunpack.c.l.b16 %v1144
        %v4156 = vunpack.c.h.b16 %v1144
        %v4157 = vunpack.c.l.b16 %v1145
        %v4158 = vunpack.c.h.b16 %v1145
        %v4159 = vunpack.c.l.b16 %v1146
        %v4160 = vunpack.c.h.b16 %v1146
        %v4161 = vunpack.c.l.b16 %v1147
        %v4162 = vunpack.c.h.b16 %v1147
        %v4163 = vunpack.c.l.b16 %v1148
        %v4164 = vunpack.c.h.b16 %v1148
        %v4165 = vunpack.c.l.b16 %v1149
        %v4166 = vunpack.c.h.b16 %v1149
        %v4167 = vunpack.c.l.b16 %v1150
        %v4168 = vunpack.c.h.b16 %v1150
        %v4169 = vunpack.c.l.b16 %v1151
        %v4170 = vunpack.c.h.b16 %v1151
        %v4171 = vunpack.c.l.b16 %v1152
        %v4172 = vunpack.c.h.b16 %v1152
        %v4173 = vunpack.c.l.b16 %v1153
        %v4174 = vunpack.c.h.b16 %v1153
        %v4175 = vunpack.c.l.b16 %v1154
        %v4176 = vunpack.c.h.b16 %v1154
        %v4177 = vunpack.c.l.b16 %v1155
        %v4178 = vunpack.c.h.b16 %v1155
        %v4179 = vunpack.c.l.b16 %v1156
        %v4180 = vunpack.c.h.b16 %v1156
        %v4181 = vunpack.c.l.b16 %v1157
        %v4182 = vunpack.c.h.b16 %v1157
        %v4183 = vunpack.c.l.b16 %v1158
        %v4184 = vunpack.c.h.b16 %v1158
        %v4185 = vunpack.c.l.b16 %v1159
        %v4186 = vunpack.c.h.b16 %v1159
        %v4187 = vunpack.c.l.b16 %v1160
        %v4188 = vunpack.c.h.b16 %v1160
        %v4189 = vunpack.c.l.b16 %v1161
        %v4190 = vunpack.c.h.b16 %v1161
        %v4191 = vunpack.c.l.b16 %v1162
        %v4192 = vunpack.c.h.b16 %v1162
        %v4193 = vunpack.c.l.b16 %v1163
        %v4194 = vunpack.c.h.b16 %v1163
        %v4195 = vunpack.c.l.b16 %v1164
        %v4196 = vunpack.c.h.b16 %v1164
        %v4197 = vunpack.c.l.b16 %v1165
        %v4198 = vunpack.c.h.b16 %v1165
        %v4199 = vunpack.c.l.b16 %v1166
        %v4200 = vunpack.c.h.b16 %v1166
        %v4201 = vunpack.c.l.b16 %v1167
        %v4202 = vunpack.c.h.b16 %v1167
        %v4203 = vunpack.c.l.b16 %v1168
        %v4204 = vunpack.c.h.b16 %v1168
        %v4205 = vunpack.c.l.b16 %v1169
        %v4206 = vunpack.c.h.b16 %v1169
        %v4207 = vunpack.c.l.b16 %v1170
        %v4208 = vunpack.c.h.b16 %v1170
        %v4209 = vunpack.c.l.b16 %v1171
        %v4210 = vunpack.c.h.b16 %v1171
        %v4211 = vunpack.c.l.b16 %v1172
        %v4212 = vunpack.c.h.b16 %v1172
        %v4213 = vunpack.c.l.b16 %v1173
        %v4214 = vunpack.c.h.b16 %v1173
        %v4215 = vunpack.c.l.b16 %v1174
        %v4216 = vunpack.c.h.b16 %v1174
        %v4217 = vunpack.c.l.b16 %v1175
        %v4218 = vunpack.c.h.b16 %v1175
        %v4219 = vunpack.c.l.b16 %v1176
        %v4220 = vunpack.c.h.b16 %v1176
        %v4221 = vunpack.c.l.b16 %v1177
        %v4222 = vunpack.c.h.b16 %v1177
        %v4223 = vunpack.c.l.b16 %v1178
        %v4224 = vunpack.c.h.b16 %v1178
        %v4225 = vunpack.c.l.b16 %v1179
        %v4226 = vunpack.c.h.b16 %v1179
        %v4227 = vunpack.c.l.b16 %v1180
        %v4228 = vunpack.c.h.b16 %v1180
        %v4229 = vunpack.c.l.b16 %v1181
        %v4230 = vunpack.c.h.b16 %v1181
        %v4231 = vunpack.c.l.b16 %v1182
        %v4232 = vunpack.c.h.b16 %v1182
        %v4233 = vunpack.c.l.b16 %v1183
        %v4234 = vunpack.c.h.b16 %v1183
        %v4235 = vunpack.c.l.b16 %v1184
        %v4236 = vunpack.c.h.b16 %v1184
        %v4237 = vunpack.c.l.b16 %v1185
        %v4238 = vunpack.c.h.b16 %v1185
        %v4239 = vunpack.c.l.b16 %v1186
        %v4240 = vunpack.c.h.b16 %v1186
        %v4241 = vunpack.c.l.b16 %v1187
        %v4242 = vunpack.c.h.b16 %v1187
        %v4243 = vunpack.c.l.b16 %v1188
        %v4244 = vunpack.c.h.b16 %v1188
        %v4245 = vunpack.c.l.b16 %v1189
        %v4246 = vunpack.c.h.b16 %v1189
        %v4247 = vunpack.c.l.b16 %v1190
        %v4248 = vunpack.c.h.b16 %v1190
        %v4249 = vunpack.c.l.b16 %v1191
        %v4250 = vunpack.c.h.b16 %v1191
        %v4251 = vunpack.c.l.b16 %v1192
        %v4252 = vunpack.c.h.b16 %v1192
        %v4253 = vunpack.c.l.b16 %v1193
        %v4254 = vunpack.c.h.b16 %v1193
        %v4255 = vunpack.c.l.b16 %v1194
        %v4256 = vunpack.c.h.b16 %v1194
        %v4257 = vunpack.c.l.b16 %v1195
        %v4258 = vunpack.c.h.b16 %v1195
        %v4259 = vunpack.c.l.b16 %v1196
        %v4260 = vunpack.c.h.b16 %v1196
        %v4261 = vunpack.c.l.b16 %v1197
        %v4262 = vunpack.c.h.b16 %v1197
        %v4263 = vunpack.c.l.b16 %v1198
        %v4264 = vunpack.c.h.b16 %v1198
        %v4265 = vunpack.c.l.b16 %v1199
        %v4266 = vunpack.c.h.b16 %v1199
        %v4267 = vunpack.c.l.b16 %v1200
        %v4268 = vunpack.c.h.b16 %v1200
        %v4269 = vunpack.c.l.b16 %v1201
        %v4270 = vunpack.c.h.b16 %v1201
        %v4271 = vunpack.c.l.b16 %v1202
        %v4272 = vunpack.c.h.b16 %v1202
        %v4273 = vunpack.c.l.b16 %v1203
        %v4274 = vunpack.c.h.b16 %v1203
        %v4275 = vunpack.c.l.b16 %v1204
        %v4276 = vunpack.c.h.b16 %v1204
        %v4277 = vunpack.c.l.b16 %v1205
        %v4278 = vunpack.c.h.b16 %v1205
        %v4279 = vunpack.c.l.b16 %v1206
        %v4280 = vunpack.c.h.b16 %v1206
        %v4281 = vunpack.c.l.b16 %v1207
        %v4282 = vunpack.c.h.b16 %v1207
        %v4283 = vunpack.c.l.b16 %v1208
        %v4284 = vunpack.c.h.b16 %v1208
        %v4285 = vunpack.c.l.b16 %v1209
        %v4286 = vunpack.c.h.b16 %v1209
        %v4287 = vunpack.c.l.b16 %v1210
        %v4288 = vunpack.c.h.b16 %v1210
        %v4289 = vunpack.c.l.b16 %v1211
        %v4290 = vunpack.c.h.b16 %v1211
        %v4291 = vunpack.c.l.b16 %v1212
        %v4292 = vunpack.c.h.b16 %v1212
        %v4293 = vunpack.c.l.b16 %v1213
        %v4294 = vunpack.c.h.b16 %v1213
        %v4295 = vunpack.c.l.b16 %v1214
        %v4296 = vunpack.c.h.b16 %v1214
        %v4297 = vunpack.c.l.b16 %v1215
        %v4298 = vunpack.c.h.b16 %v1215
        %v4299 = vunpack.c.l.b16 %v1216
        %v4300 = vunpack.c.h.b16 %v1216
        %v4301 = vunpack.c.l.b16 %v1217
        %v4302 = vunpack.c.h.b16 %v1217
        %v4303 = vunpack.c.l.b16 %v1218
        %v4304 = vunpack.c.h.b16 %v1218
        %v4305 = vunpack.c.l.b16 %v1219
        %v4306 = vunpack.c.h.b16 %v1219
        %v4307 = vunpack.c.l.b16 %v1220
        %v4308 = vunpack.c.h.b16 %v1220
        %v4309 = vunpack.c.l.b16 %v1221
        %v4310 = vunpack.c.h.b16 %v1221
        %v4311 = vunpack.c.l.b16 %v1222
        %v4312 = vunpack.c.h.b16 %v1222
        %v4313 = vunpack.c.l.b16 %v1223
        %v4314 = vunpack.c.h.b16 %v1223
        %v4315 = vunpack.c.l.b16 %v1224
        %v4316 = vunpack.c.h.b16 %v1224
        %v4317 = vunpack.c.l.b16 %v1225
        %v4318 = vunpack.c.h.b16 %v1225
        %v4319 = vunpack.c.l.b16 %v1226
        %v4320 = vunpack.c.h.b16 %v1226
        %v4321 = vunpack.c.l.b16 %v1227
        %v4322 = vunpack.c.h.b16 %v1227
        %v4323 = vunpack.c.l.b16 %v1228
        %v4324 = vunpack.c.h.b16 %v1228
        %v4325 = vunpack.c.l.b16 %v1229
        %v4326 = vunpack.c.h.b16 %v1229
        %v4327 = vunpack.c.l.b16 %v1230
        %v4328 = vunpack.c.h.b16 %v1230
        %v4329 = vunpack.c.l.b16 %v1231
        %v4330 = vunpack.c.h.b16 %v1231
        %v4331 = vunpack.c.l.b16 %v1232
        %v4332 = vunpack.c.h.b16 %v1232
        %v4333 = vunpack.c.l.b16 %v1233
        %v4334 = vunpack.c.h.b16 %v1233
        %v4335 = vunpack.c.l.b16 %v1234
        %v4336 = vunpack.c.h.b16 %v1234
        %v4337 = vunpack.c.l.b16 %v1235
        %v4338 = vunpack.c.h.b16 %v1235
        %v4339 = vunpack.c.l.b16 %v1236
        %v4340 = vunpack.c.h.b16 %v1236
        %v4341 = vunpack.c.l.b16 %v1237
        %v4342 = vunpack.c.h.b16 %v1237
        %v4343 = vunpack.c.l.b16 %v1238
        %v4344 = vunpack.c.h.b16 %v1238
        %v4345 = vunpack.c.l.b16 %v1239
        %v4346 = vunpack.c.h.b16 %v1239
        %v4347 = vunpack.c.l.b16 %v1240
        %v4348 = vunpack.c.h.b16 %v1240
        %v4349 = vunpack.c.l.b16 %v1241
        %v4350 = vunpack.c.h.b16 %v1241
        %v4351 = vunpack.c.l.b16 %v1242
        %v4352 = vunpack.c.h.b16 %v1242
        %v4353 = vunpack.c.l.b16 %v1243
        %v4354 = vunpack.c.h.b16 %v1243
        %v4355 = vunpack.c.l.b16 %v1244
        %v4356 = vunpack.c.h.b16 %v1244
        %v4357 = vunpack.c.l.b16 %v1245
        %v4358 = vunpack.c.h.b16 %v1245
        %v4359 = vunpack.c.l.b16 %v1246
        %v4360 = vunpack.c.h.b16 %v1246
        %v4361 = vunpack.c.l.b16 %v1247
        %v4362 = vunpack.c.h.b16 %v1247
        %v4363 = vunpack.c.l.b16 %v1248
        %v4364 = vunpack.c.h.b16 %v1248
        %v4365 = vunpack.c.l.b16 %v1249
        %v4366 = vunpack.c.h.b16 %v1249
        %v4367 = vunpack.c.l.b16 %v1250
        %v4368 = vunpack.c.h.b16 %v1250
        %v4369 = vunpack.c.l.b16 %v1251
        %v4370 = vunpack.c.h.b16 %v1251
        %v4371 = vunpack.c.l.b16 %v1252
        %v4372 = vunpack.c.h.b16 %v1252
        %v4373 = vunpack.c.l.b16 %v1253
        %v4374 = vunpack.c.h.b16 %v1253
        %v4375 = vunpack.c.l.b16 %v1254
        %v4376 = vunpack.c.h.b16 %v1254
        %v4377 = vunpack.c.l.b16 %v1255
        %v4378 = vunpack.c.h.b16 %v1255
        %v4379 = vunpack.c.l.b16 %v1256
        %v4380 = vunpack.c.h.b16 %v1256
        %v4381 = vunpack.c.l.b16 %v1257
        %v4382 = vunpack.c.h.b16 %v1257
        %v4383 = vunpack.c.l.b16 %v1258
        %v4384 = vunpack.c.h.b16 %v1258
        %v4385 = vunpack.c.l.b16 %v1259
        %v4386 = vunpack.c.h.b16 %v1259
        %v4387 = vunpack.c.l.b16 %v1260
        %v4388 = vunpack.c.h.b16 %v1260
        %v4389 = vunpack.c.l.b16 %v1261
        %v4390 = vunpack.c.h.b16 %v1261
        %v4391 = vunpack.c.l.b16 %v1262
        %v4392 = vunpack.c.h.b16 %v1262
        %v4393 = vunpack.c.l.b16 %v1263
        %v4394 = vunpack.c.h.b16 %v1263
        %v4395 = vunpack.c.l.b16 %v1264
        %v4396 = vunpack.c.h.b16 %v1264
        %v4397 = vunpack.c.l.b16 %v1265
        %v4398 = vunpack.c.h.b16 %v1265
        %v4399 = vunpack.c.l.b16 %v1266
        %v4400 = vunpack.c.h.b16 %v1266
        %v4401 = vunpack.c.l.b16 %v1267
        %v4402 = vunpack.c.h.b16 %v1267
        %v4403 = vunpack.c.l.b16 %v1268
        %v4404 = vunpack.c.h.b16 %v1268
        %v4405 = vunpack.c.l.b16 %v1269
        %v4406 = vunpack.c.h.b16 %v1269
        %v4407 = vunpack.c.l.b16 %v1270
        %v4408 = vunpack.c.h.b16 %v1270
        %v4409 = vunpack.c.l.b16 %v1271
        %v4410 = vunpack.c.h.b16 %v1271
        %v4411 = vunpack.c.l.b16 %v1272
        %v4412 = vunpack.c.h.b16 %v1272
        %v4413 = vunpack.c.l.b16 %v1273
        %v4414 = vunpack.c.h.b16 %v1273
        %v4415 = vunpack.c.l.b16 %v1274
        %v4416 = vunpack.c.h.b16 %v1274
        %v4417 = vunpack.c.l.b16 %v1275
        %v4418 = vunpack.c.h.b16 %v1275
        %v4419 = vunpack.c.l.b16 %v1276
        %v4420 = vunpack.c.h.b16 %v1276
        %v4421 = vunpack.c.l.b16 %v1277
        %v4422 = vunpack.c.h.b16 %v1277
        %v4423 = vunpack.c.l.b16 %v1278
        %v4424 = vunpack.c.h.b16 %v1278
        %v4425 = vunpack.c.l.b16 %v1279
        %v4426 = vunpack.c.h.b16 %v1279
        %v4427 = vunpack.c.l.b16 %v1280
        %v4428 = vunpack.c.h.b16 %v1280
        %v4429 = vunpack.c.l.b16 %v1281
        %v4430 = vunpack.c.h.b16 %v1281
        %v4431 = vunpack.c.l.b16 %v1282
        %v4432 = vunpack.c.h.b16 %v1282
        %v4433 = vunpack.c.l.b16 %v1283
        %v4434 = vunpack.c.h.b16 %v1283
        %v4435 = vunpack.c.l.b16 %v1284
        %v4436 = vunpack.c.h.b16 %v1284
        %v4437 = vunpack.c.l.b16 %v1285
        %v4438 = vunpack.c.h.b16 %v1285
        %v4439 = vunpack.c.l.b16 %v1286
        %v4440 = vunpack.c.h.b16 %v1286
        %v4441 = vunpack.c.l.b16 %v1287
        %v4442 = vunpack.c.h.b16 %v1287
        %v4443 = vunpack.c.l.b16 %v1288
        %v4444 = vunpack.c.h.b16 %v1288
        %v4445 = vunpack.c.l.b16 %v1289
        %v4446 = vunpack.c.h.b16 %v1289
        %v4447 = vunpack.c.l.b16 %v1290
        %v4448 = vunpack.c.h.b16 %v1290
        %v4449 = vunpack.c.l.b16 %v1291
        %v4450 = vunpack.c.h.b16 %v1291
        %v4451 = vunpack.c.l.b16 %v1292
        %v4452 = vunpack.c.h.b16 %v1292
        %v4453 = vunpack.c.l.b16 %v1293
        %v4454 = vunpack.c.h.b16 %v1293
        %v4455 = vunpack.c.l.b16 %v1294
        %v4456 = vunpack.c.h.b16 %v1294
        %v4457 = vunpack.c.l.b16 %v1295
        %v4458 = vunpack.c.h.b16 %v1295
        %v4459 = vunpack.c.l.b16 %v1296
        %v4460 = vunpack.c.h.b16 %v1296
        %v4461 = vunpack.c.l.b16 %v1297
        %v4462 = vunpack.c.h.b16 %v1297
        %v4463 = vunpack.c.l.b16 %v1298
        %v4464 = vunpack.c.h.b16 %v1298
        %v4465 = vunpack.c.l.b16 %v1299
        %v4466 = vunpack.c.h.b16 %v1299
        %v4467 = vunpack.c.l.b16 %v1300
        %v4468 = vunpack.c.h.b16 %v1300
        %v4469 = vunpack.c.l.b16 %v1301
        %v4470 = vunpack.c.h.b16 %v1301
        %v4471 = vunpack.c.l.b16 %v1302
        %v4472 = vunpack.c.h.b16 %v1302
        %v4473 = vunpack.c.l.b16 %v1303
        %v4474 = vunpack.c.h.b16 %v1303
        %v4475 = vunpack.c.l.b16 %v1304
        %v4476 = vunpack.c.h.b16 %v1304
        %v4477 = vunpack.c.l.b16 %v1305
        %v4478 = vunpack.c.h.b16 %v1305
        %v4479 = vunpack.c.l.b16 %v1306
        %v4480 = vunpack.c.h.b16 %v1306
        %v4481 = vunpack.c.l.b16 %v1307
        %v4482 = vunpack.c.h.b16 %v1307
        %v4483 = vunpack.c.l.b16 %v1308
        %v4484 = vunpack.c.h.b16 %v1308
        %v4485 = vunpack.c.l.b16 %v1309
        %v4486 = vunpack.c.h.b16 %v1309
        %v4487 = vunpack.c.l.b16 %v1310
        %v4488 = vunpack.c.h.b16 %v1310
        %v4489 = vunpack.c.l.b16 %v1311
        %v4490 = vunpack.c.h.b16 %v1311
        %v4491 = vunpack.c.l.b16 %v1312
        %v4492 = vunpack.c.h.b16 %v1312
        %v4493 = vunpack.c.l.b16 %v1313
        %v4494 = vunpack.c.h.b16 %v1313
        %v4495 = vunpack.c.l.b16 %v1314
        %v4496 = vunpack.c.h.b16 %v1314
        %v4497 = vunpack.c.l.b16 %v1315
        %v4498 = vunpack.c.h.b16 %v1315
        %v4499 = vunpack.c.l.b16 %v1316
        %v4500 = vunpack.c.h.b16 %v1316
        %v4501 = vunpack.c.l.b16 %v1317
        %v4502 = vunpack.c.h.b16 %v1317
        %v4503 = vunpack.c.l.b16 %v1318
        %v4504 = vunpack.c.h.b16 %v1318
        %v4505 = vunpack.c.l.b16 %v1319
        %v4506 = vunpack.c.h.b16 %v1319
        %v4507 = vunpack.c.l.b16 %v1320
        %v4508 = vunpack.c.h.b16 %v1320
        %v4509 = vunpack.c.l.b16 %v1321
        %v4510 = vunpack.c.h.b16 %v1321
        %v4511 = vunpack.c.l.b16 %v1322
        %v4512 = vunpack.c.h.b16 %v1322
        %v4513 = vunpack.c.l.b16 %v1323
        %v4514 = vunpack.c.h.b16 %v1323
        %v4515 = vunpack.c.l.b16 %v1324
        %v4516 = vunpack.c.h.b16 %v1324
        %v4517 = vunpack.c.l.b16 %v1325
        %v4518 = vunpack.c.h.b16 %v1325
        %v4519 = vunpack.c.l.b16 %v1326
        %v4520 = vunpack.c.h.b16 %v1326
        %v4521 = vunpack.c.l.b16 %v1327
        %v4522 = vunpack.c.h.b16 %v1327
        %v4523 = vunpack.c.l.b16 %v1328
        %v4524 = vunpack.c.h.b16 %v1328
        %v4525 = vunpack.c.l.b16 %v1329
        %v4526 = vunpack.c.h.b16 %v1329
        %v4527 = vunpack.c.l.b16 %v1330
        %v4528 = vunpack.c.h.b16 %v1330
        %v4529 = vunpack.c.l.b16 %v1331
        %v4530 = vunpack.c.h.b16 %v1331
        %v4531 = vunpack.c.l.b16 %v1332
        %v4532 = vunpack.c.h.b16 %v1332
        %v4533 = vunpack.c.l.b16 %v1333
        %v4534 = vunpack.c.h.b16 %v1333
        %v4535 = vunpack.c.l.b16 %v1334
        %v4536 = vunpack.c.h.b16 %v1334
        %v4537 = vunpack.c.l.b16 %v1335
        %v4538 = vunpack.c.h.b16 %v1335
        %v4539 = vunpack.c.l.b16 %v1336
        %v4540 = vunpack.c.h.b16 %v1336
        %v4541 = vunpack.c.l.b16 %v1337
        %v4542 = vunpack.c.h.b16 %v1337
        %v4543 = vunpack.c.l.b16 %v1338
        %v4544 = vunpack.c.h.b16 %v1338
        %v4545 = vunpack.c.l.b16 %v1339
        %v4546 = vunpack.c.h.b16 %v1339
        %v4547 = vunpack.c.l.b16 %v1340
        %v4548 = vunpack.c.h.b16 %v1340
        %v4549 = vunpack.c.l.b16 %v1341
        %v4550 = vunpack.c.h.b16 %v1341
        %v4551 = vunpack.c.l.b16 %v1342
        %v4552 = vunpack.c.h.b16 %v1342
        %v4553 = vunpack.c.l.b16 %v1343
        %v4554 = vunpack.c.h.b16 %v1343
        %v4555 = vunpack.c.l.b16 %v1344
        %v4556 = vunpack.c.h.b16 %v1344
        %v4557 = vunpack.c.l.b16 %v1345
        %v4558 = vunpack.c.h.b16 %v1345
        %v4559 = vunpack.c.l.b16 %v1346
        %v4560 = vunpack.c.h.b16 %v1346
        %v4561 = vunpack.c.l.b16 %v1347
        %v4562 = vunpack.c.h.b16 %v1347
        %v4563 = vunpack.c.l.b16 %v1348
        %v4564 = vunpack.c.h.b16 %v1348
        %v4565 = vunpack.c.l.b16 %v1349
        %v4566 = vunpack.c.h.b16 %v1349
        %v4567 = vunpack.c.l.b16 %v1350
        %v4568 = vunpack.c.h.b16 %v1350
        %v4569 = vunpack.c.l.b16 %v1351
        %v4570 = vunpack.c.h.b16 %v1351
        %v4571 = vunpack.c.l.b16 %v1352
        %v4572 = vunpack.c.h.b16 %v1352
        %v4573 = vunpack.c.l.b16 %v1353
        %v4574 = vunpack.c.h.b16 %v1353
        %v4575 = vunpack.c.l.b16 %v1354
        %v4576 = vunpack.c.h.b16 %v1354
        %v4577 = vunpack.c.l.b16 %v1355
        %v4578 = vunpack.c.h.b16 %v1355
        %v4579 = vunpack.c.l.b16 %v1356
        %v4580 = vunpack.c.h.b16 %v1356
        %v4581 = vunpack.c.l.b16 %v1357
        %v4582 = vunpack.c.h.b16 %v1357
        %v4583 = vunpack.c.l.b16 %v1358
        %v4584 = vunpack.c.h.b16 %v1358
        %v4585 = vunpack.c.l.b16 %v1359
        %v4586 = vunpack.c.h.b16 %v1359
        %v4587 = vunpack.c.l.b16 %v1360
        %v4588 = vunpack.c.h.b16 %v1360
        %v4589 = vpack.c.b16 %v3149, %v3053
        %v4590 = vpack.c.b16 %v3150, %v3054
        %v4591 = vpack.c.b16 %v3151, %v3055
        %v4592 = vpack.c.b16 %v3152, %v3056
        %v4593 = vpack.c.b16 %v3153, %v3057
        %v4594 = vpack.c.b16 %v3154, %v3058
        %v4595 = vpack.c.b16 %v3155, %v3059
        %v4596 = vpack.c.b16 %v3156, %v3060
        %v4597 = vpack.c.b16 %v3157, %v3061
        %v4598 = vpack.c.b16 %v3158, %v3062
        %v4599 = vpack.c.b16 %v3159, %v3063
        %v4600 = vpack.c.b16 %v3160, %v3064
        %v4601 = vpack.c.b16 %v3161, %v3065
        %v4602 = vpack.c.b16 %v3162, %v3066
        %v4603 = vpack.c.b16 %v3163, %v3067
        %v4604 = vpack.c.b16 %v3164, %v3068
        %v4605 = vpack.c.b16 %v3165, %v3069
        %v4606 = vpack.c.b16 %v3166, %v3070
        %v4607 = vpack.c.b16 %v3167, %v3071
        %v4608 = vpack.c.b16 %v3168, %v3072
        %v4609 = vpack.c.b16 %v3169, %v3073
        %v4610 = vpack.c.b16 %v3170, %v3074
        %v4611 = vpack.c.b16 %v3171, %v3075
        %v4612 = vpack.c.b16 %v3172, %v3076
        %v4613 = vpack.c.b16 %v3173, %v3077
        %v4614 = vpack.c.b16 %v3174, %v3078
        %v4615 = vpack.c.b16 %v3175, %v3079
        %v4616 = vpack.c.b16 %v3176, %v3080
        %v4617 = vpack.c.b16 %v3177, %v3081
        %v4618 = vpack.c.b16 %v3178, %v3082
        %v4619 = vpack.c.b16 %v3179, %v3083
        %v4620 = vpack.c.b16 %v3180, %v3084
        %v4621 = vpack.c.b16 %v3181, %v3085
        %v4622 = vpack.c.b16 %v3182, %v3086
        %v4623 = vpack.c.b16 %v3183, %v3087
        %v4624 = vpack.c.b16 %v3184, %v3088
        %v4625 = vpack.c.b16 %v3185, %v3089
        %v4626 = vpack.c.b16 %v3186, %v3090
        %v4627 = vpack.c.b16 %v3187, %v3091
        %v4628 = vpack.c.b16 %v3188, %v3092
        %v4629 = vpack.c.b16 %v3189, %v3093
        %v4630 = vpack.c.b16 %v3190, %v3094
        %v4631 = vpack.c.b16 %v3191, %v3095
        %v4632 = vpack.c.b16 %v3192, %v3096
        %v4633 = vpack.c.b16 %v3193, %v3097
        %v4634 = vpack.c.b16 %v3194, %v3098
        %v4635 = vpack.c.b16 %v3195, %v3099
        %v4636 = vpack.c.b16 %v3196, %v3100
        %v4637 = vpack.c.b16 %v3197, %v3101
        %v4638 = vpack.c.b16 %v3198, %v3102
        %v4639 = vpack.c.b16 %v3199, %v3103
        %v4640 = vpack.c.b16 %v3200, %v3104
        %v4641 = vpack.c.b16 %v3201, %v3105
        %v4642 = vpack.c.b16 %v3202, %v3106
        %v4643 = vpack.c.b16 %v3203, %v3107
        %v4644 = vpack.c.b16 %v3204, %v3108
        %v4645 = vpack.c.b16 %v3205, %v3109
        %v4646 = vpack.c.b16 %v3206, %v3110
        %v4647 = vpack.c.b16 %v3207, %v3111
        %v4648 = vpack.c.b16 %v3208, %v3112
        %v4649 = vpack.c.b16 %v3209, %v3113
        %v4650 = vpack.c.b16 %v3210, %v3114
        %v4651 = vpack.c.b16 %v3211, %v3115
        %v4652 = vpack.c.b16 %v3212, %v3116
        %v4653 = vpack.c.b16 %v3213, %v3117
        %v4654 = vpack.c.b16 %v3214, %v3118
        %v4655 = vpack.c.b16 %v3215, %v3119
        %v4656 = vpack.c.b16 %v3216, %v3120
        %v4657 = vpack.c.b16 %v3217, %v3121
        %v4658 = vpack.c.b16 %v3218, %v3122
        %v4659 = vpack.c.b16 %v3219, %v3123
        %v4660 = vpack.c.b16 %v3220, %v3124
        %v4661 = vpack.c.b16 %v3221, %v3125
        %v4662 = vpack.c.b16 %v3222, %v3126
        %v4663 = vpack.c.b16 %v3223, %v3127
        %v4664 = vpack.c.b16 %v3224, %v3128
        %v4665 = vpack.c.b16 %v3225, %v3129
        %v4666 = vpack.c.b16 %v3226, %v3130
        %v4667 = vpack.c.b16 %v3227, %v3131
        %v4668 = vpack.c.b16 %v3228, %v3132
        %v4669 = vpack.c.b16 %v3229, %v3133
        %v4670 = vpack.c.b16 %v3230, %v3134
        %v4671 = vpack.c.b16 %v3231, %v3135
        %v4672 = vpack.c.b16 %v3232, %v3136
        %v4673 = vpack.c.b16 %v3233, %v3137
        %v4674 = vpack.c.b16 %v3234, %v3138
        %v4675 = vpack.c.b16 %v3235, %v3139
        %v4676 = vpack.c.b16 %v3236, %v3140
        %v4677 = vpack.c.b16 %v3237, %v3141
        %v4678 = vpack.c.b16 %v3238, %v3142
        %v4679 = vpack.c.b16 %v3239, %v3143
        %v4680 = vpack.c.b16 %v3240, %v3144
        %v4681 = vpack.c.b16 %v3241, %v3145
        %v4682 = vpack.c.b16 %v3242, %v3146
        %v4683 = vpack.c.b16 %v3243, %v3147
        %v4684 = vpack.c.b16 %v3244, %v3148
        %v4685 = vpack.c.b16 %v3341, %v3245
        %v4686 = vpack.c.b16 %v3342, %v3246
        %v4687 = vpack.c.b16 %v3343, %v3247
        %v4688 = vpack.c.b16 %v3344, %v3248
        %v4689 = vpack.c.b16 %v3345, %v3249
        %v4690 = vpack.c.b16 %v3346, %v3250
        %v4691 = vpack.c.b16 %v3347, %v3251
        %v4692 = vpack.c.b16 %v3348, %v3252
        %v4693 = vpack.c.b16 %v3349, %v3253
        %v4694 = vpack.c.b16 %v3350, %v3254
        %v4695 = vpack.c.b16 %v3351, %v3255
        %v4696 = vpack.c.b16 %v3352, %v3256
        %v4697 = vpack.c.b16 %v3353, %v3257
        %v4698 = vpack.c.b16 %v3354, %v3258
        %v4699 = vpack.c.b16 %v3355, %v3259
        %v4700 = vpack.c.b16 %v3356, %v3260
        %v4701 = vpack.c.b16 %v3357, %v3261
        %v4702 = vpack.c.b16 %v3358, %v3262
        %v4703 = vpack.c.b16 %v3359, %v3263
        %v4704 = vpack.c.b16 %v3360, %v3264
        %v4705 = vpack.c.b16 %v3361, %v3265
        %v4706 = vpack.c.b16 %v3362, %v3266
        %v4707 = vpack.c.b16 %v3363, %v3267
        %v4708 = vpack.c.b16 %v3364, %v3268
        %v4709 = vpack.c.b16 %v3365, %v3269
        %v4710 = vpack.c.b16 %v3366, %v3270
        %v4711 = vpack.c.b16 %v3367, %v3271
        %v4712 = vpack.c.b16 %v3368, %v3272
        %v4713 = vpack.c.b16 %v3369, %v3273
        %v4714 = vpack.c.b16 %v3370, %v3274
        %v4715 = vpack.c.b16 %v3371, %v3275
        %v4716 = vpack.c.b16 %v3372, %v3276
        %v4717 = vpack.c.b16 %v3373, %v3277
        %v4718 = vpack.c.b16 %v3374, %v3278
        %v4719 = vpack.c.b16 %v3375, %v3279
        %v4720 = vpack.c.b16 %v3376, %v3280
        %v4721 = vpack.c.b16 %v3377, %v3281
        %v4722 = vpack.c.b16 %v3378, %v3282
        %v4723 = vpack.c.b16 %v3379, %v3283
        %v4724 = vpack.c.b16 %v3380, %v3284
        %v4725 = vpack.c.b16 %v3381, %v3285
        %v4726 = vpack.c.b16 %v3382, %v3286
        %v4727 = vpack.c.b16 %v3383, %v3287
        %v4728 = vpack.c.b16 %v3384, %v3288
        %v4729 = vpack.c.b16 %v3385, %v3289
        %v4730 = vpack.c.b16 %v3386, %v3290
        %v4731 = vpack.c.b16 %v3387, %v3291
        %v4732 = vpack.c.b16 %v3388, %v3292
        %v4733 = vpack.c.b16 %v3389, %v3293
        %v4734 = vpack.c.b16 %v3390, %v3294
        %v4735 = vpack.c.b16 %v3391, %v3295
        %v4736 = vpack.c.b16 %v3392, %v3296
        %v4737 = vpack.c.b16 %v3393, %v3297
        %v4738 = vpack.c.b16 %v3394, %v3298
        %v4739 = vpack.c.b16 %v3395, %v3299
        %v4740 = vpack.c.b16 %v3396, %v3300
        %v4741 = vpack.c.b16 %v3397, %v3301
        %v4742 = vpack.c.b16 %v3398, %v3302
        %v4743 = vpack.c.b16 %v3399, %v3303
        %v4744 = vpack.c.b16 %v3400, %v3304
        %v4745 = vpack.c.b16 %v3401, %v3305
        %v4746 = vpack.c.b16 %v3402, %v3306
        %v4747 = vpack.c.b16 %v3403, %v3307
        %v4748 = vpack.c.b16 %v3404, %v3308
        %v4749 = vpack.c.b16 %v3405, %v3309
        %v4750 = vpack.c.b16 %v3406, %v3310
        %v4751 = vpack.c.b16 %v3407, %v3311
        %v4752 = vpack.c.b16 %v3408, %v3312
        %v4753 = vpack.c.b16 %v3409, %v3313
        %v4754 = vpack.c.b16 %v3410, %v3314
        %v4755 = vpack.c.b16 %v3411, %v3315
        %v4756 = vpack.c.b16 %v3412, %v3316
        %v4757 = vpack.c.b16 %v3413, %v3317
        %v4758 = vpack.c.b16 %v3414, %v3318
        %v4759 = vpack.c.b16 %v3415, %v3319
        %v4760 = vpack.c.b16 %v3416, %v3320
        %v4761 = vpack.c.b16 %v3417, %v3321
        %v4762 = vpack.c.b16 %v3418, %v3322
        %v4763 = vpack.c.b16 %v3419, %v3323
        %v4764 = vpack.c.b16 %v3420, %v3324
        %v4765 = vpack.c.b16 %v3421, %v3325
        %v4766 = vpack.c.b16 %v3422, %v3326
        %v4767 = vpack.c.b16 %v3423, %v3327
        %v4768 = vpack.c.b16 %v3424, %v3328
        %v4769 = vpack.c.b16 %v3425, %v3329
        %v4770 = vpack.c.b16 %v3426, %v3330
        %v4771 = vpack.c.b16 %v3427, %v3331
        %v4772 = vpack.c.b16 %v3428, %v3332
        %v4773 = vpack.c.b16 %v3429, %v3333
        %v4774 = vpack.c.b16 %v3430, %v3334
        %v4775 = vpack.c.b16 %v3431, %v3335
        %v4776 = vpack.c.b16 %v3432, %v3336
        %v4777 = vpack.c.b16 %v3433, %v3337
        %v4778 = vpack.c.b16 %v3434, %v3338
        %v4779 = vpack.c.b16 %v3435, %v3339
        %v4780 = vpack.c.b16 %v3436, %v3340
        %v4781 = vpack.c.b16 %v3533, %v3437
        %v4782 = vpack.c.b16 %v3534, %v3438
        %v4783 = vpack.c.b16 %v3535, %v3439
        %v4784 = vpack.c.b16 %v3536, %v3440
        %v4785 = vpack.c.b16 %v3537, %v3441
        %v4786 = vpack.c.b16 %v3538, %v3442
        %v4787 = vpack.c.b16 %v3539, %v3443
        %v4788 = vpack.c.b16 %v3540, %v3444
        %v4789 = vpack.c.b16 %v3541, %v3445
        %v4790 = vpack.c.b16 %v3542, %v3446
        %v4791 = vpack.c.b16 %v3543, %v3447
        %v4792 = vpack.c.b16 %v3544, %v3448
        %v4793 = vpack.c.b16 %v3545, %v3449
        %v4794 = vpack.c.b16 %v3546, %v3450
        %v4795 = vpack.c.b16 %v3547, %v3451
        %v4796 = vpack.c.b16 %v3548, %v3452
        %v4797 = vpack.c.b16 %v3549, %v3453
        %v4798 = vpack.c.b16 %v3550, %v3454
        %v4799 = vpack.c.b16 %v3551, %v3455
        %v4800 = vpack.c.b16 %v3552, %v3456
        %v4801 = vpack.c.b16 %v3553, %v3457
        %v4802 = vpack.c.b16 %v3554, %v3458
        %v4803 = vpack.c.b16 %v3555, %v3459
        %v4804 = vpack.c.b16 %v3556, %v3460
        %v4805 = vpack.c.b16 %v3557, %v3461
        %v4806 = vpack.c.b16 %v3558, %v3462
        %v4807 = vpack.c.b16 %v3559, %v3463
        %v4808 = vpack.c.b16 %v3560, %v3464
        %v4809 = vpack.c.b16 %v3561, %v3465
        %v4810 = vpack.c.b16 %v3562, %v3466
        %v4811 = vpack.c.b16 %v3563, %v3467
        %v4812 = vpack.c.b16 %v3564, %v3468
        %v4813 = vpack.c.b16 %v3565, %v3469
        %v4814 = vpack.c.b16 %v3566, %v3470
        %v4815 = vpack.c.b16 %v3567, %v3471
        %v4816 = vpack.c.b16 %v3568, %v3472
        %v4817 = vpack.c.b16 %v3569, %v3473
        %v4818 = vpack.c.b16 %v3570, %v3474
        %v4819 = vpack.c.b16 %v3571, %v3475
        %v4820 = vpack.c.b16 %v3572, %v3476
        %v4821 = vpack.c.b16 %v3573, %v3477
        %v4822 = vpack.c.b16 %v3574, %v3478
        %v4823 = vpack.c.b16 %v3575, %v3479
        %v4824 = vpack.c.b16 %v3576, %v3480
        %v4825 = vpack.c.b16 %v3577, %v3481
        %v4826 = vpack.c.b16 %v3578, %v3482
        %v4827 = vpack.c.b16 %v3579, %v3483
        %v4828 = vpack.c.b16 %v3580, %v3484
        %v4829 = vpack.c.b16 %v3581, %v3485
        %v4830 = vpack.c.b16 %v3582, %v3486
        %v4831 = vpack.c.b16 %v3583, %v3487
        %v4832 = vpack.c.b16 %v3584, %v3488
        %v4833 = vpack.c.b16 %v3585, %v3489
        %v4834 = vpack.c.b16 %v3586, %v3490
        %v4835 = vpack.c.b16 %v3587, %v3491
        %v4836 = vpack.c.b16 %v3588, %v3492
        %v4837 = vpack.c.b16 %v3589, %v3493
        %v4838 = vpack.c.b16 %v3590, %v3494
        %v4839 = vpack.c.b16 %v3591, %v3495
        %v4840 = vpack.c.b16 %v3592, %v3496
        %v4841 = vpack.c.b16 %v3593, %v3497
        %v4842 = vpack.c.b16 %v3594, %v3498
        %v4843 = vpack.c.b16 %v3595, %v3499
        %v4844 = vpack.c.b16 %v3596, %v3500
        %v4845 = vpack.c.b16 %v3597, %v3501
        %v4846 = vpack.c.b16 %v3598, %v3502
        %v4847 = vpack.c.b16 %v3599, %v3503
        %v4848 = vpack.c.b16 %v3600, %v3504
        %v4849 = vpack.c.b16 %v3601, %v3505
        %v4850 = vpack.c.b16 %v3602, %v3506
        %v4851 = vpack.c.b16 %v3603, %v3507
        %v4852 = vpack.c.b16 %v3604, %v3508
        %v4853 = vpack.c.b16 %v3605, %v3509
        %v4854 = vpack.c.b16 %v3606, %v3510
        %v4855 = vpack.c.b16 %v3607, %v3511
        %v4856 = vpack.c.b16 %v3608, %v3512
        %v4857 = vpack.c.b16 %v3609, %v3513
        %v4858 = vpack.c.b16 %v3610, %v3514
        %v4859 = vpack.c.b16 %v3611, %v3515
        %v4860 = vpack.c.b16 %v3612, %v3516
        %v4861 = vpack.c.b16 %v3613, %v3517
        %v4862 = vpack.c.b16 %v3614, %v3518
        %v4863 = vpack.c.b16 %v3615, %v3519
        %v4864 = vpack.c.b16 %v3616, %v3520
        %v4865 = vpack.c.b16 %v3617, %v3521
        %v4866 = vpack.c.b16 %v3618, %v3522
        %v4867 = vpack.c.b16 %v3619, %v3523
        %v4868 = vpack.c.b16 %v3620, %v3524
        %v4869 = vpack.c.b16 %v3621, %v3525
        %v4870 = vpack.c.b16 %v3622, %v3526
        %v4871 = vpack.c.b16 %v3623, %v3527
        %v4872 = vpack.c.b16 %v3624, %v3528
        %v4873 = vpack.c.b16 %v3625, %v3529
        %v4874 = vpack.c.b16 %v3626, %v3530
        %v4875 = vpack.c.b16 %v3627, %v3531
        %v4876 = vpack.c.b16 %v3628, %v3532
        %v4877 = vpack.c.b16 %v3725, %v3629
        %v4878 = vpack.c.b16 %v3726, %v3630
        %v4879 = vpack.c.b16 %v3727, %v3631
        %v4880 = vpack.c.b16 %v3728, %v3632
        %v4881 = vpack.c.b16 %v3729, %v3633
        %v4882 = vpack.c.b16 %v3730, %v3634
        %v4883 = vpack.c.b16 %v3731, %v3635
        %v4884 = vpack.c.b16 %v3732, %v3636
        %v4885 = vpack.c.b16 %v3733, %v3637
        %v4886 = vpack.c.b16 %v3734, %v3638
        %v4887 = vpack.c.b16 %v3735, %v3639
        %v4888 = vpack.c.b16 %v3736, %v3640
        %v4889 = vpack.c.b16 %v3737, %v3641
        %v4890 = vpack.c.b16 %v3738, %v3642
        %v4891 = vpack.c.b16 %v3739, %v3643
        %v4892 = vpack.c.b16 %v3740, %v3644
        %v4893 = vpack.c.b16 %v3741, %v3645
        %v4894 = vpack.c.b16 %v3742, %v3646
        %v4895 = vpack.c.b16 %v3743, %v3647
        %v4896 = vpack.c.b16 %v3744, %v3648
        %v4897 = vpack.c.b16 %v3745, %v3649
        %v4898 = vpack.c.b16 %v3746, %v3650
        %v4899 = vpack.c.b16 %v3747, %v3651
        %v4900 = vpack.c.b16 %v3748, %v3652
        %v4901 = vpack.c.b16 %v3749, %v3653
        %v4902 = vpack.c.b16 %v3750, %v3654
        %v4903 = vpack.c.b16 %v3751, %v3655
        %v4904 = vpack.c.b16 %v3752, %v3656
        %v4905 = vpack.c.b16 %v3753, %v3657
        %v4906 = vpack.c.b16 %v3754, %v3658
        %v4907 = vpack.c.b16 %v3755, %v3659
        %v4908 = vpack.c.b16 %v3756, %v3660
        %v4909 = vpack.c.b16 %v3757, %v3661
        %v4910 = vpack.c.b16 %v3758, %v3662
        %v4911 = vpack.c.b16 %v3759, %v3663
        %v4912 = vpack.c.b16 %v3760, %v3664
        %v4913 = vpack.c.b16 %v3761, %v3665
        %v4914 = vpack.c.b16 %v3762, %v3666
        %v4915 = vpack.c.b16 %v3763, %v3667
        %v4916 = vpack.c.b16 %v3764, %v3668
        %v4917 = vpack.c.b16 %v3765, %v3669
        %v4918 = vpack.c.b16 %v3766, %v3670
        %v4919 = vpack.c.b16 %v3767, %v3671
        %v4920 = vpack.c.b16 %v3768, %v3672
        %v4921 = vpack.c.b16 %v3769, %v3673
        %v4922 = vpack.c.b16 %v3770, %v3674
        %v4923 = vpack.c.b16 %v3771, %v3675
        %v4924 = vpack.c.b16 %v3772, %v3676
        %v4925 = vpack.c.b16 %v3773, %v3677
        %v4926 = vpack.c.b16 %v3774, %v3678
        %v4927 = vpack.c.b16 %v3775, %v3679
        %v4928 = vpack.c.b16 %v3776, %v3680
        %v4929 = vpack.c.b16 %v3777, %v3681
        %v4930 = vpack.c.b16 %v3778, %v3682
        %v4931 = vpack.c.b16 %v3779, %v3683
        %v4932 = vpack.c.b16 %v3780, %v3684
        %v4933 = vpack.c.b16 %v3781, %v3685
        %v4934 = vpack.c.b16 %v3782, %v3686
        %v4935 = vpack.c.b16 %v3783, %v3687
        %v4936 = vpack.c.b16 %v3784, %v3688
        %v4937 = vpack.c.b16 %v3785, %v3689
        %v4938 = vpack.c.b16 %v3786, %v3690
        %v4939 = vpack.c.b16 %v3787, %v3691
        %v4940 = vpack.c.b16 %v3788, %v3692
        %v4941 = vpack.c.b16 %v3789, %v3693
        %v4942 = vpack.c.b16 %v3790, %v3694
        %v4943 = vpack.c.b16 %v3791, %v3695
        %v4944 = vpack.c.b16 %v3792, %v3696
        %v4945 = vpack.c.b16 %v3793, %v3697
        %v4946 = vpack.c.b16 %v3794, %v3698
        %v4947 = vpack.c.b16 %v3795, %v3699
        %v4948 = vpack.c.b16 %v3796, %v3700
        %v4949 = vpack.c.b16 %v3797, %v3701
        %v4950 = vpack.c.b16 %v3798, %v3702
        %v4951 = vpack.c.b16 %v3799, %v3703
        %v4952 = vpack.c.b16 %v3800, %v3704
        %v4953 = vpack.c.b16 %v3801, %v3705
        %v4954 = vpack.c.b16 %v3802, %v3706
        %v4955 = vpack.c.b16 %v3803, %v3707
        %v4956 = vpack.c.b16 %v3804, %v3708
        %v4957 = vpack.c.b16 %v3805, %v3709
        %v4958 = vpack.c.b16 %v3806, %v3710
        %v4959 = vpack.c.b16 %v3807, %v3711
        %v4960 = vpack.c.b16 %v3808, %v3712
        %v4961 = vpack.c.b16 %v3809, %v3713
        %v4962 = vpack.c.b16 %v3810, %v3714
        %v4963 = vpack.c.b16 %v3811, %v3715
        %v4964 = vpack.c.b16 %v3812, %v3716
        %v4965 = vpack.c.b16 %v3813, %v3717
        %v4966 = vpack.c.b16 %v3814, %v3718
        %v4967 = vpack.c.b16 %v3815, %v3719
        %v4968 = vpack.c.b16 %v3816, %v3720
        %v4969 = vpack.c.b16 %v3817, %v3721
        %v4970 = vpack.c.b16 %v3818, %v3722
        %v4971 = vpack.c.b16 %v3819, %v3723
        %v4972 = vpack.c.b16 %v3820, %v3724
        %v4973 = vpack.c.b16 %v3917, %v3821
        %v4974 = vpack.c.b16 %v3918, %v3822
        %v4975 = vpack.c.b16 %v3919, %v3823
        %v4976 = vpack.c.b16 %v3920, %v3824
        %v4977 = vpack.c.b16 %v3921, %v3825
        %v4978 = vpack.c.b16 %v3922, %v3826
        %v4979 = vpack.c.b16 %v3923, %v3827
        %v4980 = vpack.c.b16 %v3924, %v3828
        %v4981 = vpack.c.b16 %v3925, %v3829
        %v4982 = vpack.c.b16 %v3926, %v3830
        %v4983 = vpack.c.b16 %v3927, %v3831
        %v4984 = vpack.c.b16 %v3928, %v3832
        %v4985 = vpack.c.b16 %v3929, %v3833
        %v4986 = vpack.c.b16 %v3930, %v3834
        %v4987 = vpack.c.b16 %v3931, %v3835
        %v4988 = vpack.c.b16 %v3932, %v3836
        %v4989 = vpack.c.b16 %v3933, %v3837
        %v4990 = vpack.c.b16 %v3934, %v3838
        %v4991 = vpack.c.b16 %v3935, %v3839
        %v4992 = vpack.c.b16 %v3936, %v3840
        %v4993 = vpack.c.b16 %v3937, %v3841
        %v4994 = vpack.c.b16 %v3938, %v3842
        %v4995 = vpack.c.b16 %v3939, %v3843
        %v4996 = vpack.c.b16 %v3940, %v3844
        %v4997 = vpack.c.b16 %v3941, %v3845
        %v4998 = vpack.c.b16 %v3942, %v3846
        %v4999 = vpack.c.b16 %v3943, %v3847
        %v5000 = vpack.c.b16 %v3944, %v3848
        %v5001 = vpack.c.b16 %v3945, %v3849
        %v5002 = vpack.c.b16 %v3946, %v3850
        %v5003 = vpack.c.b16 %v3947, %v3851
        %v5004 = vpack.c.b16 %v3948, %v3852
        %v5005 = vpack.c.b16 %v3949, %v3853
        %v5006 = vpack.c.b16 %v3950, %v3854
        %v5007 = vpack.c.b16 %v3951, %v3855
        %v5008 = vpack.c.b16 %v3952, %v3856
        %v5009 = vpack.c.b16 %v3953, %v3857
        %v5010 = vpack.c.b16 %v3954, %v3858
        %v5011 = vpack.c.b16 %v3955, %v3859
        %v5012 = vpack.c.b16 %v3956, %v3860
        %v5013 = vpack.c.b16 %v3957, %v3861
        %v5014 = vpack.c.b16 %v3958, %v3862
        %v5015 = vpack.c.b16 %v3959, %v3863
        %v5016 = vpack.c.b16 %v3960, %v3864
        %v5017 = vpack.c.b16 %v3961, %v3865
        %v5018 = vpack.c.b16 %v3962, %v3866
        %v5019 = vpack.c.b16 %v3963, %v3867
        %v5020 = vpack.c.b16 %v3964, %v3868
        %v5021 = vpack.c.b16 %v3965, %v3869
        %v5022 = vpack.c.b16 %v3966, %v3870
        %v5023 = vpack.c.b16 %v3967, %v3871
        %v5024 = vpack.c.b16 %v3968, %v3872
        %v5025 = vpack.c.b16 %v3969, %v3873
        %v5026 = vpack.c.b16 %v3970, %v3874
        %v5027 = vpack.c.b16 %v3971, %v3875
        %v5028 = vpack.c.b16 %v3972, %v3876
        %v5029 = vpack.c.b16 %v3973, %v3877
        %v5030 = vpack.c.b16 %v3974, %v3878
        %v5031 = vpack.c.b16 %v3975, %v3879
        %v5032 = vpack.c.b16 %v3976, %v3880
        %v5033 = vpack.c.b16 %v3977, %v3881
        %v5034 = vpack.c.b16 %v3978, %v3882
        %v5035 = vpack.c.b16 %v3979, %v3883
        %v5036 = vpack.c.b16 %v3980, %v3884
        %v5037 = vpack.c.b16 %v3981, %v3885
        %v5038 = vpack.c.b16 %v3982, %v3886
        %v5039 = vpack.c.b16 %v3983, %v3887
        %v5040 = vpack.c.b16 %v3984, %v3888
        %v5041 = vpack.c.b16 %v3985, %v3889
        %v5042 = vpack.c.b16 %v3986, %v3890
        %v5043 = vpack.c.b16 %v3987, %v3891
        %v5044 = vpack.c.b16 %v3988, %v3892
        %v5045 = vpack.c.b16 %v3989, %v3893
        %v5046 = vpack.c.b16 %v3990, %v3894
        %v5047 = vpack.c.b16 %v3991, %v3895
        %v5048 = vpack.c.b16 %v3992, %v3896
        %v5049 = vpack.c.b16 %v3993, %v3897
        %v5050 = vpack.c.b16 %v3994, %v3898
        %v5051 = vpack.c.b16 %v3995, %v3899
        %v5052 = vpack.c.b16 %v3996, %v3900
        %v5053 = vpack.c.b16 %v3997, %v3901
        %v5054 = vpack.c.b16 %v3998, %v3902
        %v5055 = vpack.c.b16 %v3999, %v3903
        %v5056 = vpack.c.b16 %v4000, %v3904
        %v5057 = vpack.c.b16 %v4001, %v3905
        %v5058 = vpack.c.b16 %v4002, %v3906
        %v5059 = vpack.c.b16 %v4003, %v3907
        %v5060 = vpack.c.b16 %v4004, %v3908
        %v5061 = vpack.c.b16 %v4005, %v3909
        %v5062 = vpack.c.b16 %v4006, %v3910
        %v5063 = vpack.c.b16 %v4007, %v3911
        %v5064 = vpack.c.b16 %v4008, %v3912
        %v5065 = vpack.c.b16 %v4009, %v3913
        %v5066 = vpack.c.b16 %v4010, %v3914
        %v5067 = vpack.c.b16 %v4011, %v3915
        %v5068 = vpack.c.b16 %v4012, %v3916
        %v5069 = vpack.c.b16 %v4109, %v4013
        %v5070 = vpack.c.b16 %v4110, %v4014
        %v5071 = vpack.c.b16 %v4111, %v4015
        %v5072 = vpack.c.b16 %v4112, %v4016
        %v5073 = vpack.c.b16 %v4113, %v4017
        %v5074 = vpack.c.b16 %v4114, %v4018
        %v5075 = vpack.c.b16 %v4115, %v4019
        %v5076 = vpack.c.b16 %v4116, %v4020
        %v5077 = vpack.c.b16 %v4117, %v4021
        %v5078 = vpack.c.b16 %v4118, %v4022
        %v5079 = vpack.c.b16 %v4119, %v4023
        %v5080 = vpack.c.b16 %v4120, %v4024
        %v5081 = vpack.c.b16 %v4121, %v4025
        %v5082 = vpack.c.b16 %v4122, %v4026
        %v5083 = vpack.c.b16 %v4123, %v4027
        %v5084 = vpack.c.b16 %v4124, %v4028
        %v5085 = vpack.c.b16 %v4125, %v4029
        %v5086 = vpack.c.b16 %v4126, %v4030
        %v5087 = vpack.c.b16 %v4127, %v4031
        %v5088 = vpack.c.b16 %v4128, %v4032
        %v5089 = vpack.c.b16 %v4129, %v4033
        %v5090 = vpack.c.b16 %v4130, %v4034
        %v5091 = vpack.c.b16 %v4131, %v4035
        %v5092 = vpack.c.b16 %v4132, %v4036
        %v5093 = vpack.c.b16 %v4133, %v4037
        %v5094 = vpack.c.b16 %v4134, %v4038
        %v5095 = vpack.c.b16 %v4135, %v4039
        %v5096 = vpack.c.b16 %v4136, %v4040
        %v5097 = vpack.c.b16 %v4137, %v4041
        %v5098 = vpack.c.b16 %v4138, %v4042
        %v5099 = vpack.c.b16 %v4139, %v4043
        %v5100 = vpack.c.b16 %v4140, %v4044
        %v5101 = vpack.c.b16 %v4141, %v4045
        %v5102 = vpack.c.b16 %v4142, %v4046
        %v5103 = vpack.c.b16 %v4143, %v4047
        %v5104 = vpack.c.b16 %v4144, %v4048
        %v5105 = vpack.c.b16 %v4145, %v4049
        %v5106 = vpack.c.b16 %v4146, %v4050
        %v5107 = vpack.c.b16 %v4147, %v4051
        %v5108 = vpack.c.b16 %v4148, %v4052
        %v5109 = vpack.c.b16 %v4149, %v4053
        %v5110 = vpack.c.b16 %v4150, %v4054
        %v5111 = vpack.c.b16 %v4151, %v4055
        %v5112 = vpack.c.b16 %v4152, %v4056
        %v5113 = vpack.c.b16 %v4153, %v4057
        %v5114 = vpack.c.b16 %v4154, %v4058
        %v5115 = vpack.c.b16 %v4155, %v4059
        %v5116 = vpack.c.b16 %v4156, %v4060
        %v5117 = vpack.c.b16 %v4157, %v4061
        %v5118 = vpack.c.b16 %v4158, %v4062
        %v5119 = vpack.c.b16 %v4159, %v4063
        %v5120 = vpack.c.b16 %v4160, %v4064
        %v5121 = vpack.c.b16 %v4161, %v4065
        %v5122 = vpack.c.b16 %v4162, %v4066
        %v5123 = vpack.c.b16 %v4163, %v4067
        %v5124 = vpack.c.b16 %v4164, %v4068
        %v5125 = vpack.c.b16 %v4165, %v4069
        %v5126 = vpack.c.b16 %v4166, %v4070
        %v5127 = vpack.c.b16 %v4167, %v4071
        %v5128 = vpack.c.b16 %v4168, %v4072
        %v5129 = vpack.c.b16 %v4169, %v4073
        %v5130 = vpack.c.b16 %v4170, %v4074
        %v5131 = vpack.c.b16 %v4171, %v4075
        %v5132 = vpack.c.b16 %v4172, %v4076
        %v5133 = vpack.c.b16 %v4173, %v4077
        %v5134 = vpack.c.b16 %v4174, %v4078
        %v5135 = vpack.c.b16 %v4175, %v4079
        %v5136 = vpack.c.b16 %v4176, %v4080
        %v5137 = vpack.c.b16 %v4177, %v4081
        %v5138 = vpack.c.b16 %v4178, %v4082
        %v5139 = vpack.c.b16 %v4179, %v4083
        %v5140 = vpack.c.b16 %v4180, %v4084
        %v5141 = vpack.c.b16 %v4181, %v4085
        %v5142 = vpack.c.b16 %v4182, %v4086
        %v5143 = vpack.c.b16 %v4183, %v4087
        %v5144 = vpack.c.b16 %v4184, %v4088
        %v5145 = vpack.c.b16 %v4185, %v4089
        %v5146 = vpack.c.b16 %v4186, %v4090
        %v5147 = vpack.c.b16 %v4187, %v4091
        %v5148 = vpack.c.b16 %v4188, %v4092
        %v5149 = vpack.c.b16 %v4189, %v4093
        %v5150 = vpack.c.b16 %v4190, %v4094
        %v5151 = vpack.c.b16 %v4191, %v4095
        %v5152 = vpack.c.b16 %v4192, %v4096
        %v5153 = vpack.c.b16 %v4193, %v4097
        %v5154 = vpack.c.b16 %v4194, %v4098
        %v5155 = vpack.c.b16 %v4195, %v4099
        %v5156 = vpack.c.b16 %v4196, %v4100
        %v5157 = vpack.c.b16 %v4197, %v4101
        %v5158 = vpack.c.b16 %v4198, %v4102
        %v5159 = vpack.c.b16 %v4199, %v4103
        %v5160 = vpack.c.b16 %v4200, %v4104
        %v5161 = vpack.c.b16 %v4201, %v4105
        %v5162 = vpack.c.b16 %v4202, %v4106
        %v5163 = vpack.c.b16 %v4203, %v4107
        %v5164 = vpack.c.b16 %v4204, %v4108
        %v5165 = vpack.c.b16 %v4301, %v4205
        %v5166 = vpack.c.b16 %v4302, %v4206
        %v5167 = vpack.c.b16 %v4303, %v4207
        %v5168 = vpack.c.b16 %v4304, %v4208
        %v5169 = vpack.c.b16 %v4305, %v4209
        %v5170 = vpack.c.b16 %v4306, %v4210
        %v5171 = vpack.c.b16 %v4307, %v4211
        %v5172 = vpack.c.b16 %v4308, %v4212
        %v5173 = vpack.c.b16 %v4309, %v4213
        %v5174 = vpack.c.b16 %v4310, %v4214
        %v5175 = vpack.c.b16 %v4311, %v4215
        %v5176 = vpack.c.b16 %v4312, %v4216
        %v5177 = vpack.c.b16 %v4313, %v4217
        %v5178 = vpack.c.b16 %v4314, %v4218
        %v5179 = vpack.c.b16 %v4315, %v4219
        %v5180 = vpack.c.b16 %v4316, %v4220
        %v5181 = vpack.c.b16 %v4317, %v4221
        %v5182 = vpack.c.b16 %v4318, %v4222
        %v5183 = vpack.c.b16 %v4319, %v4223
        %v5184 = vpack.c.b16 %v4320, %v4224
        %v5185 = vpack.c.b16 %v4321, %v4225
        %v5186 = vpack.c.b16 %v4322, %v4226
        %v5187 = vpack.c.b16 %v4323, %v4227
        %v5188 = vpack.c.b16 %v4324, %v4228
        %v5189 = vpack.c.b16 %v4325, %v4229
        %v5190 = vpack.c.b16 %v4326, %v4230
        %v5191 = vpack.c.b16 %v4327, %v4231
        %v5192 = vpack.c.b16 %v4328, %v4232
        %v5193 = vpack.c.b16 %v4329, %v4233
        %v5194 = vpack.c.b16 %v4330, %v4234
        %v5195 = vpack.c.b16 %v4331, %v4235
        %v5196 = vpack.c.b16 %v4332, %v4236
        %v5197 = vpack.c.b16 %v4333, %v4237
        %v5198 = vpack.c.b16 %v4334, %v4238
        %v5199 = vpack.c.b16 %v4335, %v4239
        %v5200 = vpack.c.b16 %v4336, %v4240
        %v5201 = vpack.c.b16 %v4337, %v4241
        %v5202 = vpack.c.b16 %v4338, %v4242
        %v5203 = vpack.c.b16 %v4339, %v4243
        %v5204 = vpack.c.b16 %v4340, %v4244
        %v5205 = vpack.c.b16 %v4341, %v4245
        %v5206 = vpack.c.b16 %v4342, %v4246
        %v5207 = vpack.c.b16 %v4343, %v4247
        %v5208 = vpack.c.b16 %v4344, %v4248
        %v5209 = vpack.c.b16 %v4345, %v4249
        %v5210 = vpack.c.b16 %v4346, %v4250
        %v5211 = vpack.c.b16 %v4347, %v4251
        %v5212 = vpack.c.b16 %v4348, %v4252
        %v5213 = vpack.c.b16 %v4349, %v4253
        %v5214 = vpack.c.b16 %v4350, %v4254
        %v5215 = vpack.c.b16 %v4351, %v4255
        %v5216 = vpack.c.b16 %v4352, %v4256
        %v5217 = vpack.c.b16 %v4353, %v4257
        %v5218 = vpack.c.b16 %v4354, %v4258
        %v5219 = vpack.c.b16 %v4355, %v4259
        %v5220 = vpack.c.b16 %v4356, %v4260
        %v5221 = vpack.c.b16 %v4357, %v4261
        %v5222 = vpack.c.b16 %v4358, %v4262
        %v5223 = vpack.c.b16 %v4359, %v4263
        %v5224 = vpack.c.b16 %v4360, %v4264
        %v5225 = vpack.c.b16 %v4361, %v4265
        %v5226 = vpack.c.b16 %v4362, %v4266
        %v5227 = vpack.c.b16 %v4363, %v4267
        %v5228 = vpack.c.b16 %v4364, %v4268
        %v5229 = vpack.c.b16 %v4365, %v4269
        %v5230 = vpack.c.b16 %v4366, %v4270
        %v5231 = vpack.c.b16 %v4367, %v4271
        %v5232 = vpack.c.b16 %v4368, %v4272
        %v5233 = vpack.c.b16 %v4369, %v4273
        %v5234 = vpack.c.b16 %v4370, %v4274
        %v5235 = vpack.c.b16 %v4371, %v4275
        %v5236 = vpack.c.b16 %v4372, %v4276
        %v5237 = vpack.c.b16 %v4373, %v4277
        %v5238 = vpack.c.b16 %v4374, %v4278
        %v5239 = vpack.c.b16 %v4375, %v4279
        %v5240 = vpack.c.b16 %v4376, %v4280
        %v5241 = vpack.c.b16 %v4377, %v4281
        %v5242 = vpack.c.b16 %v4378, %v4282
        %v5243 = vpack.c.b16 %v4379, %v4283
        %v5244 = vpack.c.b16 %v4380, %v4284
        %v5245 = vpack.c.b16 %v4381, %v4285
        %v5246 = vpack.c.b16 %v4382, %v4286
        %v5247 = vpack.c.b16 %v4383, %v4287
        %v5248 = vpack.c.b16 %v4384, %v4288
        %v5249 = vpack.c.b16 %v4385, %v4289
        %v5250 = vpack.c.b16 %v4386, %v4290
        %v5251 = vpack.c.b16 %v4387, %v4291
        %v5252 = vpack.c.b16 %v4388, %v4292
        %v5253 = vpack.c.b16 %v4389, %v4293
        %v5254 = vpack.c.b16 %v4390, %v4294
        %v5255 = vpack.c.b16 %v4391, %v4295
        %v5256 = vpack.c.b16 %v4392, %v4296
        %v5257 = vpack.c.b16 %v4393, %v4297
        %v5258 = vpack.c.b16 %v4394, %v4298
        %v5259 = vpack.c.b16 %v4395, %v4299
        %v5260 = vpack.c.b16 %v4396, %v4300
        %v5261 = vpack.c.b16 %v4493, %v4397
        %v5262 = vpack.c.b16 %v4494, %v4398
        %v5263 = vpack.c.b16 %v4495, %v4399
        %v5264 = vpack.c.b16 %v4496, %v4400
        %v5265 = vpack.c.b16 %v4497, %v4401
        %v5266 = vpack.c.b16 %v4498, %v4402
        %v5267 = vpack.c.b16 %v4499, %v4403
        %v5268 = vpack.c.b16 %v4500, %v4404
        %v5269 = vpack.c.b16 %v4501, %v4405
        %v5270 = vpack.c.b16 %v4502, %v4406
        %v5271 = vpack.c.b16 %v4503, %v4407
        %v5272 = vpack.c.b16 %v4504, %v4408
        %v5273 = vpack.c.b16 %v4505, %v4409
        %v5274 = vpack.c.b16 %v4506, %v4410
        %v5275 = vpack.c.b16 %v4507, %v4411
        %v5276 = vpack.c.b16 %v4508, %v4412
        %v5277 = vpack.c.b16 %v4509, %v4413
        %v5278 = vpack.c.b16 %v4510, %v4414
        %v5279 = vpack.c.b16 %v4511, %v4415
        %v5280 = vpack.c.b16 %v4512, %v4416
        %v5281 = vpack.c.b16 %v4513, %v4417
        %v5282 = vpack.c.b16 %v4514, %v4418
        %v5283 = vpack.c.b16 %v4515, %v4419
        %v5284 = vpack.c.b16 %v4516, %v4420
        %v5285 = vpack.c.b16 %v4517, %v4421
        %v5286 = vpack.c.b16 %v4518, %v4422
        %v5287 = vpack.c.b16 %v4519, %v4423
        %v5288 = vpack.c.b16 %v4520, %v4424
        %v5289 = vpack.c.b16 %v4521, %v4425
        %v5290 = vpack.c.b16 %v4522, %v4426
        %v5291 = vpack.c.b16 %v4523, %v4427
        %v5292 = vpack.c.b16 %v4524, %v4428
        %v5293 = vpack.c.b16 %v4525, %v4429
        %v5294 = vpack.c.b16 %v4526, %v4430
        %v5295 = vpack.c.b16 %v4527, %v4431
        %v5296 = vpack.c.b16 %v4528, %v4432
        %v5297 = vpack.c.b16 %v4529, %v4433
        %v5298 = vpack.c.b16 %v4530, %v4434
        %v5299 = vpack.c.b16 %v4531, %v4435
        %v5300 = vpack.c.b16 %v4532, %v4436
        %v5301 = vpack.c.b16 %v4533, %v4437
        %v5302 = vpack.c.b16 %v4534, %v4438
        %v5303 = vpack.c.b16 %v4535, %v4439
        %v5304 = vpack.c.b16 %v4536, %v4440
        %v5305 = vpack.c.b16 %v4537, %v4441
        %v5306 = vpack.c.b16 %v4538, %v4442
        %v5307 = vpack.c.b16 %v4539, %v4443
        %v5308 = vpack.c.b16 %v4540, %v4444
        %v5309 = vpack.c.b16 %v4541, %v4445
        %v5310 = vpack.c.b16 %v4542, %v4446
        %v5311 = vpack.c.b16 %v4543, %v4447
        %v5312 = vpack.c.b16 %v4544, %v4448
        %v5313 = vpack.c.b16 %v4545, %v4449
        %v5314 = vpack.c.b16 %v4546, %v4450
        %v5315 = vpack.c.b16 %v4547, %v4451
        %v5316 = vpack.c.b16 %v4548, %v4452
        %v5317 = vpack.c.b16 %v4549, %v4453
        %v5318 = vpack.c.b16 %v4550, %v4454
        %v5319 = vpack.c.b16 %v4551, %v4455
        %v5320 = vpack.c.b16 %v4552, %v4456
        %v5321 = vpack.c.b16 %v4553, %v4457
        %v5322 = vpack.c.b16 %v4554, %v4458
        %v5323 = vpack.c.b16 %v4555, %v4459
        %v5324 = vpack.c.b16 %v4556, %v4460
        %v5325 = vpack.c.b16 %v4557, %v4461
        %v5326 = vpack.c.b16 %v4558, %v4462
        %v5327 = vpack.c.b16 %v4559, %v4463
        %v5328 = vpack.c.b16 %v4560, %v4464
        %v5329 = vpack.c.b16 %v4561, %v4465
        %v5330 = vpack.c.b16 %v4562, %v4466
        %v5331 = vpack.c.b16 %v4563, %v4467
        %v5332 = vpack.c.b16 %v4564, %v4468
        %v5333 = vpack.c.b16 %v4565, %v4469
        %v5334 = vpack.c.b16 %v4566, %v4470
        %v5335 = vpack.c.b16 %v4567, %v4471
        %v5336 = vpack.c.b16 %v4568, %v4472
        %v5337 = vpack.c.b16 %v4569, %v4473
        %v5338 = vpack.c.b16 %v4570, %v4474
        %v5339 = vpack.c.b16 %v4571, %v4475
        %v5340 = vpack.c.b16 %v4572, %v4476
        %v5341 = vpack.c.b16 %v4573, %v4477
        %v5342 = vpack.c.b16 %v4574, %v4478
        %v5343 = vpack.c.b16 %v4575, %v4479
        %v5344 = vpack.c.b16 %v4576, %v4480
        %v5345 = vpack.c.b16 %v4577, %v4481
        %v5346 = vpack.c.b16 %v4578, %v4482
        %v5347 = vpack.c.b16 %v4579, %v4483
        %v5348 = vpack.c.b16 %v4580, %v4484
        %v5349 = vpack.c.b16 %v4581, %v4485
        %v5350 = vpack.c.b16 %v4582, %v4486
        %v5351 = vpack.c.b16 %v4583, %v4487
        %v5352 = vpack.c.b16 %v4584, %v4488
        %v5353 = vpack.c.b16 %v4585, %v4489
        %v5354 = vpack.c.b16 %v4586, %v4490
        %v5355 = vpack.c.b16 %v4587, %v4491
        %v5356 = vpack.c.b16 %v4588, %v4492
        %6125 = vmatprep.subr.bf16.mxu0 %v4590
        %6126 = vmatpush1.bf16.msra.mxu0 %v4589
        %6127 = vmatprep.subr.bf16.mxu0 %v4686
        %6128 = vmatpush1.bf16.msra.mxu0 %v4685
        %6129 = vmatprep.subr.bf16.mxu0 %v4782
        %6130 = vmatpush1.bf16.msra.mxu0 %v4781
        %6131 = vmatprep.subr.bf16.mxu0 %v4878
        %6132 = vmatpush1.bf16.msra.mxu0 %v4877
        %6133 = vmatprep.subr.bf16.mxu0 %v4974
        %6134 = vmatpush1.bf16.msra.mxu0 %v4973
        %6135 = vmatprep.subr.bf16.mxu0 %v5070
        %6136 = vmatpush1.bf16.msra.mxu0 %v5069
        %6137 = vmatprep.subr.bf16.mxu0 %v5166
        %6138 = vmatpush1.bf16.msra.mxu0 %v5165
        %6139 = vmatprep.subr.bf16.mxu0 %v5262
        %6140 = vmatpush1.bf16.msra.mxu0 %v5261
        %6141 = vmatprep.subr.bf16.mxu0 0
        %6142 = vmatpush1.bf16.msra.mxu0 0
        %6143 = vmatprep.subr.bf16.mxu0 0
        %6144 = vmatpush1.bf16.msra.mxu0 0
        %6145 = vmatprep.subr.bf16.mxu0 0
        %6146 = vmatpush1.bf16.msra.mxu0 0
        %6147 = vmatprep.subr.bf16.mxu0 0
        %6148 = vmatpush1.bf16.msra.mxu0 0
        %6149 = vmatprep.subr.bf16.mxu0 0
        %6150 = vmatpush1.bf16.msra.mxu0 0
        %6151 = vmatprep.subr.bf16.mxu0 0
        %6152 = vmatpush1.bf16.msra.mxu0 0
        %6153 = vmatprep.subr.bf16.mxu0 0
        %6154 = vmatpush1.bf16.msra.mxu0 0
        %6155 = vmatprep.subr.bf16.mxu0 0
        %6156 = vmatpush1.bf16.msra.mxu0 0
        %6157 = vmatprep.mubr.bf16.mxu0 0
        %6158 = vmatmul.mubr.bf16.gmra.mrb[0].mxu0 %v592
        %v6159 = vpop.f32.mrb[0].mxu0
        %v6160 = vadd.f32 %v1904, %v6159
        %v6161 = vpop.f32.mrb[0].mxu0
        %v6162 = vadd.f32 %v1908, %v6161
        %v6163 = vpop.f32.mrb[0].mxu0
        %v6164 = vpop.f32.mrb[0].mxu0
        %6165 = vdwg.mxu0
        %6166 = vmatprep.subr.bf16.mxu0 %v4592
        %6167 = vmatpush1.bf16.msra.mxu0 %v4591
        %6168 = vmatprep.subr.bf16.mxu0 %v4688
        %6169 = vmatpush1.bf16.msra.mxu0 %v4687
        %6170 = vmatprep.subr.bf16.mxu0 %v4784
        %6171 = vmatpush1.bf16.msra.mxu0 %v4783
        %6172 = vmatprep.subr.bf16.mxu0 %v4880
        %6173 = vmatpush1.bf16.msra.mxu0 %v4879
        %6174 = vmatprep.subr.bf16.mxu0 %v4976
        %6175 = vmatpush1.bf16.msra.mxu0 %v4975
        %6176 = vmatprep.subr.bf16.mxu0 %v5072
        %6177 = vmatpush1.bf16.msra.mxu0 %v5071
        %6178 = vmatprep.subr.bf16.mxu0 %v5168
        %6179 = vmatpush1.bf16.msra.mxu0 %v5167
        %6180 = vmatprep.subr.bf16.mxu0 %v5264
        %6181 = vmatpush1.bf16.msra.mxu0 %v5263
        %6182 = vmatprep.subr.bf16.mxu0 0
        %6183 = vmatpush1.bf16.msra.mxu0 0
        %6184 = vmatprep.subr.bf16.mxu0 0
        %6185 = vmatpush1.bf16.msra.mxu0 0
        %6186 = vmatprep.subr.bf16.mxu0 0
        %6187 = vmatpush1.bf16.msra.mxu0 0
        %6188 = vmatprep.subr.bf16.mxu0 0
        %6189 = vmatpush1.bf16.msra.mxu0 0
        %6190 = vmatprep.subr.bf16.mxu0 0
        %6191 = vmatpush1.bf16.msra.mxu0 0
        %6192 = vmatprep.subr.bf16.mxu0 0
        %6193 = vmatpush1.bf16.msra.mxu0 0
        %6194 = vmatprep.subr.bf16.mxu0 0
        %6195 = vmatpush1.bf16.msra.mxu0 0
        %6196 = vmatprep.subr.bf16.mxu0 0
        %6197 = vmatpush1.bf16.msra.mxu0 0
        %6198 = vmatprep.mubr.bf16.mxu0 0
        %6199 = vmatmul.mubr.bf16.gmra.mrb[0].mxu0 %v592
        %v6200 = vpop.f32.mrb[0].mxu0
        %v6201 = vadd.f32 %v1912, %v6200
        %v6202 = vpop.f32.mrb[0].mxu0
        %v6203 = vadd.f32 %v1916, %v6202
        %v6204 = vpop.f32.mrb[0].mxu0
        %v6205 = vpop.f32.mrb[0].mxu0
        %6206 = vdwg.mxu0
        %6207 = vmatprep.subr.bf16.mxu0 %v4594
        %6208 = vmatpush1.bf16.msra.mxu0 %v4593
        %6209 = vmatprep.subr.bf16.mxu0 %v4690
        %6210 = vmatpush1.bf16.msra.mxu0 %v4689
        %6211 = vmatprep.subr.bf16.mxu0 %v4786
        %6212 = vmatpush1.bf16.msra.mxu0 %v4785
        %6213 = vmatprep.subr.bf16.mxu0 %v4882
        %6214 = vmatpush1.bf16.msra.mxu0 %v4881
        %6215 = vmatprep.subr.bf16.mxu0 %v4978
        %6216 = vmatpush1.bf16.msra.mxu0 %v4977
        %6217 = vmatprep.subr.bf16.mxu0 %v5074
        %6218 = vmatpush1.bf16.msra.mxu0 %v5073
        %6219 = vmatprep.subr.bf16.mxu0 %v5170
        %6220 = vmatpush1.bf16.msra.mxu0 %v5169
        %6221 = vmatprep.subr.bf16.mxu0 %v5266
        %6222 = vmatpush1.bf16.msra.mxu0 %v5265
        %6223 = vmatprep.subr.bf16.mxu0 0
        %6224 = vmatpush1.bf16.msra.mxu0 0
        %6225 = vmatprep.subr.bf16.mxu0 0
        %6226 = vmatpush1.bf16.msra.mxu0 0
        %6227 = vmatprep.subr.bf16.mxu0 0
        %6228 = vmatpush1.bf16.msra.mxu0 0
        %6229 = vmatprep.subr.bf16.mxu0 0
        %6230 = vmatpush1.bf16.msra.mxu0 0
        %6231 = vmatprep.subr.bf16.mxu0 0
        %6232 = vmatpush1.bf16.msra.mxu0 0
        %6233 = vmatprep.subr.bf16.mxu0 0
        %6234 = vmatpush1.bf16.msra.mxu0 0
        %6235 = vmatprep.subr.bf16.mxu0 0
        %6236 = vmatpush1.bf16.msra.mxu0 0
        %6237 = vmatprep.subr.bf16.mxu0 0
        %6238 = vmatpush1.bf16.msra.mxu0 0
        %6239 = vmatprep.mubr.bf16.mxu0 0
        %6240 = vmatmul.mubr.bf16.gmra.mrb[0].mxu0 %v592
        %v6241 = vpop.f32.mrb[0].mxu0
        %v6242 = vadd.f32 %v1920, %v6241
        %v6243 = vpop.f32.mrb[0].mxu0
        %v6244 = vadd.f32 %v1924, %v6243
        %v6245 = vpop.f32.mrb[0].mxu0
        %v6246 = vpop.f32.mrb[0].mxu0
        %6247 = vdwg.mxu0
        %6248 = vmatprep.subr.bf16.mxu0 %v4596
        %6249 = vmatpush1.bf16.msra.mxu0 %v4595
        %6250 = vmatprep.subr.bf16.mxu0 %v4692
        %6251 = vmatpush1.bf16.msra.mxu0 %v4691
        %6252 = vmatprep.subr.bf16.mxu0 %v4788
        %6253 = vmatpush1.bf16.msra.mxu0 %v4787
        %6254 = vmatprep.subr.bf16.mxu0 %v4884
        %6255 = vmatpush1.bf16.msra.mxu0 %v4883
        %6256 = vmatprep.subr.bf16.mxu0 %v4980
        %6257 = vmatpush1.bf16.msra.mxu0 %v4979
        %6258 = vmatprep.subr.bf16.mxu0 %v5076
        %6259 = vmatpush1.bf16.msra.mxu0 %v5075
        %6260 = vmatprep.subr.bf16.mxu0 %v5172
        %6261 = vmatpush1.bf16.msra.mxu0 %v5171
        %6262 = vmatprep.subr.bf16.mxu0 %v5268
        %6263 = vmatpush1.bf16.msra.mxu0 %v5267
        %6264 = vmatprep.subr.bf16.mxu0 0
        %6265 = vmatpush1.bf16.msra.mxu0 0
        %6266 = vmatprep.subr.bf16.mxu0 0
        %6267 = vmatpush1.bf16.msra.mxu0 0
        %6268 = vmatprep.subr.bf16.mxu0 0
        %6269 = vmatpush1.bf16.msra.mxu0 0
        %6270 = vmatprep.subr.bf16.mxu0 0
        %6271 = vmatpush1.bf16.msra.mxu0 0
        %6272 = vmatprep.subr.bf16.mxu0 0
        %6273 = vmatpush1.bf16.msra.mxu0 0
        %6274 = vmatprep.subr.bf16.mxu0 0
        %6275 = vmatpush1.bf16.msra.mxu0 0
        %6276 = vmatprep.subr.bf16.mxu0 0
        %6277 = vmatpush1.bf16.msra.mxu0 0
        %6278 = vmatprep.subr.bf16.mxu0 0
        %6279 = vmatpush1.bf16.msra.mxu0 0
        %6280 = vmatprep.mubr.bf16.mxu0 0
        %6281 = vmatmul.mubr.bf16.gmra.mrb[0].mxu0 %v592
        %v6282 = vpop.f32.mrb[0].mxu0
        %v6283 = vadd.f32 %v1928, %v6282
        %v6284 = vpop.f32.mrb[0].mxu0
        %v6285 = vadd.f32 %v1932, %v6284
        %v6286 = vpop.f32.mrb[0].mxu0
        %v6287 = vpop.f32.mrb[0].mxu0
        %6288 = vdwg.mxu0
        %6289 = vmatprep.subr.bf16.mxu0 %v4598
        %6290 = vmatpush1.bf16.msra.mxu0 %v4597
        %6291 = vmatprep.subr.bf16.mxu0 %v4694
        %6292 = vmatpush1.bf16.msra.mxu0 %v4693
        %6293 = vmatprep.subr.bf16.mxu0 %v4790
        %6294 = vmatpush1.bf16.msra.mxu0 %v4789
        %6295 = vmatprep.subr.bf16.mxu0 %v4886
        %6296 = vmatpush1.bf16.msra.mxu0 %v4885
        %6297 = vmatprep.subr.bf16.mxu0 %v4982
        %6298 = vmatpush1.bf16.msra.mxu0 %v4981
        %6299 = vmatprep.subr.bf16.mxu0 %v5078
        %6300 = vmatpush1.bf16.msra.mxu0 %v5077
        %6301 = vmatprep.subr.bf16.mxu0 %v5174
        %6302 = vmatpush1.bf16.msra.mxu0 %v5173
        %6303 = vmatprep.subr.bf16.mxu0 %v5270
        %6304 = vmatpush1.bf16.msra.mxu0 %v5269
        %6305 = vmatprep.subr.bf16.mxu0 0
        %6306 = vmatpush1.bf16.msra.mxu0 0
        %6307 = vmatprep.subr.bf16.mxu0 0
        %6308 = vmatpush1.bf16.msra.mxu0 0
        %6309 = vmatprep.subr.bf16.mxu0 0
        %6310 = vmatpush1.bf16.msra.mxu0 0
        %6311 = vmatprep.subr.bf16.mxu0 0
        %6312 = vmatpush1.bf16.msra.mxu0 0
        %6313 = vmatprep.subr.bf16.mxu0 0
        %6314 = vmatpush1.bf16.msra.mxu0 0
        %6315 = vmatprep.subr.bf16.mxu0 0
        %6316 = vmatpush1.bf16.msra.mxu0 0
        %6317 = vmatprep.subr.bf16.mxu0 0
        %6318 = vmatpush1.bf16.msra.mxu0 0
        %6319 = vmatprep.subr.bf16.mxu0 0
        %6320 = vmatpush1.bf16.msra.mxu0 0
        %6321 = vmatprep.mubr.bf16.mxu0 0
        %6322 = vmatmul.mubr.bf16.gmra.mrb[0].mxu0 %v592
        %v6323 = vpop.f32.mrb[0].mxu0
        %v6324 = vadd.f32 %v1936, %v6323
        %v6325 = vpop.f32.mrb[0].mxu0
        %v6326 = vadd.f32 %v1940, %v6325
        %v6327 = vpop.f32.mrb[0].mxu0
        %v6328 = vpop.f32.mrb[0].mxu0
        %6329 = vdwg.mxu0
        %6330 = vmatprep.subr.bf16.mxu0 %v4600
        %6331 = vmatpush1.bf16.msra.mxu0 %v4599
        %6332 = vmatprep.subr.bf16.mxu0 %v4696
        %6333 = vmatpush1.bf16.msra.mxu0 %v4695
        %6334 = vmatprep.subr.bf16.mxu0 %v4792
        %6335 = vmatpush1.bf16.msra.mxu0 %v4791
        %6336 = vmatprep.subr.bf16.mxu0 %v4888
        %6337 = vmatpush1.bf16.msra.mxu0 %v4887
        %6338 = vmatprep.subr.bf16.mxu0 %v4984
        %6339 = vmatpush1.bf16.msra.mxu0 %v4983
        %6340 = vmatprep.subr.bf16.mxu0 %v5080
        %6341 = vmatpush1.bf16.msra.mxu0 %v5079
        %6342 = vmatprep.subr.bf16.mxu0 %v5176
        %6343 = vmatpush1.bf16.msra.mxu0 %v5175
        %6344 = vmatprep.subr.bf16.mxu0 %v5272
        %6345 = vmatpush1.bf16.msra.mxu0 %v5271
        %6346 = vmatprep.subr.bf16.mxu0 0
        %6347 = vmatpush1.bf16.msra.mxu0 0
        %6348 = vmatprep.subr.bf16.mxu0 0
        %6349 = vmatpush1.bf16.msra.mxu0 0
        %6350 = vmatprep.subr.bf16.mxu0 0
        %6351 = vmatpush1.bf16.msra.mxu0 0
        %6352 = vmatprep.subr.bf16.mxu0 0
        %6353 = vmatpush1.bf16.msra.mxu0 0
        %6354 = vmatprep.subr.bf16.mxu0 0
        %6355 = vmatpush1.bf16.msra.mxu0 0
        %6356 = vmatprep.subr.bf16.mxu0 0
        %6357 = vmatpush1.bf16.msra.mxu0 0
        %6358 = vmatprep.subr.bf16.mxu0 0
        %6359 = vmatpush1.bf16.msra.mxu0 0
        %6360 = vmatprep.subr.bf16.mxu0 0
        %6361 = vmatpush1.bf16.msra.mxu0 0
        %6362 = vmatprep.mubr.bf16.mxu0 0
        %6363 = vmatmul.mubr.bf16.gmra.mrb[0].mxu0 %v592
        %v6364 = vpop.f32.mrb[0].mxu0
        %v6365 = vadd.f32 %v1944, %v6364
        %v6366 = vpop.f32.mrb[0].mxu0
        %v6367 = vadd.f32 %v1948, %v6366
        %v6368 = vpop.f32.mrb[0].mxu0
        %v6369 = vpop.f32.mrb[0].mxu0
        %6370 = vdwg.mxu0
        %6371 = vmatprep.subr.bf16.mxu0 %v4602
        %6372 = vmatpush1.bf16.msra.mxu0 %v4601
        %6373 = vmatprep.subr.bf16.mxu0 %v4698
        %6374 = vmatpush1.bf16.msra.mxu0 %v4697
        %6375 = vmatprep.subr.bf16.mxu0 %v4794
        %6376 = vmatpush1.bf16.msra.mxu0 %v4793
        %6377 = vmatprep.subr.bf16.mxu0 %v4890
        %6378 = vmatpush1.bf16.msra.mxu0 %v4889
        %6379 = vmatprep.subr.bf16.mxu0 %v4986
        %6380 = vmatpush1.bf16.msra.mxu0 %v4985
        %6381 = vmatprep.subr.bf16.mxu0 %v5082
        %6382 = vmatpush1.bf16.msra.mxu0 %v5081
        %6383 = vmatprep.subr.bf16.mxu0 %v5178
        %6384 = vmatpush1.bf16.msra.mxu0 %v5177
        %6385 = vmatprep.subr.bf16.mxu0 %v5274
        %6386 = vmatpush1.bf16.msra.mxu0 %v5273
        %6387 = vmatprep.subr.bf16.mxu0 0
        %6388 = vmatpush1.bf16.msra.mxu0 0
        %6389 = vmatprep.subr.bf16.mxu0 0
        %6390 = vmatpush1.bf16.msra.mxu0 0
        %6391 = vmatprep.subr.bf16.mxu0 0
        %6392 = vmatpush1.bf16.msra.mxu0 0
        %6393 = vmatprep.subr.bf16.mxu0 0
        %6394 = vmatpush1.bf16.msra.mxu0 0
        %6395 = vmatprep.subr.bf16.mxu0 0
        %6396 = vmatpush1.bf16.msra.mxu0 0
        %6397 = vmatprep.subr.bf16.mxu0 0
        %6398 = vmatpush1.bf16.msra.mxu0 0
        %6399 = vmatprep.subr.bf16.mxu0 0
        %6400 = vmatpush1.bf16.msra.mxu0 0
        %6401 = vmatprep.subr.bf16.mxu0 0
        %6402 = vmatpush1.bf16.msra.mxu0 0
        %6403 = vmatprep.mubr.bf16.mxu0 0
        %6404 = vmatmul.mubr.bf16.gmra.mrb[0].mxu0 %v592
        %v6405 = vpop.f32.mrb[0].mxu0
        %v6406 = vadd.f32 %v1952, %v6405
        %v6407 = vpop.f32.mrb[0].mxu0
        %v6408 = vadd.f32 %v1956, %v6407
        %v6409 = vpop.f32.mrb[0].mxu0
        %v6410 = vpop.f32.mrb[0].mxu0
        %6411 = vdwg.mxu0
        %6412 = vmatprep.subr.bf16.mxu0 %v4604
        %6413 = vmatpush1.bf16.msra.mxu0 %v4603
        %6414 = vmatprep.subr.bf16.mxu0 %v4700
        %6415 = vmatpush1.bf16.msra.mxu0 %v4699
        %6416 = vmatprep.subr.bf16.mxu0 %v4796
        %6417 = vmatpush1.bf16.msra.mxu0 %v4795
        %6418 = vmatprep.subr.bf16.mxu0 %v4892
        %6419 = vmatpush1.bf16.msra.mxu0 %v4891
        %6420 = vmatprep.subr.bf16.mxu0 %v4988
        %6421 = vmatpush1.bf16.msra.mxu0 %v4987
        %6422 = vmatprep.subr.bf16.mxu0 %v5084
        %6423 = vmatpush1.bf16.msra.mxu0 %v5083
        %6424 = vmatprep.subr.bf16.mxu0 %v5180
        %6425 = vmatpush1.bf16.msra.mxu0 %v5179
        %6426 = vmatprep.subr.bf16.mxu0 %v5276
        %6427 = vmatpush1.bf16.msra.mxu0 %v5275
        %6428 = vmatprep.subr.bf16.mxu0 0
        %6429 = vmatpush1.bf16.msra.mxu0 0
        %6430 = vmatprep.subr.bf16.mxu0 0
        %6431 = vmatpush1.bf16.msra.mxu0 0
        %6432 = vmatprep.subr.bf16.mxu0 0
        %6433 = vmatpush1.bf16.msra.mxu0 0
        %6434 = vmatprep.subr.bf16.mxu0 0
        %6435 = vmatpush1.bf16.msra.mxu0 0
        %6436 = vmatprep.subr.bf16.mxu0 0
        %6437 = vmatpush1.bf16.msra.mxu0 0
        %6438 = vmatprep.subr.bf16.mxu0 0
        %6439 = vmatpush1.bf16.msra.mxu0 0
        %6440 = vmatprep.subr.bf16.mxu0 0
        %6441 = vmatpush1.bf16.msra.mxu0 0
        %6442 = vmatprep.subr.bf16.mxu0 0
        %6443 = vmatpush1.bf16.msra.mxu0 0
        %6444 = vmatprep.mubr.bf16.mxu0 0
        %6445 = vmatmul.mubr.bf16.gmra.mrb[0].mxu0 %v592
        %v6446 = vpop.f32.mrb[0].mxu0
        %v6447 = vadd.f32 %v1960, %v6446
        %v6448 = vpop.f32.mrb[0].mxu0
        %v6449 = vadd.f32 %v1964, %v6448
        %v6450 = vpop.f32.mrb[0].mxu0
        %v6451 = vpop.f32.mrb[0].mxu0
        %6452 = vdwg.mxu0
        %6453 = vmatprep.subr.bf16.mxu0 %v4606
        %6454 = vmatpush1.bf16.msra.mxu0 %v4605
        %6455 = vmatprep.subr.bf16.mxu0 %v4702
        %6456 = vmatpush1.bf16.msra.mxu0 %v4701
        %6457 = vmatprep.subr.bf16.mxu0 %v4798
        %6458 = vmatpush1.bf16.msra.mxu0 %v4797
        %6459 = vmatprep.subr.bf16.mxu0 %v4894
        %6460 = vmatpush1.bf16.msra.mxu0 %v4893
        %6461 = vmatprep.subr.bf16.mxu0 %v4990
        %6462 = vmatpush1.bf16.msra.mxu0 %v4989
        %6463 = vmatprep.subr.bf16.mxu0 %v5086
        %6464 = vmatpush1.bf16.msra.mxu0 %v5085
        %6465 = vmatprep.subr.bf16.mxu0 %v5182
        %6466 = vmatpush1.bf16.msra.mxu0 %v5181
        %6467 = vmatprep.subr.bf16.mxu0 %v5278
        %6468 = vmatpush1.bf16.msra.mxu0 %v5277
        %6469 = vmatprep.subr.bf16.mxu0 0
        %6470 = vmatpush1.bf16.msra.mxu0 0
        %6471 = vmatprep.subr.bf16.mxu0 0
        %6472 = vmatpush1.bf16.msra.mxu0 0
        %6473 = vmatprep.subr.bf16.mxu0 0
        %6474 = vmatpush1.bf16.msra.mxu0 0
        %6475 = vmatprep.subr.bf16.mxu0 0
        %6476 = vmatpush1.bf16.msra.mxu0 0
        %6477 = vmatprep.subr.bf16.mxu0 0
        %6478 = vmatpush1.bf16.msra.mxu0 0
        %6479 = vmatprep.subr.bf16.mxu0 0
        %6480 = vmatpush1.bf16.msra.mxu0 0
        %6481 = vmatprep.subr.bf16.mxu0 0
        %6482 = vmatpush1.bf16.msra.mxu0 0
        %6483 = vmatprep.subr.bf16.mxu0 0
        %6484 = vmatpush1.bf16.msra.mxu0 0
        %6485 = vmatprep.mubr.bf16.mxu0 0
        %6486 = vmatmul.mubr.bf16.gmra.mrb[0].mxu0 %v592
        %v6487 = vpop.f32.mrb[0].mxu0
        %v6488 = vadd.f32 %v1968, %v6487
        %v6489 = vpop.f32.mrb[0].mxu0
        %v6490 = vadd.f32 %v1972, %v6489
        %v6491 = vpop.f32.mrb[0].mxu0
        %v6492 = vpop.f32.mrb[0].mxu0
        %6493 = vdwg.mxu0
        %6494 = vmatprep.subr.bf16.mxu0 %v4608
        %6495 = vmatpush1.bf16.msra.mxu0 %v4607
        %6496 = vmatprep.subr.bf16.mxu0 %v4704
        %6497 = vmatpush1.bf16.msra.mxu0 %v4703
        %6498 = vmatprep.subr.bf16.mxu0 %v4800
        %6499 = vmatpush1.bf16.msra.mxu0 %v4799
        %6500 = vmatprep.subr.bf16.mxu0 %v4896
        %6501 = vmatpush1.bf16.msra.mxu0 %v4895
        %6502 = vmatprep.subr.bf16.mxu0 %v4992
        %6503 = vmatpush1.bf16.msra.mxu0 %v4991
        %6504 = vmatprep.subr.bf16.mxu0 %v5088
        %6505 = vmatpush1.bf16.msra.mxu0 %v5087
        %6506 = vmatprep.subr.bf16.mxu0 %v5184
        %6507 = vmatpush1.bf16.msra.mxu0 %v5183
        %6508 = vmatprep.subr.bf16.mxu0 %v5280
        %6509 = vmatpush1.bf16.msra.mxu0 %v5279
        %6510 = vmatprep.subr.bf16.mxu0 0
        %6511 = vmatpush1.bf16.msra.mxu0 0
        %6512 = vmatprep.subr.bf16.mxu0 0
        %6513 = vmatpush1.bf16.msra.mxu0 0
        %6514 = vmatprep.subr.bf16.mxu0 0
        %6515 = vmatpush1.bf16.msra.mxu0 0
        %6516 = vmatprep.subr.bf16.mxu0 0
        %6517 = vmatpush1.bf16.msra.mxu0 0
        %6518 = vmatprep.subr.bf16.mxu0 0
        %6519 = vmatpush1.bf16.msra.mxu0 0
        %6520 = vmatprep.subr.bf16.mxu0 0
        %6521 = vmatpush1.bf16.msra.mxu0 0
        %6522 = vmatprep.subr.bf16.mxu0 0
        %6523 = vmatpush1.bf16.msra.mxu0 0
        %6524 = vmatprep.subr.bf16.mxu0 0
        %6525 = vmatpush1.bf16.msra.mxu0 0
        %6526 = vmatprep.mubr.bf16.mxu0 0
        %6527 = vmatmul.mubr.bf16.gmra.mrb[0].mxu0 %v592
        %v6528 = vpop.f32.mrb[0].mxu0
        %v6529 = vadd.f32 %v1976, %v6528
        %v6530 = vpop.f32.mrb[0].mxu0
        %v6531 = vadd.f32 %v1980, %v6530
        %v6532 = vpop.f32.mrb[0].mxu0
        %v6533 = vpop.f32.mrb[0].mxu0
        %6534 = vdwg.mxu0
        %6535 = vmatprep.subr.bf16.mxu0 %v4610
        %6536 = vmatpush1.bf16.msra.mxu0 %v4609
        %6537 = vmatprep.subr.bf16.mxu0 %v4706
        %6538 = vmatpush1.bf16.msra.mxu0 %v4705
        %6539 = vmatprep.subr.bf16.mxu0 %v4802
        %6540 = vmatpush1.bf16.msra.mxu0 %v4801
        %6541 = vmatprep.subr.bf16.mxu0 %v4898
        %6542 = vmatpush1.bf16.msra.mxu0 %v4897
        %6543 = vmatprep.subr.bf16.mxu0 %v4994
        %6544 = vmatpush1.bf16.msra.mxu0 %v4993
        %6545 = vmatprep.subr.bf16.mxu0 %v5090
        %6546 = vmatpush1.bf16.msra.mxu0 %v5089
        %6547 = vmatprep.subr.bf16.mxu0 %v5186
        %6548 = vmatpush1.bf16.msra.mxu0 %v5185
        %6549 = vmatprep.subr.bf16.mxu0 %v5282
        %6550 = vmatpush1.bf16.msra.mxu0 %v5281
        %6551 = vmatprep.subr.bf16.mxu0 0
        %6552 = vmatpush1.bf16.msra.mxu0 0
        %6553 = vmatprep.subr.bf16.mxu0 0
        %6554 = vmatpush1.bf16.msra.mxu0 0
        %6555 = vmatprep.subr.bf16.mxu0 0
        %6556 = vmatpush1.bf16.msra.mxu0 0
        %6557 = vmatprep.subr.bf16.mxu0 0
        %6558 = vmatpush1.bf16.msra.mxu0 0
        %6559 = vmatprep.subr.bf16.mxu0 0
        %6560 = vmatpush1.bf16.msra.mxu0 0
        %6561 = vmatprep.subr.bf16.mxu0 0
        %6562 = vmatpush1.bf16.msra.mxu0 0
        %6563 = vmatprep.subr.bf16.mxu0 0
        %6564 = vmatpush1.bf16.msra.mxu0 0
        %6565 = vmatprep.subr.bf16.mxu0 0
        %6566 = vmatpush1.bf16.msra.mxu0 0
        %6567 = vmatprep.mubr.bf16.mxu0 0
        %6568 = vmatmul.mubr.bf16.gmra.mrb[0].mxu0 %v592
        %v6569 = vpop.f32.mrb[0].mxu0
        %v6570 = vadd.f32 %v1984, %v6569
        %v6571 = vpop.f32.mrb[0].mxu0
        %v6572 = vadd.f32 %v1988, %v6571
        %v6573 = vpop.f32.mrb[0].mxu0
        %v6574 = vpop.f32.mrb[0].mxu0
        %6575 = vdwg.mxu0
        %6576 = vmatprep.subr.bf16.mxu0 %v4612
        %6577 = vmatpush1.bf16.msra.mxu0 %v4611
        %6578 = vmatprep.subr.bf16.mxu0 %v4708
        %6579 = vmatpush1.bf16.msra.mxu0 %v4707
        %6580 = vmatprep.subr.bf16.mxu0 %v4804
        %6581 = vmatpush1.bf16.msra.mxu0 %v4803
        %6582 = vmatprep.subr.bf16.mxu0 %v4900
        %6583 = vmatpush1.bf16.msra.mxu0 %v4899
        %6584 = vmatprep.subr.bf16.mxu0 %v4996
        %6585 = vmatpush1.bf16.msra.mxu0 %v4995
        %6586 = vmatprep.subr.bf16.mxu0 %v5092
        %6587 = vmatpush1.bf16.msra.mxu0 %v5091
        %6588 = vmatprep.subr.bf16.mxu0 %v5188
        %6589 = vmatpush1.bf16.msra.mxu0 %v5187
        %6590 = vmatprep.subr.bf16.mxu0 %v5284
        %6591 = vmatpush1.bf16.msra.mxu0 %v5283
        %6592 = vmatprep.subr.bf16.mxu0 0
        %6593 = vmatpush1.bf16.msra.mxu0 0
        %6594 = vmatprep.subr.bf16.mxu0 0
        %6595 = vmatpush1.bf16.msra.mxu0 0
        %6596 = vmatprep.subr.bf16.mxu0 0
        %6597 = vmatpush1.bf16.msra.mxu0 0
        %6598 = vmatprep.subr.bf16.mxu0 0
        %6599 = vmatpush1.bf16.msra.mxu0 0
        %6600 = vmatprep.subr.bf16.mxu0 0
        %6601 = vmatpush1.bf16.msra.mxu0 0
        %6602 = vmatprep.subr.bf16.mxu0 0
        %6603 = vmatpush1.bf16.msra.mxu0 0
        %6604 = vmatprep.subr.bf16.mxu0 0
        %6605 = vmatpush1.bf16.msra.mxu0 0
        %6606 = vmatprep.subr.bf16.mxu0 0
        %6607 = vmatpush1.bf16.msra.mxu0 0
        %6608 = vmatprep.mubr.bf16.mxu0 0
        %6609 = vmatmul.mubr.bf16.gmra.mrb[0].mxu0 %v592
        %v6610 = vpop.f32.mrb[0].mxu0
        %v6611 = vadd.f32 %v1992, %v6610
        %v6612 = vpop.f32.mrb[0].mxu0
        %v6613 = vadd.f32 %v1996, %v6612
        %v6614 = vpop.f32.mrb[0].mxu0
        %v6615 = vpop.f32.mrb[0].mxu0
        %6616 = vdwg.mxu0
        %6617 = vmatprep.subr.bf16.mxu0 %v4614
        %6618 = vmatpush1.bf16.msra.mxu0 %v4613
        %6619 = vmatprep.subr.bf16.mxu0 %v4710
        %6620 = vmatpush1.bf16.msra.mxu0 %v4709
        %6621 = vmatprep.subr.bf16.mxu0 %v4806
        %6622 = vmatpush1.bf16.msra.mxu0 %v4805
        %6623 = vmatprep.subr.bf16.mxu0 %v4902
        %6624 = vmatpush1.bf16.msra.mxu0 %v4901
        %6625 = vmatprep.subr.bf16.mxu0 %v4998
        %6626 = vmatpush1.bf16.msra.mxu0 %v4997
        %6627 = vmatprep.subr.bf16.mxu0 %v5094
        %6628 = vmatpush1.bf16.msra.mxu0 %v5093
        %6629 = vmatprep.subr.bf16.mxu0 %v5190
        %6630 = vmatpush1.bf16.msra.mxu0 %v5189
        %6631 = vmatprep.subr.bf16.mxu0 %v5286
        %6632 = vmatpush1.bf16.msra.mxu0 %v5285
        %6633 = vmatprep.subr.bf16.mxu0 0
        %6634 = vmatpush1.bf16.msra.mxu0 0
        %6635 = vmatprep.subr.bf16.mxu0 0
        %6636 = vmatpush1.bf16.msra.mxu0 0
        %6637 = vmatprep.subr.bf16.mxu0 0
        %6638 = vmatpush1.bf16.msra.mxu0 0
        %6639 = vmatprep.subr.bf16.mxu0 0
        %6640 = vmatpush1.bf16.msra.mxu0 0
        %6641 = vmatprep.subr.bf16.mxu0 0
        %6642 = vmatpush1.bf16.msra.mxu0 0
        %6643 = vmatprep.subr.bf16.mxu0 0
        %6644 = vmatpush1.bf16.msra.mxu0 0
        %6645 = vmatprep.subr.bf16.mxu0 0
        %6646 = vmatpush1.bf16.msra.mxu0 0
        %6647 = vmatprep.subr.bf16.mxu0 0
        %6648 = vmatpush1.bf16.msra.mxu0 0
        %6649 = vmatprep.mubr.bf16.mxu0 0
        %6650 = vmatmul.mubr.bf16.gmra.mrb[0].mxu0 %v592
        %v6651 = vpop.f32.mrb[0].mxu0
        %v6652 = vadd.f32 %v2000, %v6651
        %v6653 = vpop.f32.mrb[0].mxu0
        %v6654 = vadd.f32 %v2004, %v6653
        %v6655 = vpop.f32.mrb[0].mxu0
        %v6656 = vpop.f32.mrb[0].mxu0
        %6657 = vdwg.mxu0
        %6658 = vmatprep.subr.bf16.mxu0 %v4616
        %6659 = vmatpush1.bf16.msra.mxu0 %v4615
        %6660 = vmatprep.subr.bf16.mxu0 %v4712
        %6661 = vmatpush1.bf16.msra.mxu0 %v4711
        %6662 = vmatprep.subr.bf16.mxu0 %v4808
        %6663 = vmatpush1.bf16.msra.mxu0 %v4807
        %6664 = vmatprep.subr.bf16.mxu0 %v4904
        %6665 = vmatpush1.bf16.msra.mxu0 %v4903
        %6666 = vmatprep.subr.bf16.mxu0 %v5000
        %6667 = vmatpush1.bf16.msra.mxu0 %v4999
        %6668 = vmatprep.subr.bf16.mxu0 %v5096
        %6669 = vmatpush1.bf16.msra.mxu0 %v5095
        %6670 = vmatprep.subr.bf16.mxu0 %v5192
        %6671 = vmatpush1.bf16.msra.mxu0 %v5191
        %6672 = vmatprep.subr.bf16.mxu0 %v5288
        %6673 = vmatpush1.bf16.msra.mxu0 %v5287
        %6674 = vmatprep.subr.bf16.mxu0 0
        %6675 = vmatpush1.bf16.msra.mxu0 0
        %6676 = vmatprep.subr.bf16.mxu0 0
        %6677 = vmatpush1.bf16.msra.mxu0 0
        %6678 = vmatprep.subr.bf16.mxu0 0
        %6679 = vmatpush1.bf16.msra.mxu0 0
        %6680 = vmatprep.subr.bf16.mxu0 0
        %6681 = vmatpush1.bf16.msra.mxu0 0
        %6682 = vmatprep.subr.bf16.mxu0 0
        %6683 = vmatpush1.bf16.msra.mxu0 0
        %6684 = vmatprep.subr.bf16.mxu0 0
        %6685 = vmatpush1.bf16.msra.mxu0 0
        %6686 = vmatprep.subr.bf16.mxu0 0
        %6687 = vmatpush1.bf16.msra.mxu0 0
        %6688 = vmatprep.subr.bf16.mxu0 0
        %6689 = vmatpush1.bf16.msra.mxu0 0
        %6690 = vmatprep.mubr.bf16.mxu0 0
        %6691 = vmatmul.mubr.bf16.gmra.mrb[0].mxu0 %v592
        %v6692 = vpop.f32.mrb[0].mxu0
        %v6693 = vadd.f32 %v2008, %v6692
        %v6694 = vpop.f32.mrb[0].mxu0
        %v6695 = vadd.f32 %v2012, %v6694
        %v6696 = vpop.f32.mrb[0].mxu0
        %v6697 = vpop.f32.mrb[0].mxu0
        %6698 = vdwg.mxu0
        %6699 = vmatprep.subr.bf16.mxu0 %v4618
        %6700 = vmatpush1.bf16.msra.mxu0 %v4617
        %6701 = vmatprep.subr.bf16.mxu0 %v4714
        %6702 = vmatpush1.bf16.msra.mxu0 %v4713
        %6703 = vmatprep.subr.bf16.mxu0 %v4810
        %6704 = vmatpush1.bf16.msra.mxu0 %v4809
        %6705 = vmatprep.subr.bf16.mxu0 %v4906
        %6706 = vmatpush1.bf16.msra.mxu0 %v4905
        %6707 = vmatprep.subr.bf16.mxu0 %v5002
        %6708 = vmatpush1.bf16.msra.mxu0 %v5001
        %6709 = vmatprep.subr.bf16.mxu0 %v5098
        %6710 = vmatpush1.bf16.msra.mxu0 %v5097
        %6711 = vmatprep.subr.bf16.mxu0 %v5194
        %6712 = vmatpush1.bf16.msra.mxu0 %v5193
        %6713 = vmatprep.subr.bf16.mxu0 %v5290
        %6714 = vmatpush1.bf16.msra.mxu0 %v5289
        %6715 = vmatprep.subr.bf16.mxu0 0
        %6716 = vmatpush1.bf16.msra.mxu0 0
        %6717 = vmatprep.subr.bf16.mxu0 0
        %6718 = vmatpush1.bf16.msra.mxu0 0
        %6719 = vmatprep.subr.bf16.mxu0 0
        %6720 = vmatpush1.bf16.msra.mxu0 0
        %6721 = vmatprep.subr.bf16.mxu0 0
        %6722 = vmatpush1.bf16.msra.mxu0 0
        %6723 = vmatprep.subr.bf16.mxu0 0
        %6724 = vmatpush1.bf16.msra.mxu0 0
        %6725 = vmatprep.subr.bf16.mxu0 0
        %6726 = vmatpush1.bf16.msra.mxu0 0
        %6727 = vmatprep.subr.bf16.mxu0 0
        %6728 = vmatpush1.bf16.msra.mxu0 0
        %6729 = vmatprep.subr.bf16.mxu0 0
        %6730 = vmatpush1.bf16.msra.mxu0 0
        %6731 = vmatprep.mubr.bf16.mxu0 0
        %6732 = vmatmul.mubr.bf16.gmra.mrb[0].mxu0 %v592
        %v6733 = vpop.f32.mrb[0].mxu0
        %v6734 = vadd.f32 %v2016, %v6733
        %v6735 = vpop.f32.mrb[0].mxu0
        %v6736 = vadd.f32 %v2020, %v6735
        %v6737 = vpop.f32.mrb[0].mxu0
        %v6738 = vpop.f32.mrb[0].mxu0
        %6739 = vdwg.mxu0
        %6740 = vmatprep.subr.bf16.mxu0 %v4620
        %6741 = vmatpush1.bf16.msra.mxu0 %v4619
        %6742 = vmatprep.subr.bf16.mxu0 %v4716
        %6743 = vmatpush1.bf16.msra.mxu0 %v4715
        %6744 = vmatprep.subr.bf16.mxu0 %v4812
        %6745 = vmatpush1.bf16.msra.mxu0 %v4811
        %6746 = vmatprep.subr.bf16.mxu0 %v4908
        %6747 = vmatpush1.bf16.msra.mxu0 %v4907
        %6748 = vmatprep.subr.bf16.mxu0 %v5004
        %6749 = vmatpush1.bf16.msra.mxu0 %v5003
        %6750 = vmatprep.subr.bf16.mxu0 %v5100
        %6751 = vmatpush1.bf16.msra.mxu0 %v5099
        %6752 = vmatprep.subr.bf16.mxu0 %v5196
        %6753 = vmatpush1.bf16.msra.mxu0 %v5195
        %6754 = vmatprep.subr.bf16.mxu0 %v5292
        %6755 = vmatpush1.bf16.msra.mxu0 %v5291
        %6756 = vmatprep.subr.bf16.mxu0 0
        %6757 = vmatpush1.bf16.msra.mxu0 0
        %6758 = vmatprep.subr.bf16.mxu0 0
        %6759 = vmatpush1.bf16.msra.mxu0 0
        %6760 = vmatprep.subr.bf16.mxu0 0
        %6761 = vmatpush1.bf16.msra.mxu0 0
        %6762 = vmatprep.subr.bf16.mxu0 0
        %6763 = vmatpush1.bf16.msra.mxu0 0
        %6764 = vmatprep.subr.bf16.mxu0 0
        %6765 = vmatpush1.bf16.msra.mxu0 0
        %6766 = vmatprep.subr.bf16.mxu0 0
        %6767 = vmatpush1.bf16.msra.mxu0 0
        %6768 = vmatprep.subr.bf16.mxu0 0
        %6769 = vmatpush1.bf16.msra.mxu0 0
        %6770 = vmatprep.subr.bf16.mxu0 0
        %6771 = vmatpush1.bf16.msra.mxu0 0
        %6772 = vmatprep.mubr.bf16.mxu0 0
        %6773 = vmatmul.mubr.bf16.gmra.mrb[0].mxu0 %v592
        %v6774 = vpop.f32.mrb[0].mxu0
        %v6775 = vadd.f32 %v2024, %v6774
        %v6776 = vpop.f32.mrb[0].mxu0
        %v6777 = vadd.f32 %v2028, %v6776
        %v6778 = vpop.f32.mrb[0].mxu0
        %v6779 = vpop.f32.mrb[0].mxu0
        %6780 = vdwg.mxu0
        %6781 = vmatprep.subr.bf16.mxu0 %v4622
        %6782 = vmatpush1.bf16.msra.mxu0 %v4621
        %6783 = vmatprep.subr.bf16.mxu0 %v4718
        %6784 = vmatpush1.bf16.msra.mxu0 %v4717
        %6785 = vmatprep.subr.bf16.mxu0 %v4814
        %6786 = vmatpush1.bf16.msra.mxu0 %v4813
        %6787 = vmatprep.subr.bf16.mxu0 %v4910
        %6788 = vmatpush1.bf16.msra.mxu0 %v4909
        %6789 = vmatprep.subr.bf16.mxu0 %v5006
        %6790 = vmatpush1.bf16.msra.mxu0 %v5005
        %6791 = vmatprep.subr.bf16.mxu0 %v5102
        %6792 = vmatpush1.bf16.msra.mxu0 %v5101
        %6793 = vmatprep.subr.bf16.mxu0 %v5198
        %6794 = vmatpush1.bf16.msra.mxu0 %v5197
        %6795 = vmatprep.subr.bf16.mxu0 %v5294
        %6796 = vmatpush1.bf16.msra.mxu0 %v5293
        %6797 = vmatprep.subr.bf16.mxu0 0
        %6798 = vmatpush1.bf16.msra.mxu0 0
        %6799 = vmatprep.subr.bf16.mxu0 0
        %6800 = vmatpush1.bf16.msra.mxu0 0
        %6801 = vmatprep.subr.bf16.mxu0 0
        %6802 = vmatpush1.bf16.msra.mxu0 0
        %6803 = vmatprep.subr.bf16.mxu0 0
        %6804 = vmatpush1.bf16.msra.mxu0 0
        %6805 = vmatprep.subr.bf16.mxu0 0
        %6806 = vmatpush1.bf16.msra.mxu0 0
        %6807 = vmatprep.subr.bf16.mxu0 0
        %6808 = vmatpush1.bf16.msra.mxu0 0
        %6809 = vmatprep.subr.bf16.mxu0 0
        %6810 = vmatpush1.bf16.msra.mxu0 0
        %6811 = vmatprep.subr.bf16.mxu0 0
        %6812 = vmatpush1.bf16.msra.mxu0 0
        %6813 = vmatprep.mubr.bf16.mxu0 0
        %6814 = vmatmul.mubr.bf16.gmra.mrb[0].mxu0 %v592
        %v6815 = vpop.f32.mrb[0].mxu0
        %v6816 = vadd.f32 %v2032, %v6815
        %v6817 = vpop.f32.mrb[0].mxu0
        %v6818 = vadd.f32 %v2036, %v6817
        %v6819 = vpop.f32.mrb[0].mxu0
        %v6820 = vpop.f32.mrb[0].mxu0
        %6821 = vdwg.mxu0
        %6822 = vmatprep.subr.bf16.mxu0 %v4624
        %6823 = vmatpush1.bf16.msra.mxu0 %v4623
        %6824 = vmatprep.subr.bf16.mxu0 %v4720
        %6825 = vmatpush1.bf16.msra.mxu0 %v4719
        %6826 = vmatprep.subr.bf16.mxu0 %v4816
        %6827 = vmatpush1.bf16.msra.mxu0 %v4815
        %6828 = vmatprep.subr.bf16.mxu0 %v4912
        %6829 = vmatpush1.bf16.msra.mxu0 %v4911
        %6830 = vmatprep.subr.bf16.mxu0 %v5008
        %6831 = vmatpush1.bf16.msra.mxu0 %v5007
        %6832 = vmatprep.subr.bf16.mxu0 %v5104
        %6833 = vmatpush1.bf16.msra.mxu0 %v5103
        %6834 = vmatprep.subr.bf16.mxu0 %v5200
        %6835 = vmatpush1.bf16.msra.mxu0 %v5199
        %6836 = vmatprep.subr.bf16.mxu0 %v5296
        %6837 = vmatpush1.bf16.msra.mxu0 %v5295
        %6838 = vmatprep.subr.bf16.mxu0 0
        %6839 = vmatpush1.bf16.msra.mxu0 0
        %6840 = vmatprep.subr.bf16.mxu0 0
        %6841 = vmatpush1.bf16.msra.mxu0 0
        %6842 = vmatprep.subr.bf16.mxu0 0
        %6843 = vmatpush1.bf16.msra.mxu0 0
        %6844 = vmatprep.subr.bf16.mxu0 0
        %6845 = vmatpush1.bf16.msra.mxu0 0
        %6846 = vmatprep.subr.bf16.mxu0 0
        %6847 = vmatpush1.bf16.msra.mxu0 0
        %6848 = vmatprep.subr.bf16.mxu0 0
        %6849 = vmatpush1.bf16.msra.mxu0 0
        %6850 = vmatprep.subr.bf16.mxu0 0
        %6851 = vmatpush1.bf16.msra.mxu0 0
        %6852 = vmatprep.subr.bf16.mxu0 0
        %6853 = vmatpush1.bf16.msra.mxu0 0
        %6854 = vmatprep.mubr.bf16.mxu0 0
        %6855 = vmatmul.mubr.bf16.gmra.mrb[0].mxu0 %v592
        %v6856 = vpop.f32.mrb[0].mxu0
        %v6857 = vadd.f32 %v2040, %v6856
        %v6858 = vpop.f32.mrb[0].mxu0
        %v6859 = vadd.f32 %v2044, %v6858
        %v6860 = vpop.f32.mrb[0].mxu0
        %v6861 = vpop.f32.mrb[0].mxu0
        %6862 = vdwg.mxu0
        %6863 = vmatprep.subr.bf16.mxu0 %v4626
        %6864 = vmatpush1.bf16.msra.mxu0 %v4625
        %6865 = vmatprep.subr.bf16.mxu0 %v4722
        %6866 = vmatpush1.bf16.msra.mxu0 %v4721
        %6867 = vmatprep.subr.bf16.mxu0 %v4818
        %6868 = vmatpush1.bf16.msra.mxu0 %v4817
        %6869 = vmatprep.subr.bf16.mxu0 %v4914
        %6870 = vmatpush1.bf16.msra.mxu0 %v4913
        %6871 = vmatprep.subr.bf16.mxu0 %v5010
        %6872 = vmatpush1.bf16.msra.mxu0 %v5009
        %6873 = vmatprep.subr.bf16.mxu0 %v5106
        %6874 = vmatpush1.bf16.msra.mxu0 %v5105
        %6875 = vmatprep.subr.bf16.mxu0 %v5202
        %6876 = vmatpush1.bf16.msra.mxu0 %v5201
        %6877 = vmatprep.subr.bf16.mxu0 %v5298
        %6878 = vmatpush1.bf16.msra.mxu0 %v5297
        %6879 = vmatprep.subr.bf16.mxu0 0
        %6880 = vmatpush1.bf16.msra.mxu0 0
        %6881 = vmatprep.subr.bf16.mxu0 0
        %6882 = vmatpush1.bf16.msra.mxu0 0
        %6883 = vmatprep.subr.bf16.mxu0 0
        %6884 = vmatpush1.bf16.msra.mxu0 0
        %6885 = vmatprep.subr.bf16.mxu0 0
        %6886 = vmatpush1.bf16.msra.mxu0 0
        %6887 = vmatprep.subr.bf16.mxu0 0
        %6888 = vmatpush1.bf16.msra.mxu0 0
        %6889 = vmatprep.subr.bf16.mxu0 0
        %6890 = vmatpush1.bf16.msra.mxu0 0
        %6891 = vmatprep.subr.bf16.mxu0 0
        %6892 = vmatpush1.bf16.msra.mxu0 0
        %6893 = vmatprep.subr.bf16.mxu0 0
        %6894 = vmatpush1.bf16.msra.mxu0 0
        %6895 = vmatprep.mubr.bf16.mxu0 0
        %6896 = vmatmul.mubr.bf16.gmra.mrb[0].mxu0 %v592
        %v6897 = vpop.f32.mrb[0].mxu0
        %v6898 = vadd.f32 %v2048, %v6897
        %v6899 = vpop.f32.mrb[0].mxu0
        %v6900 = vadd.f32 %v2052, %v6899
        %v6901 = vpop.f32.mrb[0].mxu0
        %v6902 = vpop.f32.mrb[0].mxu0
        %6903 = vdwg.mxu0
        %6904 = vmatprep.subr.bf16.mxu0 %v4628
        %6905 = vmatpush1.bf16.msra.mxu0 %v4627
        %6906 = vmatprep.subr.bf16.mxu0 %v4724
        %6907 = vmatpush1.bf16.msra.mxu0 %v4723
        %6908 = vmatprep.subr.bf16.mxu0 %v4820
        %6909 = vmatpush1.bf16.msra.mxu0 %v4819
        %6910 = vmatprep.subr.bf16.mxu0 %v4916
        %6911 = vmatpush1.bf16.msra.mxu0 %v4915
        %6912 = vmatprep.subr.bf16.mxu0 %v5012
        %6913 = vmatpush1.bf16.msra.mxu0 %v5011
        %6914 = vmatprep.subr.bf16.mxu0 %v5108
        %6915 = vmatpush1.bf16.msra.mxu0 %v5107
        %6916 = vmatprep.subr.bf16.mxu0 %v5204
        %6917 = vmatpush1.bf16.msra.mxu0 %v5203
        %6918 = vmatprep.subr.bf16.mxu0 %v5300
        %6919 = vmatpush1.bf16.msra.mxu0 %v5299
        %6920 = vmatprep.subr.bf16.mxu0 0
        %6921 = vmatpush1.bf16.msra.mxu0 0
        %6922 = vmatprep.subr.bf16.mxu0 0
        %6923 = vmatpush1.bf16.msra.mxu0 0
        %6924 = vmatprep.subr.bf16.mxu0 0
        %6925 = vmatpush1.bf16.msra.mxu0 0
        %6926 = vmatprep.subr.bf16.mxu0 0
        %6927 = vmatpush1.bf16.msra.mxu0 0
        %6928 = vmatprep.subr.bf16.mxu0 0
        %6929 = vmatpush1.bf16.msra.mxu0 0
        %6930 = vmatprep.subr.bf16.mxu0 0
        %6931 = vmatpush1.bf16.msra.mxu0 0
        %6932 = vmatprep.subr.bf16.mxu0 0
        %6933 = vmatpush1.bf16.msra.mxu0 0
        %6934 = vmatprep.subr.bf16.mxu0 0
        %6935 = vmatpush1.bf16.msra.mxu0 0
        %6936 = vmatprep.mubr.bf16.mxu0 0
        %6937 = vmatmul.mubr.bf16.gmra.mrb[0].mxu0 %v592
        %v6938 = vpop.f32.mrb[0].mxu0
        %v6939 = vadd.f32 %v2056, %v6938
        %v6940 = vpop.f32.mrb[0].mxu0
        %v6941 = vadd.f32 %v2060, %v6940
        %v6942 = vpop.f32.mrb[0].mxu0
        %v6943 = vpop.f32.mrb[0].mxu0
        %6944 = vdwg.mxu0
        %6945 = vmatprep.subr.bf16.mxu0 %v4630
        %6946 = vmatpush1.bf16.msra.mxu0 %v4629
        %6947 = vmatprep.subr.bf16.mxu0 %v4726
        %6948 = vmatpush1.bf16.msra.mxu0 %v4725
        %6949 = vmatprep.subr.bf16.mxu0 %v4822
        %6950 = vmatpush1.bf16.msra.mxu0 %v4821
        %6951 = vmatprep.subr.bf16.mxu0 %v4918
        %6952 = vmatpush1.bf16.msra.mxu0 %v4917
        %6953 = vmatprep.subr.bf16.mxu0 %v5014
        %6954 = vmatpush1.bf16.msra.mxu0 %v5013
        %6955 = vmatprep.subr.bf16.mxu0 %v5110
        %6956 = vmatpush1.bf16.msra.mxu0 %v5109
        %6957 = vmatprep.subr.bf16.mxu0 %v5206
        %6958 = vmatpush1.bf16.msra.mxu0 %v5205
        %6959 = vmatprep.subr.bf16.mxu0 %v5302
        %6960 = vmatpush1.bf16.msra.mxu0 %v5301
        %6961 = vmatprep.subr.bf16.mxu0 0
        %6962 = vmatpush1.bf16.msra.mxu0 0
        %6963 = vmatprep.subr.bf16.mxu0 0
        %6964 = vmatpush1.bf16.msra.mxu0 0
        %6965 = vmatprep.subr.bf16.mxu0 0
        %6966 = vmatpush1.bf16.msra.mxu0 0
        %6967 = vmatprep.subr.bf16.mxu0 0
        %6968 = vmatpush1.bf16.msra.mxu0 0
        %6969 = vmatprep.subr.bf16.mxu0 0
        %6970 = vmatpush1.bf16.msra.mxu0 0
        %6971 = vmatprep.subr.bf16.mxu0 0
        %6972 = vmatpush1.bf16.msra.mxu0 0
        %6973 = vmatprep.subr.bf16.mxu0 0
        %6974 = vmatpush1.bf16.msra.mxu0 0
        %6975 = vmatprep.subr.bf16.mxu0 0
        %6976 = vmatpush1.bf16.msra.mxu0 0
        %6977 = vmatprep.mubr.bf16.mxu0 0
        %6978 = vmatmul.mubr.bf16.gmra.mrb[0].mxu0 %v592
        %v6979 = vpop.f32.mrb[0].mxu0
        %v6980 = vadd.f32 %v2064, %v6979
        %v6981 = vpop.f32.mrb[0].mxu0
        %v6982 = vadd.f32 %v2068, %v6981
        %v6983 = vpop.f32.mrb[0].mxu0
        %v6984 = vpop.f32.mrb[0].mxu0
        %6985 = vdwg.mxu0
        %6986 = vmatprep.subr.bf16.mxu0 %v4632
        %6987 = vmatpush1.bf16.msra.mxu0 %v4631
        %6988 = vmatprep.subr.bf16.mxu0 %v4728
        %6989 = vmatpush1.bf16.msra.mxu0 %v4727
        %6990 = vmatprep.subr.bf16.mxu0 %v4824
        %6991 = vmatpush1.bf16.msra.mxu0 %v4823
        %6992 = vmatprep.subr.bf16.mxu0 %v4920
        %6993 = vmatpush1.bf16.msra.mxu0 %v4919
        %6994 = vmatprep.subr.bf16.mxu0 %v5016
        %6995 = vmatpush1.bf16.msra.mxu0 %v5015
        %6996 = vmatprep.subr.bf16.mxu0 %v5112
        %6997 = vmatpush1.bf16.msra.mxu0 %v5111
        %6998 = vmatprep.subr.bf16.mxu0 %v5208
        %6999 = vmatpush1.bf16.msra.mxu0 %v5207
        %7000 = vmatprep.subr.bf16.mxu0 %v5304
        %7001 = vmatpush1.bf16.msra.mxu0 %v5303
        %7002 = vmatprep.subr.bf16.mxu0 0
        %7003 = vmatpush1.bf16.msra.mxu0 0
        %7004 = vmatprep.subr.bf16.mxu0 0
        %7005 = vmatpush1.bf16.msra.mxu0 0
        %7006 = vmatprep.subr.bf16.mxu0 0
        %7007 = vmatpush1.bf16.msra.mxu0 0
        %7008 = vmatprep.subr.bf16.mxu0 0
        %7009 = vmatpush1.bf16.msra.mxu0 0
        %7010 = vmatprep.subr.bf16.mxu0 0
        %7011 = vmatpush1.bf16.msra.mxu0 0
        %7012 = vmatprep.subr.bf16.mxu0 0
        %7013 = vmatpush1.bf16.msra.mxu0 0
        %7014 = vmatprep.subr.bf16.mxu0 0
        %7015 = vmatpush1.bf16.msra.mxu0 0
        %7016 = vmatprep.subr.bf16.mxu0 0
        %7017 = vmatpush1.bf16.msra.mxu0 0
        %7018 = vmatprep.mubr.bf16.mxu0 0
        %7019 = vmatmul.mubr.bf16.gmra.mrb[0].mxu0 %v592
        %v7020 = vpop.f32.mrb[0].mxu0
        %v7021 = vadd.f32 %v2072, %v7020
        %v7022 = vpop.f32.mrb[0].mxu0
        %v7023 = vadd.f32 %v2076, %v7022
        %v7024 = vpop.f32.mrb[0].mxu0
        %v7025 = vpop.f32.mrb[0].mxu0
        %7026 = vdwg.mxu0
        %7027 = vmatprep.subr.bf16.mxu0 %v4634
        %7028 = vmatpush1.bf16.msra.mxu0 %v4633
        %7029 = vmatprep.subr.bf16.mxu0 %v4730
        %7030 = vmatpush1.bf16.msra.mxu0 %v4729
        %7031 = vmatprep.subr.bf16.mxu0 %v4826
        %7032 = vmatpush1.bf16.msra.mxu0 %v4825
        %7033 = vmatprep.subr.bf16.mxu0 %v4922
        %7034 = vmatpush1.bf16.msra.mxu0 %v4921
        %7035 = vmatprep.subr.bf16.mxu0 %v5018
        %7036 = vmatpush1.bf16.msra.mxu0 %v5017
        %7037 = vmatprep.subr.bf16.mxu0 %v5114
        %7038 = vmatpush1.bf16.msra.mxu0 %v5113
        %7039 = vmatprep.subr.bf16.mxu0 %v5210
        %7040 = vmatpush1.bf16.msra.mxu0 %v5209
        %7041 = vmatprep.subr.bf16.mxu0 %v5306
        %7042 = vmatpush1.bf16.msra.mxu0 %v5305
        %7043 = vmatprep.subr.bf16.mxu0 0
        %7044 = vmatpush1.bf16.msra.mxu0 0
        %7045 = vmatprep.subr.bf16.mxu0 0
        %7046 = vmatpush1.bf16.msra.mxu0 0
        %7047 = vmatprep.subr.bf16.mxu0 0
        %7048 = vmatpush1.bf16.msra.mxu0 0
        %7049 = vmatprep.subr.bf16.mxu0 0
        %7050 = vmatpush1.bf16.msra.mxu0 0
        %7051 = vmatprep.subr.bf16.mxu0 0
        %7052 = vmatpush1.bf16.msra.mxu0 0
        %7053 = vmatprep.subr.bf16.mxu0 0
        %7054 = vmatpush1.bf16.msra.mxu0 0
        %7055 = vmatprep.subr.bf16.mxu0 0
        %7056 = vmatpush1.bf16.msra.mxu0 0
        %7057 = vmatprep.subr.bf16.mxu0 0
        %7058 = vmatpush1.bf16.msra.mxu0 0
        %7059 = vmatprep.mubr.bf16.mxu0 0
        %7060 = vmatmul.mubr.bf16.gmra.mrb[0].mxu0 %v592
        %v7061 = vpop.f32.mrb[0].mxu0
        %v7062 = vadd.f32 %v2080, %v7061
        %v7063 = vpop.f32.mrb[0].mxu0
        %v7064 = vadd.f32 %v2084, %v7063
        %v7065 = vpop.f32.mrb[0].mxu0
        %v7066 = vpop.f32.mrb[0].mxu0
        %7067 = vdwg.mxu0
        %7068 = vmatprep.subr.bf16.mxu0 %v4636
        %7069 = vmatpush1.bf16.msra.mxu0 %v4635
        %7070 = vmatprep.subr.bf16.mxu0 %v4732
        %7071 = vmatpush1.bf16.msra.mxu0 %v4731
        %7072 = vmatprep.subr.bf16.mxu0 %v4828
        %7073 = vmatpush1.bf16.msra.mxu0 %v4827
        %7074 = vmatprep.subr.bf16.mxu0 %v4924
        %7075 = vmatpush1.bf16.msra.mxu0 %v4923
        %7076 = vmatprep.subr.bf16.mxu0 %v5020
        %7077 = vmatpush1.bf16.msra.mxu0 %v5019
        %7078 = vmatprep.subr.bf16.mxu0 %v5116
        %7079 = vmatpush1.bf16.msra.mxu0 %v5115
        %7080 = vmatprep.subr.bf16.mxu0 %v5212
        %7081 = vmatpush1.bf16.msra.mxu0 %v5211
        %7082 = vmatprep.subr.bf16.mxu0 %v5308
        %7083 = vmatpush1.bf16.msra.mxu0 %v5307
        %7084 = vmatprep.subr.bf16.mxu0 0
        %7085 = vmatpush1.bf16.msra.mxu0 0
        %7086 = vmatprep.subr.bf16.mxu0 0
        %7087 = vmatpush1.bf16.msra.mxu0 0
        %7088 = vmatprep.subr.bf16.mxu0 0
        %7089 = vmatpush1.bf16.msra.mxu0 0
        %7090 = vmatprep.subr.bf16.mxu0 0
        %7091 = vmatpush1.bf16.msra.mxu0 0
        %7092 = vmatprep.subr.bf16.mxu0 0
        %7093 = vmatpush1.bf16.msra.mxu0 0
        %7094 = vmatprep.subr.bf16.mxu0 0
        %7095 = vmatpush1.bf16.msra.mxu0 0
        %7096 = vmatprep.subr.bf16.mxu0 0
        %7097 = vmatpush1.bf16.msra.mxu0 0
        %7098 = vmatprep.subr.bf16.mxu0 0
        %7099 = vmatpush1.bf16.msra.mxu0 0
        %7100 = vmatprep.mubr.bf16.mxu0 0
        %7101 = vmatmul.mubr.bf16.gmra.mrb[0].mxu0 %v592
        %v7102 = vpop.f32.mrb[0].mxu0
        %v7103 = vadd.f32 %v2088, %v7102
        %v7104 = vpop.f32.mrb[0].mxu0
        %v7105 = vadd.f32 %v2092, %v7104
        %v7106 = vpop.f32.mrb[0].mxu0
        %v7107 = vpop.f32.mrb[0].mxu0
        %7108 = vdwg.mxu0
        %7109 = vmatprep.subr.bf16.mxu0 %v4638
        %7110 = vmatpush1.bf16.msra.mxu0 %v4637
        %7111 = vmatprep.subr.bf16.mxu0 %v4734
        %7112 = vmatpush1.bf16.msra.mxu0 %v4733
        %7113 = vmatprep.subr.bf16.mxu0 %v4830
        %7114 = vmatpush1.bf16.msra.mxu0 %v4829
        %7115 = vmatprep.subr.bf16.mxu0 %v4926
        %7116 = vmatpush1.bf16.msra.mxu0 %v4925
        %7117 = vmatprep.subr.bf16.mxu0 %v5022
        %7118 = vmatpush1.bf16.msra.mxu0 %v5021
        %7119 = vmatprep.subr.bf16.mxu0 %v5118
        %7120 = vmatpush1.bf16.msra.mxu0 %v5117
        %7121 = vmatprep.subr.bf16.mxu0 %v5214
        %7122 = vmatpush1.bf16.msra.mxu0 %v5213
        %7123 = vmatprep.subr.bf16.mxu0 %v5310
        %7124 = vmatpush1.bf16.msra.mxu0 %v5309
        %7125 = vmatprep.subr.bf16.mxu0 0
        %7126 = vmatpush1.bf16.msra.mxu0 0
        %7127 = vmatprep.subr.bf16.mxu0 0
        %7128 = vmatpush1.bf16.msra.mxu0 0
        %7129 = vmatprep.subr.bf16.mxu0 0
        %7130 = vmatpush1.bf16.msra.mxu0 0
        %7131 = vmatprep.subr.bf16.mxu0 0
        %7132 = vmatpush1.bf16.msra.mxu0 0
        %7133 = vmatprep.subr.bf16.mxu0 0
        %7134 = vmatpush1.bf16.msra.mxu0 0
        %7135 = vmatprep.subr.bf16.mxu0 0
        %7136 = vmatpush1.bf16.msra.mxu0 0
        %7137 = vmatprep.subr.bf16.mxu0 0
        %7138 = vmatpush1.bf16.msra.mxu0 0
        %7139 = vmatprep.subr.bf16.mxu0 0
        %7140 = vmatpush1.bf16.msra.mxu0 0
        %7141 = vmatprep.mubr.bf16.mxu0 0
        %7142 = vmatmul.mubr.bf16.gmra.mrb[0].mxu0 %v592
        %v7143 = vpop.f32.mrb[0].mxu0
        %v7144 = vadd.f32 %v2096, %v7143
        %v7145 = vpop.f32.mrb[0].mxu0
        %v7146 = vadd.f32 %v2100, %v7145
        %v7147 = vpop.f32.mrb[0].mxu0
        %v7148 = vpop.f32.mrb[0].mxu0
        %7149 = vdwg.mxu0
        %7150 = vmatprep.subr.bf16.mxu0 %v4640
        %7151 = vmatpush1.bf16.msra.mxu0 %v4639
        %7152 = vmatprep.subr.bf16.mxu0 %v4736
        %7153 = vmatpush1.bf16.msra.mxu0 %v4735
        %7154 = vmatprep.subr.bf16.mxu0 %v4832
        %7155 = vmatpush1.bf16.msra.mxu0 %v4831
        %7156 = vmatprep.subr.bf16.mxu0 %v4928
        %7157 = vmatpush1.bf16.msra.mxu0 %v4927
        %7158 = vmatprep.subr.bf16.mxu0 %v5024
        %7159 = vmatpush1.bf16.msra.mxu0 %v5023
        %7160 = vmatprep.subr.bf16.mxu0 %v5120
        %7161 = vmatpush1.bf16.msra.mxu0 %v5119
        %7162 = vmatprep.subr.bf16.mxu0 %v5216
        %7163 = vmatpush1.bf16.msra.mxu0 %v5215
        %7164 = vmatprep.subr.bf16.mxu0 %v5312
        %7165 = vmatpush1.bf16.msra.mxu0 %v5311
        %7166 = vmatprep.subr.bf16.mxu0 0
        %7167 = vmatpush1.bf16.msra.mxu0 0
        %7168 = vmatprep.subr.bf16.mxu0 0
        %7169 = vmatpush1.bf16.msra.mxu0 0
        %7170 = vmatprep.subr.bf16.mxu0 0
        %7171 = vmatpush1.bf16.msra.mxu0 0
        %7172 = vmatprep.subr.bf16.mxu0 0
        %7173 = vmatpush1.bf16.msra.mxu0 0
        %7174 = vmatprep.subr.bf16.mxu0 0
        %7175 = vmatpush1.bf16.msra.mxu0 0
        %7176 = vmatprep.subr.bf16.mxu0 0
        %7177 = vmatpush1.bf16.msra.mxu0 0
        %7178 = vmatprep.subr.bf16.mxu0 0
        %7179 = vmatpush1.bf16.msra.mxu0 0
        %7180 = vmatprep.subr.bf16.mxu0 0
        %7181 = vmatpush1.bf16.msra.mxu0 0
        %7182 = vmatprep.mubr.bf16.mxu0 0
        %7183 = vmatmul.mubr.bf16.gmra.mrb[0].mxu0 %v592
        %v7184 = vpop.f32.mrb[0].mxu0
        %v7185 = vadd.f32 %v2104, %v7184
        %v7186 = vpop.f32.mrb[0].mxu0
        %v7187 = vadd.f32 %v2108, %v7186
        %v7188 = vpop.f32.mrb[0].mxu0
        %v7189 = vpop.f32.mrb[0].mxu0
        %7190 = vdwg.mxu0
        %7191 = vmatprep.subr.bf16.mxu0 %v4642
        %7192 = vmatpush1.bf16.msra.mxu0 %v4641
        %7193 = vmatprep.subr.bf16.mxu0 %v4738
        %7194 = vmatpush1.bf16.msra.mxu0 %v4737
        %7195 = vmatprep.subr.bf16.mxu0 %v4834
        %7196 = vmatpush1.bf16.msra.mxu0 %v4833
        %7197 = vmatprep.subr.bf16.mxu0 %v4930
        %7198 = vmatpush1.bf16.msra.mxu0 %v4929
        %7199 = vmatprep.subr.bf16.mxu0 %v5026
        %7200 = vmatpush1.bf16.msra.mxu0 %v5025
        %7201 = vmatprep.subr.bf16.mxu0 %v5122
        %7202 = vmatpush1.bf16.msra.mxu0 %v5121
        %7203 = vmatprep.subr.bf16.mxu0 %v5218
        %7204 = vmatpush1.bf16.msra.mxu0 %v5217
        %7205 = vmatprep.subr.bf16.mxu0 %v5314
        %7206 = vmatpush1.bf16.msra.mxu0 %v5313
        %7207 = vmatprep.subr.bf16.mxu0 0
        %7208 = vmatpush1.bf16.msra.mxu0 0
        %7209 = vmatprep.subr.bf16.mxu0 0
        %7210 = vmatpush1.bf16.msra.mxu0 0
        %7211 = vmatprep.subr.bf16.mxu0 0
        %7212 = vmatpush1.bf16.msra.mxu0 0
        %7213 = vmatprep.subr.bf16.mxu0 0
        %7214 = vmatpush1.bf16.msra.mxu0 0
        %7215 = vmatprep.subr.bf16.mxu0 0
        %7216 = vmatpush1.bf16.msra.mxu0 0
        %7217 = vmatprep.subr.bf16.mxu0 0
        %7218 = vmatpush1.bf16.msra.mxu0 0
        %7219 = vmatprep.subr.bf16.mxu0 0
        %7220 = vmatpush1.bf16.msra.mxu0 0
        %7221 = vmatprep.subr.bf16.mxu0 0
        %7222 = vmatpush1.bf16.msra.mxu0 0
        %7223 = vmatprep.mubr.bf16.mxu0 0
        %7224 = vmatmul.mubr.bf16.gmra.mrb[0].mxu0 %v592
        %v7225 = vpop.f32.mrb[0].mxu0
        %v7226 = vadd.f32 %v2112, %v7225
        %v7227 = vpop.f32.mrb[0].mxu0
        %v7228 = vadd.f32 %v2116, %v7227
        %v7229 = vpop.f32.mrb[0].mxu0
        %v7230 = vpop.f32.mrb[0].mxu0
        %7231 = vdwg.mxu0
        %7232 = vmatprep.subr.bf16.mxu0 %v4644
        %7233 = vmatpush1.bf16.msra.mxu0 %v4643
        %7234 = vmatprep.subr.bf16.mxu0 %v4740
        %7235 = vmatpush1.bf16.msra.mxu0 %v4739
        %7236 = vmatprep.subr.bf16.mxu0 %v4836
        %7237 = vmatpush1.bf16.msra.mxu0 %v4835
        %7238 = vmatprep.subr.bf16.mxu0 %v4932
        %7239 = vmatpush1.bf16.msra.mxu0 %v4931
        %7240 = vmatprep.subr.bf16.mxu0 %v5028
        %7241 = vmatpush1.bf16.msra.mxu0 %v5027
        %7242 = vmatprep.subr.bf16.mxu0 %v5124
        %7243 = vmatpush1.bf16.msra.mxu0 %v5123
        %7244 = vmatprep.subr.bf16.mxu0 %v5220
        %7245 = vmatpush1.bf16.msra.mxu0 %v5219
        %7246 = vmatprep.subr.bf16.mxu0 %v5316
        %7247 = vmatpush1.bf16.msra.mxu0 %v5315
        %7248 = vmatprep.subr.bf16.mxu0 0
        %7249 = vmatpush1.bf16.msra.mxu0 0
        %7250 = vmatprep.subr.bf16.mxu0 0
        %7251 = vmatpush1.bf16.msra.mxu0 0
        %7252 = vmatprep.subr.bf16.mxu0 0
        %7253 = vmatpush1.bf16.msra.mxu0 0
        %7254 = vmatprep.subr.bf16.mxu0 0
        %7255 = vmatpush1.bf16.msra.mxu0 0
        %7256 = vmatprep.subr.bf16.mxu0 0
        %7257 = vmatpush1.bf16.msra.mxu0 0
        %7258 = vmatprep.subr.bf16.mxu0 0
        %7259 = vmatpush1.bf16.msra.mxu0 0
        %7260 = vmatprep.subr.bf16.mxu0 0
        %7261 = vmatpush1.bf16.msra.mxu0 0
        %7262 = vmatprep.subr.bf16.mxu0 0
        %7263 = vmatpush1.bf16.msra.mxu0 0
        %7264 = vmatprep.mubr.bf16.mxu0 0
        %7265 = vmatmul.mubr.bf16.gmra.mrb[0].mxu0 %v592
        %v7266 = vpop.f32.mrb[0].mxu0
        %v7267 = vadd.f32 %v2120, %v7266
        %v7268 = vpop.f32.mrb[0].mxu0
        %v7269 = vadd.f32 %v2124, %v7268
        %v7270 = vpop.f32.mrb[0].mxu0
        %v7271 = vpop.f32.mrb[0].mxu0
        %7272 = vdwg.mxu0
        %7273 = vmatprep.subr.bf16.mxu0 %v4646
        %7274 = vmatpush1.bf16.msra.mxu0 %v4645
        %7275 = vmatprep.subr.bf16.mxu0 %v4742
        %7276 = vmatpush1.bf16.msra.mxu0 %v4741
        %7277 = vmatprep.subr.bf16.mxu0 %v4838
        %7278 = vmatpush1.bf16.msra.mxu0 %v4837
        %7279 = vmatprep.subr.bf16.mxu0 %v4934
        %7280 = vmatpush1.bf16.msra.mxu0 %v4933
        %7281 = vmatprep.subr.bf16.mxu0 %v5030
        %7282 = vmatpush1.bf16.msra.mxu0 %v5029
        %7283 = vmatprep.subr.bf16.mxu0 %v5126
        %7284 = vmatpush1.bf16.msra.mxu0 %v5125
        %7285 = vmatprep.subr.bf16.mxu0 %v5222
        %7286 = vmatpush1.bf16.msra.mxu0 %v5221
        %7287 = vmatprep.subr.bf16.mxu0 %v5318
        %7288 = vmatpush1.bf16.msra.mxu0 %v5317
        %7289 = vmatprep.subr.bf16.mxu0 0
        %7290 = vmatpush1.bf16.msra.mxu0 0
        %7291 = vmatprep.subr.bf16.mxu0 0
        %7292 = vmatpush1.bf16.msra.mxu0 0
        %7293 = vmatprep.subr.bf16.mxu0 0
        %7294 = vmatpush1.bf16.msra.mxu0 0
        %7295 = vmatprep.subr.bf16.mxu0 0
        %7296 = vmatpush1.bf16.msra.mxu0 0
        %7297 = vmatprep.subr.bf16.mxu0 0
        %7298 = vmatpush1.bf16.msra.mxu0 0
        %7299 = vmatprep.subr.bf16.mxu0 0
        %7300 = vmatpush1.bf16.msra.mxu0 0
        %7301 = vmatprep.subr.bf16.mxu0 0
        %7302 = vmatpush1.bf16.msra.mxu0 0
        %7303 = vmatprep.subr.bf16.mxu0 0
        %7304 = vmatpush1.bf16.msra.mxu0 0
        %7305 = vmatprep.mubr.bf16.mxu0 0
        %7306 = vmatmul.mubr.bf16.gmra.mrb[0].mxu0 %v592
        %v7307 = vpop.f32.mrb[0].mxu0
        %v7308 = vadd.f32 %v2128, %v7307
        %v7309 = vpop.f32.mrb[0].mxu0
        %v7310 = vadd.f32 %v2132, %v7309
        %v7311 = vpop.f32.mrb[0].mxu0
        %v7312 = vpop.f32.mrb[0].mxu0
        %7313 = vdwg.mxu0
        %7314 = vmatprep.subr.bf16.mxu0 %v4648
        %7315 = vmatpush1.bf16.msra.mxu0 %v4647
        %7316 = vmatprep.subr.bf16.mxu0 %v4744
        %7317 = vmatpush1.bf16.msra.mxu0 %v4743
        %7318 = vmatprep.subr.bf16.mxu0 %v4840
        %7319 = vmatpush1.bf16.msra.mxu0 %v4839
        %7320 = vmatprep.subr.bf16.mxu0 %v4936
        %7321 = vmatpush1.bf16.msra.mxu0 %v4935
        %7322 = vmatprep.subr.bf16.mxu0 %v5032
        %7323 = vmatpush1.bf16.msra.mxu0 %v5031
        %7324 = vmatprep.subr.bf16.mxu0 %v5128
        %7325 = vmatpush1.bf16.msra.mxu0 %v5127
        %7326 = vmatprep.subr.bf16.mxu0 %v5224
        %7327 = vmatpush1.bf16.msra.mxu0 %v5223
        %7328 = vmatprep.subr.bf16.mxu0 %v5320
        %7329 = vmatpush1.bf16.msra.mxu0 %v5319
        %7330 = vmatprep.subr.bf16.mxu0 0
        %7331 = vmatpush1.bf16.msra.mxu0 0
        %7332 = vmatprep.subr.bf16.mxu0 0
        %7333 = vmatpush1.bf16.msra.mxu0 0
        %7334 = vmatprep.subr.bf16.mxu0 0
        %7335 = vmatpush1.bf16.msra.mxu0 0
        %7336 = vmatprep.subr.bf16.mxu0 0
        %7337 = vmatpush1.bf16.msra.mxu0 0
        %7338 = vmatprep.subr.bf16.mxu0 0
        %7339 = vmatpush1.bf16.msra.mxu0 0
        %7340 = vmatprep.subr.bf16.mxu0 0
        %7341 = vmatpush1.bf16.msra.mxu0 0
        %7342 = vmatprep.subr.bf16.mxu0 0
        %7343 = vmatpush1.bf16.msra.mxu0 0
        %7344 = vmatprep.subr.bf16.mxu0 0
        %7345 = vmatpush1.bf16.msra.mxu0 0
        %7346 = vmatprep.mubr.bf16.mxu0 0
        %7347 = vmatmul.mubr.bf16.gmra.mrb[0].mxu0 %v592
        %v7348 = vpop.f32.mrb[0].mxu0
        %v7349 = vadd.f32 %v2136, %v7348
        %v7350 = vpop.f32.mrb[0].mxu0
        %v7351 = vadd.f32 %v2140, %v7350
        %v7352 = vpop.f32.mrb[0].mxu0
        %v7353 = vpop.f32.mrb[0].mxu0
        %7354 = vdwg.mxu0
        %7355 = vmatprep.subr.bf16.mxu0 %v4650
        %7356 = vmatpush1.bf16.msra.mxu0 %v4649
        %7357 = vmatprep.subr.bf16.mxu0 %v4746
        %7358 = vmatpush1.bf16.msra.mxu0 %v4745
        %7359 = vmatprep.subr.bf16.mxu0 %v4842
        %7360 = vmatpush1.bf16.msra.mxu0 %v4841
        %7361 = vmatprep.subr.bf16.mxu0 %v4938
        %7362 = vmatpush1.bf16.msra.mxu0 %v4937
        %7363 = vmatprep.subr.bf16.mxu0 %v5034
        %7364 = vmatpush1.bf16.msra.mxu0 %v5033
        %7365 = vmatprep.subr.bf16.mxu0 %v5130
        %7366 = vmatpush1.bf16.msra.mxu0 %v5129
        %7367 = vmatprep.subr.bf16.mxu0 %v5226
        %7368 = vmatpush1.bf16.msra.mxu0 %v5225
        %7369 = vmatprep.subr.bf16.mxu0 %v5322
        %7370 = vmatpush1.bf16.msra.mxu0 %v5321
        %7371 = vmatprep.subr.bf16.mxu0 0
        %7372 = vmatpush1.bf16.msra.mxu0 0
        %7373 = vmatprep.subr.bf16.mxu0 0
        %7374 = vmatpush1.bf16.msra.mxu0 0
        %7375 = vmatprep.subr.bf16.mxu0 0
        %7376 = vmatpush1.bf16.msra.mxu0 0
        %7377 = vmatprep.subr.bf16.mxu0 0
        %7378 = vmatpush1.bf16.msra.mxu0 0
        %7379 = vmatprep.subr.bf16.mxu0 0
        %7380 = vmatpush1.bf16.msra.mxu0 0
        %7381 = vmatprep.subr.bf16.mxu0 0
        %7382 = vmatpush1.bf16.msra.mxu0 0
        %7383 = vmatprep.subr.bf16.mxu0 0
        %7384 = vmatpush1.bf16.msra.mxu0 0
        %7385 = vmatprep.subr.bf16.mxu0 0
        %7386 = vmatpush1.bf16.msra.mxu0 0
        %7387 = vmatprep.mubr.bf16.mxu0 0
        %7388 = vmatmul.mubr.bf16.gmra.mrb[0].mxu0 %v592
        %v7389 = vpop.f32.mrb[0].mxu0
        %v7390 = vadd.f32 %v2144, %v7389
        %v7391 = vpop.f32.mrb[0].mxu0
        %v7392 = vadd.f32 %v2148, %v7391
        %v7393 = vpop.f32.mrb[0].mxu0
        %v7394 = vpop.f32.mrb[0].mxu0
        %7395 = vdwg.mxu0
        %7396 = vmatprep.subr.bf16.mxu0 %v4652
        %7397 = vmatpush1.bf16.msra.mxu0 %v4651
        %7398 = vmatprep.subr.bf16.mxu0 %v4748
        %7399 = vmatpush1.bf16.msra.mxu0 %v4747
        %7400 = vmatprep.subr.bf16.mxu0 %v4844
        %7401 = vmatpush1.bf16.msra.mxu0 %v4843
        %7402 = vmatprep.subr.bf16.mxu0 %v4940
        %7403 = vmatpush1.bf16.msra.mxu0 %v4939
        %7404 = vmatprep.subr.bf16.mxu0 %v5036
        %7405 = vmatpush1.bf16.msra.mxu0 %v5035
        %7406 = vmatprep.subr.bf16.mxu0 %v5132
        %7407 = vmatpush1.bf16.msra.mxu0 %v5131
        %7408 = vmatprep.subr.bf16.mxu0 %v5228
        %7409 = vmatpush1.bf16.msra.mxu0 %v5227
        %7410 = vmatprep.subr.bf16.mxu0 %v5324
        %7411 = vmatpush1.bf16.msra.mxu0 %v5323
        %7412 = vmatprep.subr.bf16.mxu0 0
        %7413 = vmatpush1.bf16.msra.mxu0 0
        %7414 = vmatprep.subr.bf16.mxu0 0
        %7415 = vmatpush1.bf16.msra.mxu0 0
        %7416 = vmatprep.subr.bf16.mxu0 0
        %7417 = vmatpush1.bf16.msra.mxu0 0
        %7418 = vmatprep.subr.bf16.mxu0 0
        %7419 = vmatpush1.bf16.msra.mxu0 0
        %7420 = vmatprep.subr.bf16.mxu0 0
        %7421 = vmatpush1.bf16.msra.mxu0 0
        %7422 = vmatprep.subr.bf16.mxu0 0
        %7423 = vmatpush1.bf16.msra.mxu0 0
        %7424 = vmatprep.subr.bf16.mxu0 0
        %7425 = vmatpush1.bf16.msra.mxu0 0
        %7426 = vmatprep.subr.bf16.mxu0 0
        %7427 = vmatpush1.bf16.msra.mxu0 0
        %7428 = vmatprep.mubr.bf16.mxu0 0
        %7429 = vmatmul.mubr.bf16.gmra.mrb[0].mxu0 %v592
        %v7430 = vpop.f32.mrb[0].mxu0
        %v7431 = vadd.f32 %v2152, %v7430
        %v7432 = vpop.f32.mrb[0].mxu0
        %v7433 = vadd.f32 %v2156, %v7432
        %v7434 = vpop.f32.mrb[0].mxu0
        %v7435 = vpop.f32.mrb[0].mxu0
        %7436 = vdwg.mxu0
        %7437 = vmatprep.subr.bf16.mxu0 %v4654
        %7438 = vmatpush1.bf16.msra.mxu0 %v4653
        %7439 = vmatprep.subr.bf16.mxu0 %v4750
        %7440 = vmatpush1.bf16.msra.mxu0 %v4749
        %7441 = vmatprep.subr.bf16.mxu0 %v4846
        %7442 = vmatpush1.bf16.msra.mxu0 %v4845
        %7443 = vmatprep.subr.bf16.mxu0 %v4942
        %7444 = vmatpush1.bf16.msra.mxu0 %v4941
        %7445 = vmatprep.subr.bf16.mxu0 %v5038
        %7446 = vmatpush1.bf16.msra.mxu0 %v5037
        %7447 = vmatprep.subr.bf16.mxu0 %v5134
        %7448 = vmatpush1.bf16.msra.mxu0 %v5133
        %7449 = vmatprep.subr.bf16.mxu0 %v5230
        %7450 = vmatpush1.bf16.msra.mxu0 %v5229
        %7451 = vmatprep.subr.bf16.mxu0 %v5326
        %7452 = vmatpush1.bf16.msra.mxu0 %v5325
        %7453 = vmatprep.subr.bf16.mxu0 0
        %7454 = vmatpush1.bf16.msra.mxu0 0
        %7455 = vmatprep.subr.bf16.mxu0 0
        %7456 = vmatpush1.bf16.msra.mxu0 0
        %7457 = vmatprep.subr.bf16.mxu0 0
        %7458 = vmatpush1.bf16.msra.mxu0 0
        %7459 = vmatprep.subr.bf16.mxu0 0
        %7460 = vmatpush1.bf16.msra.mxu0 0
        %7461 = vmatprep.subr.bf16.mxu0 0
        %7462 = vmatpush1.bf16.msra.mxu0 0
        %7463 = vmatprep.subr.bf16.mxu0 0
        %7464 = vmatpush1.bf16.msra.mxu0 0
        %7465 = vmatprep.subr.bf16.mxu0 0
        %7466 = vmatpush1.bf16.msra.mxu0 0
        %7467 = vmatprep.subr.bf16.mxu0 0
        %7468 = vmatpush1.bf16.msra.mxu0 0
        %7469 = vmatprep.mubr.bf16.mxu0 0
        %7470 = vmatmul.mubr.bf16.gmra.mrb[0].mxu0 %v592
        %v7471 = vpop.f32.mrb[0].mxu0
        %v7472 = vadd.f32 %v2160, %v7471
        %v7473 = vpop.f32.mrb[0].mxu0
        %v7474 = vadd.f32 %v2164, %v7473
        %v7475 = vpop.f32.mrb[0].mxu0
        %v7476 = vpop.f32.mrb[0].mxu0
        %7477 = vdwg.mxu0
        %7478 = vmatprep.subr.bf16.mxu0 %v4656
        %7479 = vmatpush1.bf16.msra.mxu0 %v4655
        %7480 = vmatprep.subr.bf16.mxu0 %v4752
        %7481 = vmatpush1.bf16.msra.mxu0 %v4751
        %7482 = vmatprep.subr.bf16.mxu0 %v4848
        %7483 = vmatpush1.bf16.msra.mxu0 %v4847
        %7484 = vmatprep.subr.bf16.mxu0 %v4944
        %7485 = vmatpush1.bf16.msra.mxu0 %v4943
        %7486 = vmatprep.subr.bf16.mxu0 %v5040
        %7487 = vmatpush1.bf16.msra.mxu0 %v5039
        %7488 = vmatprep.subr.bf16.mxu0 %v5136
        %7489 = vmatpush1.bf16.msra.mxu0 %v5135
        %7490 = vmatprep.subr.bf16.mxu0 %v5232
        %7491 = vmatpush1.bf16.msra.mxu0 %v5231
        %7492 = vmatprep.subr.bf16.mxu0 %v5328
        %7493 = vmatpush1.bf16.msra.mxu0 %v5327
        %7494 = vmatprep.subr.bf16.mxu0 0
        %7495 = vmatpush1.bf16.msra.mxu0 0
        %7496 = vmatprep.subr.bf16.mxu0 0
        %7497 = vmatpush1.bf16.msra.mxu0 0
        %7498 = vmatprep.subr.bf16.mxu0 0
        %7499 = vmatpush1.bf16.msra.mxu0 0
        %7500 = vmatprep.subr.bf16.mxu0 0
        %7501 = vmatpush1.bf16.msra.mxu0 0
        %7502 = vmatprep.subr.bf16.mxu0 0
        %7503 = vmatpush1.bf16.msra.mxu0 0
        %7504 = vmatprep.subr.bf16.mxu0 0
        %7505 = vmatpush1.bf16.msra.mxu0 0
        %7506 = vmatprep.subr.bf16.mxu0 0
        %7507 = vmatpush1.bf16.msra.mxu0 0
        %7508 = vmatprep.subr.bf16.mxu0 0
        %7509 = vmatpush1.bf16.msra.mxu0 0
        %7510 = vmatprep.mubr.bf16.mxu0 0
        %7511 = vmatmul.mubr.bf16.gmra.mrb[0].mxu0 %v592
        %v7512 = vpop.f32.mrb[0].mxu0
        %v7513 = vadd.f32 %v2168, %v7512
        %v7514 = vpop.f32.mrb[0].mxu0
        %v7515 = vadd.f32 %v2172, %v7514
        %v7516 = vpop.f32.mrb[0].mxu0
        %v7517 = vpop.f32.mrb[0].mxu0
        %7518 = vdwg.mxu0
        %7519 = vmatprep.subr.bf16.mxu0 %v4658
        %7520 = vmatpush1.bf16.msra.mxu0 %v4657
        %7521 = vmatprep.subr.bf16.mxu0 %v4754
        %7522 = vmatpush1.bf16.msra.mxu0 %v4753
        %7523 = vmatprep.subr.bf16.mxu0 %v4850
        %7524 = vmatpush1.bf16.msra.mxu0 %v4849
        %7525 = vmatprep.subr.bf16.mxu0 %v4946
        %7526 = vmatpush1.bf16.msra.mxu0 %v4945
        %7527 = vmatprep.subr.bf16.mxu0 %v5042
        %7528 = vmatpush1.bf16.msra.mxu0 %v5041
        %7529 = vmatprep.subr.bf16.mxu0 %v5138
        %7530 = vmatpush1.bf16.msra.mxu0 %v5137
        %7531 = vmatprep.subr.bf16.mxu0 %v5234
        %7532 = vmatpush1.bf16.msra.mxu0 %v5233
        %7533 = vmatprep.subr.bf16.mxu0 %v5330
        %7534 = vmatpush1.bf16.msra.mxu0 %v5329
        %7535 = vmatprep.subr.bf16.mxu0 0
        %7536 = vmatpush1.bf16.msra.mxu0 0
        %7537 = vmatprep.subr.bf16.mxu0 0
        %7538 = vmatpush1.bf16.msra.mxu0 0
        %7539 = vmatprep.subr.bf16.mxu0 0
        %7540 = vmatpush1.bf16.msra.mxu0 0
        %7541 = vmatprep.subr.bf16.mxu0 0
        %7542 = vmatpush1.bf16.msra.mxu0 0
        %7543 = vmatprep.subr.bf16.mxu0 0
        %7544 = vmatpush1.bf16.msra.mxu0 0
        %7545 = vmatprep.subr.bf16.mxu0 0
        %7546 = vmatpush1.bf16.msra.mxu0 0
        %7547 = vmatprep.subr.bf16.mxu0 0
        %7548 = vmatpush1.bf16.msra.mxu0 0
        %7549 = vmatprep.subr.bf16.mxu0 0
        %7550 = vmatpush1.bf16.msra.mxu0 0
        %7551 = vmatprep.mubr.bf16.mxu0 0
        %7552 = vmatmul.mubr.bf16.gmra.mrb[0].mxu0 %v592
        %v7553 = vpop.f32.mrb[0].mxu0
        %v7554 = vadd.f32 %v2176, %v7553
        %v7555 = vpop.f32.mrb[0].mxu0
        %v7556 = vadd.f32 %v2180, %v7555
        %v7557 = vpop.f32.mrb[0].mxu0
        %v7558 = vpop.f32.mrb[0].mxu0
        %7559 = vdwg.mxu0
        %7560 = vmatprep.subr.bf16.mxu0 %v4660
        %7561 = vmatpush1.bf16.msra.mxu0 %v4659
        %7562 = vmatprep.subr.bf16.mxu0 %v4756
        %7563 = vmatpush1.bf16.msra.mxu0 %v4755
        %7564 = vmatprep.subr.bf16.mxu0 %v4852
        %7565 = vmatpush1.bf16.msra.mxu0 %v4851
        %7566 = vmatprep.subr.bf16.mxu0 %v4948
        %7567 = vmatpush1.bf16.msra.mxu0 %v4947
        %7568 = vmatprep.subr.bf16.mxu0 %v5044
        %7569 = vmatpush1.bf16.msra.mxu0 %v5043
        %7570 = vmatprep.subr.bf16.mxu0 %v5140
        %7571 = vmatpush1.bf16.msra.mxu0 %v5139
        %7572 = vmatprep.subr.bf16.mxu0 %v5236
        %7573 = vmatpush1.bf16.msra.mxu0 %v5235
        %7574 = vmatprep.subr.bf16.mxu0 %v5332
        %7575 = vmatpush1.bf16.msra.mxu0 %v5331
        %7576 = vmatprep.subr.bf16.mxu0 0
        %7577 = vmatpush1.bf16.msra.mxu0 0
        %7578 = vmatprep.subr.bf16.mxu0 0
        %7579 = vmatpush1.bf16.msra.mxu0 0
        %7580 = vmatprep.subr.bf16.mxu0 0
        %7581 = vmatpush1.bf16.msra.mxu0 0
        %7582 = vmatprep.subr.bf16.mxu0 0
        %7583 = vmatpush1.bf16.msra.mxu0 0
        %7584 = vmatprep.subr.bf16.mxu0 0
        %7585 = vmatpush1.bf16.msra.mxu0 0
        %7586 = vmatprep.subr.bf16.mxu0 0
        %7587 = vmatpush1.bf16.msra.mxu0 0
        %7588 = vmatprep.subr.bf16.mxu0 0
        %7589 = vmatpush1.bf16.msra.mxu0 0
        %7590 = vmatprep.subr.bf16.mxu0 0
        %7591 = vmatpush1.bf16.msra.mxu0 0
        %7592 = vmatprep.mubr.bf16.mxu0 0
        %7593 = vmatmul.mubr.bf16.gmra.mrb[0].mxu0 %v592
        %v7594 = vpop.f32.mrb[0].mxu0
        %v7595 = vadd.f32 %v2184, %v7594
        %v7596 = vpop.f32.mrb[0].mxu0
        %v7597 = vadd.f32 %v2188, %v7596
        %v7598 = vpop.f32.mrb[0].mxu0
        %v7599 = vpop.f32.mrb[0].mxu0
        %7600 = vdwg.mxu0
        %7601 = vmatprep.subr.bf16.mxu0 %v4662
        %7602 = vmatpush1.bf16.msra.mxu0 %v4661
        %7603 = vmatprep.subr.bf16.mxu0 %v4758
        %7604 = vmatpush1.bf16.msra.mxu0 %v4757
        %7605 = vmatprep.subr.bf16.mxu0 %v4854
        %7606 = vmatpush1.bf16.msra.mxu0 %v4853
        %7607 = vmatprep.subr.bf16.mxu0 %v4950
        %7608 = vmatpush1.bf16.msra.mxu0 %v4949
        %7609 = vmatprep.subr.bf16.mxu0 %v5046
        %7610 = vmatpush1.bf16.msra.mxu0 %v5045
        %7611 = vmatprep.subr.bf16.mxu0 %v5142
        %7612 = vmatpush1.bf16.msra.mxu0 %v5141
        %7613 = vmatprep.subr.bf16.mxu0 %v5238
        %7614 = vmatpush1.bf16.msra.mxu0 %v5237
        %7615 = vmatprep.subr.bf16.mxu0 %v5334
        %7616 = vmatpush1.bf16.msra.mxu0 %v5333
        %7617 = vmatprep.subr.bf16.mxu0 0
        %7618 = vmatpush1.bf16.msra.mxu0 0
        %7619 = vmatprep.subr.bf16.mxu0 0
        %7620 = vmatpush1.bf16.msra.mxu0 0
        %7621 = vmatprep.subr.bf16.mxu0 0
        %7622 = vmatpush1.bf16.msra.mxu0 0
        %7623 = vmatprep.subr.bf16.mxu0 0
        %7624 = vmatpush1.bf16.msra.mxu0 0
        %7625 = vmatprep.subr.bf16.mxu0 0
        %7626 = vmatpush1.bf16.msra.mxu0 0
        %7627 = vmatprep.subr.bf16.mxu0 0
        %7628 = vmatpush1.bf16.msra.mxu0 0
        %7629 = vmatprep.subr.bf16.mxu0 0
        %7630 = vmatpush1.bf16.msra.mxu0 0
        %7631 = vmatprep.subr.bf16.mxu0 0
        %7632 = vmatpush1.bf16.msra.mxu0 0
        %7633 = vmatprep.mubr.bf16.mxu0 0
        %7634 = vmatmul.mubr.bf16.gmra.mrb[0].mxu0 %v592
        %v7635 = vpop.f32.mrb[0].mxu0
        %v7636 = vadd.f32 %v2192, %v7635
        %v7637 = vpop.f32.mrb[0].mxu0
        %v7638 = vadd.f32 %v2196, %v7637
        %v7639 = vpop.f32.mrb[0].mxu0
        %v7640 = vpop.f32.mrb[0].mxu0
        %7641 = vdwg.mxu0
        %7642 = vmatprep.subr.bf16.mxu0 %v4664
        %7643 = vmatpush1.bf16.msra.mxu0 %v4663
        %7644 = vmatprep.subr.bf16.mxu0 %v4760
        %7645 = vmatpush1.bf16.msra.mxu0 %v4759
        %7646 = vmatprep.subr.bf16.mxu0 %v4856
        %7647 = vmatpush1.bf16.msra.mxu0 %v4855
        %7648 = vmatprep.subr.bf16.mxu0 %v4952
        %7649 = vmatpush1.bf16.msra.mxu0 %v4951
        %7650 = vmatprep.subr.bf16.mxu0 %v5048
        %7651 = vmatpush1.bf16.msra.mxu0 %v5047
        %7652 = vmatprep.subr.bf16.mxu0 %v5144
        %7653 = vmatpush1.bf16.msra.mxu0 %v5143
        %7654 = vmatprep.subr.bf16.mxu0 %v5240
        %7655 = vmatpush1.bf16.msra.mxu0 %v5239
        %7656 = vmatprep.subr.bf16.mxu0 %v5336
        %7657 = vmatpush1.bf16.msra.mxu0 %v5335
        %7658 = vmatprep.subr.bf16.mxu0 0
        %7659 = vmatpush1.bf16.msra.mxu0 0
        %7660 = vmatprep.subr.bf16.mxu0 0
        %7661 = vmatpush1.bf16.msra.mxu0 0
        %7662 = vmatprep.subr.bf16.mxu0 0
        %7663 = vmatpush1.bf16.msra.mxu0 0
        %7664 = vmatprep.subr.bf16.mxu0 0
        %7665 = vmatpush1.bf16.msra.mxu0 0
        %7666 = vmatprep.subr.bf16.mxu0 0
        %7667 = vmatpush1.bf16.msra.mxu0 0
        %7668 = vmatprep.subr.bf16.mxu0 0
        %7669 = vmatpush1.bf16.msra.mxu0 0
        %7670 = vmatprep.subr.bf16.mxu0 0
        %7671 = vmatpush1.bf16.msra.mxu0 0
        %7672 = vmatprep.subr.bf16.mxu0 0
        %7673 = vmatpush1.bf16.msra.mxu0 0
        %7674 = vmatprep.mubr.bf16.mxu0 0
        %7675 = vmatmul.mubr.bf16.gmra.mrb[0].mxu0 %v592
        %v7676 = vpop.f32.mrb[0].mxu0
        %v7677 = vadd.f32 %v2200, %v7676
        %v7678 = vpop.f32.mrb[0].mxu0
        %v7679 = vadd.f32 %v2204, %v7678
        %v7680 = vpop.f32.mrb[0].mxu0
        %v7681 = vpop.f32.mrb[0].mxu0
        %7682 = vdwg.mxu0
        %7683 = vmatprep.subr.bf16.mxu0 %v4666
        %7684 = vmatpush1.bf16.msra.mxu0 %v4665
        %7685 = vmatprep.subr.bf16.mxu0 %v4762
        %7686 = vmatpush1.bf16.msra.mxu0 %v4761
        %7687 = vmatprep.subr.bf16.mxu0 %v4858
        %7688 = vmatpush1.bf16.msra.mxu0 %v4857
        %7689 = vmatprep.subr.bf16.mxu0 %v4954
        %7690 = vmatpush1.bf16.msra.mxu0 %v4953
        %7691 = vmatprep.subr.bf16.mxu0 %v5050
        %7692 = vmatpush1.bf16.msra.mxu0 %v5049
        %7693 = vmatprep.subr.bf16.mxu0 %v5146
        %7694 = vmatpush1.bf16.msra.mxu0 %v5145
        %7695 = vmatprep.subr.bf16.mxu0 %v5242
        %7696 = vmatpush1.bf16.msra.mxu0 %v5241
        %7697 = vmatprep.subr.bf16.mxu0 %v5338
        %7698 = vmatpush1.bf16.msra.mxu0 %v5337
        %7699 = vmatprep.subr.bf16.mxu0 0
        %7700 = vmatpush1.bf16.msra.mxu0 0
        %7701 = vmatprep.subr.bf16.mxu0 0
        %7702 = vmatpush1.bf16.msra.mxu0 0
        %7703 = vmatprep.subr.bf16.mxu0 0
        %7704 = vmatpush1.bf16.msra.mxu0 0
        %7705 = vmatprep.subr.bf16.mxu0 0
        %7706 = vmatpush1.bf16.msra.mxu0 0
        %7707 = vmatprep.subr.bf16.mxu0 0
        %7708 = vmatpush1.bf16.msra.mxu0 0
        %7709 = vmatprep.subr.bf16.mxu0 0
        %7710 = vmatpush1.bf16.msra.mxu0 0
        %7711 = vmatprep.subr.bf16.mxu0 0
        %7712 = vmatpush1.bf16.msra.mxu0 0
        %7713 = vmatprep.subr.bf16.mxu0 0
        %7714 = vmatpush1.bf16.msra.mxu0 0
        %7715 = vmatprep.mubr.bf16.mxu0 0
        %7716 = vmatmul.mubr.bf16.gmra.mrb[0].mxu0 %v592
        %v7717 = vpop.f32.mrb[0].mxu0
        %v7718 = vadd.f32 %v2208, %v7717
        %v7719 = vpop.f32.mrb[0].mxu0
        %v7720 = vadd.f32 %v2212, %v7719
        %v7721 = vpop.f32.mrb[0].mxu0
        %v7722 = vpop.f32.mrb[0].mxu0
        %7723 = vdwg.mxu0
        %7724 = vmatprep.subr.bf16.mxu0 %v4668
        %7725 = vmatpush1.bf16.msra.mxu0 %v4667
        %7726 = vmatprep.subr.bf16.mxu0 %v4764
        %7727 = vmatpush1.bf16.msra.mxu0 %v4763
        %7728 = vmatprep.subr.bf16.mxu0 %v4860
        %7729 = vmatpush1.bf16.msra.mxu0 %v4859
        %7730 = vmatprep.subr.bf16.mxu0 %v4956
        %7731 = vmatpush1.bf16.msra.mxu0 %v4955
        %7732 = vmatprep.subr.bf16.mxu0 %v5052
        %7733 = vmatpush1.bf16.msra.mxu0 %v5051
        %7734 = vmatprep.subr.bf16.mxu0 %v5148
        %7735 = vmatpush1.bf16.msra.mxu0 %v5147
        %7736 = vmatprep.subr.bf16.mxu0 %v5244
        %7737 = vmatpush1.bf16.msra.mxu0 %v5243
        %7738 = vmatprep.subr.bf16.mxu0 %v5340
        %7739 = vmatpush1.bf16.msra.mxu0 %v5339
        %7740 = vmatprep.subr.bf16.mxu0 0
        %7741 = vmatpush1.bf16.msra.mxu0 0
        %7742 = vmatprep.subr.bf16.mxu0 0
        %7743 = vmatpush1.bf16.msra.mxu0 0
        %7744 = vmatprep.subr.bf16.mxu0 0
        %7745 = vmatpush1.bf16.msra.mxu0 0
        %7746 = vmatprep.subr.bf16.mxu0 0
        %7747 = vmatpush1.bf16.msra.mxu0 0
        %7748 = vmatprep.subr.bf16.mxu0 0
        %7749 = vmatpush1.bf16.msra.mxu0 0
        %7750 = vmatprep.subr.bf16.mxu0 0
        %7751 = vmatpush1.bf16.msra.mxu0 0
        %7752 = vmatprep.subr.bf16.mxu0 0
        %7753 = vmatpush1.bf16.msra.mxu0 0
        %7754 = vmatprep.subr.bf16.mxu0 0
        %7755 = vmatpush1.bf16.msra.mxu0 0
        %7756 = vmatprep.mubr.bf16.mxu0 0
        %7757 = vmatmul.mubr.bf16.gmra.mrb[0].mxu0 %v592
        %v7758 = vpop.f32.mrb[0].mxu0
        %v7759 = vadd.f32 %v2216, %v7758
        %v7760 = vpop.f32.mrb[0].mxu0
        %v7761 = vadd.f32 %v2220, %v7760
        %v7762 = vpop.f32.mrb[0].mxu0
        %v7763 = vpop.f32.mrb[0].mxu0
        %7764 = vdwg.mxu0
        %7765 = vmatprep.subr.bf16.mxu0 %v4670
        %7766 = vmatpush1.bf16.msra.mxu0 %v4669
        %7767 = vmatprep.subr.bf16.mxu0 %v4766
        %7768 = vmatpush1.bf16.msra.mxu0 %v4765
        %7769 = vmatprep.subr.bf16.mxu0 %v4862
        %7770 = vmatpush1.bf16.msra.mxu0 %v4861
        %7771 = vmatprep.subr.bf16.mxu0 %v4958
        %7772 = vmatpush1.bf16.msra.mxu0 %v4957
        %7773 = vmatprep.subr.bf16.mxu0 %v5054
        %7774 = vmatpush1.bf16.msra.mxu0 %v5053
        %7775 = vmatprep.subr.bf16.mxu0 %v5150
        %7776 = vmatpush1.bf16.msra.mxu0 %v5149
        %7777 = vmatprep.subr.bf16.mxu0 %v5246
        %7778 = vmatpush1.bf16.msra.mxu0 %v5245
        %7779 = vmatprep.subr.bf16.mxu0 %v5342
        %7780 = vmatpush1.bf16.msra.mxu0 %v5341
        %7781 = vmatprep.subr.bf16.mxu0 0
        %7782 = vmatpush1.bf16.msra.mxu0 0
        %7783 = vmatprep.subr.bf16.mxu0 0
        %7784 = vmatpush1.bf16.msra.mxu0 0
        %7785 = vmatprep.subr.bf16.mxu0 0
        %7786 = vmatpush1.bf16.msra.mxu0 0
        %7787 = vmatprep.subr.bf16.mxu0 0
        %7788 = vmatpush1.bf16.msra.mxu0 0
        %7789 = vmatprep.subr.bf16.mxu0 0
        %7790 = vmatpush1.bf16.msra.mxu0 0
        %7791 = vmatprep.subr.bf16.mxu0 0
        %7792 = vmatpush1.bf16.msra.mxu0 0
        %7793 = vmatprep.subr.bf16.mxu0 0
        %7794 = vmatpush1.bf16.msra.mxu0 0
        %7795 = vmatprep.subr.bf16.mxu0 0
        %7796 = vmatpush1.bf16.msra.mxu0 0
        %7797 = vmatprep.mubr.bf16.mxu0 0
        %7798 = vmatmul.mubr.bf16.gmra.mrb[0].mxu0 %v592
        %v7799 = vpop.f32.mrb[0].mxu0
        %v7800 = vadd.f32 %v2224, %v7799
        %v7801 = vpop.f32.mrb[0].mxu0
        %v7802 = vadd.f32 %v2228, %v7801
        %v7803 = vpop.f32.mrb[0].mxu0
        %v7804 = vpop.f32.mrb[0].mxu0
        %7805 = vdwg.mxu0
        %7806 = vmatprep.subr.bf16.mxu0 %v4672
        %7807 = vmatpush1.bf16.msra.mxu0 %v4671
        %7808 = vmatprep.subr.bf16.mxu0 %v4768
        %7809 = vmatpush1.bf16.msra.mxu0 %v4767
        %7810 = vmatprep.subr.bf16.mxu0 %v4864
        %7811 = vmatpush1.bf16.msra.mxu0 %v4863
        %7812 = vmatprep.subr.bf16.mxu0 %v4960
        %7813 = vmatpush1.bf16.msra.mxu0 %v4959
        %7814 = vmatprep.subr.bf16.mxu0 %v5056
        %7815 = vmatpush1.bf16.msra.mxu0 %v5055
        %7816 = vmatprep.subr.bf16.mxu0 %v5152
        %7817 = vmatpush1.bf16.msra.mxu0 %v5151
        %7818 = vmatprep.subr.bf16.mxu0 %v5248
        %7819 = vmatpush1.bf16.msra.mxu0 %v5247
        %7820 = vmatprep.subr.bf16.mxu0 %v5344
        %7821 = vmatpush1.bf16.msra.mxu0 %v5343
        %7822 = vmatprep.subr.bf16.mxu0 0
        %7823 = vmatpush1.bf16.msra.mxu0 0
        %7824 = vmatprep.subr.bf16.mxu0 0
        %7825 = vmatpush1.bf16.msra.mxu0 0
        %7826 = vmatprep.subr.bf16.mxu0 0
        %7827 = vmatpush1.bf16.msra.mxu0 0
        %7828 = vmatprep.subr.bf16.mxu0 0
        %7829 = vmatpush1.bf16.msra.mxu0 0
        %7830 = vmatprep.subr.bf16.mxu0 0
        %7831 = vmatpush1.bf16.msra.mxu0 0
        %7832 = vmatprep.subr.bf16.mxu0 0
        %7833 = vmatpush1.bf16.msra.mxu0 0
        %7834 = vmatprep.subr.bf16.mxu0 0
        %7835 = vmatpush1.bf16.msra.mxu0 0
        %7836 = vmatprep.subr.bf16.mxu0 0
        %7837 = vmatpush1.bf16.msra.mxu0 0
        %7838 = vmatprep.mubr.bf16.mxu0 0
        %7839 = vmatmul.mubr.bf16.gmra.mrb[0].mxu0 %v592
        %v7840 = vpop.f32.mrb[0].mxu0
        %v7841 = vadd.f32 %v2232, %v7840
        %v7842 = vpop.f32.mrb[0].mxu0
        %v7843 = vadd.f32 %v2236, %v7842
        %v7844 = vpop.f32.mrb[0].mxu0
        %v7845 = vpop.f32.mrb[0].mxu0
        %7846 = vdwg.mxu0
        %7847 = vmatprep.subr.bf16.mxu0 %v4674
        %7848 = vmatpush1.bf16.msra.mxu0 %v4673
        %7849 = vmatprep.subr.bf16.mxu0 %v4770
        %7850 = vmatpush1.bf16.msra.mxu0 %v4769
        %7851 = vmatprep.subr.bf16.mxu0 %v4866
        %7852 = vmatpush1.bf16.msra.mxu0 %v4865
        %7853 = vmatprep.subr.bf16.mxu0 %v4962
        %7854 = vmatpush1.bf16.msra.mxu0 %v4961
        %7855 = vmatprep.subr.bf16.mxu0 %v5058
        %7856 = vmatpush1.bf16.msra.mxu0 %v5057
        %7857 = vmatprep.subr.bf16.mxu0 %v5154
        %7858 = vmatpush1.bf16.msra.mxu0 %v5153
        %7859 = vmatprep.subr.bf16.mxu0 %v5250
        %7860 = vmatpush1.bf16.msra.mxu0 %v5249
        %7861 = vmatprep.subr.bf16.mxu0 %v5346
        %7862 = vmatpush1.bf16.msra.mxu0 %v5345
        %7863 = vmatprep.subr.bf16.mxu0 0
        %7864 = vmatpush1.bf16.msra.mxu0 0
        %7865 = vmatprep.subr.bf16.mxu0 0
        %7866 = vmatpush1.bf16.msra.mxu0 0
        %7867 = vmatprep.subr.bf16.mxu0 0
        %7868 = vmatpush1.bf16.msra.mxu0 0
        %7869 = vmatprep.subr.bf16.mxu0 0
        %7870 = vmatpush1.bf16.msra.mxu0 0
        %7871 = vmatprep.subr.bf16.mxu0 0
        %7872 = vmatpush1.bf16.msra.mxu0 0
        %7873 = vmatprep.subr.bf16.mxu0 0
        %7874 = vmatpush1.bf16.msra.mxu0 0
        %7875 = vmatprep.subr.bf16.mxu0 0
        %7876 = vmatpush1.bf16.msra.mxu0 0
        %7877 = vmatprep.subr.bf16.mxu0 0
        %7878 = vmatpush1.bf16.msra.mxu0 0
        %7879 = vmatprep.mubr.bf16.mxu0 0
        %7880 = vmatmul.mubr.bf16.gmra.mrb[0].mxu0 %v592
        %v7881 = vpop.f32.mrb[0].mxu0
        %v7882 = vadd.f32 %v2240, %v7881
        %v7883 = vpop.f32.mrb[0].mxu0
        %v7884 = vadd.f32 %v2244, %v7883
        %v7885 = vpop.f32.mrb[0].mxu0
        %v7886 = vpop.f32.mrb[0].mxu0
        %7887 = vdwg.mxu0
        %7888 = vmatprep.subr.bf16.mxu0 %v4676
        %7889 = vmatpush1.bf16.msra.mxu0 %v4675
        %7890 = vmatprep.subr.bf16.mxu0 %v4772
        %7891 = vmatpush1.bf16.msra.mxu0 %v4771
        %7892 = vmatprep.subr.bf16.mxu0 %v4868
        %7893 = vmatpush1.bf16.msra.mxu0 %v4867
        %7894 = vmatprep.subr.bf16.mxu0 %v4964
        %7895 = vmatpush1.bf16.msra.mxu0 %v4963
        %7896 = vmatprep.subr.bf16.mxu0 %v5060
        %7897 = vmatpush1.bf16.msra.mxu0 %v5059
        %7898 = vmatprep.subr.bf16.mxu0 %v5156
        %7899 = vmatpush1.bf16.msra.mxu0 %v5155
        %7900 = vmatprep.subr.bf16.mxu0 %v5252
        %7901 = vmatpush1.bf16.msra.mxu0 %v5251
        %7902 = vmatprep.subr.bf16.mxu0 %v5348
        %7903 = vmatpush1.bf16.msra.mxu0 %v5347
        %7904 = vmatprep.subr.bf16.mxu0 0
        %7905 = vmatpush1.bf16.msra.mxu0 0
        %7906 = vmatprep.subr.bf16.mxu0 0
        %7907 = vmatpush1.bf16.msra.mxu0 0
        %7908 = vmatprep.subr.bf16.mxu0 0
        %7909 = vmatpush1.bf16.msra.mxu0 0
        %7910 = vmatprep.subr.bf16.mxu0 0
        %7911 = vmatpush1.bf16.msra.mxu0 0
        %7912 = vmatprep.subr.bf16.mxu0 0
        %7913 = vmatpush1.bf16.msra.mxu0 0
        %7914 = vmatprep.subr.bf16.mxu0 0
        %7915 = vmatpush1.bf16.msra.mxu0 0
        %7916 = vmatprep.subr.bf16.mxu0 0
        %7917 = vmatpush1.bf16.msra.mxu0 0
        %7918 = vmatprep.subr.bf16.mxu0 0
        %7919 = vmatpush1.bf16.msra.mxu0 0
        %7920 = vmatprep.mubr.bf16.mxu0 0
        %7921 = vmatmul.mubr.bf16.gmra.mrb[0].mxu0 %v592
        %v7922 = vpop.f32.mrb[0].mxu0
        %v7923 = vadd.f32 %v2248, %v7922
        %v7924 = vpop.f32.mrb[0].mxu0
        %v7925 = vadd.f32 %v2252, %v7924
        %v7926 = vpop.f32.mrb[0].mxu0
        %v7927 = vpop.f32.mrb[0].mxu0
        %7928 = vdwg.mxu0
        %7929 = vmatprep.subr.bf16.mxu0 %v4678
        %7930 = vmatpush1.bf16.msra.mxu0 %v4677
        %7931 = vmatprep.subr.bf16.mxu0 %v4774
        %7932 = vmatpush1.bf16.msra.mxu0 %v4773
        %7933 = vmatprep.subr.bf16.mxu0 %v4870
        %7934 = vmatpush1.bf16.msra.mxu0 %v4869
        %7935 = vmatprep.subr.bf16.mxu0 %v4966
        %7936 = vmatpush1.bf16.msra.mxu0 %v4965
        %7937 = vmatprep.subr.bf16.mxu0 %v5062
        %7938 = vmatpush1.bf16.msra.mxu0 %v5061
        %7939 = vmatprep.subr.bf16.mxu0 %v5158
        %7940 = vmatpush1.bf16.msra.mxu0 %v5157
        %7941 = vmatprep.subr.bf16.mxu0 %v5254
        %7942 = vmatpush1.bf16.msra.mxu0 %v5253
        %7943 = vmatprep.subr.bf16.mxu0 %v5350
        %7944 = vmatpush1.bf16.msra.mxu0 %v5349
        %7945 = vmatprep.subr.bf16.mxu0 0
        %7946 = vmatpush1.bf16.msra.mxu0 0
        %7947 = vmatprep.subr.bf16.mxu0 0
        %7948 = vmatpush1.bf16.msra.mxu0 0
        %7949 = vmatprep.subr.bf16.mxu0 0
        %7950 = vmatpush1.bf16.msra.mxu0 0
        %7951 = vmatprep.subr.bf16.mxu0 0
        %7952 = vmatpush1.bf16.msra.mxu0 0
        %7953 = vmatprep.subr.bf16.mxu0 0
        %7954 = vmatpush1.bf16.msra.mxu0 0
        %7955 = vmatprep.subr.bf16.mxu0 0
        %7956 = vmatpush1.bf16.msra.mxu0 0
        %7957 = vmatprep.subr.bf16.mxu0 0
        %7958 = vmatpush1.bf16.msra.mxu0 0
        %7959 = vmatprep.subr.bf16.mxu0 0
        %7960 = vmatpush1.bf16.msra.mxu0 0
        %7961 = vmatprep.mubr.bf16.mxu0 0
        %7962 = vmatmul.mubr.bf16.gmra.mrb[0].mxu0 %v592
        %v7963 = vpop.f32.mrb[0].mxu0
        %v7964 = vadd.f32 %v2256, %v7963
        %v7965 = vpop.f32.mrb[0].mxu0
        %v7966 = vadd.f32 %v2260, %v7965
        %v7967 = vpop.f32.mrb[0].mxu0
        %v7968 = vpop.f32.mrb[0].mxu0
        %7969 = vdwg.mxu0
        %7970 = vmatprep.subr.bf16.mxu0 %v4680
        %7971 = vmatpush1.bf16.msra.mxu0 %v4679
        %7972 = vmatprep.subr.bf16.mxu0 %v4776
        %7973 = vmatpush1.bf16.msra.mxu0 %v4775
        %7974 = vmatprep.subr.bf16.mxu0 %v4872
        %7975 = vmatpush1.bf16.msra.mxu0 %v4871
        %7976 = vmatprep.subr.bf16.mxu0 %v4968
        %7977 = vmatpush1.bf16.msra.mxu0 %v4967
        %7978 = vmatprep.subr.bf16.mxu0 %v5064
        %7979 = vmatpush1.bf16.msra.mxu0 %v5063
        %7980 = vmatprep.subr.bf16.mxu0 %v5160
        %7981 = vmatpush1.bf16.msra.mxu0 %v5159
        %7982 = vmatprep.subr.bf16.mxu0 %v5256
        %7983 = vmatpush1.bf16.msra.mxu0 %v5255
        %7984 = vmatprep.subr.bf16.mxu0 %v5352
        %7985 = vmatpush1.bf16.msra.mxu0 %v5351
        %7986 = vmatprep.subr.bf16.mxu0 0
        %7987 = vmatpush1.bf16.msra.mxu0 0
        %7988 = vmatprep.subr.bf16.mxu0 0
        %7989 = vmatpush1.bf16.msra.mxu0 0
        %7990 = vmatprep.subr.bf16.mxu0 0
        %7991 = vmatpush1.bf16.msra.mxu0 0
        %7992 = vmatprep.subr.bf16.mxu0 0
        %7993 = vmatpush1.bf16.msra.mxu0 0
        %7994 = vmatprep.subr.bf16.mxu0 0
        %7995 = vmatpush1.bf16.msra.mxu0 0
        %7996 = vmatprep.subr.bf16.mxu0 0
        %7997 = vmatpush1.bf16.msra.mxu0 0
        %7998 = vmatprep.subr.bf16.mxu0 0
        %7999 = vmatpush1.bf16.msra.mxu0 0
        %8000 = vmatprep.subr.bf16.mxu0 0
        %8001 = vmatpush1.bf16.msra.mxu0 0
        %8002 = vmatprep.mubr.bf16.mxu0 0
        %8003 = vmatmul.mubr.bf16.gmra.mrb[0].mxu0 %v592
        %v8004 = vpop.f32.mrb[0].mxu0
        %v8005 = vadd.f32 %v2264, %v8004
        %v8006 = vpop.f32.mrb[0].mxu0
        %v8007 = vadd.f32 %v2268, %v8006
        %v8008 = vpop.f32.mrb[0].mxu0
        %v8009 = vpop.f32.mrb[0].mxu0
        %8010 = vdwg.mxu0
        %8011 = vmatprep.subr.bf16.mxu0 %v4682
        %8012 = vmatpush1.bf16.msra.mxu0 %v4681
        %8013 = vmatprep.subr.bf16.mxu0 %v4778
        %8014 = vmatpush1.bf16.msra.mxu0 %v4777
        %8015 = vmatprep.subr.bf16.mxu0 %v4874
        %8016 = vmatpush1.bf16.msra.mxu0 %v4873
        %8017 = vmatprep.subr.bf16.mxu0 %v4970
        %8018 = vmatpush1.bf16.msra.mxu0 %v4969
        %8019 = vmatprep.subr.bf16.mxu0 %v5066
        %8020 = vmatpush1.bf16.msra.mxu0 %v5065
        %8021 = vmatprep.subr.bf16.mxu0 %v5162
        %8022 = vmatpush1.bf16.msra.mxu0 %v5161
        %8023 = vmatprep.subr.bf16.mxu0 %v5258
        %8024 = vmatpush1.bf16.msra.mxu0 %v5257
        %8025 = vmatprep.subr.bf16.mxu0 %v5354
        %8026 = vmatpush1.bf16.msra.mxu0 %v5353
        %8027 = vmatprep.subr.bf16.mxu0 0
        %8028 = vmatpush1.bf16.msra.mxu0 0
        %8029 = vmatprep.subr.bf16.mxu0 0
        %8030 = vmatpush1.bf16.msra.mxu0 0
        %8031 = vmatprep.subr.bf16.mxu0 0
        %8032 = vmatpush1.bf16.msra.mxu0 0
        %8033 = vmatprep.subr.bf16.mxu0 0
        %8034 = vmatpush1.bf16.msra.mxu0 0
        %8035 = vmatprep.subr.bf16.mxu0 0
        %8036 = vmatpush1.bf16.msra.mxu0 0
        %8037 = vmatprep.subr.bf16.mxu0 0
        %8038 = vmatpush1.bf16.msra.mxu0 0
        %8039 = vmatprep.subr.bf16.mxu0 0
        %8040 = vmatpush1.bf16.msra.mxu0 0
        %8041 = vmatprep.subr.bf16.mxu0 0
        %8042 = vmatpush1.bf16.msra.mxu0 0
        %8043 = vmatprep.mubr.bf16.mxu0 0
        %8044 = vmatmul.mubr.bf16.gmra.mrb[0].mxu0 %v592
        %v8045 = vpop.f32.mrb[0].mxu0
        %v8046 = vadd.f32 %v2272, %v8045
        %v8047 = vpop.f32.mrb[0].mxu0
        %v8048 = vadd.f32 %v2276, %v8047
        %v8049 = vpop.f32.mrb[0].mxu0
        %v8050 = vpop.f32.mrb[0].mxu0
        %8051 = vdwg.mxu0
        %8052 = vmatprep.subr.bf16.mxu0 %v4684
        %8053 = vmatpush1.bf16.msra.mxu0 %v4683
        %8054 = vmatprep.subr.bf16.mxu0 %v4780
        %8055 = vmatpush1.bf16.msra.mxu0 %v4779
        %8056 = vmatprep.subr.bf16.mxu0 %v4876
        %8057 = vmatpush1.bf16.msra.mxu0 %v4875
        %8058 = vmatprep.subr.bf16.mxu0 %v4972
        %8059 = vmatpush1.bf16.msra.mxu0 %v4971
        %8060 = vmatprep.subr.bf16.mxu0 %v5068
        %8061 = vmatpush1.bf16.msra.mxu0 %v5067
        %8062 = vmatprep.subr.bf16.mxu0 %v5164
        %8063 = vmatpush1.bf16.msra.mxu0 %v5163
        %8064 = vmatprep.subr.bf16.mxu0 %v5260
        %8065 = vmatpush1.bf16.msra.mxu0 %v5259
        %8066 = vmatprep.subr.bf16.mxu0 %v5356
        %8067 = vmatpush1.bf16.msra.mxu0 %v5355
        %8068 = vmatprep.subr.bf16.mxu0 0
        %8069 = vmatpush1.bf16.msra.mxu0 0
        %8070 = vmatprep.subr.bf16.mxu0 0
        %8071 = vmatpush1.bf16.msra.mxu0 0
        %8072 = vmatprep.subr.bf16.mxu0 0
        %8073 = vmatpush1.bf16.msra.mxu0 0
        %8074 = vmatprep.subr.bf16.mxu0 0
        %8075 = vmatpush1.bf16.msra.mxu0 0
        %8076 = vmatprep.subr.bf16.mxu0 0
        %8077 = vmatpush1.bf16.msra.mxu0 0
        %8078 = vmatprep.subr.bf16.mxu0 0
        %8079 = vmatpush1.bf16.msra.mxu0 0
        %8080 = vmatprep.subr.bf16.mxu0 0
        %8081 = vmatpush1.bf16.msra.mxu0 0
        %8082 = vmatprep.subr.bf16.mxu0 0
        %8083 = vmatpush1.bf16.msra.mxu0 0
        %8084 = vmatprep.mubr.bf16.mxu0 0
        %8085 = vmatmul.mubr.bf16.gmra.mrb[0].mxu0 %v592
        %v8086 = vpop.f32.mrb[0].mxu0
        %v8087 = vadd.f32 %v2280, %v8086
        %v8088 = vpop.f32.mrb[0].mxu0
        %v8089 = vadd.f32 %v2284, %v8088
        %v8090 = vpop.f32.mrb[0].mxu0
        %v8091 = vpop.f32.mrb[0].mxu0
        %8092 = vdwg.mxu0
        %8093 = vst [vmem:[%s398] sm:$0xff] %v6160
        %8094 = vst [vmem:[%s398 + $0x8] sm:$0xff] %v6162
        %8095 = vst [vmem:[%s398 + $0x10] sm:$0xff] %v6201
        %8096 = vst [vmem:[%s398 + $0x18] sm:$0xff] %v6203
        %8097 = vst [vmem:[%s398 + $0x20] sm:$0xff] %v6242
        %8098 = vst [vmem:[%s398 + $0x28] sm:$0xff] %v6244
        %8099 = vst [vmem:[%s398 + $0x30] sm:$0xff] %v6283
        %8100 = vst [vmem:[%s398 + $0x38] sm:$0xff] %v6285
        %8101 = vst [vmem:[%s398 + $0x40] sm:$0xff] %v6324
        %8102 = vst [vmem:[%s398 + $0x48] sm:$0xff] %v6326
        %8103 = vst [vmem:[%s398 + $0x50] sm:$0xff] %v6365
        %8104 = vst [vmem:[%s398 + $0x58] sm:$0xff] %v6367
        %8105 = vst [vmem:[%s398 + $0x60] sm:$0xff] %v6406
        %8106 = vst [vmem:[%s398 + $0x68] sm:$0xff] %v6408
        %8107 = vst [vmem:[%s398 + $0x70] sm:$0xff] %v6447
        %8108 = vst [vmem:[%s398 + $0x78] sm:$0xff] %v6449
        %8109 = vst [vmem:[%s398 + $0x80] sm:$0xff] %v6488
        %8110 = vst [vmem:[%s398 + $0x88] sm:$0xff] %v6490
        %8111 = vst [vmem:[%s398 + $0x90] sm:$0xff] %v6529
        %8112 = vst [vmem:[%s398 + $0x98] sm:$0xff] %v6531
        %8113 = vst [vmem:[%s398 + $0xa0] sm:$0xff] %v6570
        %8114 = vst [vmem:[%s398 + $0xa8] sm:$0xff] %v6572
        %8115 = vst [vmem:[%s398 + $0xb0] sm:$0xff] %v6611
        %8116 = vst [vmem:[%s398 + $0xb8] sm:$0xff] %v6613
        %8117 = vst [vmem:[%s398 + $0xc0] sm:$0xff] %v6652
        %8118 = vst [vmem:[%s398 + $0xc8] sm:$0xff] %v6654
        %8119 = vst [vmem:[%s398 + $0xd0] sm:$0xff] %v6693
        %8120 = vst [vmem:[%s398 + $0xd8] sm:$0xff] %v6695
        %8121 = vst [vmem:[%s398 + $0xe0] sm:$0xff] %v6734
        %8122 = vst [vmem:[%s398 + $0xe8] sm:$0xff] %v6736
        %8123 = vst [vmem:[%s398 + $0xf0] sm:$0xff] %v6775
        %8124 = vst [vmem:[%s398 + $0xf8] sm:$0xff] %v6777
        %8125 = vst [vmem:[%s398 + $0x100] sm:$0xff] %v6816
        %8126 = vst [vmem:[%s398 + $0x108] sm:$0xff] %v6818
        %8127 = vst [vmem:[%s398 + $0x110] sm:$0xff] %v6857
        %8128 = vst [vmem:[%s398 + $0x118] sm:$0xff] %v6859
        %8129 = vst [vmem:[%s398 + $0x120] sm:$0xff] %v6898
        %8130 = vst [vmem:[%s398 + $0x128] sm:$0xff] %v6900
        %8131 = vst [vmem:[%s398 + $0x130] sm:$0xff] %v6939
        %8132 = vst [vmem:[%s398 + $0x138] sm:$0xff] %v6941
        %8133 = vst [vmem:[%s398 + $0x140] sm:$0xff] %v6980
        %8134 = vst [vmem:[%s398 + $0x148] sm:$0xff] %v6982
        %8135 = vst [vmem:[%s398 + $0x150] sm:$0xff] %v7021
        %8136 = vst [vmem:[%s398 + $0x158] sm:$0xff] %v7023
        %8137 = vst [vmem:[%s398 + $0x160] sm:$0xff] %v7062
        %8138 = vst [vmem:[%s398 + $0x168] sm:$0xff] %v7064
        %8139 = vst [vmem:[%s398 + $0x170] sm:$0xff] %v7103
        %8140 = vst [vmem:[%s398 + $0x178] sm:$0xff] %v7105
        %8141 = vst [vmem:[%s398 + $0x180] sm:$0xff] %v7144
        %8142 = vst [vmem:[%s398 + $0x188] sm:$0xff] %v7146
        %8143 = vst [vmem:[%s398 + $0x190] sm:$0xff] %v7185
        %8144 = vst [vmem:[%s398 + $0x198] sm:$0xff] %v7187
        %8145 = vst [vmem:[%s398 + $0x1a0] sm:$0xff] %v7226
        %8146 = vst [vmem:[%s398 + $0x1a8] sm:$0xff] %v7228
        %8147 = vst [vmem:[%s398 + $0x1b0] sm:$0xff] %v7267
        %8148 = vst [vmem:[%s398 + $0x1b8] sm:$0xff] %v7269
        %8149 = vst [vmem:[%s398 + $0x1c0] sm:$0xff] %v7308
        %8150 = vst [vmem:[%s398 + $0x1c8] sm:$0xff] %v7310
        %8151 = vst [vmem:[%s398 + $0x1d0] sm:$0xff] %v7349
        %8152 = vst [vmem:[%s398 + $0x1d8] sm:$0xff] %v7351
        %8153 = vst [vmem:[%s398 + $0x1e0] sm:$0xff] %v7390
        %8154 = vst [vmem:[%s398 + $0x1e8] sm:$0xff] %v7392
        %8155 = vst [vmem:[%s398 + $0x1f0] sm:$0xff] %v7431
        %8156 = vst [vmem:[%s398 + $0x1f8] sm:$0xff] %v7433
        %8157 = vst [vmem:[%s398 + $0x200] sm:$0xff] %v7472
        %8158 = vst [vmem:[%s398 + $0x208] sm:$0xff] %v7474
        %8159 = vst [vmem:[%s398 + $0x210] sm:$0xff] %v7513
        %8160 = vst [vmem:[%s398 + $0x218] sm:$0xff] %v7515
        %8161 = vst [vmem:[%s398 + $0x220] sm:$0xff] %v7554
        %8162 = vst [vmem:[%s398 + $0x228] sm:$0xff] %v7556
        %8163 = vst [vmem:[%s398 + $0x230] sm:$0xff] %v7595
        %8164 = vst [vmem:[%s398 + $0x238] sm:$0xff] %v7597
        %8165 = vst [vmem:[%s398 + $0x240] sm:$0xff] %v7636
        %8166 = vst [vmem:[%s398 + $0x248] sm:$0xff] %v7638
        %8167 = vst [vmem:[%s398 + $0x250] sm:$0xff] %v7677
        %8168 = vst [vmem:[%s398 + $0x258] sm:$0xff] %v7679
        %8169 = vst [vmem:[%s398 + $0x260] sm:$0xff] %v7718
        %8170 = vst [vmem:[%s398 + $0x268] sm:$0xff] %v7720
        %8171 = vst [vmem:[%s398 + $0x270] sm:$0xff] %v7759
        %8172 = vst [vmem:[%s398 + $0x278] sm:$0xff] %v7761
        %8173 = vst [vmem:[%s398 + $0x280] sm:$0xff] %v7800
        %8174 = vst [vmem:[%s398 + $0x288] sm:$0xff] %v7802
        %8175 = vst [vmem:[%s398 + $0x290] sm:$0xff] %v7841
        %8176 = vst [vmem:[%s398 + $0x298] sm:$0xff] %v7843
        %8177 = vst [vmem:[%s398 + $0x2a0] sm:$0xff] %v7882
        %8178 = vst [vmem:[%s398 + $0x2a8] sm:$0xff] %v7884
        %8179 = vst [vmem:[%s398 + $0x2b0] sm:$0xff] %v7923
        %8180 = vst [vmem:[%s398 + $0x2b8] sm:$0xff] %v7925
        %8181 = vst [vmem:[%s398 + $0x2c0] sm:$0xff] %v7964
        %8182 = vst [vmem:[%s398 + $0x2c8] sm:$0xff] %v7966
        %8183 = vst [vmem:[%s398 + $0x2d0] sm:$0xff] %v8005
        %8184 = vst [vmem:[%s398 + $0x2d8] sm:$0xff] %v8007
        %8185 = vst [vmem:[%s398 + $0x2e0] sm:$0xff] %v8046
        %8186 = vst [vmem:[%s398 + $0x2e8] sm:$0xff] %v8048
        %8187 = vst [vmem:[%s398 + $0x2f0] sm:$0xff] %v8087
        %8188 = vst [vmem:[%s398 + $0x2f8] sm:$0xff] %v8089
        %s8189 = sand.u32 %s192, 1
        %s8190 = scalar_lea.sflag [#allocation4], %s8189
        %s8191 = sand.u32 %s192, 1
        %s8192 = smul.addr %s8191, 768
        %s8193 = scalar_lea.vmem [#allocation14], %s8192
        // Predicated region
        $region77: #{tpu_custom_call.1} parent=47 // pred_check
          %p8194 = pneg %p202
        $region78: #{tpu_custom_call.1} parent=47 // pred_check_branch
          %8196 = sbr.rel (%p8194) target = $region80
        $region79: #{tpu_custom_call.1} parent=47 // pred_region
          %s8197 = smul.u32 96, %s27
          %s8198 = ssub.s32 183, %s8197
          %p8199 = scmp.lt.s32.totalorder %s8198, 96
          %s8200 = scalar_select %p8199, %s8198, 96
          %s8201 = smul.u32 128, %s8200
          %s8203 = ssub.s32 12288, %s8201
          %8204 = vsyncadd %s8190, %s8203
          %p8205 = scmp.ne.s32.totalorder 0, %s8201
          %s8206 = smul.addr %s8197, 128
          %s8207 = scalar_lea.hbm %s7, %s8206
          %s8208 = smul.u32 %s8200, 8
          %s8209 = sshll.u32 %s8208, 4
          %s8210 = sshll.u32 %s8193, 4
          %s8211 = int_to_ptr.vmem [resolvable:$true] %s8210
          %8213 = dma.vmem_to_hbm [thread:$0]  (%p8205), %s8211, %s8209, %s8207, %s8190
        $region80: #{tpu_custom_call.1} parent=47 // pred_fallthru
          _
      $region48: #{tpu_custom_call.1} parent=5 // pred_fallthru
        _
      %p8214 = scmp.le.s32.totalorder 2, %s22
      // Predicated region
      $region81: #{tpu_custom_call.1} parent=5 // pred_check
        %p8215 = pneg %p8214
      $region82: #{tpu_custom_call.1} parent=5 // pred_check_branch
        %8217 = sbr.rel (%p8215) target = $region84
      $region83: #{tpu_custom_call.1} parent=5 // pred_region
        %s8218 = ssub.s32 %s22, 2
        // Predicated region
        $region85: #{tpu_custom_call.1} parent=83 // pred_check
          %p8219 = pneg %p208
        $region86: #{tpu_custom_call.1} parent=83 // pred_check_branch
          %8221 = sbr.rel (%p8219) target = $region88
        $region87: #{tpu_custom_call.1} parent=83 // pred_region
          %s8222 = sand.u32 %s193, 1
          %s8223 = scalar_lea.sflag [#allocation4], %s8222
          %s8224 = sand.u32 %s193, 1
          %s8225 = smul.addr %s8224, 768
          %s8226 = scalar_lea.vmem [#allocation14], %s8225
          %8227 = dma.done %s8223, 12288
        $region88: #{tpu_custom_call.1} parent=83 // pred_fallthru
          _
      $region84: #{tpu_custom_call.1} parent=5 // pred_fallthru
        _
    $region6: #{tpu_custom_call.1} parent=1 // loop_footer
      %s26 = sadd.s32 1, %s22
    $region7: #{tpu_custom_call.1} parent=1 // loop_footer_branch
      %21 = sbr.rel target = $region3
    $region8: #{tpu_custom_call.1} parent=1 // loop_exit
      _
    %8228 = vsyncpa [#allocation3], 1
    %s8229 = scalar_lea.sflag [#allocation3], 1
    %8230 = vsyncpa %s8229, 1
    %8231 = vsyncpa [#allocation6], 1
    %8232 = vsyncpa [#allocation9], 1
    %8233 = vsyncpa [#allocation12], 1
    %s8234 = scalar_lea.sflag [#allocation12], 1
    %8235 = vsyncpa %s8234, 1
    %8236 = vsyncpa [#allocation4], 1
    %s8237 = scalar_lea.sflag [#allocation4], 1
    %8238 = vsyncpa %s8237, 1

</llo_original>
